<compile_context>
chip_gen: v7x
topology: tpu7x:2x2x1
jax: 0.10.0
libtpu: 0.0.40
codegen_flags: <defaults>
</compile_context>

<pallas_src>
import functools

import numpy as np

import jax
import jax.numpy as jnp
from jax import lax
from jax.experimental import pallas as pl
from jax.experimental.pallas import tpu as pltpu


# ----------------------------------------------------------------------------
# Activation (same formula used in-kernel and in the pure-JAX reference)
# ----------------------------------------------------------------------------
def _gelu(x):
    c = 0.7978845608028654  # sqrt(2/pi)
    return 0.5 * x * (1.0 + jnp.tanh(c * (x + 0.044715 * x * x * x)))


# ----------------------------------------------------------------------------
# Fused generator kernel (one program = one batch element)
# ----------------------------------------------------------------------------
def _generator_kernel(lat_ref, w1_ref, b1_ref, w2_ref, b2_ref,
                      r0_ref, m16_ref, up_ref,
                      wu1_ref, bu1_ref, wc1_ref, bc1_ref,
                      wu2_ref, bu2_ref, wo_ref, bo_ref,
                      out_ref,
                      a1_s, t1_s, t2_s, t3_s,
                      *, n1, wp1, n2, wp2):
    f32 = jnp.float32

    def conv3x3(a, t_ref, w_ref, b_ref, cin, wp, npad):
        """'same' 3x3 conv on a zero-ring padded flat activation a: (cin, npad).

        Builds the 9 shifted taps into t_ref (9*cin, npad) so the conv is one
        MXU matmul with K = 9*cin.  Lanes a shift cannot reach are zeroed; they
        only feed pad-ring output columns which are discarded downstream.
        """
        for dy in range(3):
            for dx in range(3):
                t = dy * 3 + dx
                s = (dy - 1) * wp + (dx - 1)
                r0, r1 = t * cin, (t + 1) * cin
                if s > 0:
                    t_ref[r0:r1, 0:npad - s] = a[:, s:npad]
                    t_ref[r0:r1, npad - s:npad] = jnp.zeros((cin, s), f32)
                elif s < 0:
                    t_ref[r0:r1, -s:npad] = a[:, 0:npad + s]
                    t_ref[r0:r1, 0:-s] = jnp.zeros((cin, -s), f32)
                else:
                    t_ref[r0:r1, :] = a
        acc = jnp.dot(w_ref[...], t_ref[...], preferred_element_type=f32)
        return acc + b_ref[...]

    # ---- noise embedding MLP:  Linear -> GELU -> Linear -> GELU ----
    x = lat_ref[0]                                                           # (1, Z)
    h = _gelu(jnp.dot(x, w1_ref[...], preferred_element_type=f32) + b1_ref[...])   # (1, 256)
    e = _gelu(jnp.dot(h, w2_ref[...], preferred_element_type=f32) + b2_ref[...])   # (1, 128)

    # ---- rearrange 'b (ch h w) -> b ch h w' (ch=2,h=8,w=8) + nearest 2x upsample
    #      + zero pad to 18x18, folded into the constant 0/1 matrix r0 (64, 324) ----
    a1_s[0:1, :] = jnp.dot(e[:, 0:64], r0_ref[...], preferred_element_type=f32)
    a1_s[1:2, :] = jnp.dot(e[:, 64:128], r0_ref[...], preferred_element_type=f32)
    a1 = a1_s[...]                                                           # (2, n1)

    # ---- upBlock2d(2, 8): conv3x3 + GELU at 16x16 ----
    a2 = _gelu(conv3x3(a1, t1_s, wu1_ref, bu1_ref, 2, wp1, n1))              # (8, n1)
    a2 = a2 * m16_ref[...]            # re-zero the pad ring for the next conv

    # ---- geluConv2d(8, 16): conv3x3 + GELU at 16x16 ----
    a3 = _gelu(conv3x3(a2, t2_s, wc1_ref, bc1_ref, 8, wp1, n1))              # (16, n1)
    # (pad-ring garbage of a3 is annihilated by the all-zero rows of `up`)

    # ---- nearest 2x upsample 16x16 -> 32x32 (re-padded), as one constant matmul ----
    a4 = jnp.dot(a3, up_ref[...], preferred_element_type=f32)                # (16, n2)

    # ---- upBlock2d(16, 32): conv3x3 + GELU at 32x32 ----
    a5 = _gelu(conv3x3(a4, t3_s, wu2_ref, bu2_ref, 16, wp2, n2))             # (32, n2)

    # ---- final 1x1 conv: (IMG_CH, n2), lane-dense store ----
    y = jnp.dot(wo_ref[...], a5, preferred_element_type=f32) + bo_ref[...]
    out_ref[0] = y.astype(out_ref.dtype)


# ----------------------------------------------------------------------------
# Wrapper
# ----------------------------------------------------------------------------
def generator_forward(latents, kp):
    B = latents.shape[0]
    Z = kp["w1"].shape[0]
    img_ch = kp["wo"].shape[0]
    wp1, n1 = 18, 18 * 18        # padded 16x16
    wp2, n2 = 34, 34 * 34        # padded 32x32

    lat = latents.reshape(B, 1, Z)

    ordered = [kp[k] for k in ("w1", "b1", "w2", "b2", "r0", "m16", "up",
                               "wu1", "bu1", "wc1", "bc1", "wu2", "bu2", "wo", "bo")]

    def fixed(a):
        nd = a.ndim
        return pl.BlockSpec(a.shape, lambda *_: (0,) * nd)

    kernel = functools.partial(_generator_kernel, n1=n1, wp1=wp1, n2=n2, wp2=wp2)

    out = pl.pallas_call(
        kernel,
        out_shape=jax.ShapeDtypeStruct((B, img_ch, n2), jnp.float32),
        grid=(B,),
        in_specs=[pl.BlockSpec((1, 1, Z), lambda b: (b, 0, 0))] + [fixed(a) for a in ordered],
        out_specs=pl.BlockSpec((1, img_ch, n2), lambda b: (b, 0, 0)),
        scratch_shapes=[
            pltpu.VMEM((2, n1), jnp.float32),       # rearranged+upsampled embedding
            pltpu.VMEM((9 * 2, n1), jnp.float32),   # taps for conv(2 -> 8)
            pltpu.VMEM((9 * 8, n1), jnp.float32),   # taps for conv(8 -> 16)
            pltpu.VMEM((9 * 16, n2), jnp.float32),  # taps for conv(16 -> 32)
        ],
        compiler_params=pltpu.CompilerParams(dimension_semantics=("parallel",)),
    )(lat, *ordered)

    # un-pad: (B, C, 34*34) -> (B, C, 34, 34) -> interior 32x32 (already NCHW, no transpose)
    return out.reshape(B, img_ch, 34, 34)[:, :, 1:33, 1:33]


# ----------------------------------------------------------------------------
# Constant-matrix builders (weight/data prep, outside the kernel)
# ----------------------------------------------------------------------------
def _upsample_pad_matrix(src_h, src_w, src_padded):
    """0/1 matrix: (padded?) src flat -> nearest-2x upsampled, zero-padded dst flat."""
    dst_h, dst_w = 2 * src_h, 2 * src_w
    s_h = src_h + 2 if src_padded else src_h
    s_w = src_w + 2 if src_padded else src_w
    d_h, d_w = dst_h + 2, dst_w + 2
    m = np.zeros((s_h * s_w, d_h * d_w), np.float32)
    for yy in range(dst_h):
        for xx in range(dst_w):
            sy, sx = yy // 2, xx // 2
            src = (sy + 1) * s_w + (sx + 1) if src_padded else sy * s_w + sx
            m[src, (yy + 1) * d_w + (xx + 1)] = 1.0
    return jnp.asarray(m)


def _interior_mask(h, w):
    m = np.zeros((1, (h + 2) * (w + 2)), np.float32)
    for yy in range(h):
        for xx in range(w):
            m[0, (yy + 1) * (w + 2) + (xx + 1)] = 1.0
    return jnp.asarray(m)


def _flatten_conv_w(w):
    # (Cout, Cin, 3, 3) -> (Cout, 9*Cin), column index = (dy*3 + dx)*Cin + cin
    co, ci = w.shape[0], w.shape[1]
    return jnp.transpose(w, (0, 2, 3, 1)).reshape(co, 9 * ci)


def prepare_kernel_params(p):
    return {
        "w1": p["lin1_w"].T, "b1": p["lin1_b"].reshape(1, -1),
        "w2": p["lin2_w"].T, "b2": p["lin2_b"].reshape(1, -1),
        "r0": _upsample_pad_matrix(8, 8, src_padded=False),     # (64, 324)
        "m16": _interior_mask(16, 16),                          # (1, 324)
        "up": _upsample_pad_matrix(16, 16, src_padded=True),    # (324, 1156)
        "wu1": _flatten_conv_w(p["up1_w"]), "bu1": p["up1_b"].reshape(-1, 1),
        "wc1": _flatten_conv_w(p["c1_w"]),  "bc1": p["c1_b"].reshape(-1, 1),
        "wu2": _flatten_conv_w(p["up2_w"]), "bu2": p["up2_b"].reshape(-1, 1),
        "wo": p["out_w"].reshape(p["out_w"].shape[0], -1),
        "bo": p["out_b"].reshape(-1, 1),
    }


# ----------------------------------------------------------------------------
# PyTorch-layout parameters + pure-JAX reference (for self-check)
# ----------------------------------------------------------------------------
def make_torch_style_params(key, noise_len, img_ch):
    ks = jax.random.split(key, 12)
    n = lambda k, shape, s=0.05: (s * jax.random.normal(k, shape)).astype(jnp.float32)
    return {
        "lin1_w": n(ks[0], (256, noise_len)), "lin1_b": n(ks[1], (256,)),
        "lin2_w": n(ks[2], (128, 256)),       "lin2_b": n(ks[3], (128,)),
        "up1_w": n(ks[4], (8, 2, 3, 3)),      "up1_b": n(ks[5], (8,)),
        "c1_w":  n(ks[6], (16, 8, 3, 3)),     "c1_b":  n(ks[7], (16,)),
        "up2_w": n(ks[8], (32, 16, 3, 3)),    "up2_b": n(ks[9], (32,)),
        "out_w": n(ks[10], (img_ch, 32, 1, 1)), "out_b": n(ks[11], (img_ch,)),
    }


def reference_forward(latents, p):
    B = latents.shape[0]
    x = latents.reshape(B, -1)
    h = _gelu(x @ p["lin1_w"].T + p["lin1_b"])
    e = _gelu(h @ p["lin2_w"].T + p["lin2_b"])
    img = e.reshape(B, 2, 8, 8)

    def conv(z, w, b):
        y = lax.conv_general_dilated(z, w, (1, 1), "SAME",
                                     dimension_numbers=("NCHW", "OIHW", "NCHW"))
        return y + b.reshape(1, -1, 1, 1)

    def up2x(z):
        return jnp.repeat(jnp.repeat(z, 2, axis=2), 2, axis=3)

    img = _gelu(conv(up2x(img), p["up1_w"], p["up1_b"]))
    img = _gelu(conv(img, p["c1_w"], p["c1_b"]))
    img = _gelu(conv(up2x(img), p["up2_w"], p["up2_b"]))
    return conv(img, p["out_w"], p["out_b"])


if __name__ == "__main__":
    config = {"noise_vector_len": 32, "image_size": (32, 32), "image_ch": 3}
    B = 2

    key = jax.random.PRNGKey(0)
    k_lat, k_par = jax.random.split(key)
    latents = jax.random.normal(
        k_lat, (B, config["noise_vector_len"], 1, 1), dtype=jnp.float32
    )
    tparams = make_torch_style_params(k_par, config["noise_vector_len"], config["image_ch"])
    kparams = prepare_kernel_params(tparams)

    fwd = jax.jit(generator_forward)
    out = fwd(latents, kparams)
    jax.block_until_ready(out)

    assert out.shape == (B, config["image_ch"], 32, 32), out.shape
    assert out.dtype == jnp.float32

    ref = jax.jit(reference_forward)(latents, tparams)
    jax.block_until_ready(ref)
    np.testing.assert_allclose(np.asarray(out), np.asarray(ref), rtol=5e-2, atol=5e-3)

    print("KERNEL_OK")
</pallas_src>

<mosaic_0001>
module attributes {stable_mosaic.version = 11 : i64} {
  func.func @_generator_kernel(%arg0: i32, %arg1: memref<1x1x32xf32, #tpu.memory_space<vmem>>, %arg2: memref<32x256xf32, #tpu.memory_space<vmem>>, %arg3: memref<1x256xf32, #tpu.memory_space<vmem>>, %arg4: memref<256x128xf32, #tpu.memory_space<vmem>>, %arg5: memref<1x128xf32, #tpu.memory_space<vmem>>, %arg6: memref<64x324xf32, #tpu.memory_space<vmem>>, %arg7: memref<1x324xf32, #tpu.memory_space<vmem>>, %arg8: memref<324x1156xf32, #tpu.memory_space<vmem>>, %arg9: memref<8x18xf32, #tpu.memory_space<vmem>>, %arg10: memref<8x1xf32, #tpu.memory_space<vmem>>, %arg11: memref<16x72xf32, #tpu.memory_space<vmem>>, %arg12: memref<16x1xf32, #tpu.memory_space<vmem>>, %arg13: memref<32x144xf32, #tpu.memory_space<vmem>>, %arg14: memref<32x1xf32, #tpu.memory_space<vmem>>, %arg15: memref<3x32xf32, #tpu.memory_space<vmem>>, %arg16: memref<3x1xf32, #tpu.memory_space<vmem>>, %arg17: memref<1x3x1156xf32, #tpu.memory_space<vmem>>, %arg18: memref<2x324xf32, #tpu.memory_space<vmem>>, %arg19: memref<18x324xf32, #tpu.memory_space<vmem>>, %arg20: memref<72x324xf32, #tpu.memory_space<vmem>>, %arg21: memref<144x1156xf32, #tpu.memory_space<vmem>>) attributes {dimension_semantics = [#tpu.dimension_semantics<parallel>], iteration_bounds = array<i64: 2>, scalar_prefetch = 0 : i64, scratch_operands = 4 : i64, tpu.core_type = #tpu.core_type<tc>, window_params = [{transform_indices = @transform_0, window_bounds = array<i64: 1, 1, 32>}, {pipeline_mode = #tpu.pipeline_mode<synchronous>, transform_indices = @transform_1, window_bounds = array<i64: 32, 256>}, {pipeline_mode = #tpu.pipeline_mode<synchronous>, transform_indices = @transform_2, window_bounds = array<i64: 1, 256>}, {pipeline_mode = #tpu.pipeline_mode<synchronous>, transform_indices = @transform_3, window_bounds = array<i64: 256, 128>}, {pipeline_mode = #tpu.pipeline_mode<synchronous>, transform_indices = @transform_4, window_bounds = array<i64: 1, 128>}, {pipeline_mode = #tpu.pipeline_mode<synchronous>, transform_indices = @transform_5, window_bounds = array<i64: 64, 324>}, {pipeline_mode = #tpu.pipeline_mode<synchronous>, transform_indices = @transform_6, window_bounds = array<i64: 1, 324>}, {pipeline_mode = #tpu.pipeline_mode<synchronous>, transform_indices = @transform_7, window_bounds = array<i64: 324, 1156>}, {pipeline_mode = #tpu.pipeline_mode<synchronous>, transform_indices = @transform_8, window_bounds = array<i64: 8, 18>}, {pipeline_mode = #tpu.pipeline_mode<synchronous>, transform_indices = @transform_9, window_bounds = array<i64: 8, 1>}, {pipeline_mode = #tpu.pipeline_mode<synchronous>, transform_indices = @transform_10, window_bounds = array<i64: 16, 72>}, {pipeline_mode = #tpu.pipeline_mode<synchronous>, transform_indices = @transform_11, window_bounds = array<i64: 16, 1>}, {pipeline_mode = #tpu.pipeline_mode<synchronous>, transform_indices = @transform_12, window_bounds = array<i64: 32, 144>}, {pipeline_mode = #tpu.pipeline_mode<synchronous>, transform_indices = @transform_13, window_bounds = array<i64: 32, 1>}, {pipeline_mode = #tpu.pipeline_mode<synchronous>, transform_indices = @transform_14, window_bounds = array<i64: 3, 32>}, {pipeline_mode = #tpu.pipeline_mode<synchronous>, transform_indices = @transform_15, window_bounds = array<i64: 3, 1>}, {transform_indices = @transform_16, window_bounds = array<i64: 1, 3, 1156>}]} {
    %c0 = arith.constant 0 : index
    %c0_0 = arith.constant 0 : index
    %c0_1 = arith.constant 0 : index
    %0 = vector.load %arg1[%c0, %c0_0, %c0_1] : memref<1x1x32xf32, #tpu.memory_space<vmem>>, vector<1x1x32xf32>
    %1 = vector.shape_cast %0 : vector<1x1x32xf32> to vector<1x32xf32>
    %c0_2 = arith.constant 0 : index
    %c0_3 = arith.constant 0 : index
    %2 = vector.load %arg2[%c0_2, %c0_3] : memref<32x256xf32, #tpu.memory_space<vmem>>, vector<32x256xf32>
    %cst = arith.constant dense<0.000000e+00> : vector<1x256xf32>
    %3 = tpu.matmul %1, %2, %cst {dimension_numbers = #tpu.dot_dimension_numbers<[1], [0], [0], [1], [0, 0, 1, 1], [], []>} : vector<1x32xf32>, vector<32x256xf32>, vector<1x256xf32> -> vector<1x256xf32>
    %c0_4 = arith.constant 0 : index
    %c0_5 = arith.constant 0 : index
    %4 = vector.load %arg3[%c0_4, %c0_5] : memref<1x256xf32, #tpu.memory_space<vmem>>, vector<1x256xf32>
    %5 = arith.addf %3, %4 : vector<1x256xf32>
    %cst_6 = arith.constant 5.000000e-01 : f32
    %6 = vector.broadcast %cst_6 : f32 to vector<1x256xf32>
    %7 = arith.mulf %6, %5 : vector<1x256xf32>
    %cst_7 = arith.constant 4.471500e-02 : f32
    %8 = vector.broadcast %cst_7 : f32 to vector<1x256xf32>
    %9 = arith.mulf %8, %5 : vector<1x256xf32>
    %10 = arith.mulf %9, %5 : vector<1x256xf32>
    %11 = arith.mulf %10, %5 : vector<1x256xf32>
    %12 = arith.addf %5, %11 : vector<1x256xf32>
    %cst_8 = arith.constant 0.797884583 : f32
    %13 = vector.broadcast %cst_8 : f32 to vector<1x256xf32>
    %14 = arith.mulf %13, %12 : vector<1x256xf32>
    %15 = math.tanh %14 : vector<1x256xf32>
    %cst_9 = arith.constant 1.000000e+00 : f32
    %16 = vector.broadcast %cst_9 : f32 to vector<1x256xf32>
    %17 = arith.addf %16, %15 : vector<1x256xf32>
    %18 = arith.mulf %7, %17 : vector<1x256xf32>
    %c0_10 = arith.constant 0 : index
    %c0_11 = arith.constant 0 : index
    %19 = vector.load %arg4[%c0_10, %c0_11] : memref<256x128xf32, #tpu.memory_space<vmem>>, vector<256x128xf32>
    %cst_12 = arith.constant dense<0.000000e+00> : vector<1x128xf32>
    %20 = tpu.matmul %18, %19, %cst_12 {dimension_numbers = #tpu.dot_dimension_numbers<[1], [0], [0], [1], [0, 0, 1, 1], [], []>} : vector<1x256xf32>, vector<256x128xf32>, vector<1x128xf32> -> vector<1x128xf32>
    %c0_13 = arith.constant 0 : index
    %c0_14 = arith.constant 0 : index
    %21 = vector.load %arg5[%c0_13, %c0_14] : memref<1x128xf32, #tpu.memory_space<vmem>>, vector<1x128xf32>
    %22 = arith.addf %20, %21 : vector<1x128xf32>
    %cst_15 = arith.constant 5.000000e-01 : f32
    %23 = vector.broadcast %cst_15 : f32 to vector<1x128xf32>
    %24 = arith.mulf %23, %22 : vector<1x128xf32>
    %cst_16 = arith.constant 4.471500e-02 : f32
    %25 = vector.broadcast %cst_16 : f32 to vector<1x128xf32>
    %26 = arith.mulf %25, %22 : vector<1x128xf32>
    %27 = arith.mulf %26, %22 : vector<1x128xf32>
    %28 = arith.mulf %27, %22 : vector<1x128xf32>
    %29 = arith.addf %22, %28 : vector<1x128xf32>
    %cst_17 = arith.constant 0.797884583 : f32
    %30 = vector.broadcast %cst_17 : f32 to vector<1x128xf32>
    %31 = arith.mulf %30, %29 : vector<1x128xf32>
    %32 = math.tanh %31 : vector<1x128xf32>
    %cst_18 = arith.constant 1.000000e+00 : f32
    %33 = vector.broadcast %cst_18 : f32 to vector<1x128xf32>
    %34 = arith.addf %33, %32 : vector<1x128xf32>
    %35 = arith.mulf %24, %34 : vector<1x128xf32>
    %36 = vector.extract_strided_slice %35 {offsets = [0, 0], sizes = [1, 64], strides = [1, 1]} : vector<1x128xf32> to vector<1x64xf32>
    %c0_19 = arith.constant 0 : index
    %c0_20 = arith.constant 0 : index
    %37 = vector.load %arg6[%c0_19, %c0_20] : memref<64x324xf32, #tpu.memory_space<vmem>>, vector<64x324xf32>
    %cst_21 = arith.constant dense<0.000000e+00> : vector<1x324xf32>
    %38 = tpu.matmul %36, %37, %cst_21 {dimension_numbers = #tpu.dot_dimension_numbers<[1], [0], [0], [1], [0, 0, 1, 1], [], []>} : vector<1x64xf32>, vector<64x324xf32>, vector<1x324xf32> -> vector<1x324xf32>
    %c0_22 = arith.constant 0 : index
    %c0_23 = arith.constant 0 : index
    %39 = vector.load %arg18[%c0_22, %c0_23] : memref<2x324xf32, #tpu.memory_space<vmem>>, vector<1x324xf32>
    tpu.vector_store %arg18[%c0_22, %c0_23], %38 {strides = array<i32>} : memref<2x324xf32, #tpu.memory_space<vmem>>, vector<1x324xf32>,
    %40 = vector.extract_strided_slice %35 {offsets = [0, 64], sizes = [1, 64], strides = [1, 1]} : vector<1x128xf32> to vector<1x64xf32>
    %c0_24 = arith.constant 0 : index
    %c0_25 = arith.constant 0 : index
    %41 = vector.load %arg6[%c0_24, %c0_25] : memref<64x324xf32, #tpu.memory_space<vmem>>, vector<64x324xf32>
    %cst_26 = arith.constant dense<0.000000e+00> : vector<1x324xf32>
    %42 = tpu.matmul %40, %41, %cst_26 {dimension_numbers = #tpu.dot_dimension_numbers<[1], [0], [0], [1], [0, 0, 1, 1], [], []>} : vector<1x64xf32>, vector<64x324xf32>, vector<1x324xf32> -> vector<1x324xf32>
    %c1 = arith.constant 1 : index
    %c0_27 = arith.constant 0 : index
    %43 = vector.load %arg18[%c1, %c0_27] : memref<2x324xf32, #tpu.memory_space<vmem>>, vector<1x324xf32>
    tpu.vector_store %arg18[%c1, %c0_27], %42 {strides = array<i32>} : memref<2x324xf32, #tpu.memory_space<vmem>>, vector<1x324xf32>,
    %c0_28 = arith.constant 0 : index
    %c0_29 = arith.constant 0 : index
    %44 = vector.load %arg18[%c0_28, %c0_29] : memref<2x324xf32, #tpu.memory_space<vmem>>, vector<2x324xf32>
    %45 = vector.extract_strided_slice %44 {offsets = [0, 0], sizes = [2, 305], strides = [1, 1]} : vector<2x324xf32> to vector<2x305xf32>
    %c0_30 = arith.constant 0 : index
    %c19 = arith.constant 19 : index
    %46 = vector.load %arg19[%c0_30, %c19] : memref<18x324xf32, #tpu.memory_space<vmem>>, vector<2x305xf32>
    tpu.vector_store %arg19[%c0_30, %c19], %45 {strides = array<i32>} : memref<18x324xf32, #tpu.memory_space<vmem>>, vector<2x305xf32>,
    %cst_31 = arith.constant 0.000000e+00 : f32
    %47 = vector.broadcast %cst_31 : f32 to vector<2x19xf32>
    %c0_32 = arith.constant 0 : index
    %c0_33 = arith.constant 0 : index
    %48 = vector.load %arg19[%c0_32, %c0_33] : memref<18x324xf32, #tpu.memory_space<vmem>>, vector<2x19xf32>
    tpu.vector_store %arg19[%c0_32, %c0_33], %47 {strides = array<i32>} : memref<18x324xf32, #tpu.memory_space<vmem>>, vector<2x19xf32>,
    %49 = vector.extract_strided_slice %44 {offsets = [0, 0], sizes = [2, 306], strides = [1, 1]} : vector<2x324xf32> to vector<2x306xf32>
    %c2 = arith.constant 2 : index
    %c18 = arith.constant 18 : index
    %50 = vector.load %arg19[%c2, %c18] : memref<18x324xf32, #tpu.memory_space<vmem>>, vector<2x306xf32>
    tpu.vector_store %arg19[%c2, %c18], %49 {strides = array<i32>} : memref<18x324xf32, #tpu.memory_space<vmem>>, vector<2x306xf32>,
    %cst_34 = arith.constant 0.000000e+00 : f32
    %51 = vector.broadcast %cst_34 : f32 to vector<2x18xf32>
    %c2_35 = arith.constant 2 : index
    %c0_36 = arith.constant 0 : index
    %52 = vector.load %arg19[%c2_35, %c0_36] : memref<18x324xf32, #tpu.memory_space<vmem>>, vector<2x18xf32>
    tpu.vector_store %arg19[%c2_35, %c0_36], %51 {strides = array<i32>} : memref<18x324xf32, #tpu.memory_space<vmem>>, vector<2x18xf32>,
    %53 = vector.extract_strided_slice %44 {offsets = [0, 0], sizes = [2, 307], strides = [1, 1]} : vector<2x324xf32> to vector<2x307xf32>
    %c4 = arith.constant 4 : index
    %c17 = arith.constant 17 : index
    %54 = vector.load %arg19[%c4, %c17] : memref<18x324xf32, #tpu.memory_space<vmem>>, vector<2x307xf32>
    tpu.vector_store %arg19[%c4, %c17], %53 {strides = array<i32>} : memref<18x324xf32, #tpu.memory_space<vmem>>, vector<2x307xf32>,
    %cst_37 = arith.constant 0.000000e+00 : f32
    %55 = vector.broadcast %cst_37 : f32 to vector<2x17xf32>
    %c4_38 = arith.constant 4 : index
    %c0_39 = arith.constant 0 : index
    %56 = vector.load %arg19[%c4_38, %c0_39] : memref<18x324xf32, #tpu.memory_space<vmem>>, vector<2x17xf32>
    tpu.vector_store %arg19[%c4_38, %c0_39], %55 {strides = array<i32>} : memref<18x324xf32, #tpu.memory_space<vmem>>, vector<2x17xf32>,
    %57 = vector.extract_strided_slice %44 {offsets = [0, 0], sizes = [2, 323], strides = [1, 1]} : vector<2x324xf32> to vector<2x323xf32>
    %c6 = arith.constant 6 : index
    %c1_40 = arith.constant 1 : index
    %58 = vector.load %arg19[%c6, %c1_40] : memref<18x324xf32, #tpu.memory_space<vmem>>, vector<2x323xf32>
    tpu.vector_store %arg19[%c6, %c1_40], %57 {strides = array<i32>} : memref<18x324xf32, #tpu.memory_space<vmem>>, vector<2x323xf32>,
    %cst_41 = arith.constant 0.000000e+00 : f32
    %59 = vector.broadcast %cst_41 : f32 to vector<2x1xf32>
    %c6_42 = arith.constant 6 : index
    %c0_43 = arith.constant 0 : index
    %60 = vector.load %arg19[%c6_42, %c0_43] : memref<18x324xf32, #tpu.memory_space<vmem>>, vector<2x1xf32>
    tpu.vector_store %arg19[%c6_42, %c0_43], %59 {strides = array<i32>} : memref<18x324xf32, #tpu.memory_space<vmem>>, vector<2x1xf32>,
    %c8 = arith.constant 8 : index
    %c0_44 = arith.constant 0 : index
    %61 = vector.load %arg19[%c8, %c0_44] : memref<18x324xf32, #tpu.memory_space<vmem>>, vector<2x324xf32>
    tpu.vector_store %arg19[%c8, %c0_44], %44 {strides = array<i32>} : memref<18x324xf32, #tpu.memory_space<vmem>>, vector<2x324xf32>,
    %62 = vector.extract_strided_slice %44 {offsets = [0, 1], sizes = [2, 323], strides = [1, 1]} : vector<2x324xf32> to vector<2x323xf32>
    %c10 = arith.constant 10 : index
    %c0_45 = arith.constant 0 : index
    %63 = vector.load %arg19[%c10, %c0_45] : memref<18x324xf32, #tpu.memory_space<vmem>>, vector<2x323xf32>
    tpu.vector_store %arg19[%c10, %c0_45], %62 {strides = array<i32>} : memref<18x324xf32, #tpu.memory_space<vmem>>, vector<2x323xf32>,
    %cst_46 = arith.constant 0.000000e+00 : f32
    %64 = vector.broadcast %cst_46 : f32 to vector<2x1xf32>
    %c10_47 = arith.constant 10 : index
    %c323 = arith.constant 323 : index
    %65 = vector.load %arg19[%c10_47, %c323] : memref<18x324xf32, #tpu.memory_space<vmem>>, vector<2x1xf32>
    tpu.vector_store %arg19[%c10_47, %c323], %64 {strides = array<i32>} : memref<18x324xf32, #tpu.memory_space<vmem>>, vector<2x1xf32>,
    %66 = vector.extract_strided_slice %44 {offsets = [0, 17], sizes = [2, 307], strides = [1, 1]} : vector<2x324xf32> to vector<2x307xf32>
    %c12 = arith.constant 12 : index
    %c0_48 = arith.constant 0 : index
    %67 = vector.load %arg19[%c12, %c0_48] : memref<18x324xf32, #tpu.memory_space<vmem>>, vector<2x307xf32>
    tpu.vector_store %arg19[%c12, %c0_48], %66 {strides = array<i32>} : memref<18x324xf32, #tpu.memory_space<vmem>>, vector<2x307xf32>,
    %cst_49 = arith.constant 0.000000e+00 : f32
    %68 = vector.broadcast %cst_49 : f32 to vector<2x17xf32>
    %c12_50 = arith.constant 12 : index
    %c307 = arith.constant 307 : index
    %69 = vector.load %arg19[%c12_50, %c307] : memref<18x324xf32, #tpu.memory_space<vmem>>, vector<2x17xf32>
    tpu.vector_store %arg19[%c12_50, %c307], %68 {strides = array<i32>} : memref<18x324xf32, #tpu.memory_space<vmem>>, vector<2x17xf32>,
    %70 = vector.extract_strided_slice %44 {offsets = [0, 18], sizes = [2, 306], strides = [1, 1]} : vector<2x324xf32> to vector<2x306xf32>
    %c14 = arith.constant 14 : index
    %c0_51 = arith.constant 0 : index
    %71 = vector.load %arg19[%c14, %c0_51] : memref<18x324xf32, #tpu.memory_space<vmem>>, vector<2x306xf32>
    tpu.vector_store %arg19[%c14, %c0_51], %70 {strides = array<i32>} : memref<18x324xf32, #tpu.memory_space<vmem>>, vector<2x306xf32>,
    %cst_52 = arith.constant 0.000000e+00 : f32
    %72 = vector.broadcast %cst_52 : f32 to vector<2x18xf32>
    %c14_53 = arith.constant 14 : index
    %c306 = arith.constant 306 : index
    %73 = vector.load %arg19[%c14_53, %c306] : memref<18x324xf32, #tpu.memory_space<vmem>>, vector<2x18xf32>
    tpu.vector_store %arg19[%c14_53, %c306], %72 {strides = array<i32>} : memref<18x324xf32, #tpu.memory_space<vmem>>, vector<2x18xf32>,
    %74 = vector.extract_strided_slice %44 {offsets = [0, 19], sizes = [2, 305], strides = [1, 1]} : vector<2x324xf32> to vector<2x305xf32>
    %c16 = arith.constant 16 : index
    %c0_54 = arith.constant 0 : index
    %75 = vector.load %arg19[%c16, %c0_54] : memref<18x324xf32, #tpu.memory_space<vmem>>, vector<2x305xf32>
    tpu.vector_store %arg19[%c16, %c0_54], %74 {strides = array<i32>} : memref<18x324xf32, #tpu.memory_space<vmem>>, vector<2x305xf32>,
    %cst_55 = arith.constant 0.000000e+00 : f32
    %76 = vector.broadcast %cst_55 : f32 to vector<2x19xf32>
    %c16_56 = arith.constant 16 : index
    %c305 = arith.constant 305 : index
    %77 = vector.load %arg19[%c16_56, %c305] : memref<18x324xf32, #tpu.memory_space<vmem>>, vector<2x19xf32>
    tpu.vector_store %arg19[%c16_56, %c305], %76 {strides = array<i32>} : memref<18x324xf32, #tpu.memory_space<vmem>>, vector<2x19xf32>,
    %c0_57 = arith.constant 0 : index
    %c0_58 = arith.constant 0 : index
    %78 = vector.load %arg9[%c0_57, %c0_58] : memref<8x18xf32, #tpu.memory_space<vmem>>, vector<8x18xf32>
    %c0_59 = arith.constant 0 : index
    %c0_60 = arith.constant 0 : index
    %79 = vector.load %arg19[%c0_59, %c0_60] : memref<18x324xf32, #tpu.memory_space<vmem>>, vector<18x324xf32>
    %cst_61 = arith.constant dense<0.000000e+00> : vector<8x324xf32>
    %80 = tpu.matmul %78, %79, %cst_61 {dimension_numbers = #tpu.dot_dimension_numbers<[1], [0], [0], [1], [0, 0, 1, 1], [], []>} : vector<8x18xf32>, vector<18x324xf32>, vector<8x324xf32> -> vector<8x324xf32>
    %c0_62 = arith.constant 0 : index
    %c0_63 = arith.constant 0 : index
    %81 = vector.load %arg10[%c0_62, %c0_63] : memref<8x1xf32, #tpu.memory_space<vmem>>, vector<8x1xf32>
    %82 = vector.broadcast %81 : vector<8x1xf32> to vector<8x324xf32>
    %83 = arith.addf %80, %82 : vector<8x324xf32>
    %cst_64 = arith.constant 5.000000e-01 : f32
    %84 = vector.broadcast %cst_64 : f32 to vector<8x324xf32>
    %85 = arith.mulf %84, %83 : vector<8x324xf32>
    %cst_65 = arith.constant 4.471500e-02 : f32
    %86 = vector.broadcast %cst_65 : f32 to vector<8x324xf32>
    %87 = arith.mulf %86, %83 : vector<8x324xf32>
    %88 = arith.mulf %87, %83 : vector<8x324xf32>
    %89 = arith.mulf %88, %83 : vector<8x324xf32>
    %90 = arith.addf %83, %89 : vector<8x324xf32>
    %cst_66 = arith.constant 0.797884583 : f32
    %91 = vector.broadcast %cst_66 : f32 to vector<8x324xf32>
    %92 = arith.mulf %91, %90 : vector<8x324xf32>
    %93 = math.tanh %92 : vector<8x324xf32>
    %cst_67 = arith.constant 1.000000e+00 : f32
    %94 = vector.broadcast %cst_67 : f32 to vector<8x324xf32>
    %95 = arith.addf %94, %93 : vector<8x324xf32>
    %96 = arith.mulf %85, %95 : vector<8x324xf32>
    %c0_68 = arith.constant 0 : index
    %c0_69 = arith.constant 0 : index
    %97 = vector.load %arg7[%c0_68, %c0_69] : memref<1x324xf32, #tpu.memory_space<vmem>>, vector<1x324xf32>
    %98 = vector.broadcast %97 : vector<1x324xf32> to vector<8x324xf32>
    %99 = arith.mulf %96, %98 : vector<8x324xf32>
    %100 = vector.extract_strided_slice %99 {offsets = [0, 0], sizes = [8, 305], strides = [1, 1]} : vector<8x324xf32> to vector<8x305xf32>
    %c0_70 = arith.constant 0 : index
    %c19_71 = arith.constant 19 : index
    %101 = vector.load %arg20[%c0_70, %c19_71] : memref<72x324xf32, #tpu.memory_space<vmem>>, vector<8x305xf32>
    tpu.vector_store %arg20[%c0_70, %c19_71], %100 {strides = array<i32>} : memref<72x324xf32, #tpu.memory_space<vmem>>, vector<8x305xf32>,
    %cst_72 = arith.constant 0.000000e+00 : f32
    %102 = vector.broadcast %cst_72 : f32 to vector<8x19xf32>
    %c0_73 = arith.constant 0 : index
    %c0_74 = arith.constant 0 : index
    %103 = vector.load %arg20[%c0_73, %c0_74] : memref<72x324xf32, #tpu.memory_space<vmem>>, vector<8x19xf32>
    tpu.vector_store %arg20[%c0_73, %c0_74], %102 {strides = array<i32>} : memref<72x324xf32, #tpu.memory_space<vmem>>, vector<8x19xf32>,
    %104 = vector.extract_strided_slice %99 {offsets = [0, 0], sizes = [8, 306], strides = [1, 1]} : vector<8x324xf32> to vector<8x306xf32>
    %c8_75 = arith.constant 8 : index
    %c18_76 = arith.constant 18 : index
    %105 = vector.load %arg20[%c8_75, %c18_76] : memref<72x324xf32, #tpu.memory_space<vmem>>, vector<8x306xf32>
    tpu.vector_store %arg20[%c8_75, %c18_76], %104 {strides = array<i32>} : memref<72x324xf32, #tpu.memory_space<vmem>>, vector<8x306xf32>,
    %cst_77 = arith.constant 0.000000e+00 : f32
    %106 = vector.broadcast %cst_77 : f32 to vector<8x18xf32>
    %c8_78 = arith.constant 8 : index
    %c0_79 = arith.constant 0 : index
    %107 = vector.load %arg20[%c8_78, %c0_79] : memref<72x324xf32, #tpu.memory_space<vmem>>, vector<8x18xf32>
    tpu.vector_store %arg20[%c8_78, %c0_79], %106 {strides = array<i32>} : memref<72x324xf32, #tpu.memory_space<vmem>>, vector<8x18xf32>,
    %108 = vector.extract_strided_slice %99 {offsets = [0, 0], sizes = [8, 307], strides = [1, 1]} : vector<8x324xf32> to vector<8x307xf32>
    %c16_80 = arith.constant 16 : index
    %c17_81 = arith.constant 17 : index
    %109 = vector.load %arg20[%c16_80, %c17_81] : memref<72x324xf32, #tpu.memory_space<vmem>>, vector<8x307xf32>
    tpu.vector_store %arg20[%c16_80, %c17_81], %108 {strides = array<i32>} : memref<72x324xf32, #tpu.memory_space<vmem>>, vector<8x307xf32>,
    %cst_82 = arith.constant 0.000000e+00 : f32
    %110 = vector.broadcast %cst_82 : f32 to vector<8x17xf32>
    %c16_83 = arith.constant 16 : index
    %c0_84 = arith.constant 0 : index
    %111 = vector.load %arg20[%c16_83, %c0_84] : memref<72x324xf32, #tpu.memory_space<vmem>>, vector<8x17xf32>
    tpu.vector_store %arg20[%c16_83, %c0_84], %110 {strides = array<i32>} : memref<72x324xf32, #tpu.memory_space<vmem>>, vector<8x17xf32>,
    %112 = vector.extract_strided_slice %99 {offsets = [0, 0], sizes = [8, 323], strides = [1, 1]} : vector<8x324xf32> to vector<8x323xf32>
    %c24 = arith.constant 24 : index
    %c1_85 = arith.constant 1 : index
    %113 = vector.load %arg20[%c24, %c1_85] : memref<72x324xf32, #tpu.memory_space<vmem>>, vector<8x323xf32>
    tpu.vector_store %arg20[%c24, %c1_85], %112 {strides = array<i32>} : memref<72x324xf32, #tpu.memory_space<vmem>>, vector<8x323xf32>,
    %cst_86 = arith.constant 0.000000e+00 : f32
    %114 = vector.broadcast %cst_86 : f32 to vector<8x1xf32>
    %c24_87 = arith.constant 24 : index
    %c0_88 = arith.constant 0 : index
    %115 = vector.load %arg20[%c24_87, %c0_88] : memref<72x324xf32, #tpu.memory_space<vmem>>, vector<8x1xf32>
    tpu.vector_store %arg20[%c24_87, %c0_88], %114 {strides = array<i32>} : memref<72x324xf32, #tpu.memory_space<vmem>>, vector<8x1xf32>,
    %c32 = arith.constant 32 : index
    %c0_89 = arith.constant 0 : index
    %116 = vector.load %arg20[%c32, %c0_89] : memref<72x324xf32, #tpu.memory_space<vmem>>, vector<8x324xf32>
    tpu.vector_store %arg20[%c32, %c0_89], %99 {strides = array<i32>} : memref<72x324xf32, #tpu.memory_space<vmem>>, vector<8x324xf32>,
    %117 = vector.extract_strided_slice %99 {offsets = [0, 1], sizes = [8, 323], strides = [1, 1]} : vector<8x324xf32> to vector<8x323xf32>
    %c40 = arith.constant 40 : index
    %c0_90 = arith.constant 0 : index
    %118 = vector.load %arg20[%c40, %c0_90] : memref<72x324xf32, #tpu.memory_space<vmem>>, vector<8x323xf32>
    tpu.vector_store %arg20[%c40, %c0_90], %117 {strides = array<i32>} : memref<72x324xf32, #tpu.memory_space<vmem>>, vector<8x323xf32>,
    %cst_91 = arith.constant 0.000000e+00 : f32
    %119 = vector.broadcast %cst_91 : f32 to vector<8x1xf32>
    %c40_92 = arith.constant 40 : index
    %c323_93 = arith.constant 323 : index
    %120 = vector.load %arg20[%c40_92, %c323_93] : memref<72x324xf32, #tpu.memory_space<vmem>>, vector<8x1xf32>
    tpu.vector_store %arg20[%c40_92, %c323_93], %119 {strides = array<i32>} : memref<72x324xf32, #tpu.memory_space<vmem>>, vector<8x1xf32>,
    %121 = vector.extract_strided_slice %99 {offsets = [0, 17], sizes = [8, 307], strides = [1, 1]} : vector<8x324xf32> to vector<8x307xf32>
    %c48 = arith.constant 48 : index
    %c0_94 = arith.constant 0 : index
    %122 = vector.load %arg20[%c48, %c0_94] : memref<72x324xf32, #tpu.memory_space<vmem>>, vector<8x307xf32>
    tpu.vector_store %arg20[%c48, %c0_94], %121 {strides = array<i32>} : memref<72x324xf32, #tpu.memory_space<vmem>>, vector<8x307xf32>,
    %cst_95 = arith.constant 0.000000e+00 : f32
    %123 = vector.broadcast %cst_95 : f32 to vector<8x17xf32>
    %c48_96 = arith.constant 48 : index
    %c307_97 = arith.constant 307 : index
    %124 = vector.load %arg20[%c48_96, %c307_97] : memref<72x324xf32, #tpu.memory_space<vmem>>, vector<8x17xf32>
    tpu.vector_store %arg20[%c48_96, %c307_97], %123 {strides = array<i32>} : memref<72x324xf32, #tpu.memory_space<vmem>>, vector<8x17xf32>,
    %125 = vector.extract_strided_slice %99 {offsets = [0, 18], sizes = [8, 306], strides = [1, 1]} : vector<8x324xf32> to vector<8x306xf32>
    %c56 = arith.constant 56 : index
    %c0_98 = arith.constant 0 : index
    %126 = vector.load %arg20[%c56, %c0_98] : memref<72x324xf32, #tpu.memory_space<vmem>>, vector<8x306xf32>
    tpu.vector_store %arg20[%c56, %c0_98], %125 {strides = array<i32>} : memref<72x324xf32, #tpu.memory_space<vmem>>, vector<8x306xf32>,
    %cst_99 = arith.constant 0.000000e+00 : f32
    %127 = vector.broadcast %cst_99 : f32 to vector<8x18xf32>
    %c56_100 = arith.constant 56 : index
    %c306_101 = arith.constant 306 : index
    %128 = vector.load %arg20[%c56_100, %c306_101] : memref<72x324xf32, #tpu.memory_space<vmem>>, vector<8x18xf32>
    tpu.vector_store %arg20[%c56_100, %c306_101], %127 {strides = array<i32>} : memref<72x324xf32, #tpu.memory_space<vmem>>, vector<8x18xf32>,
    %129 = vector.extract_strided_slice %99 {offsets = [0, 19], sizes = [8, 305], strides = [1, 1]} : vector<8x324xf32> to vector<8x305xf32>
    %c64 = arith.constant 64 : index
    %c0_102 = arith.constant 0 : index
    %130 = vector.load %arg20[%c64, %c0_102] : memref<72x324xf32, #tpu.memory_space<vmem>>, vector<8x305xf32>
    tpu.vector_store %arg20[%c64, %c0_102], %129 {strides = array<i32>} : memref<72x324xf32, #tpu.memory_space<vmem>>, vector<8x305xf32>,
    %cst_103 = arith.constant 0.000000e+00 : f32
    %131 = vector.broadcast %cst_103 : f32 to vector<8x19xf32>
    %c64_104 = arith.constant 64 : index
    %c305_105 = arith.constant 305 : index
    %132 = vector.load %arg20[%c64_104, %c305_105] : memref<72x324xf32, #tpu.memory_space<vmem>>, vector<8x19xf32>
    tpu.vector_store %arg20[%c64_104, %c305_105], %131 {strides = array<i32>} : memref<72x324xf32, #tpu.memory_space<vmem>>, vector<8x19xf32>,
    %c0_106 = arith.constant 0 : index
    %c0_107 = arith.constant 0 : index
    %133 = vector.load %arg11[%c0_106, %c0_107] : memref<16x72xf32, #tpu.memory_space<vmem>>, vector<16x72xf32>
    %c0_108 = arith.constant 0 : index
    %c0_109 = arith.constant 0 : index
    %134 = vector.load %arg20[%c0_108, %c0_109] : memref<72x324xf32, #tpu.memory_space<vmem>>, vector<72x324xf32>
    %cst_110 = arith.constant dense<0.000000e+00> : vector<16x324xf32>
    %135 = tpu.matmul %133, %134, %cst_110 {dimension_numbers = #tpu.dot_dimension_numbers<[1], [0], [0], [1], [0, 0, 1, 1], [], []>} : vector<16x72xf32>, vector<72x324xf32>, vector<16x324xf32> -> vector<16x324xf32>
    %c0_111 = arith.constant 0 : index
    %c0_112 = arith.constant 0 : index
    %136 = vector.load %arg12[%c0_111, %c0_112] : memref<16x1xf32, #tpu.memory_space<vmem>>, vector<16x1xf32>
    %137 = vector.broadcast %136 : vector<16x1xf32> to vector<16x324xf32>
    %138 = arith.addf %135, %137 : vector<16x324xf32>
    %cst_113 = arith.constant 5.000000e-01 : f32
    %139 = vector.broadcast %cst_113 : f32 to vector<16x324xf32>
    %140 = arith.mulf %139, %138 : vector<16x324xf32>
    %cst_114 = arith.constant 4.471500e-02 : f32
    %141 = vector.broadcast %cst_114 : f32 to vector<16x324xf32>
    %142 = arith.mulf %141, %138 : vector<16x324xf32>
    %143 = arith.mulf %142, %138 : vector<16x324xf32>
    %144 = arith.mulf %143, %138 : vector<16x324xf32>
    %145 = arith.addf %138, %144 : vector<16x324xf32>
    %cst_115 = arith.constant 0.797884583 : f32
    %146 = vector.broadcast %cst_115 : f32 to vector<16x324xf32>
    %147 = arith.mulf %146, %145 : vector<16x324xf32>
    %148 = math.tanh %147 : vector<16x324xf32>
    %cst_116 = arith.constant 1.000000e+00 : f32
    %149 = vector.broadcast %cst_116 : f32 to vector<16x324xf32>
    %150 = arith.addf %149, %148 : vector<16x324xf32>
    %151 = arith.mulf %140, %150 : vector<16x324xf32>
    %c0_117 = arith.constant 0 : index
    %c0_118 = arith.constant 0 : index
    %152 = vector.load %arg8[%c0_117, %c0_118] : memref<324x1156xf32, #tpu.memory_space<vmem>>, vector<324x1156xf32>
    %cst_119 = arith.constant dense<0.000000e+00> : vector<16x1156xf32>
    %153 = tpu.matmul %151, %152, %cst_119 {dimension_numbers = #tpu.dot_dimension_numbers<[1], [0], [0], [1], [0, 0, 1, 1], [], []>} : vector<16x324xf32>, vector<324x1156xf32>, vector<16x1156xf32> -> vector<16x1156xf32>
    %154 = vector.extract_strided_slice %153 {offsets = [0, 0], sizes = [16, 1121], strides = [1, 1]} : vector<16x1156xf32> to vector<16x1121xf32>
    %c0_120 = arith.constant 0 : index
    %c35 = arith.constant 35 : index
    %155 = vector.load %arg21[%c0_120, %c35] : memref<144x1156xf32, #tpu.memory_space<vmem>>, vector<16x1121xf32>
    tpu.vector_store %arg21[%c0_120, %c35], %154 {strides = array<i32>} : memref<144x1156xf32, #tpu.memory_space<vmem>>, vector<16x1121xf32>,
    %cst_121 = arith.constant 0.000000e+00 : f32
    %156 = vector.broadcast %cst_121 : f32 to vector<16x35xf32>
    %c0_122 = arith.constant 0 : index
    %c0_123 = arith.constant 0 : index
    %157 = vector.load %arg21[%c0_122, %c0_123] : memref<144x1156xf32, #tpu.memory_space<vmem>>, vector<16x35xf32>
    tpu.vector_store %arg21[%c0_122, %c0_123], %156 {strides = array<i32>} : memref<144x1156xf32, #tpu.memory_space<vmem>>, vector<16x35xf32>,
    %158 = vector.extract_strided_slice %153 {offsets = [0, 0], sizes = [16, 1122], strides = [1, 1]} : vector<16x1156xf32> to vector<16x1122xf32>
    %c16_124 = arith.constant 16 : index
    %c34 = arith.constant 34 : index
    %159 = vector.load %arg21[%c16_124, %c34] : memref<144x1156xf32, #tpu.memory_space<vmem>>, vector<16x1122xf32>
    tpu.vector_store %arg21[%c16_124, %c34], %158 {strides = array<i32>} : memref<144x1156xf32, #tpu.memory_space<vmem>>, vector<16x1122xf32>,
    %cst_125 = arith.constant 0.000000e+00 : f32
    %160 = vector.broadcast %cst_125 : f32 to vector<16x34xf32>
    %c16_126 = arith.constant 16 : index
    %c0_127 = arith.constant 0 : index
    %161 = vector.load %arg21[%c16_126, %c0_127] : memref<144x1156xf32, #tpu.memory_space<vmem>>, vector<16x34xf32>
    tpu.vector_store %arg21[%c16_126, %c0_127], %160 {strides = array<i32>} : memref<144x1156xf32, #tpu.memory_space<vmem>>, vector<16x34xf32>,
    %162 = vector.extract_strided_slice %153 {offsets = [0, 0], sizes = [16, 1123], strides = [1, 1]} : vector<16x1156xf32> to vector<16x1123xf32>
    %c32_128 = arith.constant 32 : index
    %c33 = arith.constant 33 : index
    %163 = vector.load %arg21[%c32_128, %c33] : memref<144x1156xf32, #tpu.memory_space<vmem>>, vector<16x1123xf32>
    tpu.vector_store %arg21[%c32_128, %c33], %162 {strides = array<i32>} : memref<144x1156xf32, #tpu.memory_space<vmem>>, vector<16x1123xf32>,
    %cst_129 = arith.constant 0.000000e+00 : f32
    %164 = vector.broadcast %cst_129 : f32 to vector<16x33xf32>
    %c32_130 = arith.constant 32 : index
    %c0_131 = arith.constant 0 : index
    %165 = vector.load %arg21[%c32_130, %c0_131] : memref<144x1156xf32, #tpu.memory_space<vmem>>, vector<16x33xf32>
    tpu.vector_store %arg21[%c32_130, %c0_131], %164 {strides = array<i32>} : memref<144x1156xf32, #tpu.memory_space<vmem>>, vector<16x33xf32>,
    %166 = vector.extract_strided_slice %153 {offsets = [0, 0], sizes = [16, 1155], strides = [1, 1]} : vector<16x1156xf32> to vector<16x1155xf32>
    %c48_132 = arith.constant 48 : index
    %c1_133 = arith.constant 1 : index
    %167 = vector.load %arg21[%c48_132, %c1_133] : memref<144x1156xf32, #tpu.memory_space<vmem>>, vector<16x1155xf32>
    tpu.vector_store %arg21[%c48_132, %c1_133], %166 {strides = array<i32>} : memref<144x1156xf32, #tpu.memory_space<vmem>>, vector<16x1155xf32>,
    %cst_134 = arith.constant 0.000000e+00 : f32
    %168 = vector.broadcast %cst_134 : f32 to vector<16x1xf32>
    %c48_135 = arith.constant 48 : index
    %c0_136 = arith.constant 0 : index
    %169 = vector.load %arg21[%c48_135, %c0_136] : memref<144x1156xf32, #tpu.memory_space<vmem>>, vector<16x1xf32>
    tpu.vector_store %arg21[%c48_135, %c0_136], %168 {strides = array<i32>} : memref<144x1156xf32, #tpu.memory_space<vmem>>, vector<16x1xf32>,
    %c64_137 = arith.constant 64 : index
    %c0_138 = arith.constant 0 : index
    %170 = vector.load %arg21[%c64_137, %c0_138] : memref<144x1156xf32, #tpu.memory_space<vmem>>, vector<16x1156xf32>
    tpu.vector_store %arg21[%c64_137, %c0_138], %153 {strides = array<i32>} : memref<144x1156xf32, #tpu.memory_space<vmem>>, vector<16x1156xf32>,
    %171 = vector.extract_strided_slice %153 {offsets = [0, 1], sizes = [16, 1155], strides = [1, 1]} : vector<16x1156xf32> to vector<16x1155xf32>
    %c80 = arith.constant 80 : index
    %c0_139 = arith.constant 0 : index
    %172 = vector.load %arg21[%c80, %c0_139] : memref<144x1156xf32, #tpu.memory_space<vmem>>, vector<16x1155xf32>
    tpu.vector_store %arg21[%c80, %c0_139], %171 {strides = array<i32>} : memref<144x1156xf32, #tpu.memory_space<vmem>>, vector<16x1155xf32>,
    %cst_140 = arith.constant 0.000000e+00 : f32
    %173 = vector.broadcast %cst_140 : f32 to vector<16x1xf32>
    %c80_141 = arith.constant 80 : index
    %c1155 = arith.constant 1155 : index
    %174 = vector.load %arg21[%c80_141, %c1155] : memref<144x1156xf32, #tpu.memory_space<vmem>>, vector<16x1xf32>
    tpu.vector_store %arg21[%c80_141, %c1155], %173 {strides = array<i32>} : memref<144x1156xf32, #tpu.memory_space<vmem>>, vector<16x1xf32>,
    %175 = vector.extract_strided_slice %153 {offsets = [0, 33], sizes = [16, 1123], strides = [1, 1]} : vector<16x1156xf32> to vector<16x1123xf32>
    %c96 = arith.constant 96 : index
    %c0_142 = arith.constant 0 : index
    %176 = vector.load %arg21[%c96, %c0_142] : memref<144x1156xf32, #tpu.memory_space<vmem>>, vector<16x1123xf32>
    tpu.vector_store %arg21[%c96, %c0_142], %175 {strides = array<i32>} : memref<144x1156xf32, #tpu.memory_space<vmem>>, vector<16x1123xf32>,
    %cst_143 = arith.constant 0.000000e+00 : f32
    %177 = vector.broadcast %cst_143 : f32 to vector<16x33xf32>
    %c96_144 = arith.constant 96 : index
    %c1123 = arith.constant 1123 : index
    %178 = vector.load %arg21[%c96_144, %c1123] : memref<144x1156xf32, #tpu.memory_space<vmem>>, vector<16x33xf32>
    tpu.vector_store %arg21[%c96_144, %c1123], %177 {strides = array<i32>} : memref<144x1156xf32, #tpu.memory_space<vmem>>, vector<16x33xf32>,
    %179 = vector.extract_strided_slice %153 {offsets = [0, 34], sizes = [16, 1122], strides = [1, 1]} : vector<16x1156xf32> to vector<16x1122xf32>
    %c112 = arith.constant 112 : index
    %c0_145 = arith.constant 0 : index
    %180 = vector.load %arg21[%c112, %c0_145] : memref<144x1156xf32, #tpu.memory_space<vmem>>, vector<16x1122xf32>
    tpu.vector_store %arg21[%c112, %c0_145], %179 {strides = array<i32>} : memref<144x1156xf32, #tpu.memory_space<vmem>>, vector<16x1122xf32>,
    %cst_146 = arith.constant 0.000000e+00 : f32
    %181 = vector.broadcast %cst_146 : f32 to vector<16x34xf32>
    %c112_147 = arith.constant 112 : index
    %c1122 = arith.constant 1122 : index
    %182 = vector.load %arg21[%c112_147, %c1122] : memref<144x1156xf32, #tpu.memory_space<vmem>>, vector<16x34xf32>
    tpu.vector_store %arg21[%c112_147, %c1122], %181 {strides = array<i32>} : memref<144x1156xf32, #tpu.memory_space<vmem>>, vector<16x34xf32>,
    %183 = vector.extract_strided_slice %153 {offsets = [0, 35], sizes = [16, 1121], strides = [1, 1]} : vector<16x1156xf32> to vector<16x1121xf32>
    %c128 = arith.constant 128 : index
    %c0_148 = arith.constant 0 : index
    %184 = vector.load %arg21[%c128, %c0_148] : memref<144x1156xf32, #tpu.memory_space<vmem>>, vector<16x1121xf32>
    tpu.vector_store %arg21[%c128, %c0_148], %183 {strides = array<i32>} : memref<144x1156xf32, #tpu.memory_space<vmem>>, vector<16x1121xf32>,
    %cst_149 = arith.constant 0.000000e+00 : f32
    %185 = vector.broadcast %cst_149 : f32 to vector<16x35xf32>
    %c128_150 = arith.constant 128 : index
    %c1121 = arith.constant 1121 : index
    %186 = vector.load %arg21[%c128_150, %c1121] : memref<144x1156xf32, #tpu.memory_space<vmem>>, vector<16x35xf32>
    tpu.vector_store %arg21[%c128_150, %c1121], %185 {strides = array<i32>} : memref<144x1156xf32, #tpu.memory_space<vmem>>, vector<16x35xf32>,
    %c0_151 = arith.constant 0 : index
    %c0_152 = arith.constant 0 : index
    %187 = vector.load %arg13[%c0_151, %c0_152] : memref<32x144xf32, #tpu.memory_space<vmem>>, vector<32x144xf32>
    %c0_153 = arith.constant 0 : index
    %c0_154 = arith.constant 0 : index
    %188 = vector.load %arg21[%c0_153, %c0_154] : memref<144x1156xf32, #tpu.memory_space<vmem>>, vector<144x1156xf32>
    %cst_155 = arith.constant dense<0.000000e+00> : vector<32x1156xf32>
    %189 = tpu.matmul %187, %188, %cst_155 {dimension_numbers = #tpu.dot_dimension_numbers<[1], [0], [0], [1], [0, 0, 1, 1], [], []>} : vector<32x144xf32>, vector<144x1156xf32>, vector<32x1156xf32> -> vector<32x1156xf32>
    %c0_156 = arith.constant 0 : index
    %c0_157 = arith.constant 0 : index
    %190 = vector.load %arg14[%c0_156, %c0_157] : memref<32x1xf32, #tpu.memory_space<vmem>>, vector<32x1xf32>
    %191 = vector.broadcast %190 : vector<32x1xf32> to vector<32x1156xf32>
    %192 = arith.addf %189, %191 : vector<32x1156xf32>
    %cst_158 = arith.constant 5.000000e-01 : f32
    %193 = vector.broadcast %cst_158 : f32 to vector<32x1156xf32>
    %194 = arith.mulf %193, %192 : vector<32x1156xf32>
    %cst_159 = arith.constant 4.471500e-02 : f32
    %195 = vector.broadcast %cst_159 : f32 to vector<32x1156xf32>
    %196 = arith.mulf %195, %192 : vector<32x1156xf32>
    %197 = arith.mulf %196, %192 : vector<32x1156xf32>
    %198 = arith.mulf %197, %192 : vector<32x1156xf32>
    %199 = arith.addf %192, %198 : vector<32x1156xf32>
    %cst_160 = arith.constant 0.797884583 : f32
    %200 = vector.broadcast %cst_160 : f32 to vector<32x1156xf32>
    %201 = arith.mulf %200, %199 : vector<32x1156xf32>
    %202 = math.tanh %201 : vector<32x1156xf32>
    %cst_161 = arith.constant 1.000000e+00 : f32
    %203 = vector.broadcast %cst_161 : f32 to vector<32x1156xf32>
    %204 = arith.addf %203, %202 : vector<32x1156xf32>
    %205 = arith.mulf %194, %204 : vector<32x1156xf32>
    %c0_162 = arith.constant 0 : index
    %c0_163 = arith.constant 0 : index
    %206 = vector.load %arg15[%c0_162, %c0_163] : memref<3x32xf32, #tpu.memory_space<vmem>>, vector<3x32xf32>
    %cst_164 = arith.constant dense<0.000000e+00> : vector<3x1156xf32>
    %207 = tpu.matmul %206, %205, %cst_164 {dimension_numbers = #tpu.dot_dimension_numbers<[1], [0], [0], [1], [0, 0, 1, 1], [], []>} : vector<3x32xf32>, vector<32x1156xf32>, vector<3x1156xf32> -> vector<3x1156xf32>
    %c0_165 = arith.constant 0 : index
    %c0_166 = arith.constant 0 : index
    %208 = vector.load %arg16[%c0_165, %c0_166] : memref<3x1xf32, #tpu.memory_space<vmem>>, vector<3x1xf32>
    %209 = vector.broadcast %208 : vector<3x1xf32> to vector<3x1156xf32>
    %210 = arith.addf %207, %209 : vector<3x1156xf32>
    %c0_167 = arith.constant 0 : index
    %c0_168 = arith.constant 0 : index
    %c0_169 = arith.constant 0 : index
    %211 = vector.load %arg17[%c0_167, %c0_168, %c0_169] : memref<1x3x1156xf32, #tpu.memory_space<vmem>>, vector<1x3x1156xf32>
    %212 = vector.shape_cast %211 : vector<1x3x1156xf32> to vector<3x1156xf32>
    %213 = vector.shape_cast %210 : vector<3x1156xf32> to vector<1x3x1156xf32>
    tpu.vector_store %arg17[%c0_167, %c0_168, %c0_169], %213 {strides = array<i32>} : memref<1x3x1156xf32, #tpu.memory_space<vmem>>, vector<1x3x1156xf32>,
    return
  }
  func.func @transform_0(%arg0: i32) -> (i32, i32, i32) {
    %c0_i32 = arith.constant 0 : i32
    %c0_i32_0 = arith.constant 0 : i32
    %c0_i32_1 = arith.constant 0 : i32
    return %arg0, %c0_i32, %c0_i32_0 : i32, i32, i32
  }
  func.func @transform_1(%arg0: i32) -> (i32, i32) {
    %c0_i32 = arith.constant 0 : i32
    %c0_i32_0 = arith.constant 0 : i32
    %c0_i32_1 = arith.constant 0 : i32
    return %c0_i32, %c0_i32_0 : i32, i32
  }
  func.func @transform_2(%arg0: i32) -> (i32, i32) {
    %c0_i32 = arith.constant 0 : i32
    %c0_i32_0 = arith.constant 0 : i32
    %c0_i32_1 = arith.constant 0 : i32
    return %c0_i32, %c0_i32_0 : i32, i32
  }
  func.func @transform_3(%arg0: i32) -> (i32, i32) {
    %c0_i32 = arith.constant 0 : i32
    %c0_i32_0 = arith.constant 0 : i32
    %c0_i32_1 = arith.constant 0 : i32
    return %c0_i32, %c0_i32_0 : i32, i32
  }
  func.func @transform_4(%arg0: i32) -> (i32, i32) {
    %c0_i32 = arith.constant 0 : i32
    %c0_i32_0 = arith.constant 0 : i32
    %c0_i32_1 = arith.constant 0 : i32
    return %c0_i32, %c0_i32_0 : i32, i32
  }
  func.func @transform_5(%arg0: i32) -> (i32, i32) {
    %c0_i32 = arith.constant 0 : i32
    %c0_i32_0 = arith.constant 0 : i32
    %c0_i32_1 = arith.constant 0 : i32
    return %c0_i32, %c0_i32_0 : i32, i32
  }
  func.func @transform_6(%arg0: i32) -> (i32, i32) {
    %c0_i32 = arith.constant 0 : i32
    %c0_i32_0 = arith.constant 0 : i32
    %c0_i32_1 = arith.constant 0 : i32
    return %c0_i32, %c0_i32_0 : i32, i32
  }
  func.func @transform_7(%arg0: i32) -> (i32, i32) {
    %c0_i32 = arith.constant 0 : i32
    %c0_i32_0 = arith.constant 0 : i32
    %c0_i32_1 = arith.constant 0 : i32
    return %c0_i32, %c0_i32_0 : i32, i32
  }
  func.func @transform_8(%arg0: i32) -> (i32, i32) {
    %c0_i32 = arith.constant 0 : i32
    %c0_i32_0 = arith.constant 0 : i32
    %c0_i32_1 = arith.constant 0 : i32
    return %c0_i32, %c0_i32_0 : i32, i32
  }
  func.func @transform_9(%arg0: i32) -> (i32, i32) {
    %c0_i32 = arith.constant 0 : i32
    %c0_i32_0 = arith.constant 0 : i32
    %c0_i32_1 = arith.constant 0 : i32
    return %c0_i32, %c0_i32_0 : i32, i32
  }
  func.func @transform_10(%arg0: i32) -> (i32, i32) {
    %c0_i32 = arith.constant 0 : i32
    %c0_i32_0 = arith.constant 0 : i32
    %c0_i32_1 = arith.constant 0 : i32
    return %c0_i32, %c0_i32_0 : i32, i32
  }
  func.func @transform_11(%arg0: i32) -> (i32, i32) {
    %c0_i32 = arith.constant 0 : i32
    %c0_i32_0 = arith.constant 0 : i32
    %c0_i32_1 = arith.constant 0 : i32
    return %c0_i32, %c0_i32_0 : i32, i32
  }
  func.func @transform_12(%arg0: i32) -> (i32, i32) {
    %c0_i32 = arith.constant 0 : i32
    %c0_i32_0 = arith.constant 0 : i32
    %c0_i32_1 = arith.constant 0 : i32
    return %c0_i32, %c0_i32_0 : i32, i32
  }
  func.func @transform_13(%arg0: i32) -> (i32, i32) {
    %c0_i32 = arith.constant 0 : i32
    %c0_i32_0 = arith.constant 0 : i32
    %c0_i32_1 = arith.constant 0 : i32
    return %c0_i32, %c0_i32_0 : i32, i32
  }
  func.func @transform_14(%arg0: i32) -> (i32, i32) {
    %c0_i32 = arith.constant 0 : i32
    %c0_i32_0 = arith.constant 0 : i32
    %c0_i32_1 = arith.constant 0 : i32
    return %c0_i32, %c0_i32_0 : i32, i32
  }
  func.func @transform_15(%arg0: i32) -> (i32, i32) {
    %c0_i32 = arith.constant 0 : i32
    %c0_i32_0 = arith.constant 0 : i32
    %c0_i32_1 = arith.constant 0 : i32
    return %c0_i32, %c0_i32_0 : i32, i32
  }
  func.func @transform_16(%arg0: i32) -> (i32, i32, i32) {
    %c0_i32 = arith.constant 0 : i32
    %c0_i32_0 = arith.constant 0 : i32
    %c0_i32_1 = arith.constant 0 : i32
    return %arg0, %c0_i32, %c0_i32_0 : i32, i32, i32
  }
}

</mosaic_0001>

<llo_original>
// kernel: generator_forward.1
$region0: #{generator_forward.1}
  #allocation0 [shape = 'u32[]', space=smem, size = 0x4, offset = 0x4, fixed_abs, tag = 'smem constant byte address 0x4 - core index']
  #allocation1 [shape = 'u32[144,128]{1,0:T(1,128)}', space=vmem, size = 0x12000, scoped, tag = 'internal scratch']
  #allocation2 [shape = 'f32[2,324]{1,0:T(2,128)}', space=vmem, size = 0xc00, scoped, tag = 'scratch operand']
  #allocation3 [shape = 'f32[18,324]{1,0:T(8,128)}', space=vmem, size = 0x9000, scoped, tag = 'scratch operand']
  #allocation4 [shape = 'f32[72,324]{1,0:T(8,128)}', space=vmem, size = 0x1b000, scoped, tag = 'scratch operand']
  #allocation5 [shape = 'f32[144,1156]{1,0:T(8,128)}', space=vmem, size = 0xb4000, scoped, tag = 'scratch operand']
  %s0 = inlined_call_operand.hbm [shape: f32[2,1,32], index: 0, kind: input, shape index: {}]
  %s1 = inlined_call_operand.hbm [shape: f32[32,256], index: 1, kind: input, shape index: {}]
  %s2 = inlined_call_operand.hbm [shape: f32[1,256], index: 2, kind: input, shape index: {}]
  %s3 = inlined_call_operand.hbm [shape: f32[256,128], index: 3, kind: input, shape index: {}]
  %s4 = inlined_call_operand.hbm [shape: f32[1,128], index: 4, kind: input, shape index: {}]
  %s5 = inlined_call_operand.hbm [shape: f32[64,324], index: 5, kind: input, shape index: {}]
  %s6 = inlined_call_operand.hbm [shape: f32[1,324], index: 6, kind: input, shape index: {}]
  %s7 = inlined_call_operand.hbm [shape: f32[324,1156], index: 7, kind: input, shape index: {}]
  %s8 = inlined_call_operand.hbm [shape: f32[8,18], index: 8, kind: input, shape index: {}]
  %s9 = inlined_call_operand.vmem [shape: f32[8,1], index: 9, kind: input, shape index: {}]
  %s10 = inlined_call_operand.hbm [shape: f32[16,72], index: 10, kind: input, shape index: {}]
  %s11 = inlined_call_operand.vmem [shape: f32[16,1], index: 11, kind: input, shape index: {}]
  %s12 = inlined_call_operand.hbm [shape: f32[32,144], index: 12, kind: input, shape index: {}]
  %s13 = inlined_call_operand.vmem [shape: f32[32,1], index: 13, kind: input, shape index: {}]
  %s14 = inlined_call_operand.hbm [shape: f32[3,32], index: 14, kind: input, shape index: {}]
  %s15 = inlined_call_operand.vmem [shape: f32[3,1], index: 15, kind: input, shape index: {}]
  %s16 = inlined_call_operand.vmem [shape: f32[2,3,1156], index: 16, kind: output, shape index: {}]
  %s17 = sld [smem:[#allocation0]]
  $region145: #{generator_forward.1} parent=0
    _
  %s19 = ssub.s32 1, %s17
  %s20 = scalar_select 0, %s19, %s17
  $region1: #{generator_forward.1} parent=0
    #allocation6 [shape = 'u8[1024]{0}', space=vmem, size = 0x400, scoped, tag = 'input window, operand 0']
    #allocation7 [shape = 's32[2]{0}', space=sflag, size = 0x8, scoped, tag = 'scoped memory for generator_forward.1']
    #allocation8 [shape = 'u8[32768]{0}', space=vmem, size = 0x8000, scoped, tag = 'input window, operand 1, single buffered']
    #allocation9 [shape = 's32[1]{0}', space=sflag, size = 0x4, scoped, tag = 'scoped memory for generator_forward.1']
    #allocation10 [shape = 'u8[1024]{0}', space=vmem, size = 0x400, scoped, tag = 'input window, operand 2, single buffered']
    #allocation11 [shape = 'u8[131072]{0}', space=vmem, size = 0x20000, scoped, tag = 'input window, operand 3, single buffered']
    #allocation12 [shape = 's32[1]{0}', space=sflag, size = 0x4, scoped, tag = 'scoped memory for generator_forward.1']
    #allocation13 [shape = 'u8[512]{0}', space=vmem, size = 0x400, scoped, tag = 'input window, operand 4, single buffered']
    #allocation14 [shape = 'u8[98304]{0}', space=vmem, size = 0x18000, scoped, tag = 'input window, operand 5, single buffered']
    #allocation15 [shape = 's32[1]{0}', space=sflag, size = 0x4, scoped, tag = 'scoped memory for generator_forward.1']
    #allocation16 [shape = 'u8[1536]{0}', space=vmem, size = 0x800, scoped, tag = 'input window, operand 6, single buffered']
    #allocation17 [shape = 'u8[1679360]{0}', space=vmem, size = 0x19a000, scoped, tag = 'input window, operand 7, single buffered']
    #allocation18 [shape = 's32[1]{0}', space=sflag, size = 0x4, scoped, tag = 'scoped memory for generator_forward.1']
    #allocation19 [shape = 'u8[4096]{0}', space=vmem, size = 0x1000, scoped, tag = 'input window, operand 8, single buffered']
    #allocation20 [shape = 'u8[8192]{0}', space=vmem, size = 0x2000, scoped, tag = 'input window, operand 10, single buffered']
    #allocation21 [shape = 's32[1]{0}', space=sflag, size = 0x4, scoped, tag = 'scoped memory for generator_forward.1']
    #allocation22 [shape = 'u8[32768]{0}', space=vmem, size = 0x8000, scoped, tag = 'input window, operand 12, single buffered']
    #allocation23 [shape = 'u8[2048]{0}', space=vmem, size = 0x800, scoped, tag = 'input window, operand 14, single buffered']
    #allocation24 [shape = 's32[1]{0}', space=sflag, size = 0x4, scoped, tag = 'scoped memory for generator_forward.1']
    %21 = vsyncpa [#allocation7], 0
    %s22 = scalar_lea.sflag [#allocation7], 1
    %23 = vsyncpa %s22, 0
    %24 = vsyncpa [#allocation9], 0
    %25 = vsyncpa [#allocation12], 0
    %26 = vsyncpa [#allocation15], 0
    %27 = vsyncpa [#allocation18], 0
    %28 = vsyncpa [#allocation21], 0
    %29 = vsyncpa [#allocation24], 0
    loop: start=0, step=1, limit=4
    $region2: #{generator_forward.1} parent=1 // loop_pre_header
      _
    $region3: #{generator_forward.1} parent=1 // loop_header
      %s31 = sphi 0, %s35
      %p32 = scmp.ge.s32.totalorder %s31, 4
      %s41 = sphi 0, %s43
      %s44 = sphi 0, %s41
      %s45 = sphi 0, %s44
      %s61 = sphi 0, %s45
      %s65 = sphi 0, %s65
      %s67 = sphi 0, %s65
      %s68 = sphi 0, %s67
      %s82 = sphi 0, %s68
      %s86 = sphi 0, %s86
      %s88 = sphi 0, %s86
      %s89 = sphi 0, %s88
      %s103 = sphi 0, %s89
      %s107 = sphi 0, %s107
      %s109 = sphi 0, %s107
      %s110 = sphi 0, %s109
      %s124 = sphi 0, %s110
      %s128 = sphi 0, %s128
      %s130 = sphi 0, %s128
      %s131 = sphi 0, %s130
      %s145 = sphi 0, %s131
      %s149 = sphi 0, %s149
      %s151 = sphi 0, %s149
      %s152 = sphi 0, %s151
      %s166 = sphi 0, %s152
      %s170 = sphi 0, %s170
      %s172 = sphi 0, %s170
      %s173 = sphi 0, %s172
      %s187 = sphi 0, %s173
      %s191 = sphi 0, %s191
      %s193 = sphi 0, %s191
      %s194 = sphi 0, %s193
      %s208 = sphi 0, %s194
      %s212 = sphi 0, %s212
      %s214 = sphi 0, %s212
      %s215 = sphi 0, %s214
      %s229 = sphi 0, %s215
      %s233 = sphi 0, %s233
      %s235 = sphi 0, %s233
      %s236 = sphi 0, %s235
      %s250 = sphi 0, %s236
      %s254 = sphi 0, %s254
      %s256 = sphi 0, %s254
      %s257 = sphi 0, %s256
      %s271 = sphi 0, %s257
      %s275 = sphi 0, %s275
      %s277 = sphi 0, %s275
      %s278 = sphi 0, %s277
      %s292 = sphi 0, %s278
      %s296 = sphi 0, %s296
      %s298 = sphi 0, %s296
      %s299 = sphi 0, %s298
      %s313 = sphi 0, %s299
      %s317 = sphi 0, %s317
      %s319 = sphi 0, %s317
      %s320 = sphi 0, %s319
      %s334 = sphi 0, %s320
      %s338 = sphi 0, %s338
      %s340 = sphi 0, %s338
      %s341 = sphi 0, %s340
      %s355 = sphi 0, %s341
      %s359 = sphi 0, %s359
      %s361 = sphi 0, %s359
      %s362 = sphi 0, %s361
      %s376 = sphi 0, %s362
      %s382 = sphi 0, %s384
      %s385 = sphi 0, %s382
      %s386 = sphi 0, %s385
      %s402 = sphi 0, %s386
    $region4: #{generator_forward.1} parent=1 // loop_header_branch
      %34 = sbr.rel (%p32) target = $region8
    $region5: #{generator_forward.1} parent=1 // loop_body
      %s36 = ssub.s32 %s31, 1
      %s37 = ssub.s32 %s31, 2
      %s38 = sadd.s32 %s31, 1
      %s39 = ssub.s32 %s31, %s38
      %p40 = scmp.eq.s32.totalorder %s39, 0
      %s42 = sadd.s32 %s41, 1
      %s43 = scalar_select %p40, %s41, %s42
      %p46 = pneg %p40
      %p47 = scmp.eq.s32.totalorder %s31, 1
      %p48 = por %p46, %p47
      %p49 = scmp.ne.s32.totalorder %s41, %s44
      %p50 = scmp.eq.s32.totalorder %s31, 0
      %p51 = por %p49, %p50
      %p52 = scmp.ne.s32.totalorder %s41, %s44
      %p53 = scmp.eq.s32.totalorder %s36, 1
      %p54 = por %p52, %p53
      %p55 = scmp.ne.s32.totalorder %s44, %s45
      %p56 = scmp.eq.s32.totalorder %s36, 0
      %p57 = por %p55, %p56
      %p58 = scmp.ne.s32.totalorder %s44, %s45
      %p59 = scmp.eq.s32.totalorder %s37, 1
      %p60 = por %p58, %p59
      %p62 = scmp.ne.s32.totalorder %s45, %s61
      %p63 = scmp.eq.s32.totalorder %s37, 0
      %p64 = por %p62, %p63
      %s66 = sadd.s32 %s65, 1
      %p69 = scmp.eq.s32.totalorder %s31, 1
      %p70 = scmp.ne.s32.totalorder %s65, %s67
      %p71 = scmp.eq.s32.totalorder %s31, 0
      %p72 = por %p70, %p71
      %p73 = scmp.ne.s32.totalorder %s65, %s67
      %p74 = scmp.eq.s32.totalorder %s36, 1
      %p75 = por %p73, %p74
      %p76 = scmp.ne.s32.totalorder %s67, %s68
      %p77 = scmp.eq.s32.totalorder %s36, 0
      %p78 = por %p76, %p77
      %p79 = scmp.ne.s32.totalorder %s67, %s68
      %p80 = scmp.eq.s32.totalorder %s37, 1
      %p81 = por %p79, %p80
      %p83 = scmp.ne.s32.totalorder %s68, %s82
      %p84 = scmp.eq.s32.totalorder %s37, 0
      %p85 = por %p83, %p84
      %s87 = sadd.s32 %s86, 1
      %p90 = scmp.eq.s32.totalorder %s31, 1
      %p91 = scmp.ne.s32.totalorder %s86, %s88
      %p92 = scmp.eq.s32.totalorder %s31, 0
      %p93 = por %p91, %p92
      %p94 = scmp.ne.s32.totalorder %s86, %s88
      %p95 = scmp.eq.s32.totalorder %s36, 1
      %p96 = por %p94, %p95
      %p97 = scmp.ne.s32.totalorder %s88, %s89
      %p98 = scmp.eq.s32.totalorder %s36, 0
      %p99 = por %p97, %p98
      %p100 = scmp.ne.s32.totalorder %s88, %s89
      %p101 = scmp.eq.s32.totalorder %s37, 1
      %p102 = por %p100, %p101
      %p104 = scmp.ne.s32.totalorder %s89, %s103
      %p105 = scmp.eq.s32.totalorder %s37, 0
      %p106 = por %p104, %p105
      %s108 = sadd.s32 %s107, 1
      %p111 = scmp.eq.s32.totalorder %s31, 1
      %p112 = scmp.ne.s32.totalorder %s107, %s109
      %p113 = scmp.eq.s32.totalorder %s31, 0
      %p114 = por %p112, %p113
      %p115 = scmp.ne.s32.totalorder %s107, %s109
      %p116 = scmp.eq.s32.totalorder %s36, 1
      %p117 = por %p115, %p116
      %p118 = scmp.ne.s32.totalorder %s109, %s110
      %p119 = scmp.eq.s32.totalorder %s36, 0
      %p120 = por %p118, %p119
      %p121 = scmp.ne.s32.totalorder %s109, %s110
      %p122 = scmp.eq.s32.totalorder %s37, 1
      %p123 = por %p121, %p122
      %p125 = scmp.ne.s32.totalorder %s110, %s124
      %p126 = scmp.eq.s32.totalorder %s37, 0
      %p127 = por %p125, %p126
      %s129 = sadd.s32 %s128, 1
      %p132 = scmp.eq.s32.totalorder %s31, 1
      %p133 = scmp.ne.s32.totalorder %s128, %s130
      %p134 = scmp.eq.s32.totalorder %s31, 0
      %p135 = por %p133, %p134
      %p136 = scmp.ne.s32.totalorder %s128, %s130
      %p137 = scmp.eq.s32.totalorder %s36, 1
      %p138 = por %p136, %p137
      %p139 = scmp.ne.s32.totalorder %s130, %s131
      %p140 = scmp.eq.s32.totalorder %s36, 0
      %p141 = por %p139, %p140
      %p142 = scmp.ne.s32.totalorder %s130, %s131
      %p143 = scmp.eq.s32.totalorder %s37, 1
      %p144 = por %p142, %p143
      %p146 = scmp.ne.s32.totalorder %s131, %s145
      %p147 = scmp.eq.s32.totalorder %s37, 0
      %p148 = por %p146, %p147
      %s150 = sadd.s32 %s149, 1
      %p153 = scmp.eq.s32.totalorder %s31, 1
      %p154 = scmp.ne.s32.totalorder %s149, %s151
      %p155 = scmp.eq.s32.totalorder %s31, 0
      %p156 = por %p154, %p155
      %p157 = scmp.ne.s32.totalorder %s149, %s151
      %p158 = scmp.eq.s32.totalorder %s36, 1
      %p159 = por %p157, %p158
      %p160 = scmp.ne.s32.totalorder %s151, %s152
      %p161 = scmp.eq.s32.totalorder %s36, 0
      %p162 = por %p160, %p161
      %p163 = scmp.ne.s32.totalorder %s151, %s152
      %p164 = scmp.eq.s32.totalorder %s37, 1
      %p165 = por %p163, %p164
      %p167 = scmp.ne.s32.totalorder %s152, %s166
      %p168 = scmp.eq.s32.totalorder %s37, 0
      %p169 = por %p167, %p168
      %s171 = sadd.s32 %s170, 1
      %p174 = scmp.eq.s32.totalorder %s31, 1
      %p175 = scmp.ne.s32.totalorder %s170, %s172
      %p176 = scmp.eq.s32.totalorder %s31, 0
      %p177 = por %p175, %p176
      %p178 = scmp.ne.s32.totalorder %s170, %s172
      %p179 = scmp.eq.s32.totalorder %s36, 1
      %p180 = por %p178, %p179
      %p181 = scmp.ne.s32.totalorder %s172, %s173
      %p182 = scmp.eq.s32.totalorder %s36, 0
      %p183 = por %p181, %p182
      %p184 = scmp.ne.s32.totalorder %s172, %s173
      %p185 = scmp.eq.s32.totalorder %s37, 1
      %p186 = por %p184, %p185
      %p188 = scmp.ne.s32.totalorder %s173, %s187
      %p189 = scmp.eq.s32.totalorder %s37, 0
      %p190 = por %p188, %p189
      %s192 = sadd.s32 %s191, 1
      %p195 = scmp.eq.s32.totalorder %s31, 1
      %p196 = scmp.ne.s32.totalorder %s191, %s193
      %p197 = scmp.eq.s32.totalorder %s31, 0
      %p198 = por %p196, %p197
      %p199 = scmp.ne.s32.totalorder %s191, %s193
      %p200 = scmp.eq.s32.totalorder %s36, 1
      %p201 = por %p199, %p200
      %p202 = scmp.ne.s32.totalorder %s193, %s194
      %p203 = scmp.eq.s32.totalorder %s36, 0
      %p204 = por %p202, %p203
      %p205 = scmp.ne.s32.totalorder %s193, %s194
      %p206 = scmp.eq.s32.totalorder %s37, 1
      %p207 = por %p205, %p206
      %p209 = scmp.ne.s32.totalorder %s194, %s208
      %p210 = scmp.eq.s32.totalorder %s37, 0
      %p211 = por %p209, %p210
      %s213 = sadd.s32 %s212, 1
      %p216 = scmp.eq.s32.totalorder %s31, 1
      %p217 = scmp.ne.s32.totalorder %s212, %s214
      %p218 = scmp.eq.s32.totalorder %s31, 0
      %p219 = por %p217, %p218
      %p220 = scmp.ne.s32.totalorder %s212, %s214
      %p221 = scmp.eq.s32.totalorder %s36, 1
      %p222 = por %p220, %p221
      %p223 = scmp.ne.s32.totalorder %s214, %s215
      %p224 = scmp.eq.s32.totalorder %s36, 0
      %p225 = por %p223, %p224
      %p226 = scmp.ne.s32.totalorder %s214, %s215
      %p227 = scmp.eq.s32.totalorder %s37, 1
      %p228 = por %p226, %p227
      %p230 = scmp.ne.s32.totalorder %s215, %s229
      %p231 = scmp.eq.s32.totalorder %s37, 0
      %p232 = por %p230, %p231
      %s234 = sadd.s32 %s233, 1
      %p237 = scmp.eq.s32.totalorder %s31, 1
      %p238 = scmp.ne.s32.totalorder %s233, %s235
      %p239 = scmp.eq.s32.totalorder %s31, 0
      %p240 = por %p238, %p239
      %p241 = scmp.ne.s32.totalorder %s233, %s235
      %p242 = scmp.eq.s32.totalorder %s36, 1
      %p243 = por %p241, %p242
      %p244 = scmp.ne.s32.totalorder %s235, %s236
      %p245 = scmp.eq.s32.totalorder %s36, 0
      %p246 = por %p244, %p245
      %p247 = scmp.ne.s32.totalorder %s235, %s236
      %p248 = scmp.eq.s32.totalorder %s37, 1
      %p249 = por %p247, %p248
      %p251 = scmp.ne.s32.totalorder %s236, %s250
      %p252 = scmp.eq.s32.totalorder %s37, 0
      %p253 = por %p251, %p252
      %s255 = sadd.s32 %s254, 1
      %p258 = scmp.eq.s32.totalorder %s31, 1
      %p259 = scmp.ne.s32.totalorder %s254, %s256
      %p260 = scmp.eq.s32.totalorder %s31, 0
      %p261 = por %p259, %p260
      %p262 = scmp.ne.s32.totalorder %s254, %s256
      %p263 = scmp.eq.s32.totalorder %s36, 1
      %p264 = por %p262, %p263
      %p265 = scmp.ne.s32.totalorder %s256, %s257
      %p266 = scmp.eq.s32.totalorder %s36, 0
      %p267 = por %p265, %p266
      %p268 = scmp.ne.s32.totalorder %s256, %s257
      %p269 = scmp.eq.s32.totalorder %s37, 1
      %p270 = por %p268, %p269
      %p272 = scmp.ne.s32.totalorder %s257, %s271
      %p273 = scmp.eq.s32.totalorder %s37, 0
      %p274 = por %p272, %p273
      %s276 = sadd.s32 %s275, 1
      %p279 = scmp.eq.s32.totalorder %s31, 1
      %p280 = scmp.ne.s32.totalorder %s275, %s277
      %p281 = scmp.eq.s32.totalorder %s31, 0
      %p282 = por %p280, %p281
      %p283 = scmp.ne.s32.totalorder %s275, %s277
      %p284 = scmp.eq.s32.totalorder %s36, 1
      %p285 = por %p283, %p284
      %p286 = scmp.ne.s32.totalorder %s277, %s278
      %p287 = scmp.eq.s32.totalorder %s36, 0
      %p288 = por %p286, %p287
      %p289 = scmp.ne.s32.totalorder %s277, %s278
      %p290 = scmp.eq.s32.totalorder %s37, 1
      %p291 = por %p289, %p290
      %p293 = scmp.ne.s32.totalorder %s278, %s292
      %p294 = scmp.eq.s32.totalorder %s37, 0
      %p295 = por %p293, %p294
      %s297 = sadd.s32 %s296, 1
      %p300 = scmp.eq.s32.totalorder %s31, 1
      %p301 = scmp.ne.s32.totalorder %s296, %s298
      %p302 = scmp.eq.s32.totalorder %s31, 0
      %p303 = por %p301, %p302
      %p304 = scmp.ne.s32.totalorder %s296, %s298
      %p305 = scmp.eq.s32.totalorder %s36, 1
      %p306 = por %p304, %p305
      %p307 = scmp.ne.s32.totalorder %s298, %s299
      %p308 = scmp.eq.s32.totalorder %s36, 0
      %p309 = por %p307, %p308
      %p310 = scmp.ne.s32.totalorder %s298, %s299
      %p311 = scmp.eq.s32.totalorder %s37, 1
      %p312 = por %p310, %p311
      %p314 = scmp.ne.s32.totalorder %s299, %s313
      %p315 = scmp.eq.s32.totalorder %s37, 0
      %p316 = por %p314, %p315
      %s318 = sadd.s32 %s317, 1
      %p321 = scmp.eq.s32.totalorder %s31, 1
      %p322 = scmp.ne.s32.totalorder %s317, %s319
      %p323 = scmp.eq.s32.totalorder %s31, 0
      %p324 = por %p322, %p323
      %p325 = scmp.ne.s32.totalorder %s317, %s319
      %p326 = scmp.eq.s32.totalorder %s36, 1
      %p327 = por %p325, %p326
      %p328 = scmp.ne.s32.totalorder %s319, %s320
      %p329 = scmp.eq.s32.totalorder %s36, 0
      %p330 = por %p328, %p329
      %p331 = scmp.ne.s32.totalorder %s319, %s320
      %p332 = scmp.eq.s32.totalorder %s37, 1
      %p333 = por %p331, %p332
      %p335 = scmp.ne.s32.totalorder %s320, %s334
      %p336 = scmp.eq.s32.totalorder %s37, 0
      %p337 = por %p335, %p336
      %s339 = sadd.s32 %s338, 1
      %p342 = scmp.eq.s32.totalorder %s31, 1
      %p343 = scmp.ne.s32.totalorder %s338, %s340
      %p344 = scmp.eq.s32.totalorder %s31, 0
      %p345 = por %p343, %p344
      %p346 = scmp.ne.s32.totalorder %s338, %s340
      %p347 = scmp.eq.s32.totalorder %s36, 1
      %p348 = por %p346, %p347
      %p349 = scmp.ne.s32.totalorder %s340, %s341
      %p350 = scmp.eq.s32.totalorder %s36, 0
      %p351 = por %p349, %p350
      %p352 = scmp.ne.s32.totalorder %s340, %s341
      %p353 = scmp.eq.s32.totalorder %s37, 1
      %p354 = por %p352, %p353
      %p356 = scmp.ne.s32.totalorder %s341, %s355
      %p357 = scmp.eq.s32.totalorder %s37, 0
      %p358 = por %p356, %p357
      %s360 = sadd.s32 %s359, 1
      %p363 = scmp.eq.s32.totalorder %s31, 1
      %p364 = scmp.ne.s32.totalorder %s359, %s361
      %p365 = scmp.eq.s32.totalorder %s31, 0
      %p366 = por %p364, %p365
      %p367 = scmp.ne.s32.totalorder %s359, %s361
      %p368 = scmp.eq.s32.totalorder %s36, 1
      %p369 = por %p367, %p368
      %p370 = scmp.ne.s32.totalorder %s361, %s362
      %p371 = scmp.eq.s32.totalorder %s36, 0
      %p372 = por %p370, %p371
      %p373 = scmp.ne.s32.totalorder %s361, %s362
      %p374 = scmp.eq.s32.totalorder %s37, 1
      %p375 = por %p373, %p374
      %p377 = scmp.ne.s32.totalorder %s362, %s376
      %p378 = scmp.eq.s32.totalorder %s37, 0
      %p379 = por %p377, %p378
      %s380 = ssub.s32 %s31, %s38
      %p381 = scmp.eq.s32.totalorder %s380, 0
      %s383 = sadd.s32 %s382, 1
      %s384 = scalar_select %p381, %s382, %s383
      %p387 = pneg %p381
      %p388 = scmp.eq.s32.totalorder %s31, 1
      %p389 = por %p387, %p388
      %p390 = scmp.ne.s32.totalorder %s382, %s385
      %p391 = scmp.eq.s32.totalorder %s31, 0
      %p392 = por %p390, %p391
      %p393 = scmp.ne.s32.totalorder %s382, %s385
      %p394 = scmp.eq.s32.totalorder %s36, 1
      %p395 = por %p393, %p394
      %p396 = scmp.ne.s32.totalorder %s385, %s386
      %p397 = scmp.eq.s32.totalorder %s36, 0
      %p398 = por %p396, %p397
      %p399 = scmp.ne.s32.totalorder %s385, %s386
      %p400 = scmp.eq.s32.totalorder %s37, 1
      %p401 = por %p399, %p400
      %p403 = scmp.ne.s32.totalorder %s386, %s402
      %p404 = scmp.eq.s32.totalorder %s37, 0
      %p405 = por %p403, %p404
      %p406 = scmp.le.s32.totalorder 1, %s31
      %p407 = scmp.lt.s32.totalorder %s31, 3
      %p408 = pnand %p406, %p407
      %p409 = pneg %p408
      // Predicated region
      $region9: #{generator_forward.1} parent=5 // pred_check
        _
      $region10: #{generator_forward.1} parent=5 // pred_check_branch
        %411 = sbr.rel (%p408) target = $region12
      $region11: #{generator_forward.1} parent=5 // pred_region
        %s412 = ssub.s32 %s31, 1
        // Predicated region
        $region13: #{generator_forward.1} parent=11 // pred_check
          %p413 = pneg %p78
        $region14: #{generator_forward.1} parent=11 // pred_check_branch
          %415 = sbr.rel (%p413) target = $region16
        $region15: #{generator_forward.1} parent=11 // pred_region
          %s417 = ssub.s32 1024, 1024
          %418 = vsyncadd [#allocation9], %s417
          %s419 = sshll.u32 [#allocation8], 4
          %s420 = int_to_ptr.vmem [resolvable:$true] %s419
          %425 = dma.hbm_to_vmem [thread:$0]  %s1, 1024, %s420, [#allocation9], 256, 256, 16
        $region16: #{generator_forward.1} parent=11 // pred_fallthru
          _
        // Predicated region
        $region17: #{generator_forward.1} parent=11 // pred_check
          %p426 = pneg %p99
        $region18: #{generator_forward.1} parent=11 // pred_check_branch
          %428 = sbr.rel (%p426) target = $region20
        $region19: #{generator_forward.1} parent=11 // pred_region
          %s430 = ssub.s32 32, 32
          %431 = vsyncadd [#allocation9], %s430
          %s433 = sshll.u32 [#allocation10], 4
          %s434 = int_to_ptr.vmem [resolvable:$true] %s433
          %436 = dma.hbm_to_vmem [thread:$0]  %s2, 32, %s434, [#allocation9]
        $region20: #{generator_forward.1} parent=11 // pred_fallthru
          _
        // Predicated region
        $region21: #{generator_forward.1} parent=11 // pred_check
          %p437 = pneg %p120
        $region22: #{generator_forward.1} parent=11 // pred_check_branch
          %439 = sbr.rel (%p437) target = $region24
        $region23: #{generator_forward.1} parent=11 // pred_region
          %s441 = ssub.s32 4096, 4096
          %442 = vsyncadd [#allocation12], %s441
          %s443 = sshll.u32 [#allocation11], 4
          %s444 = int_to_ptr.vmem [resolvable:$true] %s443
          %449 = dma.hbm_to_vmem [thread:$0]  %s3, 4096, %s444, [#allocation12], 128, 128, 8
        $region24: #{generator_forward.1} parent=11 // pred_fallthru
          _
        // Predicated region
        $region25: #{generator_forward.1} parent=11 // pred_check
          %p450 = pneg %p141
        $region26: #{generator_forward.1} parent=11 // pred_check_branch
          %452 = sbr.rel (%p450) target = $region28
        $region27: #{generator_forward.1} parent=11 // pred_region
          %s454 = ssub.s32 16, 16
          %455 = vsyncadd [#allocation12], %s454
          %s457 = sshll.u32 [#allocation13], 4
          %s458 = int_to_ptr.vmem [resolvable:$true] %s457
          %460 = dma.hbm_to_vmem [thread:$0]  %s4, 16, %s458, [#allocation12]
        $region28: #{generator_forward.1} parent=11 // pred_fallthru
          _
        // Predicated region
        $region29: #{generator_forward.1} parent=11 // pred_check
          %p461 = pneg %p162
        $region30: #{generator_forward.1} parent=11 // pred_check_branch
          %463 = sbr.rel (%p461) target = $region32
        $region31: #{generator_forward.1} parent=11 // pred_region
          %s465 = ssub.s32 3072, 3072
          %466 = vsyncadd [#allocation15], %s465
          %s467 = sshll.u32 [#allocation14], 4
          %s468 = int_to_ptr.vmem [resolvable:$true] %s467
          %473 = dma.hbm_to_vmem [thread:$0]  %s5, 3072, %s468, [#allocation15], 384, 384, 24
        $region32: #{generator_forward.1} parent=11 // pred_fallthru
          _
        // Predicated region
        $region33: #{generator_forward.1} parent=11 // pred_check
          %p474 = pneg %p183
        $region34: #{generator_forward.1} parent=11 // pred_check_branch
          %476 = sbr.rel (%p474) target = $region36
        $region35: #{generator_forward.1} parent=11 // pred_region
          %s478 = ssub.s32 48, 48
          %479 = vsyncadd [#allocation15], %s478
          %s481 = sshll.u32 [#allocation16], 4
          %s482 = int_to_ptr.vmem [resolvable:$true] %s481
          %484 = dma.hbm_to_vmem [thread:$0]  %s6, 48, %s482, [#allocation15]
        $region36: #{generator_forward.1} parent=11 // pred_fallthru
          _
        // Predicated region
        $region37: #{generator_forward.1} parent=11 // pred_check
          %p485 = pneg %p204
        $region38: #{generator_forward.1} parent=11 // pred_check_branch
          %487 = sbr.rel (%p485) target = $region40
        $region39: #{generator_forward.1} parent=11 // pred_region
          %s489 = ssub.s32 52480, 52480
          %490 = vsyncadd [#allocation18], %s489
          %s491 = sshll.u32 [#allocation17], 4
          %s492 = int_to_ptr.vmem [resolvable:$true] %s491
          %497 = dma.hbm_to_vmem [thread:$0]  %s7, 52480, %s492, [#allocation18], 1280, 1280, 80
        $region40: #{generator_forward.1} parent=11 // pred_fallthru
          _
        // Predicated region
        $region41: #{generator_forward.1} parent=11 // pred_check
          %p498 = pneg %p225
        $region42: #{generator_forward.1} parent=11 // pred_check_branch
          %500 = sbr.rel (%p498) target = $region44
        $region43: #{generator_forward.1} parent=11 // pred_region
          %s502 = ssub.s32 128, 128
          %503 = vsyncadd [#allocation18], %s502
          %s505 = sshll.u32 [#allocation19], 4
          %s506 = int_to_ptr.vmem [resolvable:$true] %s505
          %508 = dma.hbm_to_vmem [thread:$0]  %s8, 128, %s506, [#allocation18]
        $region44: #{generator_forward.1} parent=11 // pred_fallthru
          _
        // Predicated region
        $region45: #{generator_forward.1} parent=11 // pred_check
          %p509 = pneg %p246
        $region46: #{generator_forward.1} parent=11 // pred_check_branch
          %511 = sbr.rel (%p509) target = $region48
        $region47: #{generator_forward.1} parent=11 // pred_region
          _
        $region48: #{generator_forward.1} parent=11 // pred_fallthru
          _
        // Predicated region
        $region49: #{generator_forward.1} parent=11 // pred_check
          %p512 = pneg %p267
        $region50: #{generator_forward.1} parent=11 // pred_check_branch
          %514 = sbr.rel (%p512) target = $region52
        $region51: #{generator_forward.1} parent=11 // pred_region
          %s516 = ssub.s32 256, 256
          %517 = vsyncadd [#allocation21], %s516
          %s518 = sshll.u32 [#allocation20], 4
          %s519 = int_to_ptr.vmem [resolvable:$true] %s518
          %524 = dma.hbm_to_vmem [thread:$0]  %s10, 256, %s519, [#allocation21], 128, 128, 8
        $region52: #{generator_forward.1} parent=11 // pred_fallthru
          _
        // Predicated region
        $region53: #{generator_forward.1} parent=11 // pred_check
          %p525 = pneg %p288
        $region54: #{generator_forward.1} parent=11 // pred_check_branch
          %527 = sbr.rel (%p525) target = $region56
        $region55: #{generator_forward.1} parent=11 // pred_region
          _
        $region56: #{generator_forward.1} parent=11 // pred_fallthru
          _
        // Predicated region
        $region57: #{generator_forward.1} parent=11 // pred_check
          %p528 = pneg %p309
        $region58: #{generator_forward.1} parent=11 // pred_check_branch
          %530 = sbr.rel (%p528) target = $region60
        $region59: #{generator_forward.1} parent=11 // pred_region
          %s532 = ssub.s32 1024, 1024
          %533 = vsyncadd [#allocation21], %s532
          %s534 = sshll.u32 [#allocation22], 4
          %s535 = int_to_ptr.vmem [resolvable:$true] %s534
          %540 = dma.hbm_to_vmem [thread:$0]  %s12, 1024, %s535, [#allocation21], 256, 256, 16
        $region60: #{generator_forward.1} parent=11 // pred_fallthru
          _
        // Predicated region
        $region61: #{generator_forward.1} parent=11 // pred_check
          %p541 = pneg %p330
        $region62: #{generator_forward.1} parent=11 // pred_check_branch
          %543 = sbr.rel (%p541) target = $region64
        $region63: #{generator_forward.1} parent=11 // pred_region
          _
        $region64: #{generator_forward.1} parent=11 // pred_fallthru
          _
        // Predicated region
        $region65: #{generator_forward.1} parent=11 // pred_check
          %p544 = pneg %p351
        $region66: #{generator_forward.1} parent=11 // pred_check_branch
          %546 = sbr.rel (%p544) target = $region68
        $region67: #{generator_forward.1} parent=11 // pred_region
          %s548 = ssub.s32 64, 64
          %549 = vsyncadd [#allocation24], %s548
          %s551 = sshll.u32 [#allocation23], 4
          %s552 = int_to_ptr.vmem [resolvable:$true] %s551
          %554 = dma.hbm_to_vmem [thread:$0]  %s14, 64, %s552, [#allocation24]
        $region68: #{generator_forward.1} parent=11 // pred_fallthru
          _
        // Predicated region
        $region69: #{generator_forward.1} parent=11 // pred_check
          %p555 = pneg %p372
        $region70: #{generator_forward.1} parent=11 // pred_check_branch
          %557 = sbr.rel (%p555) target = $region72
        $region71: #{generator_forward.1} parent=11 // pred_region
          _
        $region72: #{generator_forward.1} parent=11 // pred_fallthru
          _
      $region12: #{generator_forward.1} parent=5 // pred_fallthru
        _
      %p558 = scmp.lt.s32.totalorder %s31, 2
      // Predicated region
      $region73: #{generator_forward.1} parent=5 // pred_check
        %p559 = pneg %p558
      $region74: #{generator_forward.1} parent=5 // pred_check_branch
        %561 = sbr.rel (%p559) target = $region76
      $region75: #{generator_forward.1} parent=5 // pred_region
        // Predicated region
        $region77: #{generator_forward.1} parent=75 // pred_check
          %p562 = pneg %p51
        $region78: #{generator_forward.1} parent=75 // pred_check_branch
          %564 = sbr.rel (%p562) target = $region80
        $region79: #{generator_forward.1} parent=75 // pred_region
          %s565 = sand.u32 %s41, 1
          %s566 = scalar_lea.sflag [#allocation7], %s565
          %s567 = sand.u32 %s41, 1
          %s568 = scalar_lea.vmem [#allocation6], %s567
          %s570 = ssub.s32 16, 16
          %571 = vsyncadd %s566, %s570
          %s572 = smul.addr %s31, 16
          %s573 = scalar_lea.hbm %s0, %s572
          %s575 = sshll.u32 %s568, 4
          %s576 = int_to_ptr.vmem [resolvable:$true] %s575
          %578 = dma.hbm_to_vmem [thread:$0]  %s573, 16, %s576, %s566
        $region80: #{generator_forward.1} parent=75 // pred_fallthru
          _
      $region76: #{generator_forward.1} parent=5 // pred_fallthru
        _
      %p579 = scmp.le.s32.totalorder 1, %s31
      %p580 = scmp.lt.s32.totalorder %s31, 3
      %p581 = pnand %p579, %p580
      %p582 = pneg %p581
      // Predicated region
      $region81: #{generator_forward.1} parent=5 // pred_check
        _
      $region82: #{generator_forward.1} parent=5 // pred_check_branch
        %584 = sbr.rel (%p581) target = $region84
      $region83: #{generator_forward.1} parent=5 // pred_region
        %s585 = ssub.s32 %s31, 1
        %s586 = sand.u32 %s44, 1
        %s587 = scalar_lea.sflag [#allocation7], %s586
        %s588 = sand.u32 %s44, 1
        %s589 = scalar_lea.vmem [#allocation6], %s588
        // Predicated region
        $region85: #{generator_forward.1} parent=83 // pred_check
          %p590 = pneg %p57
        $region86: #{generator_forward.1} parent=83 // pred_check_branch
          %592 = sbr.rel (%p590) target = $region88
        $region87: #{generator_forward.1} parent=83 // pred_region
          %593 = dma.done %s587, 16
        $region88: #{generator_forward.1} parent=83 // pred_fallthru
          _
        // Predicated region
        $region89: #{generator_forward.1} parent=83 // pred_check
          %p594 = pneg %p78
        $region90: #{generator_forward.1} parent=83 // pred_check_branch
          %596 = sbr.rel (%p594) target = $region92
        $region91: #{generator_forward.1} parent=83 // pred_region
          %597 = dma.done [#allocation9], 1024
        $region92: #{generator_forward.1} parent=83 // pred_fallthru
          _
        // Predicated region
        $region93: #{generator_forward.1} parent=83 // pred_check
          %p598 = pneg %p99
        $region94: #{generator_forward.1} parent=83 // pred_check_branch
          %600 = sbr.rel (%p598) target = $region96
        $region95: #{generator_forward.1} parent=83 // pred_region
          %601 = dma.done [#allocation9], 32
        $region96: #{generator_forward.1} parent=83 // pred_fallthru
          _
        // Predicated region
        $region97: #{generator_forward.1} parent=83 // pred_check
          %p602 = pneg %p120
        $region98: #{generator_forward.1} parent=83 // pred_check_branch
          %604 = sbr.rel (%p602) target = $region100
        $region99: #{generator_forward.1} parent=83 // pred_region
          %605 = dma.done [#allocation12], 4096
        $region100: #{generator_forward.1} parent=83 // pred_fallthru
          _
        // Predicated region
        $region101: #{generator_forward.1} parent=83 // pred_check
          %p606 = pneg %p141
        $region102: #{generator_forward.1} parent=83 // pred_check_branch
          %608 = sbr.rel (%p606) target = $region104
        $region103: #{generator_forward.1} parent=83 // pred_region
          %609 = dma.done [#allocation12], 16
        $region104: #{generator_forward.1} parent=83 // pred_fallthru
          _
        // Predicated region
        $region105: #{generator_forward.1} parent=83 // pred_check
          %p610 = pneg %p162
        $region106: #{generator_forward.1} parent=83 // pred_check_branch
          %612 = sbr.rel (%p610) target = $region108
        $region107: #{generator_forward.1} parent=83 // pred_region
          %613 = dma.done [#allocation15], 3072
        $region108: #{generator_forward.1} parent=83 // pred_fallthru
          _
        // Predicated region
        $region109: #{generator_forward.1} parent=83 // pred_check
          %p614 = pneg %p183
        $region110: #{generator_forward.1} parent=83 // pred_check_branch
          %616 = sbr.rel (%p614) target = $region112
        $region111: #{generator_forward.1} parent=83 // pred_region
          %617 = dma.done [#allocation15], 48
        $region112: #{generator_forward.1} parent=83 // pred_fallthru
          _
        // Predicated region
        $region113: #{generator_forward.1} parent=83 // pred_check
          %p618 = pneg %p204
        $region114: #{generator_forward.1} parent=83 // pred_check_branch
          %620 = sbr.rel (%p618) target = $region116
        $region115: #{generator_forward.1} parent=83 // pred_region
          %621 = dma.done [#allocation18], 52480
        $region116: #{generator_forward.1} parent=83 // pred_fallthru
          _
        // Predicated region
        $region117: #{generator_forward.1} parent=83 // pred_check
          %p622 = pneg %p225
        $region118: #{generator_forward.1} parent=83 // pred_check_branch
          %624 = sbr.rel (%p622) target = $region120
        $region119: #{generator_forward.1} parent=83 // pred_region
          %625 = dma.done [#allocation18], 128
        $region120: #{generator_forward.1} parent=83 // pred_fallthru
          _
        // Predicated region
        $region121: #{generator_forward.1} parent=83 // pred_check
          %p626 = pneg %p267
        $region122: #{generator_forward.1} parent=83 // pred_check_branch
          %628 = sbr.rel (%p626) target = $region124
        $region123: #{generator_forward.1} parent=83 // pred_region
          %629 = dma.done [#allocation21], 256
        $region124: #{generator_forward.1} parent=83 // pred_fallthru
          _
        // Predicated region
        $region125: #{generator_forward.1} parent=83 // pred_check
          %p630 = pneg %p309
        $region126: #{generator_forward.1} parent=83 // pred_check_branch
          %632 = sbr.rel (%p630) target = $region128
        $region127: #{generator_forward.1} parent=83 // pred_region
          %633 = dma.done [#allocation21], 1024
        $region128: #{generator_forward.1} parent=83 // pred_fallthru
          _
        // Predicated region
        $region129: #{generator_forward.1} parent=83 // pred_check
          %p634 = pneg %p351
        $region130: #{generator_forward.1} parent=83 // pred_check_branch
          %636 = sbr.rel (%p634) target = $region132
        $region131: #{generator_forward.1} parent=83 // pred_region
          %637 = dma.done [#allocation24], 64
        $region132: #{generator_forward.1} parent=83 // pred_fallthru
          _
        %s638 = sand.u32 %s44, 1
        %s639 = scalar_lea.sflag [#allocation7], %s638
        %s640 = sand.u32 %s44, 1
        %s641 = scalar_lea.vmem [#allocation6], %s640
        %p642 = pneg %p57
        %p643 = pneg %p54
        %p644 = pneg %p78
        %p645 = pneg %p75
        %p646 = pneg %p99
        %p647 = pneg %p96
        %p648 = pneg %p120
        %p649 = pneg %p117
        %p650 = pneg %p141
        %p651 = pneg %p138
        %p652 = pneg %p162
        %p653 = pneg %p159
        %p654 = pneg %p183
        %p655 = pneg %p180
        %p656 = pneg %p204
        %p657 = pneg %p201
        %p658 = pneg %p225
        %p659 = pneg %p222
        %p660 = pneg %p246
        %p661 = pneg %p243
        %p662 = pneg %p267
        %p663 = pneg %p264
        %p664 = pneg %p288
        %p665 = pneg %p285
        %p666 = pneg %p309
        %p667 = pneg %p306
        %p668 = pneg %p330
        %p669 = pneg %p327
        %p670 = pneg %p351
        %p671 = pneg %p348
        %p672 = pneg %p372
        %p673 = pneg %p369
        %p674 = pneg %p398
        %p675 = pneg %p395
        %p676 = scmp.lt.s32.totalorder %s36, 1
        %s677 = scalar_select %p676, %s36, 1
        %s678 = smul.addr %s677, 10
        %s679 = smul.addr %s678, 4
        %s680 = scalar_lea.vmem %s16, %s679
        %p681 = scmp.lt.s32.totalorder %s36, 1
        %s682 = scalar_select %p681, %s36, 1
        %s683 = smul.addr %s682, 10
        %s684 = smul.addr %s683, 4
        %s685 = scalar_lea.vmem %s16, %s684
        %v686 = vld [vmem:[%s589] sm:$0x1]
        %v687 = vld [vmem:[#allocation8] sm:$0xff]
        %v688 = vld [vmem:[#allocation8 + $0x8] sm:$0xff]
        %v689 = vld [vmem:[#allocation8 + $0x10] sm:$0xff]
        %v690 = vld [vmem:[#allocation8 + $0x18] sm:$0xff]
        %v691 = vld [vmem:[#allocation8 + $0x20] sm:$0xff]
        %v692 = vld [vmem:[#allocation8 + $0x28] sm:$0xff]
        %v693 = vld [vmem:[#allocation8 + $0x30] sm:$0xff]
        %v694 = vld [vmem:[#allocation8 + $0x38] sm:$0xff]
        %v695 = vld [vmem:[#allocation10] sm:$0x3]
        %v697 = vlaneseq
        %v698 = vshrl.u32 %v697, 7
        %v699 = vsub.s32 0, %v698
        %v700 = vrot.slane %v695, %v699
        %v701 = vlaneseq
        %v702 = vshrl.u32 %v701, 7
        %v703 = vsub.s32 1, %v702
        %v704 = vrot.slane %v695, %v703
        %vm707 = vcmask 261120
        %v709 = vsel %vm707, %v686, 0
        %711 = vmatprep.subr.mxu0 %v688
        %712 = vmatpush1.msra.mxu0 %v687
        %713 = vmatprep.subr.mxu0 %v690
        %714 = vmatpush1.msra.mxu0 %v689
        %715 = vmatprep.subr.mxu0 %v692
        %716 = vmatpush1.msra.mxu0 %v691
        %717 = vmatprep.subr.mxu0 %v694
        %718 = vmatpush1.msra.mxu0 %v693
        %719 = vmatprep.subr.mxu0 0.0
        %720 = vmatpush1.msra.mxu0 0.0
        %721 = vmatprep.subr.mxu0 0.0
        %722 = vmatpush1.msra.mxu0 0.0
        %723 = vmatprep.subr.mxu0 0.0
        %724 = vmatpush1.msra.mxu0 0.0
        %725 = vmatprep.subr.mxu0 0.0
        %726 = vmatpush1.msra.mxu0 0.0
        %727 = vmatprep.subr.mxu0 0.0
        %728 = vmatpush1.msra.mxu0 0.0
        %729 = vmatprep.subr.mxu0 0.0
        %730 = vmatpush1.msra.mxu0 0.0
        %731 = vmatprep.subr.mxu0 0.0
        %732 = vmatpush1.msra.mxu0 0.0
        %733 = vmatprep.subr.mxu0 0.0
        %734 = vmatpush1.msra.mxu0 0.0
        %735 = vmatprep.subr.mxu0 0.0
        %736 = vmatpush1.msra.mxu0 0.0
        %737 = vmatprep.subr.mxu0 0.0
        %738 = vmatpush1.msra.mxu0 0.0
        %739 = vmatprep.subr.mxu0 0.0
        %740 = vmatpush1.msra.mxu0 0.0
        %741 = vmatprep.subr.mxu0 0.0
        %742 = vmatpush1.msra.mxu0 0.0
        %743 = vmatprep.subr.mxu0 0.0
        %744 = vmatpush1.msra.mxu0 0.0
        %745 = vmatprep.subr.mxu0 0.0
        %746 = vmatpush1.msra.mxu0 0.0
        %747 = vmatprep.subr.mxu0 0.0
        %748 = vmatpush1.msra.mxu0 0.0
        %749 = vmatprep.subr.mxu0 0.0
        %750 = vmatpush1.msra.mxu0 0.0
        %751 = vmatprep.subr.mxu0 0.0
        %752 = vmatpush1.msra.mxu0 0.0
        %753 = vmatprep.subr.mxu0 0.0
        %754 = vmatpush1.msra.mxu0 0.0
        %755 = vmatprep.subr.mxu0 0.0
        %756 = vmatpush1.msra.mxu0 0.0
        %757 = vmatprep.subr.mxu0 0.0
        %758 = vmatpush1.msra.mxu0 0.0
        %759 = vmatprep.subr.mxu0 0.0
        %760 = vmatpush1.msra.mxu0 0.0
        %761 = vmatprep.subr.mxu0 0.0
        %762 = vmatpush1.msra.mxu0 0.0
        %763 = vmatprep.subr.mxu0 0.0
        %764 = vmatpush1.msra.mxu0 0.0
        %765 = vmatprep.subr.mxu0 0.0
        %766 = vmatpush1.msra.mxu0 0.0
        %767 = vmatprep.subr.mxu0 0.0
        %768 = vmatpush1.msra.mxu0 0.0
        %769 = vmatprep.subr.mxu0 0.0
        %770 = vmatpush1.msra.mxu0 0.0
        %771 = vmatprep.subr.mxu0 0.0
        %772 = vmatpush1.msra.mxu0 0.0
        %773 = vmatprep.subr.mxu0 0.0
        %774 = vmatpush1.msra.mxu0 0.0
        %775 = vmatprep.mubr.f32.mxu0 0.0
        %776 = vmatmul.mubr.f32.gmra.mrb[0].mxu0 %v709
        %v777 = vpop.f32.mrb[0].mxu0
        %v778 = vadd.f32 %v700, %v777
        %v779 = vpop.f32.mrb[0].mxu0
        %v780 = vadd.f32 %v704, %v779
        %781 = vdwg.mxu0
        %v782 = vmul.f32 %v778, 0.5
        %v783 = vmul.f32 %v780, 0.5
        %v784 = vmul.f32 %v778, 0.044715
        %v785 = vmul.f32 %v780, 0.044715
        %v786 = vmul.f32 %v784, %v778
        %v787 = vmul.f32 %v785, %v780
        %v788 = vmul.f32 %v786, %v778
        %v789 = vmul.f32 %v787, %v780
        %v790 = vadd.f32 %v778, %v788
        %v791 = vadd.f32 %v780, %v789
        %v792 = vmul.f32 %v790, 0.7978846
        %v793 = vmul.f32 %v791, 0.7978846
        %v794 = vtanh.pop %v792
        %v795 = vtanh.pop %v793
        %v796 = vadd.f32 %v794, 1.0
        %v797 = vadd.f32 %v795, 1.0
        %v798 = vmul.f32 %v782, %v796
        %v799 = vmul.f32 %v783, %v797
        %v800 = vld [vmem:[#allocation11] sm:$0xff]
        %v801 = vld [vmem:[#allocation11 + $0x8] sm:$0xff]
        %v802 = vld [vmem:[#allocation11 + $0x10] sm:$0xff]
        %v803 = vld [vmem:[#allocation11 + $0x18] sm:$0xff]
        %v804 = vld [vmem:[#allocation11 + $0x20] sm:$0xff]
        %v805 = vld [vmem:[#allocation11 + $0x28] sm:$0xff]
        %v806 = vld [vmem:[#allocation11 + $0x30] sm:$0xff]
        %v807 = vld [vmem:[#allocation11 + $0x38] sm:$0xff]
        %v808 = vld [vmem:[#allocation11 + $0x40] sm:$0xff]
        %v809 = vld [vmem:[#allocation11 + $0x48] sm:$0xff]
        %v810 = vld [vmem:[#allocation11 + $0x50] sm:$0xff]
        %v811 = vld [vmem:[#allocation11 + $0x58] sm:$0xff]
        %v812 = vld [vmem:[#allocation11 + $0x60] sm:$0xff]
        %v813 = vld [vmem:[#allocation11 + $0x68] sm:$0xff]
        %v814 = vld [vmem:[#allocation11 + $0x70] sm:$0xff]
        %v815 = vld [vmem:[#allocation11 + $0x78] sm:$0xff]
        %v816 = vld [vmem:[#allocation11 + $0x80] sm:$0xff]
        %v817 = vld [vmem:[#allocation11 + $0x88] sm:$0xff]
        %v818 = vld [vmem:[#allocation11 + $0x90] sm:$0xff]
        %v819 = vld [vmem:[#allocation11 + $0x98] sm:$0xff]
        %v820 = vld [vmem:[#allocation11 + $0xa0] sm:$0xff]
        %v821 = vld [vmem:[#allocation11 + $0xa8] sm:$0xff]
        %v822 = vld [vmem:[#allocation11 + $0xb0] sm:$0xff]
        %v823 = vld [vmem:[#allocation11 + $0xb8] sm:$0xff]
        %v824 = vld [vmem:[#allocation11 + $0xc0] sm:$0xff]
        %v825 = vld [vmem:[#allocation11 + $0xc8] sm:$0xff]
        %v826 = vld [vmem:[#allocation11 + $0xd0] sm:$0xff]
        %v827 = vld [vmem:[#allocation11 + $0xd8] sm:$0xff]
        %v828 = vld [vmem:[#allocation11 + $0xe0] sm:$0xff]
        %v829 = vld [vmem:[#allocation11 + $0xe8] sm:$0xff]
        %v830 = vld [vmem:[#allocation11 + $0xf0] sm:$0xff]
        %v831 = vld [vmem:[#allocation11 + $0xf8] sm:$0xff]
        %v832 = vld [vmem:[#allocation13] sm:$0x1]
        %833 = vmatprep.subr.mxu0 0.0
        %834 = vmatpush1.msra.mxu0 %v800
        %835 = vmatprep.subr.mxu0 0.0
        %836 = vmatpush1.msra.mxu0 %v801
        %837 = vmatprep.subr.mxu0 0.0
        %838 = vmatpush1.msra.mxu0 %v802
        %839 = vmatprep.subr.mxu0 0.0
        %840 = vmatpush1.msra.mxu0 %v803
        %841 = vmatprep.subr.mxu0 0.0
        %842 = vmatpush1.msra.mxu0 %v804
        %843 = vmatprep.subr.mxu0 0.0
        %844 = vmatpush1.msra.mxu0 %v805
        %845 = vmatprep.subr.mxu0 0.0
        %846 = vmatpush1.msra.mxu0 %v806
        %847 = vmatprep.subr.mxu0 0.0
        %848 = vmatpush1.msra.mxu0 %v807
        %849 = vmatprep.subr.mxu0 0.0
        %850 = vmatpush1.msra.mxu0 %v808
        %851 = vmatprep.subr.mxu0 0.0
        %852 = vmatpush1.msra.mxu0 %v809
        %853 = vmatprep.subr.mxu0 0.0
        %854 = vmatpush1.msra.mxu0 %v810
        %855 = vmatprep.subr.mxu0 0.0
        %856 = vmatpush1.msra.mxu0 %v811
        %857 = vmatprep.subr.mxu0 0.0
        %858 = vmatpush1.msra.mxu0 %v812
        %859 = vmatprep.subr.mxu0 0.0
        %860 = vmatpush1.msra.mxu0 %v813
        %861 = vmatprep.subr.mxu0 0.0
        %862 = vmatpush1.msra.mxu0 %v814
        %863 = vmatprep.subr.mxu0 0.0
        %864 = vmatpush1.msra.mxu0 %v815
        %865 = vmatprep.subr.mxu0 0.0
        %866 = vmatpush1.msra.mxu0 %v816
        %867 = vmatprep.subr.mxu0 0.0
        %868 = vmatpush1.msra.mxu0 %v817
        %869 = vmatprep.subr.mxu0 0.0
        %870 = vmatpush1.msra.mxu0 %v818
        %871 = vmatprep.subr.mxu0 0.0
        %872 = vmatpush1.msra.mxu0 %v819
        %873 = vmatprep.subr.mxu0 0.0
        %874 = vmatpush1.msra.mxu0 %v820
        %875 = vmatprep.subr.mxu0 0.0
        %876 = vmatpush1.msra.mxu0 %v821
        %877 = vmatprep.subr.mxu0 0.0
        %878 = vmatpush1.msra.mxu0 %v822
        %879 = vmatprep.subr.mxu0 0.0
        %880 = vmatpush1.msra.mxu0 %v823
        %881 = vmatprep.subr.mxu0 0.0
        %882 = vmatpush1.msra.mxu0 %v824
        %883 = vmatprep.subr.mxu0 0.0
        %884 = vmatpush1.msra.mxu0 %v825
        %885 = vmatprep.subr.mxu0 0.0
        %886 = vmatpush1.msra.mxu0 %v826
        %887 = vmatprep.subr.mxu0 0.0
        %888 = vmatpush1.msra.mxu0 %v827
        %889 = vmatprep.subr.mxu0 0.0
        %890 = vmatpush1.msra.mxu0 %v828
        %891 = vmatprep.subr.mxu0 0.0
        %892 = vmatpush1.msra.mxu0 %v829
        %893 = vmatprep.subr.mxu0 0.0
        %894 = vmatpush1.msra.mxu0 %v830
        %895 = vmatprep.subr.mxu0 0.0
        %896 = vmatpush1.msra.mxu0 %v831
        %897 = vmatprep.mubr.f32.mxu0 %v799
        %898 = vmatmul.mubr.f32.gmra.mrb[0].mxu0 %v798
        %v899 = vpop.f32.mrb[0].mxu0
        %v900 = vadd.f32 %v832, %v899
        %v901 = vpop.f32.mrb[0].mxu0
        %902 = vdwg.mxu0
        %v903 = vmul.f32 %v900, 0.5
        %v904 = vmul.f32 %v900, 0.044715
        %v905 = vmul.f32 %v904, %v900
        %v906 = vmul.f32 %v905, %v900
        %v907 = vadd.f32 %v900, %v906
        %v908 = vmul.f32 %v907, 0.7978846
        %v909 = vtanh.pop %v908
        %v910 = vadd.f32 %v909, 1.0
        %v911 = vmul.f32 %v903, %v910
        %v912 = vld [vmem:[#allocation14] sm:$0xff]
        %v913 = vld [vmem:[#allocation14 + $0x8] sm:$0xff]
        %v914 = vld [vmem:[#allocation14 + $0x10] sm:$0xff]
        %v915 = vld [vmem:[#allocation14 + $0x18] sm:$0xff]
        %v916 = vld [vmem:[#allocation14 + $0x20] sm:$0xff]
        %v917 = vld [vmem:[#allocation14 + $0x28] sm:$0xff]
        %v918 = vld [vmem:[#allocation14 + $0x30] sm:$0xff]
        %v919 = vld [vmem:[#allocation14 + $0x38] sm:$0xff]
        %v920 = vld [vmem:[#allocation14 + $0x40] sm:$0xff]
        %v921 = vld [vmem:[#allocation14 + $0x48] sm:$0xff]
        %v922 = vld [vmem:[#allocation14 + $0x50] sm:$0xff]
        %v923 = vld [vmem:[#allocation14 + $0x58] sm:$0xff]
        %v924 = vld [vmem:[#allocation14 + $0x60] sm:$0xff]
        %v925 = vld [vmem:[#allocation14 + $0x68] sm:$0xff]
        %v926 = vld [vmem:[#allocation14 + $0x70] sm:$0xff]
        %v927 = vld [vmem:[#allocation14 + $0x78] sm:$0xff]
        %v928 = vld [vmem:[#allocation14 + $0x80] sm:$0xff]
        %v929 = vld [vmem:[#allocation14 + $0x88] sm:$0xff]
        %v930 = vld [vmem:[#allocation14 + $0x90] sm:$0xff]
        %v931 = vld [vmem:[#allocation14 + $0x98] sm:$0xff]
        %v932 = vld [vmem:[#allocation14 + $0xa0] sm:$0xff]
        %v933 = vld [vmem:[#allocation14 + $0xa8] sm:$0xff]
        %v934 = vld [vmem:[#allocation14 + $0xb0] sm:$0xff]
        %v935 = vld [vmem:[#allocation14 + $0xb8] sm:$0xff]
        %vm936 = vcmask 523264
        %v938 = vsel %vm936, %v911, 0
        %940 = vmatprep.subr.mxu0 %v913
        %941 = vmatpush1.msra.mxu0 %v912
        %942 = vmatprep.subr.mxu0 %v916
        %943 = vmatpush1.msra.mxu0 %v915
        %944 = vmatprep.subr.mxu0 %v919
        %945 = vmatpush1.msra.mxu0 %v918
        %946 = vmatprep.subr.mxu0 %v922
        %947 = vmatpush1.msra.mxu0 %v921
        %948 = vmatprep.subr.mxu0 %v925
        %949 = vmatpush1.msra.mxu0 %v924
        %950 = vmatprep.subr.mxu0 %v928
        %951 = vmatpush1.msra.mxu0 %v927
        %952 = vmatprep.subr.mxu0 %v931
        %953 = vmatpush1.msra.mxu0 %v930
        %954 = vmatprep.subr.mxu0 %v934
        %955 = vmatpush1.msra.mxu0 %v933
        %956 = vmatprep.subr.mxu0 0.0
        %957 = vmatpush1.msra.mxu0 0.0
        %958 = vmatprep.subr.mxu0 0.0
        %959 = vmatpush1.msra.mxu0 0.0
        %960 = vmatprep.subr.mxu0 0.0
        %961 = vmatpush1.msra.mxu0 0.0
        %962 = vmatprep.subr.mxu0 0.0
        %963 = vmatpush1.msra.mxu0 0.0
        %964 = vmatprep.subr.mxu0 0.0
        %965 = vmatpush1.msra.mxu0 0.0
        %966 = vmatprep.subr.mxu0 0.0
        %967 = vmatpush1.msra.mxu0 0.0
        %968 = vmatprep.subr.mxu0 0.0
        %969 = vmatpush1.msra.mxu0 0.0
        %970 = vmatprep.subr.mxu0 0.0
        %971 = vmatpush1.msra.mxu0 0.0
        %972 = vmatprep.subr.mxu0 0.0
        %973 = vmatpush1.msra.mxu0 0.0
        %974 = vmatprep.subr.mxu0 0.0
        %975 = vmatpush1.msra.mxu0 0.0
        %976 = vmatprep.subr.mxu0 0.0
        %977 = vmatpush1.msra.mxu0 0.0
        %978 = vmatprep.subr.mxu0 0.0
        %979 = vmatpush1.msra.mxu0 0.0
        %980 = vmatprep.subr.mxu0 0.0
        %981 = vmatpush1.msra.mxu0 0.0
        %982 = vmatprep.subr.mxu0 0.0
        %983 = vmatpush1.msra.mxu0 0.0
        %984 = vmatprep.subr.mxu0 0.0
        %985 = vmatpush1.msra.mxu0 0.0
        %986 = vmatprep.subr.mxu0 0.0
        %987 = vmatpush1.msra.mxu0 0.0
        %988 = vmatprep.subr.mxu0 0.0
        %989 = vmatpush1.msra.mxu0 0.0
        %990 = vmatprep.subr.mxu0 0.0
        %991 = vmatpush1.msra.mxu0 0.0
        %992 = vmatprep.subr.mxu0 0.0
        %993 = vmatpush1.msra.mxu0 0.0
        %994 = vmatprep.subr.mxu0 0.0
        %995 = vmatpush1.msra.mxu0 0.0
        %996 = vmatprep.subr.mxu0 0.0
        %997 = vmatpush1.msra.mxu0 0.0
        %998 = vmatprep.subr.mxu0 0.0
        %999 = vmatpush1.msra.mxu0 0.0
        %1000 = vmatprep.subr.mxu0 0.0
        %1001 = vmatpush1.msra.mxu0 0.0
        %1002 = vmatprep.subr.mxu0 0.0
        %1003 = vmatpush1.msra.mxu0 0.0
        %1004 = vmatprep.mubr.f32.mxu0 0.0
        %1005 = vmatmul.mubr.f32.gmra.mrb[0].mxu0 %v938
        %v1006 = vpop.f32.mrb[0].mxu0
        %v1007 = vadd.f32 0.0, %v1006
        %v1008 = vpop.f32.mrb[0].mxu0
        %v1009 = vadd.f32 0.0, %v1008
        %1010 = vdwg.mxu0
        %1011 = vmatprep.subr.mxu0 0.0
        %1012 = vmatpush1.msra.mxu0 %v914
        %1013 = vmatprep.subr.mxu0 0.0
        %1014 = vmatpush1.msra.mxu0 %v917
        %1015 = vmatprep.subr.mxu0 0.0
        %1016 = vmatpush1.msra.mxu0 %v920
        %1017 = vmatprep.subr.mxu0 0.0
        %1018 = vmatpush1.msra.mxu0 %v923
        %1019 = vmatprep.subr.mxu0 0.0
        %1020 = vmatpush1.msra.mxu0 %v926
        %1021 = vmatprep.subr.mxu0 0.0
        %1022 = vmatpush1.msra.mxu0 %v929
        %1023 = vmatprep.subr.mxu0 0.0
        %1024 = vmatpush1.msra.mxu0 %v932
        %1025 = vmatprep.subr.mxu0 0.0
        %1026 = vmatpush1.msra.mxu0 %v935
        %1027 = vmatprep.subr.mxu0 0.0
        %1028 = vmatpush1.msra.mxu0 0.0
        %1029 = vmatprep.subr.mxu0 0.0
        %1030 = vmatpush1.msra.mxu0 0.0
        %1031 = vmatprep.subr.mxu0 0.0
        %1032 = vmatpush1.msra.mxu0 0.0
        %1033 = vmatprep.subr.mxu0 0.0
        %1034 = vmatpush1.msra.mxu0 0.0
        %1035 = vmatprep.subr.mxu0 0.0
        %1036 = vmatpush1.msra.mxu0 0.0
        %1037 = vmatprep.subr.mxu0 0.0
        %1038 = vmatpush1.msra.mxu0 0.0
        %1039 = vmatprep.subr.mxu0 0.0
        %1040 = vmatpush1.msra.mxu0 0.0
        %1041 = vmatprep.subr.mxu0 0.0
        %1042 = vmatpush1.msra.mxu0 0.0
        %1043 = vmatprep.subr.mxu0 0.0
        %1044 = vmatpush1.msra.mxu0 0.0
        %1045 = vmatprep.subr.mxu0 0.0
        %1046 = vmatpush1.msra.mxu0 0.0
        %1047 = vmatprep.subr.mxu0 0.0
        %1048 = vmatpush1.msra.mxu0 0.0
        %1049 = vmatprep.subr.mxu0 0.0
        %1050 = vmatpush1.msra.mxu0 0.0
        %1051 = vmatprep.subr.mxu0 0.0
        %1052 = vmatpush1.msra.mxu0 0.0
        %1053 = vmatprep.subr.mxu0 0.0
        %1054 = vmatpush1.msra.mxu0 0.0
        %1055 = vmatprep.subr.mxu0 0.0
        %1056 = vmatpush1.msra.mxu0 0.0
        %1057 = vmatprep.subr.mxu0 0.0
        %1058 = vmatpush1.msra.mxu0 0.0
        %1059 = vmatprep.subr.mxu0 0.0
        %1060 = vmatpush1.msra.mxu0 0.0
        %1061 = vmatprep.subr.mxu0 0.0
        %1062 = vmatpush1.msra.mxu0 0.0
        %1063 = vmatprep.subr.mxu0 0.0
        %1064 = vmatpush1.msra.mxu0 0.0
        %1065 = vmatprep.subr.mxu0 0.0
        %1066 = vmatpush1.msra.mxu0 0.0
        %1067 = vmatprep.subr.mxu0 0.0
        %1068 = vmatpush1.msra.mxu0 0.0
        %1069 = vmatprep.subr.mxu0 0.0
        %1070 = vmatpush1.msra.mxu0 0.0
        %1071 = vmatprep.subr.mxu0 0.0
        %1072 = vmatpush1.msra.mxu0 0.0
        %1073 = vmatprep.subr.mxu0 0.0
        %1074 = vmatpush1.msra.mxu0 0.0
        %1075 = vmatprep.mubr.f32.mxu0 0.0
        %1076 = vmatmul.mubr.f32.gmra.mrb[0].mxu0 %v938
        %v1077 = vpop.f32.mrb[0].mxu0
        %v1078 = vadd.f32 0.0, %v1077
        %v1079 = vpop.f32.mrb[0].mxu0
        %1080 = vdwg.mxu0
        %v1084 = vcombine.low %v1007, %v1009
        %v1086 = vunpack.c.l.s4 1966171168
        %v1087 = vunpack.c.0.s8 %v1086
        %v1088 = vlaneseq
        %v1089 = vshrl.u32 %v1088, 7
        %v1090 = vsub.s32 %v1087, %v1089
        %v1091 = vrot.slane %v1084, %v1090
        %v1093 = vunpack.c.l.s4 1966171168
        %v1094 = vunpack.c.0.s8 %v1093
        %v1095 = vlaneseq
        %v1096 = vshrl.u32 %v1095, 7
        %v1097 = vsub.s32 %v1094, %v1096
        %v1098 = vrot.slane %v1078, %v1097
        %v1099 = vcombine.low %v1091, %v1098
        %v1101 = vunpack.c.l.s4 1966171168
        %v1102 = vunpack.c.0.s8 %v1101
        %v1103 = vlaneseq
        %v1104 = vshrl.u32 %v1103, 7
        %v1105 = vsub.s32 %v1102, %v1104
        %v1106 = vrot.slane %v1099, %v1105
        %v1108 = vlaneseq
        %vm1109 = vcmp.ge.s32.totalorder %v1108, 0
        %vm1110 = vcmp.lt.s32.totalorder %v1108, 324
        %vm1111 = vmand %vm1109, %vm1110
        %1112 = vst.msk [vmem:[#allocation2] ss:$2 sm:$0x7] %vm1111, %v1106
        %v1113 = vld [vmem:[#allocation14] sm:$0xff]
        %v1114 = vld [vmem:[#allocation14 + $0x8] sm:$0xff]
        %v1115 = vld [vmem:[#allocation14 + $0x10] sm:$0xff]
        %v1116 = vld [vmem:[#allocation14 + $0x18] sm:$0xff]
        %v1117 = vld [vmem:[#allocation14 + $0x20] sm:$0xff]
        %v1118 = vld [vmem:[#allocation14 + $0x28] sm:$0xff]
        %v1119 = vld [vmem:[#allocation14 + $0x30] sm:$0xff]
        %v1120 = vld [vmem:[#allocation14 + $0x38] sm:$0xff]
        %v1121 = vld [vmem:[#allocation14 + $0x40] sm:$0xff]
        %v1122 = vld [vmem:[#allocation14 + $0x48] sm:$0xff]
        %v1123 = vld [vmem:[#allocation14 + $0x50] sm:$0xff]
        %v1124 = vld [vmem:[#allocation14 + $0x58] sm:$0xff]
        %v1125 = vld [vmem:[#allocation14 + $0x60] sm:$0xff]
        %v1126 = vld [vmem:[#allocation14 + $0x68] sm:$0xff]
        %v1127 = vld [vmem:[#allocation14 + $0x70] sm:$0xff]
        %v1128 = vld [vmem:[#allocation14 + $0x78] sm:$0xff]
        %v1129 = vld [vmem:[#allocation14 + $0x80] sm:$0xff]
        %v1130 = vld [vmem:[#allocation14 + $0x88] sm:$0xff]
        %v1131 = vld [vmem:[#allocation14 + $0x90] sm:$0xff]
        %v1132 = vld [vmem:[#allocation14 + $0x98] sm:$0xff]
        %v1133 = vld [vmem:[#allocation14 + $0xa0] sm:$0xff]
        %v1134 = vld [vmem:[#allocation14 + $0xa8] sm:$0xff]
        %v1135 = vld [vmem:[#allocation14 + $0xb0] sm:$0xff]
        %v1136 = vld [vmem:[#allocation14 + $0xb8] sm:$0xff]
        %1137 = vrot.lane.b32.xlu0 %v911, 64
        %v1138 = vpop.permute.xlu0 %1137
        %v1139 = vsel %vm936, %v1138, 0
        %1141 = vmatprep.subr.mxu0 %v1114
        %1142 = vmatpush1.msra.mxu0 %v1113
        %1143 = vmatprep.subr.mxu0 %v1117
        %1144 = vmatpush1.msra.mxu0 %v1116
        %1145 = vmatprep.subr.mxu0 %v1120
        %1146 = vmatpush1.msra.mxu0 %v1119
        %1147 = vmatprep.subr.mxu0 %v1123
        %1148 = vmatpush1.msra.mxu0 %v1122
        %1149 = vmatprep.subr.mxu0 %v1126
        %1150 = vmatpush1.msra.mxu0 %v1125
        %1151 = vmatprep.subr.mxu0 %v1129
        %1152 = vmatpush1.msra.mxu0 %v1128
        %1153 = vmatprep.subr.mxu0 %v1132
        %1154 = vmatpush1.msra.mxu0 %v1131
        %1155 = vmatprep.subr.mxu0 %v1135
        %1156 = vmatpush1.msra.mxu0 %v1134
        %1157 = vmatprep.subr.mxu0 0.0
        %1158 = vmatpush1.msra.mxu0 0.0
        %1159 = vmatprep.subr.mxu0 0.0
        %1160 = vmatpush1.msra.mxu0 0.0
        %1161 = vmatprep.subr.mxu0 0.0
        %1162 = vmatpush1.msra.mxu0 0.0
        %1163 = vmatprep.subr.mxu0 0.0
        %1164 = vmatpush1.msra.mxu0 0.0
        %1165 = vmatprep.subr.mxu0 0.0
        %1166 = vmatpush1.msra.mxu0 0.0
        %1167 = vmatprep.subr.mxu0 0.0
        %1168 = vmatpush1.msra.mxu0 0.0
        %1169 = vmatprep.subr.mxu0 0.0
        %1170 = vmatpush1.msra.mxu0 0.0
        %1171 = vmatprep.subr.mxu0 0.0
        %1172 = vmatpush1.msra.mxu0 0.0
        %1173 = vmatprep.subr.mxu0 0.0
        %1174 = vmatpush1.msra.mxu0 0.0
        %1175 = vmatprep.subr.mxu0 0.0
        %1176 = vmatpush1.msra.mxu0 0.0
        %1177 = vmatprep.subr.mxu0 0.0
        %1178 = vmatpush1.msra.mxu0 0.0
        %1179 = vmatprep.subr.mxu0 0.0
        %1180 = vmatpush1.msra.mxu0 0.0
        %1181 = vmatprep.subr.mxu0 0.0
        %1182 = vmatpush1.msra.mxu0 0.0
        %1183 = vmatprep.subr.mxu0 0.0
        %1184 = vmatpush1.msra.mxu0 0.0
        %1185 = vmatprep.subr.mxu0 0.0
        %1186 = vmatpush1.msra.mxu0 0.0
        %1187 = vmatprep.subr.mxu0 0.0
        %1188 = vmatpush1.msra.mxu0 0.0
        %1189 = vmatprep.subr.mxu0 0.0
        %1190 = vmatpush1.msra.mxu0 0.0
        %1191 = vmatprep.subr.mxu0 0.0
        %1192 = vmatpush1.msra.mxu0 0.0
        %1193 = vmatprep.subr.mxu0 0.0
        %1194 = vmatpush1.msra.mxu0 0.0
        %1195 = vmatprep.subr.mxu0 0.0
        %1196 = vmatpush1.msra.mxu0 0.0
        %1197 = vmatprep.subr.mxu0 0.0
        %1198 = vmatpush1.msra.mxu0 0.0
        %1199 = vmatprep.subr.mxu0 0.0
        %1200 = vmatpush1.msra.mxu0 0.0
        %1201 = vmatprep.subr.mxu0 0.0
        %1202 = vmatpush1.msra.mxu0 0.0
        %1203 = vmatprep.subr.mxu0 0.0
        %1204 = vmatpush1.msra.mxu0 0.0
        %1205 = vmatprep.mubr.f32.mxu0 0.0
        %1206 = vmatmul.mubr.f32.gmra.mrb[0].mxu0 %v1139
        %v1207 = vpop.f32.mrb[0].mxu0
        %v1208 = vadd.f32 0.0, %v1207
        %v1209 = vpop.f32.mrb[0].mxu0
        %v1210 = vadd.f32 0.0, %v1209
        %1211 = vdwg.mxu0
        %1212 = vmatprep.subr.mxu0 0.0
        %1213 = vmatpush1.msra.mxu0 %v1115
        %1214 = vmatprep.subr.mxu0 0.0
        %1215 = vmatpush1.msra.mxu0 %v1118
        %1216 = vmatprep.subr.mxu0 0.0
        %1217 = vmatpush1.msra.mxu0 %v1121
        %1218 = vmatprep.subr.mxu0 0.0
        %1219 = vmatpush1.msra.mxu0 %v1124
        %1220 = vmatprep.subr.mxu0 0.0
        %1221 = vmatpush1.msra.mxu0 %v1127
        %1222 = vmatprep.subr.mxu0 0.0
        %1223 = vmatpush1.msra.mxu0 %v1130
        %1224 = vmatprep.subr.mxu0 0.0
        %1225 = vmatpush1.msra.mxu0 %v1133
        %1226 = vmatprep.subr.mxu0 0.0
        %1227 = vmatpush1.msra.mxu0 %v1136
        %1228 = vmatprep.subr.mxu0 0.0
        %1229 = vmatpush1.msra.mxu0 0.0
        %1230 = vmatprep.subr.mxu0 0.0
        %1231 = vmatpush1.msra.mxu0 0.0
        %1232 = vmatprep.subr.mxu0 0.0
        %1233 = vmatpush1.msra.mxu0 0.0
        %1234 = vmatprep.subr.mxu0 0.0
        %1235 = vmatpush1.msra.mxu0 0.0
        %1236 = vmatprep.subr.mxu0 0.0
        %1237 = vmatpush1.msra.mxu0 0.0
        %1238 = vmatprep.subr.mxu0 0.0
        %1239 = vmatpush1.msra.mxu0 0.0
        %1240 = vmatprep.subr.mxu0 0.0
        %1241 = vmatpush1.msra.mxu0 0.0
        %1242 = vmatprep.subr.mxu0 0.0
        %1243 = vmatpush1.msra.mxu0 0.0
        %1244 = vmatprep.subr.mxu0 0.0
        %1245 = vmatpush1.msra.mxu0 0.0
        %1246 = vmatprep.subr.mxu0 0.0
        %1247 = vmatpush1.msra.mxu0 0.0
        %1248 = vmatprep.subr.mxu0 0.0
        %1249 = vmatpush1.msra.mxu0 0.0
        %1250 = vmatprep.subr.mxu0 0.0
        %1251 = vmatpush1.msra.mxu0 0.0
        %1252 = vmatprep.subr.mxu0 0.0
        %1253 = vmatpush1.msra.mxu0 0.0
        %1254 = vmatprep.subr.mxu0 0.0
        %1255 = vmatpush1.msra.mxu0 0.0
        %1256 = vmatprep.subr.mxu0 0.0
        %1257 = vmatpush1.msra.mxu0 0.0
        %1258 = vmatprep.subr.mxu0 0.0
        %1259 = vmatpush1.msra.mxu0 0.0
        %1260 = vmatprep.subr.mxu0 0.0
        %1261 = vmatpush1.msra.mxu0 0.0
        %1262 = vmatprep.subr.mxu0 0.0
        %1263 = vmatpush1.msra.mxu0 0.0
        %1264 = vmatprep.subr.mxu0 0.0
        %1265 = vmatpush1.msra.mxu0 0.0
        %1266 = vmatprep.subr.mxu0 0.0
        %1267 = vmatpush1.msra.mxu0 0.0
        %1268 = vmatprep.subr.mxu0 0.0
        %1269 = vmatpush1.msra.mxu0 0.0
        %1270 = vmatprep.subr.mxu0 0.0
        %1271 = vmatpush1.msra.mxu0 0.0
        %1272 = vmatprep.subr.mxu0 0.0
        %1273 = vmatpush1.msra.mxu0 0.0
        %1274 = vmatprep.subr.mxu0 0.0
        %1275 = vmatpush1.msra.mxu0 0.0
        %1276 = vmatprep.mubr.f32.mxu0 0.0
        %1277 = vmatmul.mubr.f32.gmra.mrb[0].mxu0 %v1139
        %v1278 = vpop.f32.mrb[0].mxu0
        %v1279 = vadd.f32 0.0, %v1278
        %v1280 = vpop.f32.mrb[0].mxu0
        %1281 = vdwg.mxu0
        %v1285 = vcombine.low %v1208, %v1210
        %v1287 = vunpack.c.l.s4 1966171168
        %v1288 = vunpack.c.0.s8 %v1287
        %v1289 = vlaneseq
        %v1290 = vshrl.u32 %v1289, 7
        %v1291 = vsub.s32 %v1288, %v1290
        %v1292 = vrot.slane %v1285, %v1291
        %v1294 = vunpack.c.l.s4 1966171168
        %v1295 = vunpack.c.0.s8 %v1294
        %v1296 = vlaneseq
        %v1297 = vshrl.u32 %v1296, 7
        %v1298 = vsub.s32 %v1295, %v1297
        %v1299 = vrot.slane %v1279, %v1298
        %v1300 = vcombine.low %v1292, %v1299
        %v1302 = vunpack.c.l.s4 1966171168
        %v1303 = vunpack.c.0.s8 %v1302
        %v1304 = vlaneseq
        %v1305 = vshrl.u32 %v1304, 7
        %v1306 = vsub.s32 %v1303, %v1305
        %v1307 = vrot.slane %v1300, %v1306
        %s1309 = scalar_lea.vmem [#allocation2], 1
        %1310 = vst.msk [vmem:[%s1309] ss:$2 sm:$0x7] %vm1111, %v1307
        %v1311 = vld [vmem:[#allocation2] sm:$0x3f]
        %v1313 = vcombine.high %v1311, %v1311
        %v1315 = vunpack.c.l.s4 1983009808
        %v1316 = vunpack.c.0.s8 %v1315
        %v1317 = vlaneseq
        %v1318 = vshrl.u32 %v1317, 7
        %v1319 = vsub.s32 %v1316, %v1318
        %v1320 = vrot.slane %v1311, %v1319
        %v1322 = vunpack.c.l.s4 1983009808
        %v1323 = vunpack.c.0.s8 %v1322
        %v1324 = vlaneseq
        %v1325 = vshrl.u32 %v1324, 7
        %v1326 = vsub.s32 %v1323, %v1325
        %v1327 = vrot.slane %v1313, %v1326
        %v1328 = vcombine.high %v1320, %v1320
        %1329 = vrot.lane.b32.xlu0 %v1320, 19
        %v1330 = vpop.permute.xlu0 %1329
        %1331 = vrot.lane.b32.xlu0 %v1328, 19
        %v1332 = vpop.permute.xlu0 %1331
        %1333 = vrot.lane.b32.xlu0 %v1327, 19
        %v1334 = vpop.permute.xlu0 %1333
        %vm1335 = vcmask 154624
        %v1336 = vsel %vm1335, %v1330, %v1332
        %v1337 = vsel %vm1335, %v1332, %v1334
        %vm1341 = vcmask 1041560
        %1342 = vst.msk [vmem:[#allocation3] sm:$0x3] %vm1341, %v1330
        %1343 = vst [vmem:[#allocation3 + $0x8] sm:$0x3] %v1336
        %vm1344 = vcmask 549888
        %1345 = vst.msk [vmem:[#allocation3 + $0x10] sm:$0x3] %vm1344, %v1337
        %vm1346 = vcmask 148480
        %1347 = vst.msk [vmem:[#allocation3] sm:$0x3] %vm1346, 0.0
        %v1348 = vcombine.low %v1311, %v1311
        %v1350 = vunpack.c.l.s4 1983009808
        %v1351 = vunpack.c.0.s8 %v1350
        %v1352 = vlaneseq
        %v1353 = vshrl.u32 %v1352, 7
        %v1354 = vsub.s32 %v1351, %v1353
        %v1355 = vrot.slane %v1348, %v1354
        %v1356 = vcombine.high %v1355, %v1355
        %1357 = vrot.lane.b32.xlu0 %v1355, 18
        %v1358 = vpop.permute.xlu0 %1357
        %1359 = vrot.lane.b32.xlu0 %v1356, 18
        %v1360 = vpop.permute.xlu0 %1359
        %1361 = vrot.lane.b32.xlu0 %v1320, 18
        %v1362 = vpop.permute.xlu0 %1361
        %vm1363 = vcmask 146432
        %v1364 = vsel %vm1363, %v1358, %v1360
        %v1365 = vsel %vm1363, %v1360, %v1362
        %vm1369 = vcmask 1043602
        %1370 = vst.msk [vmem:[#allocation3] sm:$0xc] %vm1369, %v1358
        %1371 = vst [vmem:[#allocation3 + $0x8] sm:$0xc] %v1364
        %vm1372 = vcmask 551938
        %1373 = vst.msk [vmem:[#allocation3 + $0x10] sm:$0xc] %vm1372, %v1365
        %vm1374 = vcmask 142338
        %1375 = vst.msk [vmem:[#allocation3] sm:$0xc] %vm1374, 0.0
        %v1376 = vcombine.low %v1320, %v1320
        %v1377 = vcombine.low %v1327, %v1327
        %1378 = vrot.lane.b32.xlu0 %v1376, 17
        %v1379 = vpop.permute.xlu0 %1378
        %1380 = vrot.lane.b32.xlu0 %v1320, 17
        %v1381 = vpop.permute.xlu0 %1380
        %1382 = vrot.lane.b32.xlu0 %v1377, 17
        %v1383 = vpop.permute.xlu0 %1382
        %vm1384 = vcmask 138240
        %v1385 = vsel %vm1384, %v1379, %v1381
        %v1386 = vsel %vm1384, %v1381, %v1383
        %vm1390 = vcmask 1045644
        %1391 = vst.msk [vmem:[#allocation3] sm:$0x30] %vm1390, %v1379
        %1392 = vst [vmem:[#allocation3 + $0x8] sm:$0x30] %v1385
        %vm1393 = vcmask 553988
        %1394 = vst.msk [vmem:[#allocation3 + $0x10] sm:$0x30] %vm1393, %v1386
        %vm1395 = vcmask 136196
        %1396 = vst.msk [vmem:[#allocation3] sm:$0x30] %vm1395, 0.0
        %v1397 = vcombine.low %v1355, %v1355
        %1398 = vrot.lane.b32.xlu0 %v1397, 1
        %v1399 = vpop.permute.xlu0 %1398
        %1400 = vrot.lane.b32.xlu0 %v1355, 1
        %v1401 = vpop.permute.xlu0 %1400
        %1402 = vrot.lane.b32.xlu0 %v1376, 1
        %v1403 = vpop.permute.xlu0 %1402
        %vm1404 = vcmask 7168
        %v1405 = vsel %vm1404, %v1399, %v1401
        %v1406 = vsel %vm1404, %v1401, %v1403
        %vm1410 = vcmask 1047566
        %1411 = vst.msk [vmem:[#allocation3] sm:$0xc0] %vm1410, %v1399
        %1412 = vst [vmem:[#allocation3 + $0x8] sm:$0xc0] %v1405
        %vm1413 = vcmask 556038
        %1414 = vst.msk [vmem:[#allocation3 + $0x10] sm:$0xc0] %vm1413, %v1406
        %vm1415 = vcmask 7174
        %1416 = vst.msk [vmem:[#allocation3] sm:$0xc0] %vm1415, 0.0
        %1420 = vst [vmem:[#allocation3 + $0x18] sm:$0x3] %v1320
        %1421 = vst [vmem:[#allocation3 + $0x20] sm:$0x3] %v1328
        %1422 = vst.msk [vmem:[#allocation3 + $0x28] sm:$0x3] %vm1344, %v1327
        %1423 = vrot.lane.b32.xlu0 %v1355, 127
        %v1424 = vpop.permute.xlu0 %1423
        %1425 = vrot.lane.b32.xlu0 %v1356, 127
        %v1426 = vpop.permute.xlu0 %1425
        %1427 = vrot.lane.b32.xlu0 %v1320, 127
        %v1428 = vpop.permute.xlu0 %1427
        %vm1429 = vcmask 1039360
        %v1430 = vsel %vm1429, %v1424, %v1426
        %v1431 = vsel %vm1429, %v1426, %v1428
        %1435 = vst [vmem:[#allocation3 + $0x18] sm:$0xc] %v1430
        %1436 = vst [vmem:[#allocation3 + $0x20] sm:$0xc] %v1431
        %vm1437 = vcmask 543746
        %1438 = vst.msk [vmem:[#allocation3 + $0x28] sm:$0xc] %vm1437, %v1428
        %vm1439 = vcmask 552474
        %1440 = vst.msk [vmem:[#allocation3 + $0x28] sm:$0xc] %vm1439, 0.0
        %1441 = vrot.lane.b32.xlu0 %v1376, 111
        %v1442 = vpop.permute.xlu0 %1441
        %1443 = vrot.lane.b32.xlu0 %v1320, 111
        %v1444 = vpop.permute.xlu0 %1443
        %1445 = vrot.lane.b32.xlu0 %v1377, 111
        %v1446 = vpop.permute.xlu0 %1445
        %vm1447 = vcmask 908288
        %v1448 = vsel %vm1447, %v1442, %v1444
        %v1449 = vsel %vm1447, %v1444, %v1446
        %1453 = vst [vmem:[#allocation3 + $0x18] sm:$0x30] %v1448
        %1454 = vst [vmem:[#allocation3 + $0x20] sm:$0x30] %v1449
        %vm1455 = vcmask 414724
        %1456 = vst.msk [vmem:[#allocation3 + $0x28] sm:$0x30] %vm1455, %v1446
        %vm1457 = vcmask 554396
        %1458 = vst.msk [vmem:[#allocation3 + $0x28] sm:$0x30] %vm1457, 0.0
        %1459 = vrot.lane.b32.xlu0 %v1397, 110
        %v1460 = vpop.permute.xlu0 %1459
        %1461 = vrot.lane.b32.xlu0 %v1355, 110
        %v1462 = vpop.permute.xlu0 %1461
        %1463 = vrot.lane.b32.xlu0 %v1376, 110
        %v1464 = vpop.permute.xlu0 %1463
        %vm1465 = vcmask 900096
        %v1466 = vsel %vm1465, %v1460, %v1462
        %v1467 = vsel %vm1465, %v1462, %v1464
        %1471 = vst [vmem:[#allocation3 + $0x18] sm:$0xc0] %v1466
        %1472 = vst [vmem:[#allocation3 + $0x20] sm:$0xc0] %v1467
        %vm1473 = vcmask 408582
        %1474 = vst.msk [vmem:[#allocation3 + $0x28] sm:$0xc0] %vm1473, %v1464
        %vm1475 = vcmask 556438
        %1476 = vst.msk [vmem:[#allocation3 + $0x28] sm:$0xc0] %vm1475, 0.0
        %1477 = vrot.lane.b32.xlu0 %v1320, 109
        %v1478 = vpop.permute.xlu0 %1477
        %1479 = vrot.lane.b32.xlu0 %v1328, 109
        %v1480 = vpop.permute.xlu0 %1479
        %1481 = vrot.lane.b32.xlu0 %v1327, 109
        %v1482 = vpop.permute.xlu0 %1481
        %vm1483 = vcmask 891904
        %v1484 = vsel %vm1483, %v1478, %v1480
        %v1485 = vsel %vm1483, %v1480, %v1482
        %1489 = vst [vmem:[#allocation3 + $0x30] sm:$0x3] %v1484
        %1490 = vst [vmem:[#allocation3 + $0x38] sm:$0x3] %v1485
        %vm1491 = vcmask 394240
        %1492 = vst.msk [vmem:[#allocation3 + $0x40] sm:$0x3] %vm1491, %v1482
        %vm1493 = vcmask 550280
        %1494 = vst.msk [vmem:[#allocation3 + $0x40] sm:$0x3] %vm1493, 0.0
        %v1495 = vld [vmem:[#allocation19] sm:$0xff]
        %v1496 = vld [vmem:[#allocation3] sm:$0xff]
        %v1497 = vld [vmem:[#allocation3 + $0x8] sm:$0xff]
        %v1498 = vld [vmem:[#allocation3 + $0x10] sm:$0xff]
        %v1499 = vld [vmem:[#allocation3 + $0x18] sm:$0xff]
        %v1500 = vld [vmem:[#allocation3 + $0x20] sm:$0xff]
        %v1501 = vld [vmem:[#allocation3 + $0x28] sm:$0xff]
        %v1502 = vld [vmem:[#allocation3 + $0x30] sm:$0x3]
        %v1503 = vld [vmem:[#allocation3 + $0x38] sm:$0x3]
        %v1504 = vld [vmem:[#allocation3 + $0x40] sm:$0x3]
        %v1505 = vld [vmem:[%s9] sm:$0xff]
        %1507 = vset.pattern.permute.xlu0 0
        %1508 = vperm.xlu0 %1507, %v1505
        %v1509 = vpop.permute.xlu0 %1508
        %v1512 = vsel %vm1363, %v1495, 0
        %vm1514 = vcmask 1041408
        %v1516 = vsel %vm1514, %v1502, 0
        %v1519 = vsel %vm1514, %v1503, 0
        %v1522 = vsel %vm1514, %v1504, 0
        %1524 = vmatprep.subr.mxu0 %v1497
        %1525 = vmatpush1.msra.mxu0 %v1496
        %1526 = vmatprep.subr.mxu0 %v1500
        %1527 = vmatpush1.msra.mxu0 %v1499
        %1528 = vmatprep.subr.mxu0 %v1519
        %1529 = vmatpush1.msra.mxu0 %v1516
        %1530 = vmatprep.subr.mxu0 0.0
        %1531 = vmatpush1.msra.mxu0 0.0
        %1532 = vmatprep.subr.mxu0 0.0
        %1533 = vmatpush1.msra.mxu0 0.0
        %1534 = vmatprep.subr.mxu0 0.0
        %1535 = vmatpush1.msra.mxu0 0.0
        %1536 = vmatprep.subr.mxu0 0.0
        %1537 = vmatpush1.msra.mxu0 0.0
        %1538 = vmatprep.subr.mxu0 0.0
        %1539 = vmatpush1.msra.mxu0 0.0
        %1540 = vmatprep.subr.mxu0 0.0
        %1541 = vmatpush1.msra.mxu0 0.0
        %1542 = vmatprep.subr.mxu0 0.0
        %1543 = vmatpush1.msra.mxu0 0.0
        %1544 = vmatprep.subr.mxu0 0.0
        %1545 = vmatpush1.msra.mxu0 0.0
        %1546 = vmatprep.subr.mxu0 0.0
        %1547 = vmatpush1.msra.mxu0 0.0
        %1548 = vmatprep.subr.mxu0 0.0
        %1549 = vmatpush1.msra.mxu0 0.0
        %1550 = vmatprep.subr.mxu0 0.0
        %1551 = vmatpush1.msra.mxu0 0.0
        %1552 = vmatprep.subr.mxu0 0.0
        %1553 = vmatpush1.msra.mxu0 0.0
        %1554 = vmatprep.subr.mxu0 0.0
        %1555 = vmatpush1.msra.mxu0 0.0
        %1556 = vmatprep.subr.mxu0 0.0
        %1557 = vmatpush1.msra.mxu0 0.0
        %1558 = vmatprep.subr.mxu0 0.0
        %1559 = vmatpush1.msra.mxu0 0.0
        %1560 = vmatprep.subr.mxu0 0.0
        %1561 = vmatpush1.msra.mxu0 0.0
        %1562 = vmatprep.subr.mxu0 0.0
        %1563 = vmatpush1.msra.mxu0 0.0
        %1564 = vmatprep.subr.mxu0 0.0
        %1565 = vmatpush1.msra.mxu0 0.0
        %1566 = vmatprep.subr.mxu0 0.0
        %1567 = vmatpush1.msra.mxu0 0.0
        %1568 = vmatprep.subr.mxu0 0.0
        %1569 = vmatpush1.msra.mxu0 0.0
        %1570 = vmatprep.subr.mxu0 0.0
        %1571 = vmatpush1.msra.mxu0 0.0
        %1572 = vmatprep.subr.mxu0 0.0
        %1573 = vmatpush1.msra.mxu0 0.0
        %1574 = vmatprep.subr.mxu0 0.0
        %1575 = vmatpush1.msra.mxu0 0.0
        %1576 = vmatprep.subr.mxu0 0.0
        %1577 = vmatpush1.msra.mxu0 0.0
        %1578 = vmatprep.subr.mxu0 0.0
        %1579 = vmatpush1.msra.mxu0 0.0
        %1580 = vmatprep.subr.mxu0 0.0
        %1581 = vmatpush1.msra.mxu0 0.0
        %1582 = vmatprep.subr.mxu0 0.0
        %1583 = vmatpush1.msra.mxu0 0.0
        %1584 = vmatprep.subr.mxu0 0.0
        %1585 = vmatpush1.msra.mxu0 0.0
        %1586 = vmatprep.subr.mxu0 0.0
        %1587 = vmatpush1.msra.mxu0 0.0
        %1588 = vmatprep.mubr.f32.mxu0 0.0
        %1589 = vmatmul.mubr.f32.gmra.mrb[0].mxu0 %v1512
        %v1590 = vpop.f32.mrb[0].mxu0
        %v1591 = vadd.f32 %v1509, %v1590
        %v1592 = vpop.f32.mrb[0].mxu0
        %v1593 = vadd.f32 %v1509, %v1592
        %1594 = vdwg.mxu0
        %1595 = vmatprep.subr.mxu0 0.0
        %1596 = vmatpush1.msra.mxu0 %v1498
        %1597 = vmatprep.subr.mxu0 0.0
        %1598 = vmatpush1.msra.mxu0 %v1501
        %1599 = vmatprep.subr.mxu0 0.0
        %1600 = vmatpush1.msra.mxu0 %v1522
        %1601 = vmatprep.subr.mxu0 0.0
        %1602 = vmatpush1.msra.mxu0 0.0
        %1603 = vmatprep.subr.mxu0 0.0
        %1604 = vmatpush1.msra.mxu0 0.0
        %1605 = vmatprep.subr.mxu0 0.0
        %1606 = vmatpush1.msra.mxu0 0.0
        %1607 = vmatprep.subr.mxu0 0.0
        %1608 = vmatpush1.msra.mxu0 0.0
        %1609 = vmatprep.subr.mxu0 0.0
        %1610 = vmatpush1.msra.mxu0 0.0
        %1611 = vmatprep.subr.mxu0 0.0
        %1612 = vmatpush1.msra.mxu0 0.0
        %1613 = vmatprep.subr.mxu0 0.0
        %1614 = vmatpush1.msra.mxu0 0.0
        %1615 = vmatprep.subr.mxu0 0.0
        %1616 = vmatpush1.msra.mxu0 0.0
        %1617 = vmatprep.subr.mxu0 0.0
        %1618 = vmatpush1.msra.mxu0 0.0
        %1619 = vmatprep.subr.mxu0 0.0
        %1620 = vmatpush1.msra.mxu0 0.0
        %1621 = vmatprep.subr.mxu0 0.0
        %1622 = vmatpush1.msra.mxu0 0.0
        %1623 = vmatprep.subr.mxu0 0.0
        %1624 = vmatpush1.msra.mxu0 0.0
        %1625 = vmatprep.subr.mxu0 0.0
        %1626 = vmatpush1.msra.mxu0 0.0
        %1627 = vmatprep.subr.mxu0 0.0
        %1628 = vmatpush1.msra.mxu0 0.0
        %1629 = vmatprep.subr.mxu0 0.0
        %1630 = vmatpush1.msra.mxu0 0.0
        %1631 = vmatprep.subr.mxu0 0.0
        %1632 = vmatpush1.msra.mxu0 0.0
        %1633 = vmatprep.subr.mxu0 0.0
        %1634 = vmatpush1.msra.mxu0 0.0
        %1635 = vmatprep.subr.mxu0 0.0
        %1636 = vmatpush1.msra.mxu0 0.0
        %1637 = vmatprep.subr.mxu0 0.0
        %1638 = vmatpush1.msra.mxu0 0.0
        %1639 = vmatprep.subr.mxu0 0.0
        %1640 = vmatpush1.msra.mxu0 0.0
        %1641 = vmatprep.subr.mxu0 0.0
        %1642 = vmatpush1.msra.mxu0 0.0
        %1643 = vmatprep.subr.mxu0 0.0
        %1644 = vmatpush1.msra.mxu0 0.0
        %1645 = vmatprep.subr.mxu0 0.0
        %1646 = vmatpush1.msra.mxu0 0.0
        %1647 = vmatprep.subr.mxu0 0.0
        %1648 = vmatpush1.msra.mxu0 0.0
        %1649 = vmatprep.subr.mxu0 0.0
        %1650 = vmatpush1.msra.mxu0 0.0
        %1651 = vmatprep.subr.mxu0 0.0
        %1652 = vmatpush1.msra.mxu0 0.0
        %1653 = vmatprep.subr.mxu0 0.0
        %1654 = vmatpush1.msra.mxu0 0.0
        %1655 = vmatprep.subr.mxu0 0.0
        %1656 = vmatpush1.msra.mxu0 0.0
        %1657 = vmatprep.subr.mxu0 0.0
        %1658 = vmatpush1.msra.mxu0 0.0
        %1659 = vmatprep.mubr.f32.mxu0 0.0
        %1660 = vmatmul.mubr.f32.gmra.mrb[0].mxu0 %v1512
        %v1661 = vpop.f32.mrb[0].mxu0
        %v1662 = vadd.f32 %v1509, %v1661
        %v1663 = vpop.f32.mrb[0].mxu0
        %1664 = vdwg.mxu0
        %v1665 = vmul.f32 %v1591, 0.5
        %v1666 = vmul.f32 %v1593, 0.5
        %v1667 = vmul.f32 %v1662, 0.5
        %v1668 = vmul.f32 %v1591, 0.044715
        %v1669 = vmul.f32 %v1593, 0.044715
        %v1670 = vmul.f32 %v1662, 0.044715
        %v1671 = vmul.f32 %v1668, %v1591
        %v1672 = vmul.f32 %v1669, %v1593
        %v1673 = vmul.f32 %v1670, %v1662
        %v1674 = vmul.f32 %v1671, %v1591
        %v1675 = vmul.f32 %v1672, %v1593
        %v1676 = vmul.f32 %v1673, %v1662
        %v1677 = vadd.f32 %v1591, %v1674
        %v1678 = vadd.f32 %v1593, %v1675
        %v1679 = vadd.f32 %v1662, %v1676
        %v1680 = vmul.f32 %v1677, 0.7978846
        %v1681 = vmul.f32 %v1678, 0.7978846
        %v1682 = vmul.f32 %v1679, 0.7978846
        %v1683 = vtanh.pop %v1680
        %v1684 = vtanh.pop %v1681
        %v1685 = vtanh.pop %v1682
        %v1686 = vadd.f32 %v1683, 1.0
        %v1687 = vadd.f32 %v1684, 1.0
        %v1688 = vadd.f32 %v1685, 1.0
        %v1689 = vmul.f32 %v1665, %v1686
        %v1690 = vmul.f32 %v1666, %v1687
        %v1691 = vmul.f32 %v1667, %v1688
        %v1692 = vld [vmem:[#allocation16] sm:$0x7]
        %v1694 = vlaneseq
        %v1695 = vshrl.u32 %v1694, 7
        %v1696 = vsub.s32 0, %v1695
        %v1697 = vrot.slane %v1692, %v1696
        %v1698 = vlaneseq
        %v1699 = vshrl.u32 %v1698, 7
        %v1700 = vsub.s32 1, %v1699
        %v1701 = vrot.slane %v1692, %v1700
        %v1702 = vlaneseq
        %v1703 = vshrl.u32 %v1702, 7
        %v1704 = vsub.s32 2, %v1703
        %v1705 = vrot.slane %v1692, %v1704
        %v1709 = vmul.f32 %v1689, %v1697
        %v1710 = vmul.f32 %v1690, %v1701
        %v1711 = vmul.f32 %v1691, %v1705
        %1715 = vrot.lane.b32.xlu0 %v1709, 19
        %v1716 = vpop.permute.xlu0 %1715
        %1717 = vrot.lane.b32.xlu0 %v1710, 19
        %v1718 = vpop.permute.xlu0 %1717
        %1719 = vrot.lane.b32.xlu0 %v1711, 19
        %v1720 = vpop.permute.xlu0 %1719
        %v1721 = vsel %vm1335, %v1716, %v1718
        %v1722 = vsel %vm1335, %v1718, %v1720
        %vm1726 = vcmask 1047704
        %1727 = vst.msk [vmem:[#allocation4] sm:$0xff] %vm1726, %v1716
        %1728 = vst [vmem:[#allocation4 + $0x8] sm:$0xff] %v1721
        %vm1729 = vcmask 556032
        %1730 = vst.msk [vmem:[#allocation4 + $0x10] sm:$0xff] %vm1729, %v1722
        %1731 = vst.msk [vmem:[#allocation4] sm:$0xff] %vm1335, 0.0
        %1732 = vrot.lane.b32.xlu0 %v1709, 18
        %v1733 = vpop.permute.xlu0 %1732
        %1734 = vrot.lane.b32.xlu0 %v1710, 18
        %v1735 = vpop.permute.xlu0 %1734
        %1736 = vrot.lane.b32.xlu0 %v1711, 18
        %v1737 = vpop.permute.xlu0 %1736
        %v1738 = vsel %vm1363, %v1733, %v1735
        %v1739 = vsel %vm1363, %v1735, %v1737
        %vm1743 = vcmask 1047696
        %1744 = vst.msk [vmem:[#allocation4 + $0x18] sm:$0xff] %vm1743, %v1733
        %1745 = vst [vmem:[#allocation4 + $0x20] sm:$0xff] %v1738
        %1746 = vst.msk [vmem:[#allocation4 + $0x28] sm:$0xff] %vm1729, %v1739
        %1747 = vst.msk [vmem:[#allocation4 + $0x18] sm:$0xff] %vm1363, 0.0
        %1748 = vrot.lane.b32.xlu0 %v1709, 17
        %v1749 = vpop.permute.xlu0 %1748
        %1750 = vrot.lane.b32.xlu0 %v1710, 17
        %v1751 = vpop.permute.xlu0 %1750
        %1752 = vrot.lane.b32.xlu0 %v1711, 17
        %v1753 = vpop.permute.xlu0 %1752
        %v1754 = vsel %vm1384, %v1749, %v1751
        %v1755 = vsel %vm1384, %v1751, %v1753
        %vm1759 = vcmask 1047688
        %1760 = vst.msk [vmem:[#allocation4 + $0x30] sm:$0xff] %vm1759, %v1749
        %1761 = vst [vmem:[#allocation4 + $0x38] sm:$0xff] %v1754
        %1762 = vst.msk [vmem:[#allocation4 + $0x40] sm:$0xff] %vm1729, %v1755
        %1763 = vst.msk [vmem:[#allocation4 + $0x30] sm:$0xff] %vm1384, 0.0
        %1764 = vrot.lane.b32.xlu0 %v1709, 1
        %v1765 = vpop.permute.xlu0 %1764
        %1766 = vrot.lane.b32.xlu0 %v1710, 1
        %v1767 = vpop.permute.xlu0 %1766
        %1768 = vrot.lane.b32.xlu0 %v1711, 1
        %v1769 = vpop.permute.xlu0 %1768
        %v1770 = vsel %vm1404, %v1765, %v1767
        %v1771 = vsel %vm1404, %v1767, %v1769
        %vm1775 = vcmask 1047560
        %1776 = vst.msk [vmem:[#allocation4 + $0x48] sm:$0xff] %vm1775, %v1765
        %1777 = vst [vmem:[#allocation4 + $0x50] sm:$0xff] %v1770
        %1778 = vst.msk [vmem:[#allocation4 + $0x58] sm:$0xff] %vm1729, %v1771
        %1779 = vst.msk [vmem:[#allocation4 + $0x48] sm:$0xff] %vm1404, 0.0
        %1780 = vst [vmem:[#allocation4 + $0x60] sm:$0xff] %v1709
        %1781 = vst [vmem:[#allocation4 + $0x68] sm:$0xff] %v1710
        %1782 = vst.msk [vmem:[#allocation4 + $0x70] sm:$0xff] %vm1729, %v1711
        %1783 = vrot.lane.b32.xlu0 %v1709, 127
        %v1784 = vpop.permute.xlu0 %1783
        %1785 = vrot.lane.b32.xlu0 %v1710, 127
        %v1786 = vpop.permute.xlu0 %1785
        %1787 = vrot.lane.b32.xlu0 %v1711, 127
        %v1788 = vpop.permute.xlu0 %1787
        %v1789 = vsel %vm1429, %v1784, %v1786
        %v1790 = vsel %vm1429, %v1786, %v1788
        %1794 = vst [vmem:[#allocation4 + $0x78] sm:$0xff] %v1789
        %1795 = vst [vmem:[#allocation4 + $0x80] sm:$0xff] %v1790
        %vm1796 = vcmask 547840
        %1797 = vst.msk [vmem:[#allocation4 + $0x88] sm:$0xff] %vm1796, %v1788
        %vm1798 = vcmask 556568
        %1799 = vst.msk [vmem:[#allocation4 + $0x88] sm:$0xff] %vm1798, 0.0
        %1800 = vrot.lane.b32.xlu0 %v1709, 111
        %v1801 = vpop.permute.xlu0 %1800
        %1802 = vrot.lane.b32.xlu0 %v1710, 111
        %v1803 = vpop.permute.xlu0 %1802
        %1804 = vrot.lane.b32.xlu0 %v1711, 111
        %v1805 = vpop.permute.xlu0 %1804
        %v1806 = vsel %vm1447, %v1801, %v1803
        %v1807 = vsel %vm1447, %v1803, %v1805
        %1811 = vst [vmem:[#allocation4 + $0x90] sm:$0xff] %v1806
        %1812 = vst [vmem:[#allocation4 + $0x98] sm:$0xff] %v1807
        %vm1813 = vcmask 416768
        %1814 = vst.msk [vmem:[#allocation4 + $0xa0] sm:$0xff] %vm1813, %v1805
        %vm1815 = vcmask 556440
        %1816 = vst.msk [vmem:[#allocation4 + $0xa0] sm:$0xff] %vm1815, 0.0
        %1817 = vrot.lane.b32.xlu0 %v1709, 110
        %v1818 = vpop.permute.xlu0 %1817
        %1819 = vrot.lane.b32.xlu0 %v1710, 110
        %v1820 = vpop.permute.xlu0 %1819
        %1821 = vrot.lane.b32.xlu0 %v1711, 110
        %v1822 = vpop.permute.xlu0 %1821
        %v1823 = vsel %vm1465, %v1818, %v1820
        %v1824 = vsel %vm1465, %v1820, %v1822
        %1828 = vst [vmem:[#allocation4 + $0xa8] sm:$0xff] %v1823
        %1829 = vst [vmem:[#allocation4 + $0xb0] sm:$0xff] %v1824
        %vm1830 = vcmask 408576
        %1831 = vst.msk [vmem:[#allocation4 + $0xb8] sm:$0xff] %vm1830, %v1822
        %vm1832 = vcmask 556432
        %1833 = vst.msk [vmem:[#allocation4 + $0xb8] sm:$0xff] %vm1832, 0.0
        %1834 = vrot.lane.b32.xlu0 %v1709, 109
        %v1835 = vpop.permute.xlu0 %1834
        %1836 = vrot.lane.b32.xlu0 %v1710, 109
        %v1837 = vpop.permute.xlu0 %1836
        %1838 = vrot.lane.b32.xlu0 %v1711, 109
        %v1839 = vpop.permute.xlu0 %1838
        %v1840 = vsel %vm1483, %v1835, %v1837
        %v1841 = vsel %vm1483, %v1837, %v1839
        %1845 = vst [vmem:[#allocation4 + $0xc0] sm:$0xff] %v1840
        %1846 = vst [vmem:[#allocation4 + $0xc8] sm:$0xff] %v1841
        %vm1847 = vcmask 400384
        %1848 = vst.msk [vmem:[#allocation4 + $0xd0] sm:$0xff] %vm1847, %v1839
        %vm1849 = vcmask 556424
        %1850 = vst.msk [vmem:[#allocation4 + $0xd0] sm:$0xff] %vm1849, 0.0
        %v1851 = vld [vmem:[#allocation20] sm:$0xff]
        %v1852 = vld [vmem:[#allocation20 + $0x8] sm:$0xff]
        %v1853 = vld [vmem:[#allocation4] sm:$0xff]
        %v1854 = vld [vmem:[#allocation4 + $0x8] sm:$0xff]
        %v1855 = vld [vmem:[#allocation4 + $0x10] sm:$0xff]
        %v1856 = vld [vmem:[#allocation4 + $0x18] sm:$0xff]
        %v1857 = vld [vmem:[#allocation4 + $0x20] sm:$0xff]
        %v1858 = vld [vmem:[#allocation4 + $0x28] sm:$0xff]
        %v1859 = vld [vmem:[#allocation4 + $0x30] sm:$0xff]
        %v1860 = vld [vmem:[#allocation4 + $0x38] sm:$0xff]
        %v1861 = vld [vmem:[#allocation4 + $0x40] sm:$0xff]
        %v1862 = vld [vmem:[#allocation4 + $0x48] sm:$0xff]
        %v1863 = vld [vmem:[#allocation4 + $0x50] sm:$0xff]
        %v1864 = vld [vmem:[#allocation4 + $0x58] sm:$0xff]
        %v1865 = vld [vmem:[#allocation4 + $0x60] sm:$0xff]
        %v1866 = vld [vmem:[#allocation4 + $0x68] sm:$0xff]
        %v1867 = vld [vmem:[#allocation4 + $0x70] sm:$0xff]
        %v1868 = vld [vmem:[#allocation4 + $0x78] sm:$0xff]
        %v1869 = vld [vmem:[#allocation4 + $0x80] sm:$0xff]
        %v1870 = vld [vmem:[#allocation4 + $0x88] sm:$0xff]
        %v1871 = vld [vmem:[#allocation4 + $0x90] sm:$0xff]
        %v1872 = vld [vmem:[#allocation4 + $0x98] sm:$0xff]
        %v1873 = vld [vmem:[#allocation4 + $0xa0] sm:$0xff]
        %v1874 = vld [vmem:[#allocation4 + $0xa8] sm:$0xff]
        %v1875 = vld [vmem:[#allocation4 + $0xb0] sm:$0xff]
        %v1876 = vld [vmem:[#allocation4 + $0xb8] sm:$0xff]
        %v1877 = vld [vmem:[#allocation4 + $0xc0] sm:$0xff]
        %v1878 = vld [vmem:[#allocation4 + $0xc8] sm:$0xff]
        %v1879 = vld [vmem:[#allocation4 + $0xd0] sm:$0xff]
        %v1880 = vld [vmem:[%s11] sm:$0xff]
        %v1881 = vld [vmem:[%s11 + $0x8] sm:$0xff]
        %1883 = vset.pattern.permute.xlu0 0
        %1884 = vperm.xlu0 %1883, %v1880
        %v1885 = vpop.permute.xlu0 %1884
        %1888 = vset.pattern.permute.xlu0 0
        %1889 = vperm.xlu0 %1888, %v1881
        %v1890 = vpop.permute.xlu0 %1889
        %vm1892 = vcmask 588800
        %v1894 = vsel %vm1892, %v1851, 0
        %v1897 = vsel %vm1892, %v1852, 0
        %1899 = vmatprep.subr.mxu0 %v1854
        %1900 = vmatpush1.msra.mxu0 %v1853
        %1901 = vmatprep.subr.mxu0 %v1857
        %1902 = vmatpush1.msra.mxu0 %v1856
        %1903 = vmatprep.subr.mxu0 %v1860
        %1904 = vmatpush1.msra.mxu0 %v1859
        %1905 = vmatprep.subr.mxu0 %v1863
        %1906 = vmatpush1.msra.mxu0 %v1862
        %1907 = vmatprep.subr.mxu0 %v1866
        %1908 = vmatpush1.msra.mxu0 %v1865
        %1909 = vmatprep.subr.mxu0 %v1869
        %1910 = vmatpush1.msra.mxu0 %v1868
        %1911 = vmatprep.subr.mxu0 %v1872
        %1912 = vmatpush1.msra.mxu0 %v1871
        %1913 = vmatprep.subr.mxu0 %v1875
        %1914 = vmatpush1.msra.mxu0 %v1874
        %1915 = vmatprep.subr.mxu0 %v1878
        %1916 = vmatpush1.msra.mxu0 %v1877
        %1917 = vmatprep.subr.mxu0 0.0
        %1918 = vmatpush1.msra.mxu0 0.0
        %1919 = vmatprep.subr.mxu0 0.0
        %1920 = vmatpush1.msra.mxu0 0.0
        %1921 = vmatprep.subr.mxu0 0.0
        %1922 = vmatpush1.msra.mxu0 0.0
        %1923 = vmatprep.subr.mxu0 0.0
        %1924 = vmatpush1.msra.mxu0 0.0
        %1925 = vmatprep.subr.mxu0 0.0
        %1926 = vmatpush1.msra.mxu0 0.0
        %1927 = vmatprep.subr.mxu0 0.0
        %1928 = vmatpush1.msra.mxu0 0.0
        %1929 = vmatprep.subr.mxu0 0.0
        %1930 = vmatpush1.msra.mxu0 0.0
        %1931 = vmatprep.subr.mxu0 0.0
        %1932 = vmatpush1.msra.mxu0 0.0
        %1933 = vmatprep.subr.mxu0 0.0
        %1934 = vmatpush1.msra.mxu0 0.0
        %1935 = vmatprep.subr.mxu0 0.0
        %1936 = vmatpush1.msra.mxu0 0.0
        %1937 = vmatprep.subr.mxu0 0.0
        %1938 = vmatpush1.msra.mxu0 0.0
        %1939 = vmatprep.subr.mxu0 0.0
        %1940 = vmatpush1.msra.mxu0 0.0
        %1941 = vmatprep.subr.mxu0 0.0
        %1942 = vmatpush1.msra.mxu0 0.0
        %1943 = vmatprep.subr.mxu0 0.0
        %1944 = vmatpush1.msra.mxu0 0.0
        %1945 = vmatprep.subr.mxu0 0.0
        %1946 = vmatpush1.msra.mxu0 0.0
        %1947 = vmatprep.subr.mxu0 0.0
        %1948 = vmatpush1.msra.mxu0 0.0
        %1949 = vmatprep.subr.mxu0 0.0
        %1950 = vmatpush1.msra.mxu0 0.0
        %1951 = vmatprep.subr.mxu0 0.0
        %1952 = vmatpush1.msra.mxu0 0.0
        %1953 = vmatprep.subr.mxu0 0.0
        %1954 = vmatpush1.msra.mxu0 0.0
        %1955 = vmatprep.subr.mxu0 0.0
        %1956 = vmatpush1.msra.mxu0 0.0
        %1957 = vmatprep.subr.mxu0 0.0
        %1958 = vmatpush1.msra.mxu0 0.0
        %1959 = vmatprep.subr.mxu0 0.0
        %1960 = vmatpush1.msra.mxu0 0.0
        %1961 = vmatprep.subr.mxu0 0.0
        %1962 = vmatpush1.msra.mxu0 0.0
        %1963 = vmatprep.mubr.f32.mxu0 0.0
        %1964 = vmatmul.mubr.f32.gmra.mrb[0].mxu0 %v1894
        %v1965 = vpop.f32.mrb[0].mxu0
        %v1966 = vadd.f32 %v1885, %v1965
        %v1967 = vpop.f32.mrb[0].mxu0
        %v1968 = vadd.f32 %v1885, %v1967
        %1969 = vmatprep.mubr.f32.mxu0 0.0
        %1970 = vmatmul.mubr.f32.gmra.mrb[0].mxu0 %v1897
        %v1971 = vpop.f32.mrb[0].mxu0
        %v1972 = vadd.f32 %v1890, %v1971
        %v1973 = vpop.f32.mrb[0].mxu0
        %v1974 = vadd.f32 %v1890, %v1973
        %1975 = vdwg.mxu0
        %1976 = vmatprep.subr.mxu0 0.0
        %1977 = vmatpush1.msra.mxu0 %v1855
        %1978 = vmatprep.subr.mxu0 0.0
        %1979 = vmatpush1.msra.mxu0 %v1858
        %1980 = vmatprep.subr.mxu0 0.0
        %1981 = vmatpush1.msra.mxu0 %v1861
        %1982 = vmatprep.subr.mxu0 0.0
        %1983 = vmatpush1.msra.mxu0 %v1864
        %1984 = vmatprep.subr.mxu0 0.0
        %1985 = vmatpush1.msra.mxu0 %v1867
        %1986 = vmatprep.subr.mxu0 0.0
        %1987 = vmatpush1.msra.mxu0 %v1870
        %1988 = vmatprep.subr.mxu0 0.0
        %1989 = vmatpush1.msra.mxu0 %v1873
        %1990 = vmatprep.subr.mxu0 0.0
        %1991 = vmatpush1.msra.mxu0 %v1876
        %1992 = vmatprep.subr.mxu0 0.0
        %1993 = vmatpush1.msra.mxu0 %v1879
        %1994 = vmatprep.subr.mxu0 0.0
        %1995 = vmatpush1.msra.mxu0 0.0
        %1996 = vmatprep.subr.mxu0 0.0
        %1997 = vmatpush1.msra.mxu0 0.0
        %1998 = vmatprep.subr.mxu0 0.0
        %1999 = vmatpush1.msra.mxu0 0.0
        %2000 = vmatprep.subr.mxu0 0.0
        %2001 = vmatpush1.msra.mxu0 0.0
        %2002 = vmatprep.subr.mxu0 0.0
        %2003 = vmatpush1.msra.mxu0 0.0
        %2004 = vmatprep.subr.mxu0 0.0
        %2005 = vmatpush1.msra.mxu0 0.0
        %2006 = vmatprep.subr.mxu0 0.0
        %2007 = vmatpush1.msra.mxu0 0.0
        %2008 = vmatprep.subr.mxu0 0.0
        %2009 = vmatpush1.msra.mxu0 0.0
        %2010 = vmatprep.subr.mxu0 0.0
        %2011 = vmatpush1.msra.mxu0 0.0
        %2012 = vmatprep.subr.mxu0 0.0
        %2013 = vmatpush1.msra.mxu0 0.0
        %2014 = vmatprep.subr.mxu0 0.0
        %2015 = vmatpush1.msra.mxu0 0.0
        %2016 = vmatprep.subr.mxu0 0.0
        %2017 = vmatpush1.msra.mxu0 0.0
        %2018 = vmatprep.subr.mxu0 0.0
        %2019 = vmatpush1.msra.mxu0 0.0
        %2020 = vmatprep.subr.mxu0 0.0
        %2021 = vmatpush1.msra.mxu0 0.0
        %2022 = vmatprep.subr.mxu0 0.0
        %2023 = vmatpush1.msra.mxu0 0.0
        %2024 = vmatprep.subr.mxu0 0.0
        %2025 = vmatpush1.msra.mxu0 0.0
        %2026 = vmatprep.subr.mxu0 0.0
        %2027 = vmatpush1.msra.mxu0 0.0
        %2028 = vmatprep.subr.mxu0 0.0
        %2029 = vmatpush1.msra.mxu0 0.0
        %2030 = vmatprep.subr.mxu0 0.0
        %2031 = vmatpush1.msra.mxu0 0.0
        %2032 = vmatprep.subr.mxu0 0.0
        %2033 = vmatpush1.msra.mxu0 0.0
        %2034 = vmatprep.subr.mxu0 0.0
        %2035 = vmatpush1.msra.mxu0 0.0
        %2036 = vmatprep.subr.mxu0 0.0
        %2037 = vmatpush1.msra.mxu0 0.0
        %2038 = vmatprep.subr.mxu0 0.0
        %2039 = vmatpush1.msra.mxu0 0.0
        %2040 = vmatprep.mubr.f32.mxu0 0.0
        %2041 = vmatmul.mubr.f32.gmra.mrb[0].mxu0 %v1894
        %v2042 = vpop.f32.mrb[0].mxu0
        %v2043 = vadd.f32 %v1885, %v2042
        %v2044 = vpop.f32.mrb[0].mxu0
        %2045 = vmatprep.mubr.f32.mxu0 0.0
        %2046 = vmatmul.mubr.f32.gmra.mrb[0].mxu0 %v1897
        %v2047 = vpop.f32.mrb[0].mxu0
        %v2048 = vadd.f32 %v1890, %v2047
        %v2049 = vpop.f32.mrb[0].mxu0
        %2050 = vdwg.mxu0
        %v2051 = vmul.f32 %v1966, 0.5
        %v2052 = vmul.f32 %v1968, 0.5
        %v2053 = vmul.f32 %v2043, 0.5
        %v2054 = vmul.f32 %v1972, 0.5
        %v2055 = vmul.f32 %v1974, 0.5
        %v2056 = vmul.f32 %v2048, 0.5
        %v2057 = vmul.f32 %v1966, 0.044715
        %v2058 = vmul.f32 %v1968, 0.044715
        %v2059 = vmul.f32 %v2043, 0.044715
        %v2060 = vmul.f32 %v1972, 0.044715
        %v2061 = vmul.f32 %v1974, 0.044715
        %v2062 = vmul.f32 %v2048, 0.044715
        %v2063 = vmul.f32 %v2057, %v1966
        %v2064 = vmul.f32 %v2058, %v1968
        %v2065 = vmul.f32 %v2059, %v2043
        %v2066 = vmul.f32 %v2060, %v1972
        %v2067 = vmul.f32 %v2061, %v1974
        %v2068 = vmul.f32 %v2062, %v2048
        %v2069 = vmul.f32 %v2063, %v1966
        %v2070 = vmul.f32 %v2064, %v1968
        %v2071 = vmul.f32 %v2065, %v2043
        %v2072 = vmul.f32 %v2066, %v1972
        %v2073 = vmul.f32 %v2067, %v1974
        %v2074 = vmul.f32 %v2068, %v2048
        %v2075 = vadd.f32 %v1966, %v2069
        %v2076 = vadd.f32 %v1968, %v2070
        %v2077 = vadd.f32 %v2043, %v2071
        %v2078 = vadd.f32 %v1972, %v2072
        %v2079 = vadd.f32 %v1974, %v2073
        %v2080 = vadd.f32 %v2048, %v2074
        %v2081 = vmul.f32 %v2075, 0.7978846
        %v2082 = vmul.f32 %v2076, 0.7978846
        %v2083 = vmul.f32 %v2077, 0.7978846
        %v2084 = vmul.f32 %v2078, 0.7978846
        %v2085 = vmul.f32 %v2079, 0.7978846
        %v2086 = vmul.f32 %v2080, 0.7978846
        %v2087 = vtanh.pop %v2081
        %v2088 = vtanh.pop %v2082
        %v2089 = vtanh.pop %v2083
        %v2090 = vtanh.pop %v2084
        %v2091 = vtanh.pop %v2085
        %v2092 = vtanh.pop %v2086
        %v2093 = vadd.f32 %v2087, 1.0
        %v2094 = vadd.f32 %v2088, 1.0
        %v2095 = vadd.f32 %v2089, 1.0
        %v2096 = vadd.f32 %v2090, 1.0
        %v2097 = vadd.f32 %v2091, 1.0
        %v2098 = vadd.f32 %v2092, 1.0
        %v2099 = vmul.f32 %v2051, %v2093
        %v2100 = vmul.f32 %v2052, %v2094
        %v2101 = vmul.f32 %v2053, %v2095
        %v2102 = vmul.f32 %v2054, %v2096
        %v2103 = vmul.f32 %v2055, %v2097
        %v2104 = vmul.f32 %v2056, %v2098
        %v2105 = vld [vmem:[#allocation17] sm:$0xff]
        %v2106 = vld [vmem:[#allocation17 + $0x8] sm:$0xff]
        %v2107 = vld [vmem:[#allocation17 + $0x10] sm:$0xff]
        %v2108 = vld [vmem:[#allocation17 + $0x18] sm:$0xff]
        %v2109 = vld [vmem:[#allocation17 + $0x20] sm:$0xff]
        %v2110 = vld [vmem:[#allocation17 + $0x28] sm:$0xff]
        %v2111 = vld [vmem:[#allocation17 + $0x30] sm:$0xff]
        %v2112 = vld [vmem:[#allocation17 + $0x38] sm:$0xff]
        %v2113 = vld [vmem:[#allocation17 + $0x40] sm:$0xff]
        %v2114 = vld [vmem:[#allocation17 + $0x48] sm:$0xff]
        %v2115 = vld [vmem:[#allocation17 + $0x50] sm:$0xff]
        %v2116 = vld [vmem:[#allocation17 + $0x58] sm:$0xff]
        %v2117 = vld [vmem:[#allocation17 + $0x60] sm:$0xff]
        %v2118 = vld [vmem:[#allocation17 + $0x68] sm:$0xff]
        %v2119 = vld [vmem:[#allocation17 + $0x70] sm:$0xff]
        %v2120 = vld [vmem:[#allocation17 + $0x78] sm:$0xff]
        %v2121 = vld [vmem:[#allocation17 + $0x80] sm:$0xff]
        %v2122 = vld [vmem:[#allocation17 + $0x88] sm:$0xff]
        %v2123 = vld [vmem:[#allocation17 + $0x90] sm:$0xff]
        %v2124 = vld [vmem:[#allocation17 + $0x98] sm:$0xff]
        %v2125 = vld [vmem:[#allocation17 + $0xa0] sm:$0xff]
        %v2126 = vld [vmem:[#allocation17 + $0xa8] sm:$0xff]
        %v2127 = vld [vmem:[#allocation17 + $0xb0] sm:$0xff]
        %v2128 = vld [vmem:[#allocation17 + $0xb8] sm:$0xff]
        %v2129 = vld [vmem:[#allocation17 + $0xc0] sm:$0xff]
        %v2130 = vld [vmem:[#allocation17 + $0xc8] sm:$0xff]
        %v2131 = vld [vmem:[#allocation17 + $0xd0] sm:$0xff]
        %v2132 = vld [vmem:[#allocation17 + $0xd8] sm:$0xff]
        %v2133 = vld [vmem:[#allocation17 + $0xe0] sm:$0xff]
        %v2134 = vld [vmem:[#allocation17 + $0xe8] sm:$0xff]
        %v2135 = vld [vmem:[#allocation17 + $0xf0] sm:$0xff]
        %v2136 = vld [vmem:[#allocation17 + $0xf8] sm:$0xff]
        %v2137 = vld [vmem:[#allocation17 + $0x100] sm:$0xff]
        %v2138 = vld [vmem:[#allocation17 + $0x108] sm:$0xff]
        %v2139 = vld [vmem:[#allocation17 + $0x110] sm:$0xff]
        %v2140 = vld [vmem:[#allocation17 + $0x118] sm:$0xff]
        %v2141 = vld [vmem:[#allocation17 + $0x120] sm:$0xff]
        %v2142 = vld [vmem:[#allocation17 + $0x128] sm:$0xff]
        %v2143 = vld [vmem:[#allocation17 + $0x130] sm:$0xff]
        %v2144 = vld [vmem:[#allocation17 + $0x138] sm:$0xff]
        %v2145 = vld [vmem:[#allocation17 + $0x140] sm:$0xff]
        %v2146 = vld [vmem:[#allocation17 + $0x148] sm:$0xff]
        %v2147 = vld [vmem:[#allocation17 + $0x150] sm:$0xff]
        %v2148 = vld [vmem:[#allocation17 + $0x158] sm:$0xff]
        %v2149 = vld [vmem:[#allocation17 + $0x160] sm:$0xff]
        %v2150 = vld [vmem:[#allocation17 + $0x168] sm:$0xff]
        %v2151 = vld [vmem:[#allocation17 + $0x170] sm:$0xff]
        %v2152 = vld [vmem:[#allocation17 + $0x178] sm:$0xff]
        %v2153 = vld [vmem:[#allocation17 + $0x180] sm:$0xff]
        %v2154 = vld [vmem:[#allocation17 + $0x188] sm:$0xff]
        %v2155 = vld [vmem:[#allocation17 + $0x190] sm:$0xff]
        %v2156 = vld [vmem:[#allocation17 + $0x198] sm:$0xff]
        %v2157 = vld [vmem:[#allocation17 + $0x1a0] sm:$0xff]
        %v2158 = vld [vmem:[#allocation17 + $0x1a8] sm:$0xff]
        %v2159 = vld [vmem:[#allocation17 + $0x1b0] sm:$0xff]
        %v2160 = vld [vmem:[#allocation17 + $0x1b8] sm:$0xff]
        %v2161 = vld [vmem:[#allocation17 + $0x1c0] sm:$0xff]
        %v2162 = vld [vmem:[#allocation17 + $0x1c8] sm:$0xff]
        %v2163 = vld [vmem:[#allocation17 + $0x1d0] sm:$0xff]
        %v2164 = vld [vmem:[#allocation17 + $0x1d8] sm:$0xff]
        %v2165 = vld [vmem:[#allocation17 + $0x1e0] sm:$0xff]
        %v2166 = vld [vmem:[#allocation17 + $0x1e8] sm:$0xff]
        %v2167 = vld [vmem:[#allocation17 + $0x1f0] sm:$0xff]
        %v2168 = vld [vmem:[#allocation17 + $0x1f8] sm:$0xff]
        %v2169 = vld [vmem:[#allocation17 + $0x200] sm:$0xff]
        %v2170 = vld [vmem:[#allocation17 + $0x208] sm:$0xff]
        %v2171 = vld [vmem:[#allocation17 + $0x210] sm:$0xff]
        %v2172 = vld [vmem:[#allocation17 + $0x218] sm:$0xff]
        %v2173 = vld [vmem:[#allocation17 + $0x220] sm:$0xff]
        %v2174 = vld [vmem:[#allocation17 + $0x228] sm:$0xff]
        %v2175 = vld [vmem:[#allocation17 + $0x230] sm:$0xff]
        %v2176 = vld [vmem:[#allocation17 + $0x238] sm:$0xff]
        %v2177 = vld [vmem:[#allocation17 + $0x240] sm:$0xff]
        %v2178 = vld [vmem:[#allocation17 + $0x248] sm:$0xff]
        %v2179 = vld [vmem:[#allocation17 + $0x250] sm:$0xff]
        %v2180 = vld [vmem:[#allocation17 + $0x258] sm:$0xff]
        %v2181 = vld [vmem:[#allocation17 + $0x260] sm:$0xff]
        %v2182 = vld [vmem:[#allocation17 + $0x268] sm:$0xff]
        %v2183 = vld [vmem:[#allocation17 + $0x270] sm:$0xff]
        %v2184 = vld [vmem:[#allocation17 + $0x278] sm:$0xff]
        %v2185 = vld [vmem:[#allocation17 + $0x280] sm:$0xff]
        %v2186 = vld [vmem:[#allocation17 + $0x288] sm:$0xff]
        %v2187 = vld [vmem:[#allocation17 + $0x290] sm:$0xff]
        %v2188 = vld [vmem:[#allocation17 + $0x298] sm:$0xff]
        %v2189 = vld [vmem:[#allocation17 + $0x2a0] sm:$0xff]
        %v2190 = vld [vmem:[#allocation17 + $0x2a8] sm:$0xff]
        %v2191 = vld [vmem:[#allocation17 + $0x2b0] sm:$0xff]
        %v2192 = vld [vmem:[#allocation17 + $0x2b8] sm:$0xff]
        %v2193 = vld [vmem:[#allocation17 + $0x2c0] sm:$0xff]
        %v2194 = vld [vmem:[#allocation17 + $0x2c8] sm:$0xff]
        %v2195 = vld [vmem:[#allocation17 + $0x2d0] sm:$0xff]
        %v2196 = vld [vmem:[#allocation17 + $0x2d8] sm:$0xff]
        %v2197 = vld [vmem:[#allocation17 + $0x2e0] sm:$0xff]
        %v2198 = vld [vmem:[#allocation17 + $0x2e8] sm:$0xff]
        %v2199 = vld [vmem:[#allocation17 + $0x2f0] sm:$0xff]
        %v2200 = vld [vmem:[#allocation17 + $0x2f8] sm:$0xff]
        %v2201 = vld [vmem:[#allocation17 + $0x300] sm:$0xff]
        %v2202 = vld [vmem:[#allocation17 + $0x308] sm:$0xff]
        %v2203 = vld [vmem:[#allocation17 + $0x310] sm:$0xff]
        %v2204 = vld [vmem:[#allocation17 + $0x318] sm:$0xff]
        %v2205 = vld [vmem:[#allocation17 + $0x320] sm:$0xff]
        %v2206 = vld [vmem:[#allocation17 + $0x328] sm:$0xff]
        %v2207 = vld [vmem:[#allocation17 + $0x330] sm:$0xff]
        %v2208 = vld [vmem:[#allocation17 + $0x338] sm:$0xff]
        %v2209 = vld [vmem:[#allocation17 + $0x340] sm:$0xff]
        %v2210 = vld [vmem:[#allocation17 + $0x348] sm:$0xff]
        %v2211 = vld [vmem:[#allocation17 + $0x350] sm:$0xff]
        %v2212 = vld [vmem:[#allocation17 + $0x358] sm:$0xff]
        %v2213 = vld [vmem:[#allocation17 + $0x360] sm:$0xff]
        %v2214 = vld [vmem:[#allocation17 + $0x368] sm:$0xff]
        %v2215 = vld [vmem:[#allocation17 + $0x370] sm:$0xff]
        %v2216 = vld [vmem:[#allocation17 + $0x378] sm:$0xff]
        %v2217 = vld [vmem:[#allocation17 + $0x380] sm:$0xff]
        %v2218 = vld [vmem:[#allocation17 + $0x388] sm:$0xff]
        %v2219 = vld [vmem:[#allocation17 + $0x390] sm:$0xff]
        %v2220 = vld [vmem:[#allocation17 + $0x398] sm:$0xff]
        %v2221 = vld [vmem:[#allocation17 + $0x3a0] sm:$0xff]
        %v2222 = vld [vmem:[#allocation17 + $0x3a8] sm:$0xff]
        %v2223 = vld [vmem:[#allocation17 + $0x3b0] sm:$0xff]
        %v2224 = vld [vmem:[#allocation17 + $0x3b8] sm:$0xff]
        %v2225 = vld [vmem:[#allocation17 + $0x3c0] sm:$0xff]
        %v2226 = vld [vmem:[#allocation17 + $0x3c8] sm:$0xff]
        %v2227 = vld [vmem:[#allocation17 + $0x3d0] sm:$0xff]
        %v2228 = vld [vmem:[#allocation17 + $0x3d8] sm:$0xff]
        %v2229 = vld [vmem:[#allocation17 + $0x3e0] sm:$0xff]
        %v2230 = vld [vmem:[#allocation17 + $0x3e8] sm:$0xff]
        %v2231 = vld [vmem:[#allocation17 + $0x3f0] sm:$0xff]
        %v2232 = vld [vmem:[#allocation17 + $0x3f8] sm:$0xff]
        %v2233 = vld [vmem:[#allocation17 + $0x400] sm:$0xff]
        %v2234 = vld [vmem:[#allocation17 + $0x408] sm:$0xff]
        %v2235 = vld [vmem:[#allocation17 + $0x410] sm:$0xff]
        %v2236 = vld [vmem:[#allocation17 + $0x418] sm:$0xff]
        %v2237 = vld [vmem:[#allocation17 + $0x420] sm:$0xff]
        %v2238 = vld [vmem:[#allocation17 + $0x428] sm:$0xff]
        %v2239 = vld [vmem:[#allocation17 + $0x430] sm:$0xff]
        %v2240 = vld [vmem:[#allocation17 + $0x438] sm:$0xff]
        %v2241 = vld [vmem:[#allocation17 + $0x440] sm:$0xff]
        %v2242 = vld [vmem:[#allocation17 + $0x448] sm:$0xff]
        %v2243 = vld [vmem:[#allocation17 + $0x450] sm:$0xff]
        %v2244 = vld [vmem:[#allocation17 + $0x458] sm:$0xff]
        %v2245 = vld [vmem:[#allocation17 + $0x460] sm:$0xff]
        %v2246 = vld [vmem:[#allocation17 + $0x468] sm:$0xff]
        %v2247 = vld [vmem:[#allocation17 + $0x470] sm:$0xff]
        %v2248 = vld [vmem:[#allocation17 + $0x478] sm:$0xff]
        %v2249 = vld [vmem:[#allocation17 + $0x480] sm:$0xff]
        %v2250 = vld [vmem:[#allocation17 + $0x488] sm:$0xff]
        %v2251 = vld [vmem:[#allocation17 + $0x490] sm:$0xff]
        %v2252 = vld [vmem:[#allocation17 + $0x498] sm:$0xff]
        %v2253 = vld [vmem:[#allocation17 + $0x4a0] sm:$0xff]
        %v2254 = vld [vmem:[#allocation17 + $0x4a8] sm:$0xff]
        %v2255 = vld [vmem:[#allocation17 + $0x4b0] sm:$0xff]
        %v2256 = vld [vmem:[#allocation17 + $0x4b8] sm:$0xff]
        %v2257 = vld [vmem:[#allocation17 + $0x4c0] sm:$0xff]
        %v2258 = vld [vmem:[#allocation17 + $0x4c8] sm:$0xff]
        %v2259 = vld [vmem:[#allocation17 + $0x4d0] sm:$0xff]
        %v2260 = vld [vmem:[#allocation17 + $0x4d8] sm:$0xff]
        %v2261 = vld [vmem:[#allocation17 + $0x4e0] sm:$0xff]
        %v2262 = vld [vmem:[#allocation17 + $0x4e8] sm:$0xff]
        %v2263 = vld [vmem:[#allocation17 + $0x4f0] sm:$0xff]
        %v2264 = vld [vmem:[#allocation17 + $0x4f8] sm:$0xff]
        %v2265 = vld [vmem:[#allocation17 + $0x500] sm:$0xff]
        %v2266 = vld [vmem:[#allocation17 + $0x508] sm:$0xff]
        %v2267 = vld [vmem:[#allocation17 + $0x510] sm:$0xff]
        %v2268 = vld [vmem:[#allocation17 + $0x518] sm:$0xff]
        %v2269 = vld [vmem:[#allocation17 + $0x520] sm:$0xff]
        %v2270 = vld [vmem:[#allocation17 + $0x528] sm:$0xff]
        %v2271 = vld [vmem:[#allocation17 + $0x530] sm:$0xff]
        %v2272 = vld [vmem:[#allocation17 + $0x538] sm:$0xff]
        %v2273 = vld [vmem:[#allocation17 + $0x540] sm:$0xff]
        %v2274 = vld [vmem:[#allocation17 + $0x548] sm:$0xff]
        %v2275 = vld [vmem:[#allocation17 + $0x550] sm:$0xff]
        %v2276 = vld [vmem:[#allocation17 + $0x558] sm:$0xff]
        %v2277 = vld [vmem:[#allocation17 + $0x560] sm:$0xff]
        %v2278 = vld [vmem:[#allocation17 + $0x568] sm:$0xff]
        %v2279 = vld [vmem:[#allocation17 + $0x570] sm:$0xff]
        %v2280 = vld [vmem:[#allocation17 + $0x578] sm:$0xff]
        %v2281 = vld [vmem:[#allocation17 + $0x580] sm:$0xff]
        %v2282 = vld [vmem:[#allocation17 + $0x588] sm:$0xff]
        %v2283 = vld [vmem:[#allocation17 + $0x590] sm:$0xff]
        %v2284 = vld [vmem:[#allocation17 + $0x598] sm:$0xff]
        %v2285 = vld [vmem:[#allocation17 + $0x5a0] sm:$0xff]
        %v2286 = vld [vmem:[#allocation17 + $0x5a8] sm:$0xff]
        %v2287 = vld [vmem:[#allocation17 + $0x5b0] sm:$0xff]
        %v2288 = vld [vmem:[#allocation17 + $0x5b8] sm:$0xff]
        %v2289 = vld [vmem:[#allocation17 + $0x5c0] sm:$0xff]
        %v2290 = vld [vmem:[#allocation17 + $0x5c8] sm:$0xff]
        %v2291 = vld [vmem:[#allocation17 + $0x5d0] sm:$0xff]
        %v2292 = vld [vmem:[#allocation17 + $0x5d8] sm:$0xff]
        %v2293 = vld [vmem:[#allocation17 + $0x5e0] sm:$0xff]
        %v2294 = vld [vmem:[#allocation17 + $0x5e8] sm:$0xff]
        %v2295 = vld [vmem:[#allocation17 + $0x5f0] sm:$0xff]
        %v2296 = vld [vmem:[#allocation17 + $0x5f8] sm:$0xff]
        %v2297 = vld [vmem:[#allocation17 + $0x600] sm:$0xff]
        %v2298 = vld [vmem:[#allocation17 + $0x608] sm:$0xff]
        %v2299 = vld [vmem:[#allocation17 + $0x610] sm:$0xff]
        %v2300 = vld [vmem:[#allocation17 + $0x618] sm:$0xff]
        %v2301 = vld [vmem:[#allocation17 + $0x620] sm:$0xff]
        %v2302 = vld [vmem:[#allocation17 + $0x628] sm:$0xff]
        %v2303 = vld [vmem:[#allocation17 + $0x630] sm:$0xff]
        %v2304 = vld [vmem:[#allocation17 + $0x638] sm:$0xff]
        %v2305 = vld [vmem:[#allocation17 + $0x640] sm:$0xff]
        %v2306 = vld [vmem:[#allocation17 + $0x648] sm:$0xff]
        %v2307 = vld [vmem:[#allocation17 + $0x650] sm:$0xff]
        %v2308 = vld [vmem:[#allocation17 + $0x658] sm:$0xff]
        %v2309 = vld [vmem:[#allocation17 + $0x660] sm:$0xff]
        %v2310 = vld [vmem:[#allocation17 + $0x668] sm:$0xff]
        %v2311 = vld [vmem:[#allocation17 + $0x670] sm:$0xff]
        %v2312 = vld [vmem:[#allocation17 + $0x678] sm:$0xff]
        %v2313 = vld [vmem:[#allocation17 + $0x680] sm:$0xff]
        %v2314 = vld [vmem:[#allocation17 + $0x688] sm:$0xff]
        %v2315 = vld [vmem:[#allocation17 + $0x690] sm:$0xff]
        %v2316 = vld [vmem:[#allocation17 + $0x698] sm:$0xff]
        %v2317 = vld [vmem:[#allocation17 + $0x6a0] sm:$0xff]
        %v2318 = vld [vmem:[#allocation17 + $0x6a8] sm:$0xff]
        %v2319 = vld [vmem:[#allocation17 + $0x6b0] sm:$0xff]
        %v2320 = vld [vmem:[#allocation17 + $0x6b8] sm:$0xff]
        %v2321 = vld [vmem:[#allocation17 + $0x6c0] sm:$0xff]
        %v2322 = vld [vmem:[#allocation17 + $0x6c8] sm:$0xff]
        %v2323 = vld [vmem:[#allocation17 + $0x6d0] sm:$0xff]
        %v2324 = vld [vmem:[#allocation17 + $0x6d8] sm:$0xff]
        %v2325 = vld [vmem:[#allocation17 + $0x6e0] sm:$0xff]
        %v2326 = vld [vmem:[#allocation17 + $0x6e8] sm:$0xff]
        %v2327 = vld [vmem:[#allocation17 + $0x6f0] sm:$0xff]
        %v2328 = vld [vmem:[#allocation17 + $0x6f8] sm:$0xff]
        %v2329 = vld [vmem:[#allocation17 + $0x700] sm:$0xff]
        %v2330 = vld [vmem:[#allocation17 + $0x708] sm:$0xff]
        %v2331 = vld [vmem:[#allocation17 + $0x710] sm:$0xff]
        %v2332 = vld [vmem:[#allocation17 + $0x718] sm:$0xff]
        %v2333 = vld [vmem:[#allocation17 + $0x720] sm:$0xff]
        %v2334 = vld [vmem:[#allocation17 + $0x728] sm:$0xff]
        %v2335 = vld [vmem:[#allocation17 + $0x730] sm:$0xff]
        %v2336 = vld [vmem:[#allocation17 + $0x738] sm:$0xff]
        %v2337 = vld [vmem:[#allocation17 + $0x740] sm:$0xff]
        %v2338 = vld [vmem:[#allocation17 + $0x748] sm:$0xff]
        %v2339 = vld [vmem:[#allocation17 + $0x750] sm:$0xff]
        %v2340 = vld [vmem:[#allocation17 + $0x758] sm:$0xff]
        %v2341 = vld [vmem:[#allocation17 + $0x760] sm:$0xff]
        %v2342 = vld [vmem:[#allocation17 + $0x768] sm:$0xff]
        %v2343 = vld [vmem:[#allocation17 + $0x770] sm:$0xff]
        %v2344 = vld [vmem:[#allocation17 + $0x778] sm:$0xff]
        %v2345 = vld [vmem:[#allocation17 + $0x780] sm:$0xff]
        %v2346 = vld [vmem:[#allocation17 + $0x788] sm:$0xff]
        %v2347 = vld [vmem:[#allocation17 + $0x790] sm:$0xff]
        %v2348 = vld [vmem:[#allocation17 + $0x798] sm:$0xff]
        %v2349 = vld [vmem:[#allocation17 + $0x7a0] sm:$0xff]
        %v2350 = vld [vmem:[#allocation17 + $0x7a8] sm:$0xff]
        %v2351 = vld [vmem:[#allocation17 + $0x7b0] sm:$0xff]
        %v2352 = vld [vmem:[#allocation17 + $0x7b8] sm:$0xff]
        %v2353 = vld [vmem:[#allocation17 + $0x7c0] sm:$0xff]
        %v2354 = vld [vmem:[#allocation17 + $0x7c8] sm:$0xff]
        %v2355 = vld [vmem:[#allocation17 + $0x7d0] sm:$0xff]
        %v2356 = vld [vmem:[#allocation17 + $0x7d8] sm:$0xff]
        %v2357 = vld [vmem:[#allocation17 + $0x7e0] sm:$0xff]
        %v2358 = vld [vmem:[#allocation17 + $0x7e8] sm:$0xff]
        %v2359 = vld [vmem:[#allocation17 + $0x7f0] sm:$0xff]
        %v2360 = vld [vmem:[#allocation17 + $0x7f8] sm:$0xff]
        %v2361 = vld [vmem:[#allocation17 + $0x800] sm:$0xff]
        %v2362 = vld [vmem:[#allocation17 + $0x808] sm:$0xff]
        %v2363 = vld [vmem:[#allocation17 + $0x810] sm:$0xff]
        %v2364 = vld [vmem:[#allocation17 + $0x818] sm:$0xff]
        %v2365 = vld [vmem:[#allocation17 + $0x820] sm:$0xff]
        %v2366 = vld [vmem:[#allocation17 + $0x828] sm:$0xff]
        %v2367 = vld [vmem:[#allocation17 + $0x830] sm:$0xff]
        %v2368 = vld [vmem:[#allocation17 + $0x838] sm:$0xff]
        %v2369 = vld [vmem:[#allocation17 + $0x840] sm:$0xff]
        %v2370 = vld [vmem:[#allocation17 + $0x848] sm:$0xff]
        %v2371 = vld [vmem:[#allocation17 + $0x850] sm:$0xff]
        %v2372 = vld [vmem:[#allocation17 + $0x858] sm:$0xff]
        %v2373 = vld [vmem:[#allocation17 + $0x860] sm:$0xff]
        %v2374 = vld [vmem:[#allocation17 + $0x868] sm:$0xff]
        %v2375 = vld [vmem:[#allocation17 + $0x870] sm:$0xff]
        %v2376 = vld [vmem:[#allocation17 + $0x878] sm:$0xff]
        %v2377 = vld [vmem:[#allocation17 + $0x880] sm:$0xff]
        %v2378 = vld [vmem:[#allocation17 + $0x888] sm:$0xff]
        %v2379 = vld [vmem:[#allocation17 + $0x890] sm:$0xff]
        %v2380 = vld [vmem:[#allocation17 + $0x898] sm:$0xff]
        %v2381 = vld [vmem:[#allocation17 + $0x8a0] sm:$0xff]
        %v2382 = vld [vmem:[#allocation17 + $0x8a8] sm:$0xff]
        %v2383 = vld [vmem:[#allocation17 + $0x8b0] sm:$0xff]
        %v2384 = vld [vmem:[#allocation17 + $0x8b8] sm:$0xff]
        %v2385 = vld [vmem:[#allocation17 + $0x8c0] sm:$0xff]
        %v2386 = vld [vmem:[#allocation17 + $0x8c8] sm:$0xff]
        %v2387 = vld [vmem:[#allocation17 + $0x8d0] sm:$0xff]
        %v2388 = vld [vmem:[#allocation17 + $0x8d8] sm:$0xff]
        %v2389 = vld [vmem:[#allocation17 + $0x8e0] sm:$0xff]
        %v2390 = vld [vmem:[#allocation17 + $0x8e8] sm:$0xff]
        %v2391 = vld [vmem:[#allocation17 + $0x8f0] sm:$0xff]
        %v2392 = vld [vmem:[#allocation17 + $0x8f8] sm:$0xff]
        %v2393 = vld [vmem:[#allocation17 + $0x900] sm:$0xff]
        %v2394 = vld [vmem:[#allocation17 + $0x908] sm:$0xff]
        %v2395 = vld [vmem:[#allocation17 + $0x910] sm:$0xff]
        %v2396 = vld [vmem:[#allocation17 + $0x918] sm:$0xff]
        %v2397 = vld [vmem:[#allocation17 + $0x920] sm:$0xff]
        %v2398 = vld [vmem:[#allocation17 + $0x928] sm:$0xff]
        %v2399 = vld [vmem:[#allocation17 + $0x930] sm:$0xff]
        %v2400 = vld [vmem:[#allocation17 + $0x938] sm:$0xff]
        %v2401 = vld [vmem:[#allocation17 + $0x940] sm:$0xff]
        %v2402 = vld [vmem:[#allocation17 + $0x948] sm:$0xff]
        %v2403 = vld [vmem:[#allocation17 + $0x950] sm:$0xff]
        %v2404 = vld [vmem:[#allocation17 + $0x958] sm:$0xff]
        %v2405 = vld [vmem:[#allocation17 + $0x960] sm:$0xff]
        %v2406 = vld [vmem:[#allocation17 + $0x968] sm:$0xff]
        %v2407 = vld [vmem:[#allocation17 + $0x970] sm:$0xff]
        %v2408 = vld [vmem:[#allocation17 + $0x978] sm:$0xff]
        %v2409 = vld [vmem:[#allocation17 + $0x980] sm:$0xff]
        %v2410 = vld [vmem:[#allocation17 + $0x988] sm:$0xff]
        %v2411 = vld [vmem:[#allocation17 + $0x990] sm:$0xff]
        %v2412 = vld [vmem:[#allocation17 + $0x998] sm:$0xff]
        %v2413 = vld [vmem:[#allocation17 + $0x9a0] sm:$0xff]
        %v2414 = vld [vmem:[#allocation17 + $0x9a8] sm:$0xff]
        %v2415 = vld [vmem:[#allocation17 + $0x9b0] sm:$0xff]
        %v2416 = vld [vmem:[#allocation17 + $0x9b8] sm:$0xff]
        %v2417 = vld [vmem:[#allocation17 + $0x9c0] sm:$0xff]
        %v2418 = vld [vmem:[#allocation17 + $0x9c8] sm:$0xff]
        %v2419 = vld [vmem:[#allocation17 + $0x9d0] sm:$0xff]
        %v2420 = vld [vmem:[#allocation17 + $0x9d8] sm:$0xff]
        %v2421 = vld [vmem:[#allocation17 + $0x9e0] sm:$0xff]
        %v2422 = vld [vmem:[#allocation17 + $0x9e8] sm:$0xff]
        %v2423 = vld [vmem:[#allocation17 + $0x9f0] sm:$0xff]
        %v2424 = vld [vmem:[#allocation17 + $0x9f8] sm:$0xff]
        %v2425 = vld [vmem:[#allocation17 + $0xa00] sm:$0xff]
        %v2426 = vld [vmem:[#allocation17 + $0xa08] sm:$0xff]
        %v2427 = vld [vmem:[#allocation17 + $0xa10] sm:$0xff]
        %v2428 = vld [vmem:[#allocation17 + $0xa18] sm:$0xff]
        %v2429 = vld [vmem:[#allocation17 + $0xa20] sm:$0xff]
        %v2430 = vld [vmem:[#allocation17 + $0xa28] sm:$0xff]
        %v2431 = vld [vmem:[#allocation17 + $0xa30] sm:$0xff]
        %v2432 = vld [vmem:[#allocation17 + $0xa38] sm:$0xff]
        %v2433 = vld [vmem:[#allocation17 + $0xa40] sm:$0xff]
        %v2434 = vld [vmem:[#allocation17 + $0xa48] sm:$0xff]
        %v2435 = vld [vmem:[#allocation17 + $0xa50] sm:$0xff]
        %v2436 = vld [vmem:[#allocation17 + $0xa58] sm:$0xff]
        %v2437 = vld [vmem:[#allocation17 + $0xa60] sm:$0xff]
        %v2438 = vld [vmem:[#allocation17 + $0xa68] sm:$0xff]
        %v2439 = vld [vmem:[#allocation17 + $0xa70] sm:$0xff]
        %v2440 = vld [vmem:[#allocation17 + $0xa78] sm:$0xff]
        %v2441 = vld [vmem:[#allocation17 + $0xa80] sm:$0xff]
        %v2442 = vld [vmem:[#allocation17 + $0xa88] sm:$0xff]
        %v2443 = vld [vmem:[#allocation17 + $0xa90] sm:$0xff]
        %v2444 = vld [vmem:[#allocation17 + $0xa98] sm:$0xff]
        %v2445 = vld [vmem:[#allocation17 + $0xaa0] sm:$0xff]
        %v2446 = vld [vmem:[#allocation17 + $0xaa8] sm:$0xff]
        %v2447 = vld [vmem:[#allocation17 + $0xab0] sm:$0xff]
        %v2448 = vld [vmem:[#allocation17 + $0xab8] sm:$0xff]
        %v2449 = vld [vmem:[#allocation17 + $0xac0] sm:$0xff]
        %v2450 = vld [vmem:[#allocation17 + $0xac8] sm:$0xff]
        %v2451 = vld [vmem:[#allocation17 + $0xad0] sm:$0xff]
        %v2452 = vld [vmem:[#allocation17 + $0xad8] sm:$0xff]
        %v2453 = vld [vmem:[#allocation17 + $0xae0] sm:$0xff]
        %v2454 = vld [vmem:[#allocation17 + $0xae8] sm:$0xff]
        %v2455 = vld [vmem:[#allocation17 + $0xaf0] sm:$0xff]
        %v2456 = vld [vmem:[#allocation17 + $0xaf8] sm:$0xff]
        %v2457 = vld [vmem:[#allocation17 + $0xb00] sm:$0xff]
        %v2458 = vld [vmem:[#allocation17 + $0xb08] sm:$0xff]
        %v2459 = vld [vmem:[#allocation17 + $0xb10] sm:$0xff]
        %v2460 = vld [vmem:[#allocation17 + $0xb18] sm:$0xff]
        %v2461 = vld [vmem:[#allocation17 + $0xb20] sm:$0xff]
        %v2462 = vld [vmem:[#allocation17 + $0xb28] sm:$0xff]
        %v2463 = vld [vmem:[#allocation17 + $0xb30] sm:$0xff]
        %v2464 = vld [vmem:[#allocation17 + $0xb38] sm:$0xff]
        %v2465 = vld [vmem:[#allocation17 + $0xb40] sm:$0xff]
        %v2466 = vld [vmem:[#allocation17 + $0xb48] sm:$0xff]
        %v2467 = vld [vmem:[#allocation17 + $0xb50] sm:$0xff]
        %v2468 = vld [vmem:[#allocation17 + $0xb58] sm:$0xff]
        %v2469 = vld [vmem:[#allocation17 + $0xb60] sm:$0xff]
        %v2470 = vld [vmem:[#allocation17 + $0xb68] sm:$0xff]
        %v2471 = vld [vmem:[#allocation17 + $0xb70] sm:$0xff]
        %v2472 = vld [vmem:[#allocation17 + $0xb78] sm:$0xff]
        %v2473 = vld [vmem:[#allocation17 + $0xb80] sm:$0xff]
        %v2474 = vld [vmem:[#allocation17 + $0xb88] sm:$0xff]
        %v2475 = vld [vmem:[#allocation17 + $0xb90] sm:$0xff]
        %v2476 = vld [vmem:[#allocation17 + $0xb98] sm:$0xff]
        %v2477 = vld [vmem:[#allocation17 + $0xba0] sm:$0xff]
        %v2478 = vld [vmem:[#allocation17 + $0xba8] sm:$0xff]
        %v2479 = vld [vmem:[#allocation17 + $0xbb0] sm:$0xff]
        %v2480 = vld [vmem:[#allocation17 + $0xbb8] sm:$0xff]
        %v2481 = vld [vmem:[#allocation17 + $0xbc0] sm:$0xff]
        %v2482 = vld [vmem:[#allocation17 + $0xbc8] sm:$0xff]
        %v2483 = vld [vmem:[#allocation17 + $0xbd0] sm:$0xff]
        %v2484 = vld [vmem:[#allocation17 + $0xbd8] sm:$0xff]
        %v2485 = vld [vmem:[#allocation17 + $0xbe0] sm:$0xff]
        %v2486 = vld [vmem:[#allocation17 + $0xbe8] sm:$0xff]
        %v2487 = vld [vmem:[#allocation17 + $0xbf0] sm:$0xff]
        %v2488 = vld [vmem:[#allocation17 + $0xbf8] sm:$0xff]
        %v2489 = vld [vmem:[#allocation17 + $0xc00] sm:$0xff]
        %v2490 = vld [vmem:[#allocation17 + $0xc08] sm:$0xff]
        %v2491 = vld [vmem:[#allocation17 + $0xc10] sm:$0xff]
        %v2492 = vld [vmem:[#allocation17 + $0xc18] sm:$0xff]
        %v2493 = vld [vmem:[#allocation17 + $0xc20] sm:$0xff]
        %v2494 = vld [vmem:[#allocation17 + $0xc28] sm:$0xff]
        %v2495 = vld [vmem:[#allocation17 + $0xc30] sm:$0xff]
        %v2496 = vld [vmem:[#allocation17 + $0xc38] sm:$0xff]
        %v2497 = vld [vmem:[#allocation17 + $0xc40] sm:$0xff]
        %v2498 = vld [vmem:[#allocation17 + $0xc48] sm:$0xff]
        %v2499 = vld [vmem:[#allocation17 + $0xc50] sm:$0xff]
        %v2500 = vld [vmem:[#allocation17 + $0xc58] sm:$0xff]
        %v2501 = vld [vmem:[#allocation17 + $0xc60] sm:$0xff]
        %v2502 = vld [vmem:[#allocation17 + $0xc68] sm:$0xff]
        %v2503 = vld [vmem:[#allocation17 + $0xc70] sm:$0xff]
        %v2504 = vld [vmem:[#allocation17 + $0xc78] sm:$0xff]
        %v2505 = vld [vmem:[#allocation17 + $0xc80] sm:$0xf]
        %v2506 = vld [vmem:[#allocation17 + $0xc88] sm:$0xf]
        %v2507 = vld [vmem:[#allocation17 + $0xc90] sm:$0xf]
        %v2508 = vld [vmem:[#allocation17 + $0xc98] sm:$0xf]
        %v2509 = vld [vmem:[#allocation17 + $0xca0] sm:$0xf]
        %v2510 = vld [vmem:[#allocation17 + $0xca8] sm:$0xf]
        %v2511 = vld [vmem:[#allocation17 + $0xcb0] sm:$0xf]
        %v2512 = vld [vmem:[#allocation17 + $0xcb8] sm:$0xf]
        %v2513 = vld [vmem:[#allocation17 + $0xcc0] sm:$0xf]
        %v2514 = vld [vmem:[#allocation17 + $0xcc8] sm:$0xf]
        %v2516 = vsel %vm1729, %v2101, 0
        %v2519 = vsel %vm1729, %v2104, 0
        %vm2521 = vcmask 1043456
        %v2523 = vsel %vm2521, %v2505, 0
        %v2526 = vsel %vm2521, %v2506, 0
        %v2529 = vsel %vm2521, %v2507, 0
        %v2532 = vsel %vm2521, %v2508, 0
        %v2535 = vsel %vm2521, %v2509, 0
        %v2538 = vsel %vm2521, %v2510, 0
        %v2541 = vsel %vm2521, %v2511, 0
        %v2544 = vsel %vm2521, %v2512, 0
        %v2547 = vsel %vm2521, %v2513, 0
        %v2550 = vsel %vm2521, %v2514, 0
        %2552 = vmatprep.subr.mxu0 %v2106
        %2553 = vmatpush1.msra.mxu0 %v2105
        %2554 = vmatprep.subr.mxu0 %v2116
        %2555 = vmatpush1.msra.mxu0 %v2115
        %2556 = vmatprep.subr.mxu0 %v2126
        %2557 = vmatpush1.msra.mxu0 %v2125
        %2558 = vmatprep.subr.mxu0 %v2136
        %2559 = vmatpush1.msra.mxu0 %v2135
        %2560 = vmatprep.subr.mxu0 %v2146
        %2561 = vmatpush1.msra.mxu0 %v2145
        %2562 = vmatprep.subr.mxu0 %v2156
        %2563 = vmatpush1.msra.mxu0 %v2155
        %2564 = vmatprep.subr.mxu0 %v2166
        %2565 = vmatpush1.msra.mxu0 %v2165
        %2566 = vmatprep.subr.mxu0 %v2176
        %2567 = vmatpush1.msra.mxu0 %v2175
        %2568 = vmatprep.subr.mxu0 %v2186
        %2569 = vmatpush1.msra.mxu0 %v2185
        %2570 = vmatprep.subr.mxu0 %v2196
        %2571 = vmatpush1.msra.mxu0 %v2195
        %2572 = vmatprep.subr.mxu0 %v2206
        %2573 = vmatpush1.msra.mxu0 %v2205
        %2574 = vmatprep.subr.mxu0 %v2216
        %2575 = vmatpush1.msra.mxu0 %v2215
        %2576 = vmatprep.subr.mxu0 %v2226
        %2577 = vmatpush1.msra.mxu0 %v2225
        %2578 = vmatprep.subr.mxu0 %v2236
        %2579 = vmatpush1.msra.mxu0 %v2235
        %2580 = vmatprep.subr.mxu0 %v2246
        %2581 = vmatpush1.msra.mxu0 %v2245
        %2582 = vmatprep.subr.mxu0 %v2256
        %2583 = vmatpush1.msra.mxu0 %v2255
        %2584 = vmatprep.subr.mxu0 %v2266
        %2585 = vmatpush1.msra.mxu0 %v2265
        %2586 = vmatprep.subr.mxu0 %v2276
        %2587 = vmatpush1.msra.mxu0 %v2275
        %2588 = vmatprep.subr.mxu0 %v2286
        %2589 = vmatpush1.msra.mxu0 %v2285
        %2590 = vmatprep.subr.mxu0 %v2296
        %2591 = vmatpush1.msra.mxu0 %v2295
        %2592 = vmatprep.subr.mxu0 %v2306
        %2593 = vmatpush1.msra.mxu0 %v2305
        %2594 = vmatprep.subr.mxu0 %v2316
        %2595 = vmatpush1.msra.mxu0 %v2315
        %2596 = vmatprep.subr.mxu0 %v2326
        %2597 = vmatpush1.msra.mxu0 %v2325
        %2598 = vmatprep.subr.mxu0 %v2336
        %2599 = vmatpush1.msra.mxu0 %v2335
        %2600 = vmatprep.subr.mxu0 %v2346
        %2601 = vmatpush1.msra.mxu0 %v2345
        %2602 = vmatprep.subr.mxu0 %v2356
        %2603 = vmatpush1.msra.mxu0 %v2355
        %2604 = vmatprep.subr.mxu0 %v2366
        %2605 = vmatpush1.msra.mxu0 %v2365
        %2606 = vmatprep.subr.mxu0 %v2376
        %2607 = vmatpush1.msra.mxu0 %v2375
        %2608 = vmatprep.subr.mxu0 %v2386
        %2609 = vmatpush1.msra.mxu0 %v2385
        %2610 = vmatprep.subr.mxu0 %v2396
        %2611 = vmatpush1.msra.mxu0 %v2395
        %2612 = vmatprep.subr.mxu0 %v2406
        %2613 = vmatpush1.msra.mxu0 %v2405
        %2614 = vmatprep.subr.mxu0 %v2416
        %2615 = vmatpush1.msra.mxu0 %v2415
        %2616 = vmatprep.mubr.f32.mxu0 %v2100
        %2617 = vmatmul.mubr.f32.gmra.mrb[0].mxu0 %v2099
        %v2618 = vpop.f32.mrb[0].mxu0
        %v2619 = vadd.f32 0.0, %v2618
        %v2620 = vpop.f32.mrb[0].mxu0
        %v2621 = vadd.f32 0.0, %v2620
        %2622 = vmatprep.mubr.f32.mxu0 %v2103
        %2623 = vmatmul.mubr.f32.gmra.mrb[0].mxu0 %v2102
        %v2624 = vpop.f32.mrb[0].mxu0
        %v2625 = vadd.f32 0.0, %v2624
        %v2626 = vpop.f32.mrb[0].mxu0
        %v2627 = vadd.f32 0.0, %v2626
        %2628 = vdwg.mxu0
        %2629 = vmatprep.subr.mxu0 %v2426
        %2630 = vmatpush1.msra.mxu0 %v2425
        %2631 = vmatprep.subr.mxu0 %v2436
        %2632 = vmatpush1.msra.mxu0 %v2435
        %2633 = vmatprep.subr.mxu0 %v2446
        %2634 = vmatpush1.msra.mxu0 %v2445
        %2635 = vmatprep.subr.mxu0 %v2456
        %2636 = vmatpush1.msra.mxu0 %v2455
        %2637 = vmatprep.subr.mxu0 %v2466
        %2638 = vmatpush1.msra.mxu0 %v2465
        %2639 = vmatprep.subr.mxu0 %v2476
        %2640 = vmatpush1.msra.mxu0 %v2475
        %2641 = vmatprep.subr.mxu0 %v2486
        %2642 = vmatpush1.msra.mxu0 %v2485
        %2643 = vmatprep.subr.mxu0 %v2496
        %2644 = vmatpush1.msra.mxu0 %v2495
        %2645 = vmatprep.subr.mxu0 %v2526
        %2646 = vmatpush1.msra.mxu0 %v2523
        %2647 = vmatprep.subr.mxu0 0.0
        %2648 = vmatpush1.msra.mxu0 0.0
        %2649 = vmatprep.subr.mxu0 0.0
        %2650 = vmatpush1.msra.mxu0 0.0
        %2651 = vmatprep.subr.mxu0 0.0
        %2652 = vmatpush1.msra.mxu0 0.0
        %2653 = vmatprep.subr.mxu0 0.0
        %2654 = vmatpush1.msra.mxu0 0.0
        %2655 = vmatprep.subr.mxu0 0.0
        %2656 = vmatpush1.msra.mxu0 0.0
        %2657 = vmatprep.subr.mxu0 0.0
        %2658 = vmatpush1.msra.mxu0 0.0
        %2659 = vmatprep.subr.mxu0 0.0
        %2660 = vmatpush1.msra.mxu0 0.0
        %2661 = vmatprep.subr.mxu0 0.0
        %2662 = vmatpush1.msra.mxu0 0.0
        %2663 = vmatprep.subr.mxu0 0.0
        %2664 = vmatpush1.msra.mxu0 0.0
        %2665 = vmatprep.subr.mxu0 0.0
        %2666 = vmatpush1.msra.mxu0 0.0
        %2667 = vmatprep.subr.mxu0 0.0
        %2668 = vmatpush1.msra.mxu0 0.0
        %2669 = vmatprep.subr.mxu0 0.0
        %2670 = vmatpush1.msra.mxu0 0.0
        %2671 = vmatprep.subr.mxu0 0.0
        %2672 = vmatpush1.msra.mxu0 0.0
        %2673 = vmatprep.subr.mxu0 0.0
        %2674 = vmatpush1.msra.mxu0 0.0
        %2675 = vmatprep.subr.mxu0 0.0
        %2676 = vmatpush1.msra.mxu0 0.0
        %2677 = vmatprep.subr.mxu0 0.0
        %2678 = vmatpush1.msra.mxu0 0.0
        %2679 = vmatprep.subr.mxu0 0.0
        %2680 = vmatpush1.msra.mxu0 0.0
        %2681 = vmatprep.subr.mxu0 0.0
        %2682 = vmatpush1.msra.mxu0 0.0
        %2683 = vmatprep.subr.mxu0 0.0
        %2684 = vmatpush1.msra.mxu0 0.0
        %2685 = vmatprep.subr.mxu0 0.0
        %2686 = vmatpush1.msra.mxu0 0.0
        %2687 = vmatprep.subr.mxu0 0.0
        %2688 = vmatpush1.msra.mxu0 0.0
        %2689 = vmatprep.subr.mxu0 0.0
        %2690 = vmatpush1.msra.mxu0 0.0
        %2691 = vmatprep.subr.mxu0 0.0
        %2692 = vmatpush1.msra.mxu0 0.0
        %2693 = vmatprep.mubr.f32.mxu0 0.0
        %2694 = vmatmul.mubr.f32.gmra.mrb[0].mxu0 %v2516
        %v2695 = vpop.f32.mrb[0].mxu0
        %v2696 = vadd.f32 %v2619, %v2695
        %v2697 = vpop.f32.mrb[0].mxu0
        %v2698 = vadd.f32 %v2621, %v2697
        %2699 = vmatprep.mubr.f32.mxu0 0.0
        %2700 = vmatmul.mubr.f32.gmra.mrb[0].mxu0 %v2519
        %v2701 = vpop.f32.mrb[0].mxu0
        %v2702 = vadd.f32 %v2625, %v2701
        %v2703 = vpop.f32.mrb[0].mxu0
        %v2704 = vadd.f32 %v2627, %v2703
        %2705 = vdwg.mxu0
        %2706 = vmatprep.subr.mxu0 %v2108
        %2707 = vmatpush1.msra.mxu0 %v2107
        %2708 = vmatprep.subr.mxu0 %v2118
        %2709 = vmatpush1.msra.mxu0 %v2117
        %2710 = vmatprep.subr.mxu0 %v2128
        %2711 = vmatpush1.msra.mxu0 %v2127
        %2712 = vmatprep.subr.mxu0 %v2138
        %2713 = vmatpush1.msra.mxu0 %v2137
        %2714 = vmatprep.subr.mxu0 %v2148
        %2715 = vmatpush1.msra.mxu0 %v2147
        %2716 = vmatprep.subr.mxu0 %v2158
        %2717 = vmatpush1.msra.mxu0 %v2157
        %2718 = vmatprep.subr.mxu0 %v2168
        %2719 = vmatpush1.msra.mxu0 %v2167
        %2720 = vmatprep.subr.mxu0 %v2178
        %2721 = vmatpush1.msra.mxu0 %v2177
        %2722 = vmatprep.subr.mxu0 %v2188
        %2723 = vmatpush1.msra.mxu0 %v2187
        %2724 = vmatprep.subr.mxu0 %v2198
        %2725 = vmatpush1.msra.mxu0 %v2197
        %2726 = vmatprep.subr.mxu0 %v2208
        %2727 = vmatpush1.msra.mxu0 %v2207
        %2728 = vmatprep.subr.mxu0 %v2218
        %2729 = vmatpush1.msra.mxu0 %v2217
        %2730 = vmatprep.subr.mxu0 %v2228
        %2731 = vmatpush1.msra.mxu0 %v2227
        %2732 = vmatprep.subr.mxu0 %v2238
        %2733 = vmatpush1.msra.mxu0 %v2237
        %2734 = vmatprep.subr.mxu0 %v2248
        %2735 = vmatpush1.msra.mxu0 %v2247
        %2736 = vmatprep.subr.mxu0 %v2258
        %2737 = vmatpush1.msra.mxu0 %v2257
        %2738 = vmatprep.subr.mxu0 %v2268
        %2739 = vmatpush1.msra.mxu0 %v2267
        %2740 = vmatprep.subr.mxu0 %v2278
        %2741 = vmatpush1.msra.mxu0 %v2277
        %2742 = vmatprep.subr.mxu0 %v2288
        %2743 = vmatpush1.msra.mxu0 %v2287
        %2744 = vmatprep.subr.mxu0 %v2298
        %2745 = vmatpush1.msra.mxu0 %v2297
        %2746 = vmatprep.subr.mxu0 %v2308
        %2747 = vmatpush1.msra.mxu0 %v2307
        %2748 = vmatprep.subr.mxu0 %v2318
        %2749 = vmatpush1.msra.mxu0 %v2317
        %2750 = vmatprep.subr.mxu0 %v2328
        %2751 = vmatpush1.msra.mxu0 %v2327
        %2752 = vmatprep.subr.mxu0 %v2338
        %2753 = vmatpush1.msra.mxu0 %v2337
        %2754 = vmatprep.subr.mxu0 %v2348
        %2755 = vmatpush1.msra.mxu0 %v2347
        %2756 = vmatprep.subr.mxu0 %v2358
        %2757 = vmatpush1.msra.mxu0 %v2357
        %2758 = vmatprep.subr.mxu0 %v2368
        %2759 = vmatpush1.msra.mxu0 %v2367
        %2760 = vmatprep.subr.mxu0 %v2378
        %2761 = vmatpush1.msra.mxu0 %v2377
        %2762 = vmatprep.subr.mxu0 %v2388
        %2763 = vmatpush1.msra.mxu0 %v2387
        %2764 = vmatprep.subr.mxu0 %v2398
        %2765 = vmatpush1.msra.mxu0 %v2397
        %2766 = vmatprep.subr.mxu0 %v2408
        %2767 = vmatpush1.msra.mxu0 %v2407
        %2768 = vmatprep.subr.mxu0 %v2418
        %2769 = vmatpush1.msra.mxu0 %v2417
        %2770 = vmatprep.mubr.f32.mxu0 %v2100
        %2771 = vmatmul.mubr.f32.gmra.mrb[0].mxu0 %v2099
        %v2772 = vpop.f32.mrb[0].mxu0
        %v2773 = vadd.f32 0.0, %v2772
        %v2774 = vpop.f32.mrb[0].mxu0
        %v2775 = vadd.f32 0.0, %v2774
        %2776 = vmatprep.mubr.f32.mxu0 %v2103
        %2777 = vmatmul.mubr.f32.gmra.mrb[0].mxu0 %v2102
        %v2778 = vpop.f32.mrb[0].mxu0
        %v2779 = vadd.f32 0.0, %v2778
        %v2780 = vpop.f32.mrb[0].mxu0
        %v2781 = vadd.f32 0.0, %v2780
        %2782 = vdwg.mxu0
        %2783 = vmatprep.subr.mxu0 %v2428
        %2784 = vmatpush1.msra.mxu0 %v2427
        %2785 = vmatprep.subr.mxu0 %v2438
        %2786 = vmatpush1.msra.mxu0 %v2437
        %2787 = vmatprep.subr.mxu0 %v2448
        %2788 = vmatpush1.msra.mxu0 %v2447
        %2789 = vmatprep.subr.mxu0 %v2458
        %2790 = vmatpush1.msra.mxu0 %v2457
        %2791 = vmatprep.subr.mxu0 %v2468
        %2792 = vmatpush1.msra.mxu0 %v2467
        %2793 = vmatprep.subr.mxu0 %v2478
        %2794 = vmatpush1.msra.mxu0 %v2477
        %2795 = vmatprep.subr.mxu0 %v2488
        %2796 = vmatpush1.msra.mxu0 %v2487
        %2797 = vmatprep.subr.mxu0 %v2498
        %2798 = vmatpush1.msra.mxu0 %v2497
        %2799 = vmatprep.subr.mxu0 %v2532
        %2800 = vmatpush1.msra.mxu0 %v2529
        %2801 = vmatprep.subr.mxu0 0.0
        %2802 = vmatpush1.msra.mxu0 0.0
        %2803 = vmatprep.subr.mxu0 0.0
        %2804 = vmatpush1.msra.mxu0 0.0
        %2805 = vmatprep.subr.mxu0 0.0
        %2806 = vmatpush1.msra.mxu0 0.0
        %2807 = vmatprep.subr.mxu0 0.0
        %2808 = vmatpush1.msra.mxu0 0.0
        %2809 = vmatprep.subr.mxu0 0.0
        %2810 = vmatpush1.msra.mxu0 0.0
        %2811 = vmatprep.subr.mxu0 0.0
        %2812 = vmatpush1.msra.mxu0 0.0
        %2813 = vmatprep.subr.mxu0 0.0
        %2814 = vmatpush1.msra.mxu0 0.0
        %2815 = vmatprep.subr.mxu0 0.0
        %2816 = vmatpush1.msra.mxu0 0.0
        %2817 = vmatprep.subr.mxu0 0.0
        %2818 = vmatpush1.msra.mxu0 0.0
        %2819 = vmatprep.subr.mxu0 0.0
        %2820 = vmatpush1.msra.mxu0 0.0
        %2821 = vmatprep.subr.mxu0 0.0
        %2822 = vmatpush1.msra.mxu0 0.0
        %2823 = vmatprep.subr.mxu0 0.0
        %2824 = vmatpush1.msra.mxu0 0.0
        %2825 = vmatprep.subr.mxu0 0.0
        %2826 = vmatpush1.msra.mxu0 0.0
        %2827 = vmatprep.subr.mxu0 0.0
        %2828 = vmatpush1.msra.mxu0 0.0
        %2829 = vmatprep.subr.mxu0 0.0
        %2830 = vmatpush1.msra.mxu0 0.0
        %2831 = vmatprep.subr.mxu0 0.0
        %2832 = vmatpush1.msra.mxu0 0.0
        %2833 = vmatprep.subr.mxu0 0.0
        %2834 = vmatpush1.msra.mxu0 0.0
        %2835 = vmatprep.subr.mxu0 0.0
        %2836 = vmatpush1.msra.mxu0 0.0
        %2837 = vmatprep.subr.mxu0 0.0
        %2838 = vmatpush1.msra.mxu0 0.0
        %2839 = vmatprep.subr.mxu0 0.0
        %2840 = vmatpush1.msra.mxu0 0.0
        %2841 = vmatprep.subr.mxu0 0.0
        %2842 = vmatpush1.msra.mxu0 0.0
        %2843 = vmatprep.subr.mxu0 0.0
        %2844 = vmatpush1.msra.mxu0 0.0
        %2845 = vmatprep.subr.mxu0 0.0
        %2846 = vmatpush1.msra.mxu0 0.0
        %2847 = vmatprep.mubr.f32.mxu0 0.0
        %2848 = vmatmul.mubr.f32.gmra.mrb[0].mxu0 %v2516
        %v2849 = vpop.f32.mrb[0].mxu0
        %v2850 = vadd.f32 %v2773, %v2849
        %v2851 = vpop.f32.mrb[0].mxu0
        %v2852 = vadd.f32 %v2775, %v2851
        %2853 = vmatprep.mubr.f32.mxu0 0.0
        %2854 = vmatmul.mubr.f32.gmra.mrb[0].mxu0 %v2519
        %v2855 = vpop.f32.mrb[0].mxu0
        %v2856 = vadd.f32 %v2779, %v2855
        %v2857 = vpop.f32.mrb[0].mxu0
        %v2858 = vadd.f32 %v2781, %v2857
        %2859 = vdwg.mxu0
        %2860 = vmatprep.subr.mxu0 %v2110
        %2861 = vmatpush1.msra.mxu0 %v2109
        %2862 = vmatprep.subr.mxu0 %v2120
        %2863 = vmatpush1.msra.mxu0 %v2119
        %2864 = vmatprep.subr.mxu0 %v2130
        %2865 = vmatpush1.msra.mxu0 %v2129
        %2866 = vmatprep.subr.mxu0 %v2140
        %2867 = vmatpush1.msra.mxu0 %v2139
        %2868 = vmatprep.subr.mxu0 %v2150
        %2869 = vmatpush1.msra.mxu0 %v2149
        %2870 = vmatprep.subr.mxu0 %v2160
        %2871 = vmatpush1.msra.mxu0 %v2159
        %2872 = vmatprep.subr.mxu0 %v2170
        %2873 = vmatpush1.msra.mxu0 %v2169
        %2874 = vmatprep.subr.mxu0 %v2180
        %2875 = vmatpush1.msra.mxu0 %v2179
        %2876 = vmatprep.subr.mxu0 %v2190
        %2877 = vmatpush1.msra.mxu0 %v2189
        %2878 = vmatprep.subr.mxu0 %v2200
        %2879 = vmatpush1.msra.mxu0 %v2199
        %2880 = vmatprep.subr.mxu0 %v2210
        %2881 = vmatpush1.msra.mxu0 %v2209
        %2882 = vmatprep.subr.mxu0 %v2220
        %2883 = vmatpush1.msra.mxu0 %v2219
        %2884 = vmatprep.subr.mxu0 %v2230
        %2885 = vmatpush1.msra.mxu0 %v2229
        %2886 = vmatprep.subr.mxu0 %v2240
        %2887 = vmatpush1.msra.mxu0 %v2239
        %2888 = vmatprep.subr.mxu0 %v2250
        %2889 = vmatpush1.msra.mxu0 %v2249
        %2890 = vmatprep.subr.mxu0 %v2260
        %2891 = vmatpush1.msra.mxu0 %v2259
        %2892 = vmatprep.subr.mxu0 %v2270
        %2893 = vmatpush1.msra.mxu0 %v2269
        %2894 = vmatprep.subr.mxu0 %v2280
        %2895 = vmatpush1.msra.mxu0 %v2279
        %2896 = vmatprep.subr.mxu0 %v2290
        %2897 = vmatpush1.msra.mxu0 %v2289
        %2898 = vmatprep.subr.mxu0 %v2300
        %2899 = vmatpush1.msra.mxu0 %v2299
        %2900 = vmatprep.subr.mxu0 %v2310
        %2901 = vmatpush1.msra.mxu0 %v2309
        %2902 = vmatprep.subr.mxu0 %v2320
        %2903 = vmatpush1.msra.mxu0 %v2319
        %2904 = vmatprep.subr.mxu0 %v2330
        %2905 = vmatpush1.msra.mxu0 %v2329
        %2906 = vmatprep.subr.mxu0 %v2340
        %2907 = vmatpush1.msra.mxu0 %v2339
        %2908 = vmatprep.subr.mxu0 %v2350
        %2909 = vmatpush1.msra.mxu0 %v2349
        %2910 = vmatprep.subr.mxu0 %v2360
        %2911 = vmatpush1.msra.mxu0 %v2359
        %2912 = vmatprep.subr.mxu0 %v2370
        %2913 = vmatpush1.msra.mxu0 %v2369
        %2914 = vmatprep.subr.mxu0 %v2380
        %2915 = vmatpush1.msra.mxu0 %v2379
        %2916 = vmatprep.subr.mxu0 %v2390
        %2917 = vmatpush1.msra.mxu0 %v2389
        %2918 = vmatprep.subr.mxu0 %v2400
        %2919 = vmatpush1.msra.mxu0 %v2399
        %2920 = vmatprep.subr.mxu0 %v2410
        %2921 = vmatpush1.msra.mxu0 %v2409
        %2922 = vmatprep.subr.mxu0 %v2420
        %2923 = vmatpush1.msra.mxu0 %v2419
        %2924 = vmatprep.mubr.f32.mxu0 %v2100
        %2925 = vmatmul.mubr.f32.gmra.mrb[0].mxu0 %v2099
        %v2926 = vpop.f32.mrb[0].mxu0
        %v2927 = vadd.f32 0.0, %v2926
        %v2928 = vpop.f32.mrb[0].mxu0
        %v2929 = vadd.f32 0.0, %v2928
        %2930 = vmatprep.mubr.f32.mxu0 %v2103
        %2931 = vmatmul.mubr.f32.gmra.mrb[0].mxu0 %v2102
        %v2932 = vpop.f32.mrb[0].mxu0
        %v2933 = vadd.f32 0.0, %v2932
        %v2934 = vpop.f32.mrb[0].mxu0
        %v2935 = vadd.f32 0.0, %v2934
        %2936 = vdwg.mxu0
        %2937 = vmatprep.subr.mxu0 %v2430
        %2938 = vmatpush1.msra.mxu0 %v2429
        %2939 = vmatprep.subr.mxu0 %v2440
        %2940 = vmatpush1.msra.mxu0 %v2439
        %2941 = vmatprep.subr.mxu0 %v2450
        %2942 = vmatpush1.msra.mxu0 %v2449
        %2943 = vmatprep.subr.mxu0 %v2460
        %2944 = vmatpush1.msra.mxu0 %v2459
        %2945 = vmatprep.subr.mxu0 %v2470
        %2946 = vmatpush1.msra.mxu0 %v2469
        %2947 = vmatprep.subr.mxu0 %v2480
        %2948 = vmatpush1.msra.mxu0 %v2479
        %2949 = vmatprep.subr.mxu0 %v2490
        %2950 = vmatpush1.msra.mxu0 %v2489
        %2951 = vmatprep.subr.mxu0 %v2500
        %2952 = vmatpush1.msra.mxu0 %v2499
        %2953 = vmatprep.subr.mxu0 %v2538
        %2954 = vmatpush1.msra.mxu0 %v2535
        %2955 = vmatprep.subr.mxu0 0.0
        %2956 = vmatpush1.msra.mxu0 0.0
        %2957 = vmatprep.subr.mxu0 0.0
        %2958 = vmatpush1.msra.mxu0 0.0
        %2959 = vmatprep.subr.mxu0 0.0
        %2960 = vmatpush1.msra.mxu0 0.0
        %2961 = vmatprep.subr.mxu0 0.0
        %2962 = vmatpush1.msra.mxu0 0.0
        %2963 = vmatprep.subr.mxu0 0.0
        %2964 = vmatpush1.msra.mxu0 0.0
        %2965 = vmatprep.subr.mxu0 0.0
        %2966 = vmatpush1.msra.mxu0 0.0
        %2967 = vmatprep.subr.mxu0 0.0
        %2968 = vmatpush1.msra.mxu0 0.0
        %2969 = vmatprep.subr.mxu0 0.0
        %2970 = vmatpush1.msra.mxu0 0.0
        %2971 = vmatprep.subr.mxu0 0.0
        %2972 = vmatpush1.msra.mxu0 0.0
        %2973 = vmatprep.subr.mxu0 0.0
        %2974 = vmatpush1.msra.mxu0 0.0
        %2975 = vmatprep.subr.mxu0 0.0
        %2976 = vmatpush1.msra.mxu0 0.0
        %2977 = vmatprep.subr.mxu0 0.0
        %2978 = vmatpush1.msra.mxu0 0.0
        %2979 = vmatprep.subr.mxu0 0.0
        %2980 = vmatpush1.msra.mxu0 0.0
        %2981 = vmatprep.subr.mxu0 0.0
        %2982 = vmatpush1.msra.mxu0 0.0
        %2983 = vmatprep.subr.mxu0 0.0
        %2984 = vmatpush1.msra.mxu0 0.0
        %2985 = vmatprep.subr.mxu0 0.0
        %2986 = vmatpush1.msra.mxu0 0.0
        %2987 = vmatprep.subr.mxu0 0.0
        %2988 = vmatpush1.msra.mxu0 0.0
        %2989 = vmatprep.subr.mxu0 0.0
        %2990 = vmatpush1.msra.mxu0 0.0
        %2991 = vmatprep.subr.mxu0 0.0
        %2992 = vmatpush1.msra.mxu0 0.0
        %2993 = vmatprep.subr.mxu0 0.0
        %2994 = vmatpush1.msra.mxu0 0.0
        %2995 = vmatprep.subr.mxu0 0.0
        %2996 = vmatpush1.msra.mxu0 0.0
        %2997 = vmatprep.subr.mxu0 0.0
        %2998 = vmatpush1.msra.mxu0 0.0
        %2999 = vmatprep.subr.mxu0 0.0
        %3000 = vmatpush1.msra.mxu0 0.0
        %3001 = vmatprep.mubr.f32.mxu0 0.0
        %3002 = vmatmul.mubr.f32.gmra.mrb[0].mxu0 %v2516
        %v3003 = vpop.f32.mrb[0].mxu0
        %v3004 = vadd.f32 %v2927, %v3003
        %v3005 = vpop.f32.mrb[0].mxu0
        %v3006 = vadd.f32 %v2929, %v3005
        %3007 = vmatprep.mubr.f32.mxu0 0.0
        %3008 = vmatmul.mubr.f32.gmra.mrb[0].mxu0 %v2519
        %v3009 = vpop.f32.mrb[0].mxu0
        %v3010 = vadd.f32 %v2933, %v3009
        %v3011 = vpop.f32.mrb[0].mxu0
        %v3012 = vadd.f32 %v2935, %v3011
        %3013 = vdwg.mxu0
        %3014 = vmatprep.subr.mxu0 %v2112
        %3015 = vmatpush1.msra.mxu0 %v2111
        %3016 = vmatprep.subr.mxu0 %v2122
        %3017 = vmatpush1.msra.mxu0 %v2121
        %3018 = vmatprep.subr.mxu0 %v2132
        %3019 = vmatpush1.msra.mxu0 %v2131
        %3020 = vmatprep.subr.mxu0 %v2142
        %3021 = vmatpush1.msra.mxu0 %v2141
        %3022 = vmatprep.subr.mxu0 %v2152
        %3023 = vmatpush1.msra.mxu0 %v2151
        %3024 = vmatprep.subr.mxu0 %v2162
        %3025 = vmatpush1.msra.mxu0 %v2161
        %3026 = vmatprep.subr.mxu0 %v2172
        %3027 = vmatpush1.msra.mxu0 %v2171
        %3028 = vmatprep.subr.mxu0 %v2182
        %3029 = vmatpush1.msra.mxu0 %v2181
        %3030 = vmatprep.subr.mxu0 %v2192
        %3031 = vmatpush1.msra.mxu0 %v2191
        %3032 = vmatprep.subr.mxu0 %v2202
        %3033 = vmatpush1.msra.mxu0 %v2201
        %3034 = vmatprep.subr.mxu0 %v2212
        %3035 = vmatpush1.msra.mxu0 %v2211
        %3036 = vmatprep.subr.mxu0 %v2222
        %3037 = vmatpush1.msra.mxu0 %v2221
        %3038 = vmatprep.subr.mxu0 %v2232
        %3039 = vmatpush1.msra.mxu0 %v2231
        %3040 = vmatprep.subr.mxu0 %v2242
        %3041 = vmatpush1.msra.mxu0 %v2241
        %3042 = vmatprep.subr.mxu0 %v2252
        %3043 = vmatpush1.msra.mxu0 %v2251
        %3044 = vmatprep.subr.mxu0 %v2262
        %3045 = vmatpush1.msra.mxu0 %v2261
        %3046 = vmatprep.subr.mxu0 %v2272
        %3047 = vmatpush1.msra.mxu0 %v2271
        %3048 = vmatprep.subr.mxu0 %v2282
        %3049 = vmatpush1.msra.mxu0 %v2281
        %3050 = vmatprep.subr.mxu0 %v2292
        %3051 = vmatpush1.msra.mxu0 %v2291
        %3052 = vmatprep.subr.mxu0 %v2302
        %3053 = vmatpush1.msra.mxu0 %v2301
        %3054 = vmatprep.subr.mxu0 %v2312
        %3055 = vmatpush1.msra.mxu0 %v2311
        %3056 = vmatprep.subr.mxu0 %v2322
        %3057 = vmatpush1.msra.mxu0 %v2321
        %3058 = vmatprep.subr.mxu0 %v2332
        %3059 = vmatpush1.msra.mxu0 %v2331
        %3060 = vmatprep.subr.mxu0 %v2342
        %3061 = vmatpush1.msra.mxu0 %v2341
        %3062 = vmatprep.subr.mxu0 %v2352
        %3063 = vmatpush1.msra.mxu0 %v2351
        %3064 = vmatprep.subr.mxu0 %v2362
        %3065 = vmatpush1.msra.mxu0 %v2361
        %3066 = vmatprep.subr.mxu0 %v2372
        %3067 = vmatpush1.msra.mxu0 %v2371
        %3068 = vmatprep.subr.mxu0 %v2382
        %3069 = vmatpush1.msra.mxu0 %v2381
        %3070 = vmatprep.subr.mxu0 %v2392
        %3071 = vmatpush1.msra.mxu0 %v2391
        %3072 = vmatprep.subr.mxu0 %v2402
        %3073 = vmatpush1.msra.mxu0 %v2401
        %3074 = vmatprep.subr.mxu0 %v2412
        %3075 = vmatpush1.msra.mxu0 %v2411
        %3076 = vmatprep.subr.mxu0 %v2422
        %3077 = vmatpush1.msra.mxu0 %v2421
        %3078 = vmatprep.mubr.f32.mxu0 %v2100
        %3079 = vmatmul.mubr.f32.gmra.mrb[0].mxu0 %v2099
        %v3080 = vpop.f32.mrb[0].mxu0
        %v3081 = vadd.f32 0.0, %v3080
        %v3082 = vpop.f32.mrb[0].mxu0
        %v3083 = vadd.f32 0.0, %v3082
        %3084 = vmatprep.mubr.f32.mxu0 %v2103
        %3085 = vmatmul.mubr.f32.gmra.mrb[0].mxu0 %v2102
        %v3086 = vpop.f32.mrb[0].mxu0
        %v3087 = vadd.f32 0.0, %v3086
        %v3088 = vpop.f32.mrb[0].mxu0
        %v3089 = vadd.f32 0.0, %v3088
        %3090 = vdwg.mxu0
        %3091 = vmatprep.subr.mxu0 %v2432
        %3092 = vmatpush1.msra.mxu0 %v2431
        %3093 = vmatprep.subr.mxu0 %v2442
        %3094 = vmatpush1.msra.mxu0 %v2441
        %3095 = vmatprep.subr.mxu0 %v2452
        %3096 = vmatpush1.msra.mxu0 %v2451
        %3097 = vmatprep.subr.mxu0 %v2462
        %3098 = vmatpush1.msra.mxu0 %v2461
        %3099 = vmatprep.subr.mxu0 %v2472
        %3100 = vmatpush1.msra.mxu0 %v2471
        %3101 = vmatprep.subr.mxu0 %v2482
        %3102 = vmatpush1.msra.mxu0 %v2481
        %3103 = vmatprep.subr.mxu0 %v2492
        %3104 = vmatpush1.msra.mxu0 %v2491
        %3105 = vmatprep.subr.mxu0 %v2502
        %3106 = vmatpush1.msra.mxu0 %v2501
        %3107 = vmatprep.subr.mxu0 %v2544
        %3108 = vmatpush1.msra.mxu0 %v2541
        %3109 = vmatprep.subr.mxu0 0.0
        %3110 = vmatpush1.msra.mxu0 0.0
        %3111 = vmatprep.subr.mxu0 0.0
        %3112 = vmatpush1.msra.mxu0 0.0
        %3113 = vmatprep.subr.mxu0 0.0
        %3114 = vmatpush1.msra.mxu0 0.0
        %3115 = vmatprep.subr.mxu0 0.0
        %3116 = vmatpush1.msra.mxu0 0.0
        %3117 = vmatprep.subr.mxu0 0.0
        %3118 = vmatpush1.msra.mxu0 0.0
        %3119 = vmatprep.subr.mxu0 0.0
        %3120 = vmatpush1.msra.mxu0 0.0
        %3121 = vmatprep.subr.mxu0 0.0
        %3122 = vmatpush1.msra.mxu0 0.0
        %3123 = vmatprep.subr.mxu0 0.0
        %3124 = vmatpush1.msra.mxu0 0.0
        %3125 = vmatprep.subr.mxu0 0.0
        %3126 = vmatpush1.msra.mxu0 0.0
        %3127 = vmatprep.subr.mxu0 0.0
        %3128 = vmatpush1.msra.mxu0 0.0
        %3129 = vmatprep.subr.mxu0 0.0
        %3130 = vmatpush1.msra.mxu0 0.0
        %3131 = vmatprep.subr.mxu0 0.0
        %3132 = vmatpush1.msra.mxu0 0.0
        %3133 = vmatprep.subr.mxu0 0.0
        %3134 = vmatpush1.msra.mxu0 0.0
        %3135 = vmatprep.subr.mxu0 0.0
        %3136 = vmatpush1.msra.mxu0 0.0
        %3137 = vmatprep.subr.mxu0 0.0
        %3138 = vmatpush1.msra.mxu0 0.0
        %3139 = vmatprep.subr.mxu0 0.0
        %3140 = vmatpush1.msra.mxu0 0.0
        %3141 = vmatprep.subr.mxu0 0.0
        %3142 = vmatpush1.msra.mxu0 0.0
        %3143 = vmatprep.subr.mxu0 0.0
        %3144 = vmatpush1.msra.mxu0 0.0
        %3145 = vmatprep.subr.mxu0 0.0
        %3146 = vmatpush1.msra.mxu0 0.0
        %3147 = vmatprep.subr.mxu0 0.0
        %3148 = vmatpush1.msra.mxu0 0.0
        %3149 = vmatprep.subr.mxu0 0.0
        %3150 = vmatpush1.msra.mxu0 0.0
        %3151 = vmatprep.subr.mxu0 0.0
        %3152 = vmatpush1.msra.mxu0 0.0
        %3153 = vmatprep.subr.mxu0 0.0
        %3154 = vmatpush1.msra.mxu0 0.0
        %3155 = vmatprep.mubr.f32.mxu0 0.0
        %3156 = vmatmul.mubr.f32.gmra.mrb[0].mxu0 %v2516
        %v3157 = vpop.f32.mrb[0].mxu0
        %v3158 = vadd.f32 %v3081, %v3157
        %v3159 = vpop.f32.mrb[0].mxu0
        %v3160 = vadd.f32 %v3083, %v3159
        %3161 = vmatprep.mubr.f32.mxu0 0.0
        %3162 = vmatmul.mubr.f32.gmra.mrb[0].mxu0 %v2519
        %v3163 = vpop.f32.mrb[0].mxu0
        %v3164 = vadd.f32 %v3087, %v3163
        %v3165 = vpop.f32.mrb[0].mxu0
        %v3166 = vadd.f32 %v3089, %v3165
        %3167 = vdwg.mxu0
        %3168 = vmatprep.subr.mxu0 %v2114
        %3169 = vmatpush1.msra.mxu0 %v2113
        %3170 = vmatprep.subr.mxu0 %v2124
        %3171 = vmatpush1.msra.mxu0 %v2123
        %3172 = vmatprep.subr.mxu0 %v2134
        %3173 = vmatpush1.msra.mxu0 %v2133
        %3174 = vmatprep.subr.mxu0 %v2144
        %3175 = vmatpush1.msra.mxu0 %v2143
        %3176 = vmatprep.subr.mxu0 %v2154
        %3177 = vmatpush1.msra.mxu0 %v2153
        %3178 = vmatprep.subr.mxu0 %v2164
        %3179 = vmatpush1.msra.mxu0 %v2163
        %3180 = vmatprep.subr.mxu0 %v2174
        %3181 = vmatpush1.msra.mxu0 %v2173
        %3182 = vmatprep.subr.mxu0 %v2184
        %3183 = vmatpush1.msra.mxu0 %v2183
        %3184 = vmatprep.subr.mxu0 %v2194
        %3185 = vmatpush1.msra.mxu0 %v2193
        %3186 = vmatprep.subr.mxu0 %v2204
        %3187 = vmatpush1.msra.mxu0 %v2203
        %3188 = vmatprep.subr.mxu0 %v2214
        %3189 = vmatpush1.msra.mxu0 %v2213
        %3190 = vmatprep.subr.mxu0 %v2224
        %3191 = vmatpush1.msra.mxu0 %v2223
        %3192 = vmatprep.subr.mxu0 %v2234
        %3193 = vmatpush1.msra.mxu0 %v2233
        %3194 = vmatprep.subr.mxu0 %v2244
        %3195 = vmatpush1.msra.mxu0 %v2243
        %3196 = vmatprep.subr.mxu0 %v2254
        %3197 = vmatpush1.msra.mxu0 %v2253
        %3198 = vmatprep.subr.mxu0 %v2264
        %3199 = vmatpush1.msra.mxu0 %v2263
        %3200 = vmatprep.subr.mxu0 %v2274
        %3201 = vmatpush1.msra.mxu0 %v2273
        %3202 = vmatprep.subr.mxu0 %v2284
        %3203 = vmatpush1.msra.mxu0 %v2283
        %3204 = vmatprep.subr.mxu0 %v2294
        %3205 = vmatpush1.msra.mxu0 %v2293
        %3206 = vmatprep.subr.mxu0 %v2304
        %3207 = vmatpush1.msra.mxu0 %v2303
        %3208 = vmatprep.subr.mxu0 %v2314
        %3209 = vmatpush1.msra.mxu0 %v2313
        %3210 = vmatprep.subr.mxu0 %v2324
        %3211 = vmatpush1.msra.mxu0 %v2323
        %3212 = vmatprep.subr.mxu0 %v2334
        %3213 = vmatpush1.msra.mxu0 %v2333
        %3214 = vmatprep.subr.mxu0 %v2344
        %3215 = vmatpush1.msra.mxu0 %v2343
        %3216 = vmatprep.subr.mxu0 %v2354
        %3217 = vmatpush1.msra.mxu0 %v2353
        %3218 = vmatprep.subr.mxu0 %v2364
        %3219 = vmatpush1.msra.mxu0 %v2363
        %3220 = vmatprep.subr.mxu0 %v2374
        %3221 = vmatpush1.msra.mxu0 %v2373
        %3222 = vmatprep.subr.mxu0 %v2384
        %3223 = vmatpush1.msra.mxu0 %v2383
        %3224 = vmatprep.subr.mxu0 %v2394
        %3225 = vmatpush1.msra.mxu0 %v2393
        %3226 = vmatprep.subr.mxu0 %v2404
        %3227 = vmatpush1.msra.mxu0 %v2403
        %3228 = vmatprep.subr.mxu0 %v2414
        %3229 = vmatpush1.msra.mxu0 %v2413
        %3230 = vmatprep.subr.mxu0 %v2424
        %3231 = vmatpush1.msra.mxu0 %v2423
        %3232 = vmatprep.mubr.f32.mxu0 %v2100
        %3233 = vmatmul.mubr.f32.gmra.mrb[0].mxu0 %v2099
        %v3234 = vpop.f32.mrb[0].mxu0
        %v3235 = vadd.f32 0.0, %v3234
        %v3236 = vpop.f32.mrb[0].mxu0
        %v3237 = vadd.f32 0.0, %v3236
        %3238 = vmatprep.mubr.f32.mxu0 %v2103
        %3239 = vmatmul.mubr.f32.gmra.mrb[0].mxu0 %v2102
        %v3240 = vpop.f32.mrb[0].mxu0
        %v3241 = vadd.f32 0.0, %v3240
        %v3242 = vpop.f32.mrb[0].mxu0
        %v3243 = vadd.f32 0.0, %v3242
        %3244 = vdwg.mxu0
        %3245 = vmatprep.subr.mxu0 %v2434
        %3246 = vmatpush1.msra.mxu0 %v2433
        %3247 = vmatprep.subr.mxu0 %v2444
        %3248 = vmatpush1.msra.mxu0 %v2443
        %3249 = vmatprep.subr.mxu0 %v2454
        %3250 = vmatpush1.msra.mxu0 %v2453
        %3251 = vmatprep.subr.mxu0 %v2464
        %3252 = vmatpush1.msra.mxu0 %v2463
        %3253 = vmatprep.subr.mxu0 %v2474
        %3254 = vmatpush1.msra.mxu0 %v2473
        %3255 = vmatprep.subr.mxu0 %v2484
        %3256 = vmatpush1.msra.mxu0 %v2483
        %3257 = vmatprep.subr.mxu0 %v2494
        %3258 = vmatpush1.msra.mxu0 %v2493
        %3259 = vmatprep.subr.mxu0 %v2504
        %3260 = vmatpush1.msra.mxu0 %v2503
        %3261 = vmatprep.subr.mxu0 %v2550
        %3262 = vmatpush1.msra.mxu0 %v2547
        %3263 = vmatprep.subr.mxu0 0.0
        %3264 = vmatpush1.msra.mxu0 0.0
        %3265 = vmatprep.subr.mxu0 0.0
        %3266 = vmatpush1.msra.mxu0 0.0
        %3267 = vmatprep.subr.mxu0 0.0
        %3268 = vmatpush1.msra.mxu0 0.0
        %3269 = vmatprep.subr.mxu0 0.0
        %3270 = vmatpush1.msra.mxu0 0.0
        %3271 = vmatprep.subr.mxu0 0.0
        %3272 = vmatpush1.msra.mxu0 0.0
        %3273 = vmatprep.subr.mxu0 0.0
        %3274 = vmatpush1.msra.mxu0 0.0
        %3275 = vmatprep.subr.mxu0 0.0
        %3276 = vmatpush1.msra.mxu0 0.0
        %3277 = vmatprep.subr.mxu0 0.0
        %3278 = vmatpush1.msra.mxu0 0.0
        %3279 = vmatprep.subr.mxu0 0.0
        %3280 = vmatpush1.msra.mxu0 0.0
        %3281 = vmatprep.subr.mxu0 0.0
        %3282 = vmatpush1.msra.mxu0 0.0
        %3283 = vmatprep.subr.mxu0 0.0
        %3284 = vmatpush1.msra.mxu0 0.0
        %3285 = vmatprep.subr.mxu0 0.0
        %3286 = vmatpush1.msra.mxu0 0.0
        %3287 = vmatprep.subr.mxu0 0.0
        %3288 = vmatpush1.msra.mxu0 0.0
        %3289 = vmatprep.subr.mxu0 0.0
        %3290 = vmatpush1.msra.mxu0 0.0
        %3291 = vmatprep.subr.mxu0 0.0
        %3292 = vmatpush1.msra.mxu0 0.0
        %3293 = vmatprep.subr.mxu0 0.0
        %3294 = vmatpush1.msra.mxu0 0.0
        %3295 = vmatprep.subr.mxu0 0.0
        %3296 = vmatpush1.msra.mxu0 0.0
        %3297 = vmatprep.subr.mxu0 0.0
        %3298 = vmatpush1.msra.mxu0 0.0
        %3299 = vmatprep.subr.mxu0 0.0
        %3300 = vmatpush1.msra.mxu0 0.0
        %3301 = vmatprep.subr.mxu0 0.0
        %3302 = vmatpush1.msra.mxu0 0.0
        %3303 = vmatprep.subr.mxu0 0.0
        %3304 = vmatpush1.msra.mxu0 0.0
        %3305 = vmatprep.subr.mxu0 0.0
        %3306 = vmatpush1.msra.mxu0 0.0
        %3307 = vmatprep.subr.mxu0 0.0
        %3308 = vmatpush1.msra.mxu0 0.0
        %3309 = vmatprep.mubr.f32.mxu0 0.0
        %3310 = vmatmul.mubr.f32.gmra.mrb[0].mxu0 %v2516
        %v3311 = vpop.f32.mrb[0].mxu0
        %v3312 = vadd.f32 %v3235, %v3311
        %v3313 = vpop.f32.mrb[0].mxu0
        %v3314 = vadd.f32 %v3237, %v3313
        %3315 = vmatprep.mubr.f32.mxu0 0.0
        %3316 = vmatmul.mubr.f32.gmra.mrb[0].mxu0 %v2519
        %v3317 = vpop.f32.mrb[0].mxu0
        %v3318 = vadd.f32 %v3241, %v3317
        %v3319 = vpop.f32.mrb[0].mxu0
        %v3320 = vadd.f32 %v3243, %v3319
        %3321 = vdwg.mxu0
        %3340 = vrot.lane.b32.xlu0 %v2696, 35
        %v3341 = vpop.permute.xlu0 %3340
        %3342 = vrot.lane.b32.xlu0 %v2698, 35
        %v3343 = vpop.permute.xlu0 %3342
        %3344 = vrot.lane.b32.xlu0 %v2850, 35
        %v3345 = vpop.permute.xlu0 %3344
        %3346 = vrot.lane.b32.xlu0 %v2852, 35
        %v3347 = vpop.permute.xlu0 %3346
        %3348 = vrot.lane.b32.xlu0 %v3004, 35
        %v3349 = vpop.permute.xlu0 %3348
        %3350 = vrot.lane.b32.xlu0 %v3006, 35
        %v3351 = vpop.permute.xlu0 %3350
        %3352 = vrot.lane.b32.xlu0 %v3158, 35
        %v3353 = vpop.permute.xlu0 %3352
        %3354 = vrot.lane.b32.xlu0 %v3160, 35
        %v3355 = vpop.permute.xlu0 %3354
        %3356 = vrot.lane.b32.xlu0 %v3312, 35
        %v3357 = vpop.permute.xlu0 %3356
        %3358 = vrot.lane.b32.xlu0 %v2702, 35
        %v3359 = vpop.permute.xlu0 %3358
        %3360 = vrot.lane.b32.xlu0 %v2704, 35
        %v3361 = vpop.permute.xlu0 %3360
        %3362 = vrot.lane.b32.xlu0 %v2856, 35
        %v3363 = vpop.permute.xlu0 %3362
        %3364 = vrot.lane.b32.xlu0 %v2858, 35
        %v3365 = vpop.permute.xlu0 %3364
        %3366 = vrot.lane.b32.xlu0 %v3010, 35
        %v3367 = vpop.permute.xlu0 %3366
        %3368 = vrot.lane.b32.xlu0 %v3012, 35
        %v3369 = vpop.permute.xlu0 %3368
        %3370 = vrot.lane.b32.xlu0 %v3164, 35
        %v3371 = vpop.permute.xlu0 %3370
        %3372 = vrot.lane.b32.xlu0 %v3166, 35
        %v3373 = vpop.permute.xlu0 %3372
        %3374 = vrot.lane.b32.xlu0 %v3318, 35
        %v3375 = vpop.permute.xlu0 %3374
        %vm3376 = vcmask 285696
        %v3377 = vsel %vm3376, %v3341, %v3343
        %v3378 = vsel %vm3376, %v3343, %v3345
        %v3379 = vsel %vm3376, %v3345, %v3347
        %v3380 = vsel %vm3376, %v3347, %v3349
        %v3381 = vsel %vm3376, %v3349, %v3351
        %v3382 = vsel %vm3376, %v3351, %v3353
        %v3383 = vsel %vm3376, %v3353, %v3355
        %v3384 = vsel %vm3376, %v3355, %v3357
        %v3385 = vsel %vm3376, %v3359, %v3361
        %v3386 = vsel %vm3376, %v3361, %v3363
        %v3387 = vsel %vm3376, %v3363, %v3365
        %v3388 = vsel %vm3376, %v3365, %v3367
        %v3389 = vsel %vm3376, %v3367, %v3369
        %v3390 = vsel %vm3376, %v3369, %v3371
        %v3391 = vsel %vm3376, %v3371, %v3373
        %v3392 = vsel %vm3376, %v3373, %v3375
        %vm3413 = vcmask 1047832
        %3414 = vst.msk [vmem:[#allocation5] sm:$0xff] %vm3413, %v3341
        %3415 = vst [vmem:[#allocation5 + $0x8] sm:$0xff] %v3377
        %3416 = vst [vmem:[#allocation5 + $0x10] sm:$0xff] %v3378
        %3417 = vst [vmem:[#allocation5 + $0x18] sm:$0xff] %v3379
        %3418 = vst [vmem:[#allocation5 + $0x20] sm:$0xff] %v3380
        %3419 = vst [vmem:[#allocation5 + $0x28] sm:$0xff] %v3381
        %3420 = vst [vmem:[#allocation5 + $0x30] sm:$0xff] %v3382
        %3421 = vst [vmem:[#allocation5 + $0x38] sm:$0xff] %v3383
        %3422 = vst [vmem:[#allocation5 + $0x40] sm:$0xff] %v3384
        %vm3423 = vcmask 31744
        %3424 = vst.msk [vmem:[#allocation5 + $0x48] sm:$0xff] %vm3423, %v3357
        %3425 = vst.msk [vmem:[#allocation5 + $0x50] sm:$0xff] %vm3413, %v3359
        %3426 = vst [vmem:[#allocation5 + $0x58] sm:$0xff] %v3385
        %3427 = vst [vmem:[#allocation5 + $0x60] sm:$0xff] %v3386
        %3428 = vst [vmem:[#allocation5 + $0x68] sm:$0xff] %v3387
        %3429 = vst [vmem:[#allocation5 + $0x70] sm:$0xff] %v3388
        %3430 = vst [vmem:[#allocation5 + $0x78] sm:$0xff] %v3389
        %3431 = vst [vmem:[#allocation5 + $0x80] sm:$0xff] %v3390
        %3432 = vst [vmem:[#allocation5 + $0x88] sm:$0xff] %v3391
        %3433 = vst [vmem:[#allocation5 + $0x90] sm:$0xff] %v3392
        %3434 = vst.msk [vmem:[#allocation5 + $0x98] sm:$0xff] %vm3423, %v3375
        %3435 = vst.msk [vmem:[#allocation5] sm:$0xff] %vm3376, 0.0
        %3436 = vst.msk [vmem:[#allocation5 + $0x50] sm:$0xff] %vm3376, 0.0
        %3437 = vrot.lane.b32.xlu0 %v2696, 34
        %v3438 = vpop.permute.xlu0 %3437
        %3439 = vrot.lane.b32.xlu0 %v2698, 34
        %v3440 = vpop.permute.xlu0 %3439
        %3441 = vrot.lane.b32.xlu0 %v2850, 34
        %v3442 = vpop.permute.xlu0 %3441
        %3443 = vrot.lane.b32.xlu0 %v2852, 34
        %v3444 = vpop.permute.xlu0 %3443
        %3445 = vrot.lane.b32.xlu0 %v3004, 34
        %v3446 = vpop.permute.xlu0 %3445
        %3447 = vrot.lane.b32.xlu0 %v3006, 34
        %v3448 = vpop.permute.xlu0 %3447
        %3449 = vrot.lane.b32.xlu0 %v3158, 34
        %v3450 = vpop.permute.xlu0 %3449
        %3451 = vrot.lane.b32.xlu0 %v3160, 34
        %v3452 = vpop.permute.xlu0 %3451
        %3453 = vrot.lane.b32.xlu0 %v3312, 34
        %v3454 = vpop.permute.xlu0 %3453
        %3455 = vrot.lane.b32.xlu0 %v2702, 34
        %v3456 = vpop.permute.xlu0 %3455
        %3457 = vrot.lane.b32.xlu0 %v2704, 34
        %v3458 = vpop.permute.xlu0 %3457
        %3459 = vrot.lane.b32.xlu0 %v2856, 34
        %v3460 = vpop.permute.xlu0 %3459
        %3461 = vrot.lane.b32.xlu0 %v2858, 34
        %v3462 = vpop.permute.xlu0 %3461
        %3463 = vrot.lane.b32.xlu0 %v3010, 34
        %v3464 = vpop.permute.xlu0 %3463
        %3465 = vrot.lane.b32.xlu0 %v3012, 34
        %v3466 = vpop.permute.xlu0 %3465
        %3467 = vrot.lane.b32.xlu0 %v3164, 34
        %v3468 = vpop.permute.xlu0 %3467
        %3469 = vrot.lane.b32.xlu0 %v3166, 34
        %v3470 = vpop.permute.xlu0 %3469
        %3471 = vrot.lane.b32.xlu0 %v3318, 34
        %v3472 = vpop.permute.xlu0 %3471
        %vm3473 = vcmask 277504
        %v3474 = vsel %vm3473, %v3438, %v3440
        %v3475 = vsel %vm3473, %v3440, %v3442
        %v3476 = vsel %vm3473, %v3442, %v3444
        %v3477 = vsel %vm3473, %v3444, %v3446
        %v3478 = vsel %vm3473, %v3446, %v3448
        %v3479 = vsel %vm3473, %v3448, %v3450
        %v3480 = vsel %vm3473, %v3450, %v3452
        %v3481 = vsel %vm3473, %v3452, %v3454
        %v3482 = vsel %vm3473, %v3456, %v3458
        %v3483 = vsel %vm3473, %v3458, %v3460
        %v3484 = vsel %vm3473, %v3460, %v3462
        %v3485 = vsel %vm3473, %v3462, %v3464
        %v3486 = vsel %vm3473, %v3464, %v3466
        %v3487 = vsel %vm3473, %v3466, %v3468
        %v3488 = vsel %vm3473, %v3468, %v3470
        %v3489 = vsel %vm3473, %v3470, %v3472
        %vm3510 = vcmask 1047824
        %3511 = vst.msk [vmem:[#allocation5 + $0xa0] sm:$0xff] %vm3510, %v3438
        %3512 = vst [vmem:[#allocation5 + $0xa8] sm:$0xff] %v3474
        %3513 = vst [vmem:[#allocation5 + $0xb0] sm:$0xff] %v3475
        %3514 = vst [vmem:[#allocation5 + $0xb8] sm:$0xff] %v3476
        %3515 = vst [vmem:[#allocation5 + $0xc0] sm:$0xff] %v3477
        %3516 = vst [vmem:[#allocation5 + $0xc8] sm:$0xff] %v3478
        %3517 = vst [vmem:[#allocation5 + $0xd0] sm:$0xff] %v3479
        %3518 = vst [vmem:[#allocation5 + $0xd8] sm:$0xff] %v3480
        %3519 = vst [vmem:[#allocation5 + $0xe0] sm:$0xff] %v3481
        %3520 = vst.msk [vmem:[#allocation5 + $0xe8] sm:$0xff] %vm3423, %v3454
        %3521 = vst.msk [vmem:[#allocation5 + $0xf0] sm:$0xff] %vm3510, %v3456
        %3522 = vst [vmem:[#allocation5 + $0xf8] sm:$0xff] %v3482
        %3523 = vst [vmem:[#allocation5 + $0x100] sm:$0xff] %v3483
        %3524 = vst [vmem:[#allocation5 + $0x108] sm:$0xff] %v3484
        %3525 = vst [vmem:[#allocation5 + $0x110] sm:$0xff] %v3485
        %3526 = vst [vmem:[#allocation5 + $0x118] sm:$0xff] %v3486
        %3527 = vst [vmem:[#allocation5 + $0x120] sm:$0xff] %v3487
        %3528 = vst [vmem:[#allocation5 + $0x128] sm:$0xff] %v3488
        %3529 = vst [vmem:[#allocation5 + $0x130] sm:$0xff] %v3489
        %3530 = vst.msk [vmem:[#allocation5 + $0x138] sm:$0xff] %vm3423, %v3472
        %3531 = vst.msk [vmem:[#allocation5 + $0xa0] sm:$0xff] %vm3473, 0.0
        %3532 = vst.msk [vmem:[#allocation5 + $0xf0] sm:$0xff] %vm3473, 0.0
        %3533 = vrot.lane.b32.xlu0 %v2696, 33
        %v3534 = vpop.permute.xlu0 %3533
        %3535 = vrot.lane.b32.xlu0 %v2698, 33
        %v3536 = vpop.permute.xlu0 %3535
        %3537 = vrot.lane.b32.xlu0 %v2850, 33
        %v3538 = vpop.permute.xlu0 %3537
        %3539 = vrot.lane.b32.xlu0 %v2852, 33
        %v3540 = vpop.permute.xlu0 %3539
        %3541 = vrot.lane.b32.xlu0 %v3004, 33
        %v3542 = vpop.permute.xlu0 %3541
        %3543 = vrot.lane.b32.xlu0 %v3006, 33
        %v3544 = vpop.permute.xlu0 %3543
        %3545 = vrot.lane.b32.xlu0 %v3158, 33
        %v3546 = vpop.permute.xlu0 %3545
        %3547 = vrot.lane.b32.xlu0 %v3160, 33
        %v3548 = vpop.permute.xlu0 %3547
        %3549 = vrot.lane.b32.xlu0 %v3312, 33
        %v3550 = vpop.permute.xlu0 %3549
        %3551 = vrot.lane.b32.xlu0 %v2702, 33
        %v3552 = vpop.permute.xlu0 %3551
        %3553 = vrot.lane.b32.xlu0 %v2704, 33
        %v3554 = vpop.permute.xlu0 %3553
        %3555 = vrot.lane.b32.xlu0 %v2856, 33
        %v3556 = vpop.permute.xlu0 %3555
        %3557 = vrot.lane.b32.xlu0 %v2858, 33
        %v3558 = vpop.permute.xlu0 %3557
        %3559 = vrot.lane.b32.xlu0 %v3010, 33
        %v3560 = vpop.permute.xlu0 %3559
        %3561 = vrot.lane.b32.xlu0 %v3012, 33
        %v3562 = vpop.permute.xlu0 %3561
        %3563 = vrot.lane.b32.xlu0 %v3164, 33
        %v3564 = vpop.permute.xlu0 %3563
        %3565 = vrot.lane.b32.xlu0 %v3166, 33
        %v3566 = vpop.permute.xlu0 %3565
        %3567 = vrot.lane.b32.xlu0 %v3318, 33
        %v3568 = vpop.permute.xlu0 %3567
        %vm3569 = vcmask 269312
        %v3570 = vsel %vm3569, %v3534, %v3536
        %v3571 = vsel %vm3569, %v3536, %v3538
        %v3572 = vsel %vm3569, %v3538, %v3540
        %v3573 = vsel %vm3569, %v3540, %v3542
        %v3574 = vsel %vm3569, %v3542, %v3544
        %v3575 = vsel %vm3569, %v3544, %v3546
        %v3576 = vsel %vm3569, %v3546, %v3548
        %v3577 = vsel %vm3569, %v3548, %v3550
        %v3578 = vsel %vm3569, %v3552, %v3554
        %v3579 = vsel %vm3569, %v3554, %v3556
        %v3580 = vsel %vm3569, %v3556, %v3558
        %v3581 = vsel %vm3569, %v3558, %v3560
        %v3582 = vsel %vm3569, %v3560, %v3562
        %v3583 = vsel %vm3569, %v3562, %v3564
        %v3584 = vsel %vm3569, %v3564, %v3566
        %v3585 = vsel %vm3569, %v3566, %v3568
        %vm3606 = vcmask 1047816
        %3607 = vst.msk [vmem:[#allocation5 + $0x140] sm:$0xff] %vm3606, %v3534
        %3608 = vst [vmem:[#allocation5 + $0x148] sm:$0xff] %v3570
        %3609 = vst [vmem:[#allocation5 + $0x150] sm:$0xff] %v3571
        %3610 = vst [vmem:[#allocation5 + $0x158] sm:$0xff] %v3572
        %3611 = vst [vmem:[#allocation5 + $0x160] sm:$0xff] %v3573
        %3612 = vst [vmem:[#allocation5 + $0x168] sm:$0xff] %v3574
        %3613 = vst [vmem:[#allocation5 + $0x170] sm:$0xff] %v3575
        %3614 = vst [vmem:[#allocation5 + $0x178] sm:$0xff] %v3576
        %3615 = vst [vmem:[#allocation5 + $0x180] sm:$0xff] %v3577
        %3616 = vst.msk [vmem:[#allocation5 + $0x188] sm:$0xff] %vm3423, %v3550
        %3617 = vst.msk [vmem:[#allocation5 + $0x190] sm:$0xff] %vm3606, %v3552
        %3618 = vst [vmem:[#allocation5 + $0x198] sm:$0xff] %v3578
        %3619 = vst [vmem:[#allocation5 + $0x1a0] sm:$0xff] %v3579
        %3620 = vst [vmem:[#allocation5 + $0x1a8] sm:$0xff] %v3580
        %3621 = vst [vmem:[#allocation5 + $0x1b0] sm:$0xff] %v3581
        %3622 = vst [vmem:[#allocation5 + $0x1b8] sm:$0xff] %v3582
        %3623 = vst [vmem:[#allocation5 + $0x1c0] sm:$0xff] %v3583
        %3624 = vst [vmem:[#allocation5 + $0x1c8] sm:$0xff] %v3584
        %3625 = vst [vmem:[#allocation5 + $0x1d0] sm:$0xff] %v3585
        %3626 = vst.msk [vmem:[#allocation5 + $0x1d8] sm:$0xff] %vm3423, %v3568
        %3627 = vst.msk [vmem:[#allocation5 + $0x140] sm:$0xff] %vm3569, 0.0
        %3628 = vst.msk [vmem:[#allocation5 + $0x190] sm:$0xff] %vm3569, 0.0
        %3631 = vrot.lane.b32.xlu0 %v2696, 1
        %v3632 = vpop.permute.xlu0 %3631
        %3633 = vrot.lane.b32.xlu0 %v2698, 1
        %v3634 = vpop.permute.xlu0 %3633
        %3635 = vrot.lane.b32.xlu0 %v2850, 1
        %v3636 = vpop.permute.xlu0 %3635
        %3637 = vrot.lane.b32.xlu0 %v2852, 1
        %v3638 = vpop.permute.xlu0 %3637
        %3639 = vrot.lane.b32.xlu0 %v3004, 1
        %v3640 = vpop.permute.xlu0 %3639
        %3641 = vrot.lane.b32.xlu0 %v3006, 1
        %v3642 = vpop.permute.xlu0 %3641
        %3643 = vrot.lane.b32.xlu0 %v3158, 1
        %v3644 = vpop.permute.xlu0 %3643
        %3645 = vrot.lane.b32.xlu0 %v3160, 1
        %v3646 = vpop.permute.xlu0 %3645
        %3647 = vrot.lane.b32.xlu0 %v3312, 1
        %v3648 = vpop.permute.xlu0 %3647
        %3649 = vrot.lane.b32.xlu0 %v3314, 1
        %v3650 = vpop.permute.xlu0 %3649
        %3651 = vrot.lane.b32.xlu0 %v2702, 1
        %v3652 = vpop.permute.xlu0 %3651
        %3653 = vrot.lane.b32.xlu0 %v2704, 1
        %v3654 = vpop.permute.xlu0 %3653
        %3655 = vrot.lane.b32.xlu0 %v2856, 1
        %v3656 = vpop.permute.xlu0 %3655
        %3657 = vrot.lane.b32.xlu0 %v2858, 1
        %v3658 = vpop.permute.xlu0 %3657
        %3659 = vrot.lane.b32.xlu0 %v3010, 1
        %v3660 = vpop.permute.xlu0 %3659
        %3661 = vrot.lane.b32.xlu0 %v3012, 1
        %v3662 = vpop.permute.xlu0 %3661
        %3663 = vrot.lane.b32.xlu0 %v3164, 1
        %v3664 = vpop.permute.xlu0 %3663
        %3665 = vrot.lane.b32.xlu0 %v3166, 1
        %v3666 = vpop.permute.xlu0 %3665
        %3667 = vrot.lane.b32.xlu0 %v3318, 1
        %v3668 = vpop.permute.xlu0 %3667
        %3669 = vrot.lane.b32.xlu0 %v3320, 1
        %v3670 = vpop.permute.xlu0 %3669
        %v3671 = vsel %vm1404, %v3632, %v3634
        %v3672 = vsel %vm1404, %v3634, %v3636
        %v3673 = vsel %vm1404, %v3636, %v3638
        %v3674 = vsel %vm1404, %v3638, %v3640
        %v3675 = vsel %vm1404, %v3640, %v3642
        %v3676 = vsel %vm1404, %v3642, %v3644
        %v3677 = vsel %vm1404, %v3644, %v3646
        %v3678 = vsel %vm1404, %v3646, %v3648
        %v3679 = vsel %vm1404, %v3648, %v3650
        %v3680 = vsel %vm1404, %v3652, %v3654
        %v3681 = vsel %vm1404, %v3654, %v3656
        %v3682 = vsel %vm1404, %v3656, %v3658
        %v3683 = vsel %vm1404, %v3658, %v3660
        %v3684 = vsel %vm1404, %v3660, %v3662
        %v3685 = vsel %vm1404, %v3662, %v3664
        %v3686 = vsel %vm1404, %v3664, %v3666
        %v3687 = vsel %vm1404, %v3666, %v3668
        %v3688 = vsel %vm1404, %v3668, %v3670
        %3709 = vst.msk [vmem:[#allocation5 + $0x1e0] sm:$0xff] %vm1775, %v3632
        %3710 = vst [vmem:[#allocation5 + $0x1e8] sm:$0xff] %v3671
        %3711 = vst [vmem:[#allocation5 + $0x1f0] sm:$0xff] %v3672
        %3712 = vst [vmem:[#allocation5 + $0x1f8] sm:$0xff] %v3673
        %3713 = vst [vmem:[#allocation5 + $0x200] sm:$0xff] %v3674
        %3714 = vst [vmem:[#allocation5 + $0x208] sm:$0xff] %v3675
        %3715 = vst [vmem:[#allocation5 + $0x210] sm:$0xff] %v3676
        %3716 = vst [vmem:[#allocation5 + $0x218] sm:$0xff] %v3677
        %3717 = vst [vmem:[#allocation5 + $0x220] sm:$0xff] %v3678
        %3718 = vst.msk [vmem:[#allocation5 + $0x228] sm:$0xff] %vm3423, %v3679
        %3719 = vst.msk [vmem:[#allocation5 + $0x230] sm:$0xff] %vm1775, %v3652
        %3720 = vst [vmem:[#allocation5 + $0x238] sm:$0xff] %v3680
        %3721 = vst [vmem:[#allocation5 + $0x240] sm:$0xff] %v3681
        %3722 = vst [vmem:[#allocation5 + $0x248] sm:$0xff] %v3682
        %3723 = vst [vmem:[#allocation5 + $0x250] sm:$0xff] %v3683
        %3724 = vst [vmem:[#allocation5 + $0x258] sm:$0xff] %v3684
        %3725 = vst [vmem:[#allocation5 + $0x260] sm:$0xff] %v3685
        %3726 = vst [vmem:[#allocation5 + $0x268] sm:$0xff] %v3686
        %3727 = vst [vmem:[#allocation5 + $0x270] sm:$0xff] %v3687
        %3728 = vst.msk [vmem:[#allocation5 + $0x278] sm:$0xff] %vm3423, %v3688
        %3729 = vst.msk [vmem:[#allocation5 + $0x1e0] sm:$0xff] %vm1404, 0.0
        %3730 = vst.msk [vmem:[#allocation5 + $0x230] sm:$0xff] %vm1404, 0.0
        %3731 = vst [vmem:[#allocation5 + $0x280] sm:$0xff] %v2696
        %3732 = vst [vmem:[#allocation5 + $0x288] sm:$0xff] %v2698
        %3733 = vst [vmem:[#allocation5 + $0x290] sm:$0xff] %v2850
        %3734 = vst [vmem:[#allocation5 + $0x298] sm:$0xff] %v2852
        %3735 = vst [vmem:[#allocation5 + $0x2a0] sm:$0xff] %v3004
        %3736 = vst [vmem:[#allocation5 + $0x2a8] sm:$0xff] %v3006
        %3737 = vst [vmem:[#allocation5 + $0x2b0] sm:$0xff] %v3158
        %3738 = vst [vmem:[#allocation5 + $0x2b8] sm:$0xff] %v3160
        %3739 = vst [vmem:[#allocation5 + $0x2c0] sm:$0xff] %v3312
        %3740 = vst.msk [vmem:[#allocation5 + $0x2c8] sm:$0xff] %vm3423, %v3314
        %3741 = vst [vmem:[#allocation5 + $0x2d0] sm:$0xff] %v2702
        %3742 = vst [vmem:[#allocation5 + $0x2d8] sm:$0xff] %v2704
        %3743 = vst [vmem:[#allocation5 + $0x2e0] sm:$0xff] %v2856
        %3744 = vst [vmem:[#allocation5 + $0x2e8] sm:$0xff] %v2858
        %3745 = vst [vmem:[#allocation5 + $0x2f0] sm:$0xff] %v3010
        %3746 = vst [vmem:[#allocation5 + $0x2f8] sm:$0xff] %v3012
        %3747 = vst [vmem:[#allocation5 + $0x300] sm:$0xff] %v3164
        %3748 = vst [vmem:[#allocation5 + $0x308] sm:$0xff] %v3166
        %3749 = vst [vmem:[#allocation5 + $0x310] sm:$0xff] %v3318
        %3750 = vst.msk [vmem:[#allocation5 + $0x318] sm:$0xff] %vm3423, %v3320
        %3751 = vrot.lane.b32.xlu0 %v2696, 127
        %v3752 = vpop.permute.xlu0 %3751
        %3753 = vrot.lane.b32.xlu0 %v2698, 127
        %v3754 = vpop.permute.xlu0 %3753
        %3755 = vrot.lane.b32.xlu0 %v2850, 127
        %v3756 = vpop.permute.xlu0 %3755
        %3757 = vrot.lane.b32.xlu0 %v2852, 127
        %v3758 = vpop.permute.xlu0 %3757
        %3759 = vrot.lane.b32.xlu0 %v3004, 127
        %v3760 = vpop.permute.xlu0 %3759
        %3761 = vrot.lane.b32.xlu0 %v3006, 127
        %v3762 = vpop.permute.xlu0 %3761
        %3763 = vrot.lane.b32.xlu0 %v3158, 127
        %v3764 = vpop.permute.xlu0 %3763
        %3765 = vrot.lane.b32.xlu0 %v3160, 127
        %v3766 = vpop.permute.xlu0 %3765
        %3767 = vrot.lane.b32.xlu0 %v3312, 127
        %v3768 = vpop.permute.xlu0 %3767
        %3769 = vrot.lane.b32.xlu0 %v3314, 127
        %v3770 = vpop.permute.xlu0 %3769
        %3771 = vrot.lane.b32.xlu0 %v2702, 127
        %v3772 = vpop.permute.xlu0 %3771
        %3773 = vrot.lane.b32.xlu0 %v2704, 127
        %v3774 = vpop.permute.xlu0 %3773
        %3775 = vrot.lane.b32.xlu0 %v2856, 127
        %v3776 = vpop.permute.xlu0 %3775
        %3777 = vrot.lane.b32.xlu0 %v2858, 127
        %v3778 = vpop.permute.xlu0 %3777
        %3779 = vrot.lane.b32.xlu0 %v3010, 127
        %v3780 = vpop.permute.xlu0 %3779
        %3781 = vrot.lane.b32.xlu0 %v3012, 127
        %v3782 = vpop.permute.xlu0 %3781
        %3783 = vrot.lane.b32.xlu0 %v3164, 127
        %v3784 = vpop.permute.xlu0 %3783
        %3785 = vrot.lane.b32.xlu0 %v3166, 127
        %v3786 = vpop.permute.xlu0 %3785
        %3787 = vrot.lane.b32.xlu0 %v3318, 127
        %v3788 = vpop.permute.xlu0 %3787
        %3789 = vrot.lane.b32.xlu0 %v3320, 127
        %v3790 = vpop.permute.xlu0 %3789
        %v3791 = vsel %vm1429, %v3752, %v3754
        %v3792 = vsel %vm1429, %v3754, %v3756
        %v3793 = vsel %vm1429, %v3756, %v3758
        %v3794 = vsel %vm1429, %v3758, %v3760
        %v3795 = vsel %vm1429, %v3760, %v3762
        %v3796 = vsel %vm1429, %v3762, %v3764
        %v3797 = vsel %vm1429, %v3764, %v3766
        %v3798 = vsel %vm1429, %v3766, %v3768
        %v3799 = vsel %vm1429, %v3768, %v3770
        %v3800 = vsel %vm1429, %v3772, %v3774
        %v3801 = vsel %vm1429, %v3774, %v3776
        %v3802 = vsel %vm1429, %v3776, %v3778
        %v3803 = vsel %vm1429, %v3778, %v3780
        %v3804 = vsel %vm1429, %v3780, %v3782
        %v3805 = vsel %vm1429, %v3782, %v3784
        %v3806 = vsel %vm1429, %v3784, %v3786
        %v3807 = vsel %vm1429, %v3786, %v3788
        %v3808 = vsel %vm1429, %v3788, %v3790
        %3829 = vst [vmem:[#allocation5 + $0x320] sm:$0xff] %v3791
        %3830 = vst [vmem:[#allocation5 + $0x328] sm:$0xff] %v3792
        %3831 = vst [vmem:[#allocation5 + $0x330] sm:$0xff] %v3793
        %3832 = vst [vmem:[#allocation5 + $0x338] sm:$0xff] %v3794
        %3833 = vst [vmem:[#allocation5 + $0x340] sm:$0xff] %v3795
        %3834 = vst [vmem:[#allocation5 + $0x348] sm:$0xff] %v3796
        %3835 = vst [vmem:[#allocation5 + $0x350] sm:$0xff] %v3797
        %3836 = vst [vmem:[#allocation5 + $0x358] sm:$0xff] %v3798
        %3837 = vst [vmem:[#allocation5 + $0x360] sm:$0xff] %v3799
        %vm3838 = vcmask 23552
        %3839 = vst.msk [vmem:[#allocation5 + $0x368] sm:$0xff] %vm3838, %v3770
        %3840 = vst [vmem:[#allocation5 + $0x370] sm:$0xff] %v3800
        %3841 = vst [vmem:[#allocation5 + $0x378] sm:$0xff] %v3801
        %3842 = vst [vmem:[#allocation5 + $0x380] sm:$0xff] %v3802
        %3843 = vst [vmem:[#allocation5 + $0x388] sm:$0xff] %v3803
        %3844 = vst [vmem:[#allocation5 + $0x390] sm:$0xff] %v3804
        %3845 = vst [vmem:[#allocation5 + $0x398] sm:$0xff] %v3805
        %3846 = vst [vmem:[#allocation5 + $0x3a0] sm:$0xff] %v3806
        %3847 = vst [vmem:[#allocation5 + $0x3a8] sm:$0xff] %v3807
        %3848 = vst [vmem:[#allocation5 + $0x3b0] sm:$0xff] %v3808
        %3849 = vst.msk [vmem:[#allocation5 + $0x3b8] sm:$0xff] %vm3838, %v3790
        %vm3850 = vcmask 31768
        %3851 = vst.msk [vmem:[#allocation5 + $0x368] sm:$0xff] %vm3850, 0.0
        %3852 = vst.msk [vmem:[#allocation5 + $0x3b8] sm:$0xff] %vm3850, 0.0
        %3853 = vrot.lane.b32.xlu0 %v2696, 95
        %v3854 = vpop.permute.xlu0 %3853
        %3855 = vrot.lane.b32.xlu0 %v2698, 95
        %v3856 = vpop.permute.xlu0 %3855
        %3857 = vrot.lane.b32.xlu0 %v2850, 95
        %v3858 = vpop.permute.xlu0 %3857
        %3859 = vrot.lane.b32.xlu0 %v2852, 95
        %v3860 = vpop.permute.xlu0 %3859
        %3861 = vrot.lane.b32.xlu0 %v3004, 95
        %v3862 = vpop.permute.xlu0 %3861
        %3863 = vrot.lane.b32.xlu0 %v3006, 95
        %v3864 = vpop.permute.xlu0 %3863
        %3865 = vrot.lane.b32.xlu0 %v3158, 95
        %v3866 = vpop.permute.xlu0 %3865
        %3867 = vrot.lane.b32.xlu0 %v3160, 95
        %v3868 = vpop.permute.xlu0 %3867
        %3869 = vrot.lane.b32.xlu0 %v3312, 95
        %v3870 = vpop.permute.xlu0 %3869
        %3871 = vrot.lane.b32.xlu0 %v3314, 95
        %v3872 = vpop.permute.xlu0 %3871
        %3873 = vrot.lane.b32.xlu0 %v2702, 95
        %v3874 = vpop.permute.xlu0 %3873
        %3875 = vrot.lane.b32.xlu0 %v2704, 95
        %v3876 = vpop.permute.xlu0 %3875
        %3877 = vrot.lane.b32.xlu0 %v2856, 95
        %v3878 = vpop.permute.xlu0 %3877
        %3879 = vrot.lane.b32.xlu0 %v2858, 95
        %v3880 = vpop.permute.xlu0 %3879
        %3881 = vrot.lane.b32.xlu0 %v3010, 95
        %v3882 = vpop.permute.xlu0 %3881
        %3883 = vrot.lane.b32.xlu0 %v3012, 95
        %v3884 = vpop.permute.xlu0 %3883
        %3885 = vrot.lane.b32.xlu0 %v3164, 95
        %v3886 = vpop.permute.xlu0 %3885
        %3887 = vrot.lane.b32.xlu0 %v3166, 95
        %v3888 = vpop.permute.xlu0 %3887
        %3889 = vrot.lane.b32.xlu0 %v3318, 95
        %v3890 = vpop.permute.xlu0 %3889
        %3891 = vrot.lane.b32.xlu0 %v3320, 95
        %v3892 = vpop.permute.xlu0 %3891
        %vm3893 = vcmask 777216
        %v3894 = vsel %vm3893, %v3854, %v3856
        %v3895 = vsel %vm3893, %v3856, %v3858
        %v3896 = vsel %vm3893, %v3858, %v3860
        %v3897 = vsel %vm3893, %v3860, %v3862
        %v3898 = vsel %vm3893, %v3862, %v3864
        %v3899 = vsel %vm3893, %v3864, %v3866
        %v3900 = vsel %vm3893, %v3866, %v3868
        %v3901 = vsel %vm3893, %v3868, %v3870
        %v3902 = vsel %vm3893, %v3870, %v3872
        %v3903 = vsel %vm3893, %v3874, %v3876
        %v3904 = vsel %vm3893, %v3876, %v3878
        %v3905 = vsel %vm3893, %v3878, %v3880
        %v3906 = vsel %vm3893, %v3880, %v3882
        %v3907 = vsel %vm3893, %v3882, %v3884
        %v3908 = vsel %vm3893, %v3884, %v3886
        %v3909 = vsel %vm3893, %v3886, %v3888
        %v3910 = vsel %vm3893, %v3888, %v3890
        %v3911 = vsel %vm3893, %v3890, %v3892
        %3930 = vst [vmem:[#allocation5 + $0x3c0] sm:$0xff] %v3894
        %3931 = vst [vmem:[#allocation5 + $0x3c8] sm:$0xff] %v3895
        %3932 = vst [vmem:[#allocation5 + $0x3d0] sm:$0xff] %v3896
        %3933 = vst [vmem:[#allocation5 + $0x3d8] sm:$0xff] %v3897
        %3934 = vst [vmem:[#allocation5 + $0x3e0] sm:$0xff] %v3898
        %3935 = vst [vmem:[#allocation5 + $0x3e8] sm:$0xff] %v3899
        %3936 = vst [vmem:[#allocation5 + $0x3f0] sm:$0xff] %v3900
        %3937 = vst [vmem:[#allocation5 + $0x3f8] sm:$0xff] %v3901
        %vm3938 = vcmask 809984
        %3939 = vst.msk [vmem:[#allocation5 + $0x400] sm:$0xff] %vm3938, %v3902
        %3940 = vst [vmem:[#allocation5 + $0x410] sm:$0xff] %v3903
        %3941 = vst [vmem:[#allocation5 + $0x418] sm:$0xff] %v3904
        %3942 = vst [vmem:[#allocation5 + $0x420] sm:$0xff] %v3905
        %3943 = vst [vmem:[#allocation5 + $0x428] sm:$0xff] %v3906
        %3944 = vst [vmem:[#allocation5 + $0x430] sm:$0xff] %v3907
        %3945 = vst [vmem:[#allocation5 + $0x438] sm:$0xff] %v3908
        %3946 = vst [vmem:[#allocation5 + $0x440] sm:$0xff] %v3909
        %3947 = vst [vmem:[#allocation5 + $0x448] sm:$0xff] %v3910
        %3948 = vst.msk [vmem:[#allocation5 + $0x450] sm:$0xff] %vm3938, %v3911
        %vm3949 = vcmask 1048344
        %3950 = vst.msk [vmem:[#allocation5 + $0x400] sm:$0xff] %vm3949, 0.0
        %3951 = vst.msk [vmem:[#allocation5 + $0x408] sm:$0xff] %vm3423, 0.0
        %3952 = vst.msk [vmem:[#allocation5 + $0x450] sm:$0xff] %vm3949, 0.0
        %3953 = vst.msk [vmem:[#allocation5 + $0x458] sm:$0xff] %vm3423, 0.0
        %3954 = vrot.lane.b32.xlu0 %v2696, 94
        %v3955 = vpop.permute.xlu0 %3954
        %3956 = vrot.lane.b32.xlu0 %v2698, 94
        %v3957 = vpop.permute.xlu0 %3956
        %3958 = vrot.lane.b32.xlu0 %v2850, 94
        %v3959 = vpop.permute.xlu0 %3958
        %3960 = vrot.lane.b32.xlu0 %v2852, 94
        %v3961 = vpop.permute.xlu0 %3960
        %3962 = vrot.lane.b32.xlu0 %v3004, 94
        %v3963 = vpop.permute.xlu0 %3962
        %3964 = vrot.lane.b32.xlu0 %v3006, 94
        %v3965 = vpop.permute.xlu0 %3964
        %3966 = vrot.lane.b32.xlu0 %v3158, 94
        %v3967 = vpop.permute.xlu0 %3966
        %3968 = vrot.lane.b32.xlu0 %v3160, 94
        %v3969 = vpop.permute.xlu0 %3968
        %3970 = vrot.lane.b32.xlu0 %v3312, 94
        %v3971 = vpop.permute.xlu0 %3970
        %3972 = vrot.lane.b32.xlu0 %v3314, 94
        %v3973 = vpop.permute.xlu0 %3972
        %3974 = vrot.lane.b32.xlu0 %v2702, 94
        %v3975 = vpop.permute.xlu0 %3974
        %3976 = vrot.lane.b32.xlu0 %v2704, 94
        %v3977 = vpop.permute.xlu0 %3976
        %3978 = vrot.lane.b32.xlu0 %v2856, 94
        %v3979 = vpop.permute.xlu0 %3978
        %3980 = vrot.lane.b32.xlu0 %v2858, 94
        %v3981 = vpop.permute.xlu0 %3980
        %3982 = vrot.lane.b32.xlu0 %v3010, 94
        %v3983 = vpop.permute.xlu0 %3982
        %3984 = vrot.lane.b32.xlu0 %v3012, 94
        %v3985 = vpop.permute.xlu0 %3984
        %3986 = vrot.lane.b32.xlu0 %v3164, 94
        %v3987 = vpop.permute.xlu0 %3986
        %3988 = vrot.lane.b32.xlu0 %v3166, 94
        %v3989 = vpop.permute.xlu0 %3988
        %3990 = vrot.lane.b32.xlu0 %v3318, 94
        %v3991 = vpop.permute.xlu0 %3990
        %3992 = vrot.lane.b32.xlu0 %v3320, 94
        %v3993 = vpop.permute.xlu0 %3992
        %vm3994 = vcmask 769024
        %v3995 = vsel %vm3994, %v3955, %v3957
        %v3996 = vsel %vm3994, %v3957, %v3959
        %v3997 = vsel %vm3994, %v3959, %v3961
        %v3998 = vsel %vm3994, %v3961, %v3963
        %v3999 = vsel %vm3994, %v3963, %v3965
        %v4000 = vsel %vm3994, %v3965, %v3967
        %v4001 = vsel %vm3994, %v3967, %v3969
        %v4002 = vsel %vm3994, %v3969, %v3971
        %v4003 = vsel %vm3994, %v3971, %v3973
        %v4004 = vsel %vm3994, %v3975, %v3977
        %v4005 = vsel %vm3994, %v3977, %v3979
        %v4006 = vsel %vm3994, %v3979, %v3981
        %v4007 = vsel %vm3994, %v3981, %v3983
        %v4008 = vsel %vm3994, %v3983, %v3985
        %v4009 = vsel %vm3994, %v3985, %v3987
        %v4010 = vsel %vm3994, %v3987, %v3989
        %v4011 = vsel %vm3994, %v3989, %v3991
        %v4012 = vsel %vm3994, %v3991, %v3993
        %4031 = vst [vmem:[#allocation5 + $0x460] sm:$0xff] %v3995
        %4032 = vst [vmem:[#allocation5 + $0x468] sm:$0xff] %v3996
        %4033 = vst [vmem:[#allocation5 + $0x470] sm:$0xff] %v3997
        %4034 = vst [vmem:[#allocation5 + $0x478] sm:$0xff] %v3998
        %4035 = vst [vmem:[#allocation5 + $0x480] sm:$0xff] %v3999
        %4036 = vst [vmem:[#allocation5 + $0x488] sm:$0xff] %v4000
        %4037 = vst [vmem:[#allocation5 + $0x490] sm:$0xff] %v4001
        %4038 = vst [vmem:[#allocation5 + $0x498] sm:$0xff] %v4002
        %vm4039 = vcmask 801792
        %4040 = vst.msk [vmem:[#allocation5 + $0x4a0] sm:$0xff] %vm4039, %v4003
        %4041 = vst [vmem:[#allocation5 + $0x4b0] sm:$0xff] %v4004
        %4042 = vst [vmem:[#allocation5 + $0x4b8] sm:$0xff] %v4005
        %4043 = vst [vmem:[#allocation5 + $0x4c0] sm:$0xff] %v4006
        %4044 = vst [vmem:[#allocation5 + $0x4c8] sm:$0xff] %v4007
        %4045 = vst [vmem:[#allocation5 + $0x4d0] sm:$0xff] %v4008
        %4046 = vst [vmem:[#allocation5 + $0x4d8] sm:$0xff] %v4009
        %4047 = vst [vmem:[#allocation5 + $0x4e0] sm:$0xff] %v4010
        %4048 = vst [vmem:[#allocation5 + $0x4e8] sm:$0xff] %v4011
        %4049 = vst.msk [vmem:[#allocation5 + $0x4f0] sm:$0xff] %vm4039, %v4012
        %vm4050 = vcmask 1048336
        %4051 = vst.msk [vmem:[#allocation5 + $0x4a0] sm:$0xff] %vm4050, 0.0
        %4052 = vst.msk [vmem:[#allocation5 + $0x4a8] sm:$0xff] %vm3423, 0.0
        %4053 = vst.msk [vmem:[#allocation5 + $0x4f0] sm:$0xff] %vm4050, 0.0
        %4054 = vst.msk [vmem:[#allocation5 + $0x4f8] sm:$0xff] %vm3423, 0.0
        %4055 = vrot.lane.b32.xlu0 %v2696, 93
        %v4056 = vpop.permute.xlu0 %4055
        %4057 = vrot.lane.b32.xlu0 %v2698, 93
        %v4058 = vpop.permute.xlu0 %4057
        %4059 = vrot.lane.b32.xlu0 %v2850, 93
        %v4060 = vpop.permute.xlu0 %4059
        %4061 = vrot.lane.b32.xlu0 %v2852, 93
        %v4062 = vpop.permute.xlu0 %4061
        %4063 = vrot.lane.b32.xlu0 %v3004, 93
        %v4064 = vpop.permute.xlu0 %4063
        %4065 = vrot.lane.b32.xlu0 %v3006, 93
        %v4066 = vpop.permute.xlu0 %4065
        %4067 = vrot.lane.b32.xlu0 %v3158, 93
        %v4068 = vpop.permute.xlu0 %4067
        %4069 = vrot.lane.b32.xlu0 %v3160, 93
        %v4070 = vpop.permute.xlu0 %4069
        %4071 = vrot.lane.b32.xlu0 %v3312, 93
        %v4072 = vpop.permute.xlu0 %4071
        %4073 = vrot.lane.b32.xlu0 %v3314, 93
        %v4074 = vpop.permute.xlu0 %4073
        %4075 = vrot.lane.b32.xlu0 %v2702, 93
        %v4076 = vpop.permute.xlu0 %4075
        %4077 = vrot.lane.b32.xlu0 %v2704, 93
        %v4078 = vpop.permute.xlu0 %4077
        %4079 = vrot.lane.b32.xlu0 %v2856, 93
        %v4080 = vpop.permute.xlu0 %4079
        %4081 = vrot.lane.b32.xlu0 %v2858, 93
        %v4082 = vpop.permute.xlu0 %4081
        %4083 = vrot.lane.b32.xlu0 %v3010, 93
        %v4084 = vpop.permute.xlu0 %4083
        %4085 = vrot.lane.b32.xlu0 %v3012, 93
        %v4086 = vpop.permute.xlu0 %4085
        %4087 = vrot.lane.b32.xlu0 %v3164, 93
        %v4088 = vpop.permute.xlu0 %4087
        %4089 = vrot.lane.b32.xlu0 %v3166, 93
        %v4090 = vpop.permute.xlu0 %4089
        %4091 = vrot.lane.b32.xlu0 %v3318, 93
        %v4092 = vpop.permute.xlu0 %4091
        %4093 = vrot.lane.b32.xlu0 %v3320, 93
        %v4094 = vpop.permute.xlu0 %4093
        %vm4095 = vcmask 760832
        %v4096 = vsel %vm4095, %v4056, %v4058
        %v4097 = vsel %vm4095, %v4058, %v4060
        %v4098 = vsel %vm4095, %v4060, %v4062
        %v4099 = vsel %vm4095, %v4062, %v4064
        %v4100 = vsel %vm4095, %v4064, %v4066
        %v4101 = vsel %vm4095, %v4066, %v4068
        %v4102 = vsel %vm4095, %v4068, %v4070
        %v4103 = vsel %vm4095, %v4070, %v4072
        %v4104 = vsel %vm4095, %v4072, %v4074
        %v4105 = vsel %vm4095, %v4076, %v4078
        %v4106 = vsel %vm4095, %v4078, %v4080
        %v4107 = vsel %vm4095, %v4080, %v4082
        %v4108 = vsel %vm4095, %v4082, %v4084
        %v4109 = vsel %vm4095, %v4084, %v4086
        %v4110 = vsel %vm4095, %v4086, %v4088
        %v4111 = vsel %vm4095, %v4088, %v4090
        %v4112 = vsel %vm4095, %v4090, %v4092
        %v4113 = vsel %vm4095, %v4092, %v4094
        %4132 = vst [vmem:[#allocation5 + $0x500] sm:$0xff] %v4096
        %4133 = vst [vmem:[#allocation5 + $0x508] sm:$0xff] %v4097
        %4134 = vst [vmem:[#allocation5 + $0x510] sm:$0xff] %v4098
        %4135 = vst [vmem:[#allocation5 + $0x518] sm:$0xff] %v4099
        %4136 = vst [vmem:[#allocation5 + $0x520] sm:$0xff] %v4100
        %4137 = vst [vmem:[#allocation5 + $0x528] sm:$0xff] %v4101
        %4138 = vst [vmem:[#allocation5 + $0x530] sm:$0xff] %v4102
        %4139 = vst [vmem:[#allocation5 + $0x538] sm:$0xff] %v4103
        %vm4140 = vcmask 793600
        %4141 = vst.msk [vmem:[#allocation5 + $0x540] sm:$0xff] %vm4140, %v4104
        %4142 = vst [vmem:[#allocation5 + $0x550] sm:$0xff] %v4105
        %4143 = vst [vmem:[#allocation5 + $0x558] sm:$0xff] %v4106
        %4144 = vst [vmem:[#allocation5 + $0x560] sm:$0xff] %v4107
        %4145 = vst [vmem:[#allocation5 + $0x568] sm:$0xff] %v4108
        %4146 = vst [vmem:[#allocation5 + $0x570] sm:$0xff] %v4109
        %4147 = vst [vmem:[#allocation5 + $0x578] sm:$0xff] %v4110
        %4148 = vst [vmem:[#allocation5 + $0x580] sm:$0xff] %v4111
        %4149 = vst [vmem:[#allocation5 + $0x588] sm:$0xff] %v4112
        %4150 = vst.msk [vmem:[#allocation5 + $0x590] sm:$0xff] %vm4140, %v4113
        %vm4151 = vcmask 1048328
        %4152 = vst.msk [vmem:[#allocation5 + $0x540] sm:$0xff] %vm4151, 0.0
        %4153 = vst.msk [vmem:[#allocation5 + $0x548] sm:$0xff] %vm3423, 0.0
        %4154 = vst.msk [vmem:[#allocation5 + $0x590] sm:$0xff] %vm4151, 0.0
        %4155 = vst.msk [vmem:[#allocation5 + $0x598] sm:$0xff] %vm3423, 0.0
        %v4156 = vld [vmem:[#allocation22] sm:$0xff]
        %v4157 = vld [vmem:[#allocation22 + $0x8] sm:$0xff]
        %v4158 = vld [vmem:[#allocation22 + $0x10] sm:$0xff]
        %v4159 = vld [vmem:[#allocation22 + $0x18] sm:$0xff]
        %v4160 = vld [vmem:[#allocation22 + $0x20] sm:$0xff]
        %v4161 = vld [vmem:[#allocation22 + $0x28] sm:$0xff]
        %v4162 = vld [vmem:[#allocation22 + $0x30] sm:$0xff]
        %v4163 = vld [vmem:[#allocation22 + $0x38] sm:$0xff]
        %v4164 = vld [vmem:[#allocation5] sm:$0xff]
        %v4165 = vld [vmem:[#allocation5 + $0x8] sm:$0xff]
        %v4166 = vld [vmem:[#allocation5 + $0x10] sm:$0xff]
        %v4167 = vld [vmem:[#allocation5 + $0x18] sm:$0xff]
        %v4168 = vld [vmem:[#allocation5 + $0x20] sm:$0xff]
        %v4169 = vld [vmem:[#allocation5 + $0x28] sm:$0xff]
        %v4170 = vld [vmem:[#allocation5 + $0x30] sm:$0xff]
        %v4171 = vld [vmem:[#allocation5 + $0x38] sm:$0xff]
        %v4172 = vld [vmem:[#allocation5 + $0x40] sm:$0xff]
        %v4173 = vld [vmem:[#allocation5 + $0x48] sm:$0xff]
        %v4174 = vld [vmem:[#allocation5 + $0x50] sm:$0xff]
        %v4175 = vld [vmem:[#allocation5 + $0x58] sm:$0xff]
        %v4176 = vld [vmem:[#allocation5 + $0x60] sm:$0xff]
        %v4177 = vld [vmem:[#allocation5 + $0x68] sm:$0xff]
        %v4178 = vld [vmem:[#allocation5 + $0x70] sm:$0xff]
        %v4179 = vld [vmem:[#allocation5 + $0x78] sm:$0xff]
        %v4180 = vld [vmem:[#allocation5 + $0x80] sm:$0xff]
        %v4181 = vld [vmem:[#allocation5 + $0x88] sm:$0xff]
        %v4182 = vld [vmem:[#allocation5 + $0x90] sm:$0xff]
        %v4183 = vld [vmem:[#allocation5 + $0x98] sm:$0xff]
        %v4184 = vld [vmem:[#allocation5 + $0xa0] sm:$0xff]
        %v4185 = vld [vmem:[#allocation5 + $0xa8] sm:$0xff]
        %v4186 = vld [vmem:[#allocation5 + $0xb0] sm:$0xff]
        %v4187 = vld [vmem:[#allocation5 + $0xb8] sm:$0xff]
        %v4188 = vld [vmem:[#allocation5 + $0xc0] sm:$0xff]
        %v4189 = vld [vmem:[#allocation5 + $0xc8] sm:$0xff]
        %v4190 = vld [vmem:[#allocation5 + $0xd0] sm:$0xff]
        %v4191 = vld [vmem:[#allocation5 + $0xd8] sm:$0xff]
        %v4192 = vld [vmem:[#allocation5 + $0xe0] sm:$0xff]
        %v4193 = vld [vmem:[#allocation5 + $0xe8] sm:$0xff]
        %v4194 = vld [vmem:[#allocation5 + $0xf0] sm:$0xff]
        %v4195 = vld [vmem:[#allocation5 + $0xf8] sm:$0xff]
        %v4196 = vld [vmem:[#allocation5 + $0x100] sm:$0xff]
        %v4197 = vld [vmem:[#allocation5 + $0x108] sm:$0xff]
        %v4198 = vld [vmem:[#allocation5 + $0x110] sm:$0xff]
        %v4199 = vld [vmem:[#allocation5 + $0x118] sm:$0xff]
        %v4200 = vld [vmem:[#allocation5 + $0x120] sm:$0xff]
        %v4201 = vld [vmem:[#allocation5 + $0x128] sm:$0xff]
        %v4202 = vld [vmem:[#allocation5 + $0x130] sm:$0xff]
        %v4203 = vld [vmem:[#allocation5 + $0x138] sm:$0xff]
        %v4204 = vld [vmem:[#allocation5 + $0x140] sm:$0xff]
        %v4205 = vld [vmem:[#allocation5 + $0x148] sm:$0xff]
        %v4206 = vld [vmem:[#allocation5 + $0x150] sm:$0xff]
        %v4207 = vld [vmem:[#allocation5 + $0x158] sm:$0xff]
        %v4208 = vld [vmem:[#allocation5 + $0x160] sm:$0xff]
        %v4209 = vld [vmem:[#allocation5 + $0x168] sm:$0xff]
        %v4210 = vld [vmem:[#allocation5 + $0x170] sm:$0xff]
        %v4211 = vld [vmem:[#allocation5 + $0x178] sm:$0xff]
        %v4212 = vld [vmem:[#allocation5 + $0x180] sm:$0xff]
        %v4213 = vld [vmem:[#allocation5 + $0x188] sm:$0xff]
        %v4214 = vld [vmem:[#allocation5 + $0x190] sm:$0xff]
        %v4215 = vld [vmem:[#allocation5 + $0x198] sm:$0xff]
        %v4216 = vld [vmem:[#allocation5 + $0x1a0] sm:$0xff]
        %v4217 = vld [vmem:[#allocation5 + $0x1a8] sm:$0xff]
        %v4218 = vld [vmem:[#allocation5 + $0x1b0] sm:$0xff]
        %v4219 = vld [vmem:[#allocation5 + $0x1b8] sm:$0xff]
        %v4220 = vld [vmem:[#allocation5 + $0x1c0] sm:$0xff]
        %v4221 = vld [vmem:[#allocation5 + $0x1c8] sm:$0xff]
        %v4222 = vld [vmem:[#allocation5 + $0x1d0] sm:$0xff]
        %v4223 = vld [vmem:[#allocation5 + $0x1d8] sm:$0xff]
        %v4224 = vld [vmem:[#allocation5 + $0x1e0] sm:$0xff]
        %v4225 = vld [vmem:[#allocation5 + $0x1e8] sm:$0xff]
        %v4226 = vld [vmem:[#allocation5 + $0x1f0] sm:$0xff]
        %v4227 = vld [vmem:[#allocation5 + $0x1f8] sm:$0xff]
        %v4228 = vld [vmem:[#allocation5 + $0x200] sm:$0xff]
        %v4229 = vld [vmem:[#allocation5 + $0x208] sm:$0xff]
        %v4230 = vld [vmem:[#allocation5 + $0x210] sm:$0xff]
        %v4231 = vld [vmem:[#allocation5 + $0x218] sm:$0xff]
        %v4232 = vld [vmem:[#allocation5 + $0x220] sm:$0xff]
        %v4233 = vld [vmem:[#allocation5 + $0x228] sm:$0xff]
        %v4234 = vld [vmem:[#allocation5 + $0x230] sm:$0xff]
        %v4235 = vld [vmem:[#allocation5 + $0x238] sm:$0xff]
        %v4236 = vld [vmem:[#allocation5 + $0x240] sm:$0xff]
        %v4237 = vld [vmem:[#allocation5 + $0x248] sm:$0xff]
        %v4238 = vld [vmem:[#allocation5 + $0x250] sm:$0xff]
        %v4239 = vld [vmem:[#allocation5 + $0x258] sm:$0xff]
        %v4240 = vld [vmem:[#allocation5 + $0x260] sm:$0xff]
        %v4241 = vld [vmem:[#allocation5 + $0x268] sm:$0xff]
        %v4242 = vld [vmem:[#allocation5 + $0x270] sm:$0xff]
        %v4243 = vld [vmem:[#allocation5 + $0x278] sm:$0xff]
        %v4244 = vld [vmem:[#allocation5 + $0x280] sm:$0xff]
        %v4245 = vld [vmem:[#allocation5 + $0x288] sm:$0xff]
        %v4246 = vld [vmem:[#allocation5 + $0x290] sm:$0xff]
        %v4247 = vld [vmem:[#allocation5 + $0x298] sm:$0xff]
        %v4248 = vld [vmem:[#allocation5 + $0x2a0] sm:$0xff]
        %v4249 = vld [vmem:[#allocation5 + $0x2a8] sm:$0xff]
        %v4250 = vld [vmem:[#allocation5 + $0x2b0] sm:$0xff]
        %v4251 = vld [vmem:[#allocation5 + $0x2b8] sm:$0xff]
        %v4252 = vld [vmem:[#allocation5 + $0x2c0] sm:$0xff]
        %v4253 = vld [vmem:[#allocation5 + $0x2c8] sm:$0xff]
        %v4254 = vld [vmem:[#allocation5 + $0x2d0] sm:$0xff]
        %v4255 = vld [vmem:[#allocation5 + $0x2d8] sm:$0xff]
        %v4256 = vld [vmem:[#allocation5 + $0x2e0] sm:$0xff]
        %v4257 = vld [vmem:[#allocation5 + $0x2e8] sm:$0xff]
        %v4258 = vld [vmem:[#allocation5 + $0x2f0] sm:$0xff]
        %v4259 = vld [vmem:[#allocation5 + $0x2f8] sm:$0xff]
        %v4260 = vld [vmem:[#allocation5 + $0x300] sm:$0xff]
        %v4261 = vld [vmem:[#allocation5 + $0x308] sm:$0xff]
        %v4262 = vld [vmem:[#allocation5 + $0x310] sm:$0xff]
        %v4263 = vld [vmem:[#allocation5 + $0x318] sm:$0xff]
        %v4264 = vld [vmem:[#allocation5 + $0x320] sm:$0xff]
        %v4265 = vld [vmem:[#allocation5 + $0x328] sm:$0xff]
        %v4266 = vld [vmem:[#allocation5 + $0x330] sm:$0xff]
        %v4267 = vld [vmem:[#allocation5 + $0x338] sm:$0xff]
        %v4268 = vld [vmem:[#allocation5 + $0x340] sm:$0xff]
        %v4269 = vld [vmem:[#allocation5 + $0x348] sm:$0xff]
        %v4270 = vld [vmem:[#allocation5 + $0x350] sm:$0xff]
        %v4271 = vld [vmem:[#allocation5 + $0x358] sm:$0xff]
        %v4272 = vld [vmem:[#allocation5 + $0x360] sm:$0xff]
        %v4273 = vld [vmem:[#allocation5 + $0x368] sm:$0xff]
        %v4274 = vld [vmem:[#allocation5 + $0x370] sm:$0xff]
        %v4275 = vld [vmem:[#allocation5 + $0x378] sm:$0xff]
        %v4276 = vld [vmem:[#allocation5 + $0x380] sm:$0xff]
        %v4277 = vld [vmem:[#allocation5 + $0x388] sm:$0xff]
        %v4278 = vld [vmem:[#allocation5 + $0x390] sm:$0xff]
        %v4279 = vld [vmem:[#allocation5 + $0x398] sm:$0xff]
        %v4280 = vld [vmem:[#allocation5 + $0x3a0] sm:$0xff]
        %v4281 = vld [vmem:[#allocation5 + $0x3a8] sm:$0xff]
        %v4282 = vld [vmem:[#allocation5 + $0x3b0] sm:$0xff]
        %v4283 = vld [vmem:[#allocation5 + $0x3b8] sm:$0xff]
        %v4284 = vld [vmem:[#allocation5 + $0x3c0] sm:$0xff]
        %v4285 = vld [vmem:[#allocation5 + $0x3c8] sm:$0xff]
        %v4286 = vld [vmem:[#allocation5 + $0x3d0] sm:$0xff]
        %v4287 = vld [vmem:[#allocation5 + $0x3d8] sm:$0xff]
        %v4288 = vld [vmem:[#allocation5 + $0x3e0] sm:$0xff]
        %v4289 = vld [vmem:[#allocation5 + $0x3e8] sm:$0xff]
        %v4290 = vld [vmem:[#allocation5 + $0x3f0] sm:$0xff]
        %v4291 = vld [vmem:[#allocation5 + $0x3f8] sm:$0xff]
        %v4292 = vld [vmem:[#allocation5 + $0x400] sm:$0xff]
        %v4293 = vld [vmem:[#allocation5 + $0x408] sm:$0xff]
        %v4294 = vld [vmem:[#allocation5 + $0x410] sm:$0xff]
        %v4295 = vld [vmem:[#allocation5 + $0x418] sm:$0xff]
        %v4296 = vld [vmem:[#allocation5 + $0x420] sm:$0xff]
        %v4297 = vld [vmem:[#allocation5 + $0x428] sm:$0xff]
        %v4298 = vld [vmem:[#allocation5 + $0x430] sm:$0xff]
        %v4299 = vld [vmem:[#allocation5 + $0x438] sm:$0xff]
        %v4300 = vld [vmem:[#allocation5 + $0x440] sm:$0xff]
        %v4301 = vld [vmem:[#allocation5 + $0x448] sm:$0xff]
        %v4302 = vld [vmem:[#allocation5 + $0x450] sm:$0xff]
        %v4303 = vld [vmem:[#allocation5 + $0x458] sm:$0xff]
        %v4304 = vld [vmem:[#allocation5 + $0x460] sm:$0xff]
        %v4305 = vld [vmem:[#allocation5 + $0x468] sm:$0xff]
        %v4306 = vld [vmem:[#allocation5 + $0x470] sm:$0xff]
        %v4307 = vld [vmem:[#allocation5 + $0x478] sm:$0xff]
        %v4308 = vld [vmem:[#allocation5 + $0x480] sm:$0xff]
        %v4309 = vld [vmem:[#allocation5 + $0x488] sm:$0xff]
        %v4310 = vld [vmem:[#allocation5 + $0x490] sm:$0xff]
        %v4311 = vld [vmem:[#allocation5 + $0x498] sm:$0xff]
        %v4312 = vld [vmem:[#allocation5 + $0x4a0] sm:$0xff]
        %v4313 = vld [vmem:[#allocation5 + $0x4a8] sm:$0xff]
        %v4314 = vld [vmem:[#allocation5 + $0x4b0] sm:$0xff]
        %v4315 = vld [vmem:[#allocation5 + $0x4b8] sm:$0xff]
        %v4316 = vld [vmem:[#allocation5 + $0x4c0] sm:$0xff]
        %v4317 = vld [vmem:[#allocation5 + $0x4c8] sm:$0xff]
        %v4318 = vld [vmem:[#allocation5 + $0x4d0] sm:$0xff]
        %v4319 = vld [vmem:[#allocation5 + $0x4d8] sm:$0xff]
        %v4320 = vld [vmem:[#allocation5 + $0x4e0] sm:$0xff]
        %v4321 = vld [vmem:[#allocation5 + $0x4e8] sm:$0xff]
        %v4322 = vld [vmem:[#allocation5 + $0x4f0] sm:$0xff]
        %v4323 = vld [vmem:[#allocation5 + $0x4f8] sm:$0xff]
        %v4324 = vld [vmem:[#allocation5 + $0x500] sm:$0xff]
        %v4325 = vld [vmem:[#allocation5 + $0x508] sm:$0xff]
        %v4326 = vld [vmem:[#allocation5 + $0x510] sm:$0xff]
        %v4327 = vld [vmem:[#allocation5 + $0x518] sm:$0xff]
        %v4328 = vld [vmem:[#allocation5 + $0x520] sm:$0xff]
        %v4329 = vld [vmem:[#allocation5 + $0x528] sm:$0xff]
        %v4330 = vld [vmem:[#allocation5 + $0x530] sm:$0xff]
        %v4331 = vld [vmem:[#allocation5 + $0x538] sm:$0xff]
        %v4332 = vld [vmem:[#allocation5 + $0x540] sm:$0xff]
        %v4333 = vld [vmem:[#allocation5 + $0x548] sm:$0xff]
        %v4334 = vld [vmem:[#allocation5 + $0x550] sm:$0xff]
        %v4335 = vld [vmem:[#allocation5 + $0x558] sm:$0xff]
        %v4336 = vld [vmem:[#allocation5 + $0x560] sm:$0xff]
        %v4337 = vld [vmem:[#allocation5 + $0x568] sm:$0xff]
        %v4338 = vld [vmem:[#allocation5 + $0x570] sm:$0xff]
        %v4339 = vld [vmem:[#allocation5 + $0x578] sm:$0xff]
        %v4340 = vld [vmem:[#allocation5 + $0x580] sm:$0xff]
        %v4341 = vld [vmem:[#allocation5 + $0x588] sm:$0xff]
        %v4342 = vld [vmem:[#allocation5 + $0x590] sm:$0xff]
        %v4343 = vld [vmem:[#allocation5 + $0x598] sm:$0xff]
        %v4344 = vld [vmem:[%s13] sm:$0xff]
        %v4345 = vld [vmem:[%s13 + $0x8] sm:$0xff]
        %v4346 = vld [vmem:[%s13 + $0x10] sm:$0xff]
        %v4347 = vld [vmem:[%s13 + $0x18] sm:$0xff]
        %4349 = vset.pattern.permute.xlu0 0
        %4350 = vperm.xlu0 %4349, %v4344
        %v4351 = vpop.permute.xlu0 %4350
        %4354 = vset.pattern.permute.xlu0 0
        %4355 = vperm.xlu0 %4354, %v4345
        %v4356 = vpop.permute.xlu0 %4355
        %4359 = vset.pattern.permute.xlu0 0
        %4360 = vperm.xlu0 %4359, %v4346
        %v4361 = vpop.permute.xlu0 %4360
        %4364 = vset.pattern.permute.xlu0 0
        %4365 = vperm.xlu0 %4364, %v4347
        %v4366 = vpop.permute.xlu0 %4365
        %vm4368 = vcmask 130048
        %v4370 = vsel %vm4368, %v4157, 0
        %v4373 = vsel %vm4368, %v4159, 0
        %v4376 = vsel %vm4368, %v4161, 0
        %v4379 = vsel %vm4368, %v4163, 0
        %4381 = vmatprep.subr.mxu0 %v4165
        %4382 = vmatpush1.msra.mxu0 %v4164
        %4383 = vmatprep.subr.mxu0 %v4175
        %4384 = vmatpush1.msra.mxu0 %v4174
        %4385 = vmatprep.subr.mxu0 %v4185
        %4386 = vmatpush1.msra.mxu0 %v4184
        %4387 = vmatprep.subr.mxu0 %v4195
        %4388 = vmatpush1.msra.mxu0 %v4194
        %4389 = vmatprep.subr.mxu0 %v4205
        %4390 = vmatpush1.msra.mxu0 %v4204
        %4391 = vmatprep.subr.mxu0 %v4215
        %4392 = vmatpush1.msra.mxu0 %v4214
        %4393 = vmatprep.subr.mxu0 %v4225
        %4394 = vmatpush1.msra.mxu0 %v4224
        %4395 = vmatprep.subr.mxu0 %v4235
        %4396 = vmatpush1.msra.mxu0 %v4234
        %4397 = vmatprep.subr.mxu0 %v4245
        %4398 = vmatpush1.msra.mxu0 %v4244
        %4399 = vmatprep.subr.mxu0 %v4255
        %4400 = vmatpush1.msra.mxu0 %v4254
        %4401 = vmatprep.subr.mxu0 %v4265
        %4402 = vmatpush1.msra.mxu0 %v4264
        %4403 = vmatprep.subr.mxu0 %v4275
        %4404 = vmatpush1.msra.mxu0 %v4274
        %4405 = vmatprep.subr.mxu0 %v4285
        %4406 = vmatpush1.msra.mxu0 %v4284
        %4407 = vmatprep.subr.mxu0 %v4295
        %4408 = vmatpush1.msra.mxu0 %v4294
        %4409 = vmatprep.subr.mxu0 %v4305
        %4410 = vmatpush1.msra.mxu0 %v4304
        %4411 = vmatprep.subr.mxu0 %v4315
        %4412 = vmatpush1.msra.mxu0 %v4314
        %4413 = vmatprep.subr.mxu0 %v4325
        %4414 = vmatpush1.msra.mxu0 %v4324
        %4415 = vmatprep.subr.mxu0 %v4335
        %4416 = vmatpush1.msra.mxu0 %v4334
        %4417 = vmatprep.subr.mxu0 0.0
        %4418 = vmatpush1.msra.mxu0 0.0
        %4419 = vmatprep.subr.mxu0 0.0
        %4420 = vmatpush1.msra.mxu0 0.0
        %4421 = vmatprep.subr.mxu0 0.0
        %4422 = vmatpush1.msra.mxu0 0.0
        %4423 = vmatprep.subr.mxu0 0.0
        %4424 = vmatpush1.msra.mxu0 0.0
        %4425 = vmatprep.subr.mxu0 0.0
        %4426 = vmatpush1.msra.mxu0 0.0
        %4427 = vmatprep.subr.mxu0 0.0
        %4428 = vmatpush1.msra.mxu0 0.0
        %4429 = vmatprep.subr.mxu0 0.0
        %4430 = vmatpush1.msra.mxu0 0.0
        %4431 = vmatprep.subr.mxu0 0.0
        %4432 = vmatpush1.msra.mxu0 0.0
        %4433 = vmatprep.subr.mxu0 0.0
        %4434 = vmatpush1.msra.mxu0 0.0
        %4435 = vmatprep.subr.mxu0 0.0
        %4436 = vmatpush1.msra.mxu0 0.0
        %4437 = vmatprep.subr.mxu0 0.0
        %4438 = vmatpush1.msra.mxu0 0.0
        %4439 = vmatprep.subr.mxu0 0.0
        %4440 = vmatpush1.msra.mxu0 0.0
        %4441 = vmatprep.subr.mxu0 0.0
        %4442 = vmatpush1.msra.mxu0 0.0
        %4443 = vmatprep.subr.mxu0 0.0
        %4444 = vmatpush1.msra.mxu0 0.0
        %4445 = vmatprep.mubr.f32.mxu0 %v4370
        %4446 = vmatmul.mubr.f32.gmra.mrb[0].mxu0 %v4156
        %v4447 = vpop.f32.mrb[0].mxu0
        %v4448 = vadd.f32 %v4351, %v4447
        %v4449 = vpop.f32.mrb[0].mxu0
        %v4450 = vadd.f32 %v4351, %v4449
        %4451 = vmatprep.mubr.f32.mxu0 %v4373
        %4452 = vmatmul.mubr.f32.gmra.mrb[0].mxu0 %v4158
        %v4453 = vpop.f32.mrb[0].mxu0
        %v4454 = vadd.f32 %v4356, %v4453
        %v4455 = vpop.f32.mrb[0].mxu0
        %v4456 = vadd.f32 %v4356, %v4455
        %4457 = vmatprep.mubr.f32.mxu0 %v4376
        %4458 = vmatmul.mubr.f32.gmra.mrb[0].mxu0 %v4160
        %v4459 = vpop.f32.mrb[0].mxu0
        %v4460 = vadd.f32 %v4361, %v4459
        %v4461 = vpop.f32.mrb[0].mxu0
        %v4462 = vadd.f32 %v4361, %v4461
        %4463 = vmatprep.mubr.f32.mxu0 %v4379
        %4464 = vmatmul.mubr.f32.gmra.mrb[0].mxu0 %v4162
        %v4465 = vpop.f32.mrb[0].mxu0
        %v4466 = vadd.f32 %v4366, %v4465
        %v4467 = vpop.f32.mrb[0].mxu0
        %v4468 = vadd.f32 %v4366, %v4467
        %4469 = vdwg.mxu0
        %4470 = vmatprep.subr.mxu0 %v4167
        %4471 = vmatpush1.msra.mxu0 %v4166
        %4472 = vmatprep.subr.mxu0 %v4177
        %4473 = vmatpush1.msra.mxu0 %v4176
        %4474 = vmatprep.subr.mxu0 %v4187
        %4475 = vmatpush1.msra.mxu0 %v4186
        %4476 = vmatprep.subr.mxu0 %v4197
        %4477 = vmatpush1.msra.mxu0 %v4196
        %4478 = vmatprep.subr.mxu0 %v4207
        %4479 = vmatpush1.msra.mxu0 %v4206
        %4480 = vmatprep.subr.mxu0 %v4217
        %4481 = vmatpush1.msra.mxu0 %v4216
        %4482 = vmatprep.subr.mxu0 %v4227
        %4483 = vmatpush1.msra.mxu0 %v4226
        %4484 = vmatprep.subr.mxu0 %v4237
        %4485 = vmatpush1.msra.mxu0 %v4236
        %4486 = vmatprep.subr.mxu0 %v4247
        %4487 = vmatpush1.msra.mxu0 %v4246
        %4488 = vmatprep.subr.mxu0 %v4257
        %4489 = vmatpush1.msra.mxu0 %v4256
        %4490 = vmatprep.subr.mxu0 %v4267
        %4491 = vmatpush1.msra.mxu0 %v4266
        %4492 = vmatprep.subr.mxu0 %v4277
        %4493 = vmatpush1.msra.mxu0 %v4276
        %4494 = vmatprep.subr.mxu0 %v4287
        %4495 = vmatpush1.msra.mxu0 %v4286
        %4496 = vmatprep.subr.mxu0 %v4297
        %4497 = vmatpush1.msra.mxu0 %v4296
        %4498 = vmatprep.subr.mxu0 %v4307
        %4499 = vmatpush1.msra.mxu0 %v4306
        %4500 = vmatprep.subr.mxu0 %v4317
        %4501 = vmatpush1.msra.mxu0 %v4316
        %4502 = vmatprep.subr.mxu0 %v4327
        %4503 = vmatpush1.msra.mxu0 %v4326
        %4504 = vmatprep.subr.mxu0 %v4337
        %4505 = vmatpush1.msra.mxu0 %v4336
        %4506 = vmatprep.subr.mxu0 0.0
        %4507 = vmatpush1.msra.mxu0 0.0
        %4508 = vmatprep.subr.mxu0 0.0
        %4509 = vmatpush1.msra.mxu0 0.0
        %4510 = vmatprep.subr.mxu0 0.0
        %4511 = vmatpush1.msra.mxu0 0.0
        %4512 = vmatprep.subr.mxu0 0.0
        %4513 = vmatpush1.msra.mxu0 0.0
        %4514 = vmatprep.subr.mxu0 0.0
        %4515 = vmatpush1.msra.mxu0 0.0
        %4516 = vmatprep.subr.mxu0 0.0
        %4517 = vmatpush1.msra.mxu0 0.0
        %4518 = vmatprep.subr.mxu0 0.0
        %4519 = vmatpush1.msra.mxu0 0.0
        %4520 = vmatprep.subr.mxu0 0.0
        %4521 = vmatpush1.msra.mxu0 0.0
        %4522 = vmatprep.subr.mxu0 0.0
        %4523 = vmatpush1.msra.mxu0 0.0
        %4524 = vmatprep.subr.mxu0 0.0
        %4525 = vmatpush1.msra.mxu0 0.0
        %4526 = vmatprep.subr.mxu0 0.0
        %4527 = vmatpush1.msra.mxu0 0.0
        %4528 = vmatprep.subr.mxu0 0.0
        %4529 = vmatpush1.msra.mxu0 0.0
        %4530 = vmatprep.subr.mxu0 0.0
        %4531 = vmatpush1.msra.mxu0 0.0
        %4532 = vmatprep.subr.mxu0 0.0
        %4533 = vmatpush1.msra.mxu0 0.0
        %4534 = vmatprep.mubr.f32.mxu0 %v4370
        %4535 = vmatmul.mubr.f32.gmra.mrb[0].mxu0 %v4156
        %v4536 = vpop.f32.mrb[0].mxu0
        %v4537 = vadd.f32 %v4351, %v4536
        %v4538 = vpop.f32.mrb[0].mxu0
        %v4539 = vadd.f32 %v4351, %v4538
        %4540 = vmatprep.mubr.f32.mxu0 %v4373
        %4541 = vmatmul.mubr.f32.gmra.mrb[0].mxu0 %v4158
        %v4542 = vpop.f32.mrb[0].mxu0
        %v4543 = vadd.f32 %v4356, %v4542
        %v4544 = vpop.f32.mrb[0].mxu0
        %v4545 = vadd.f32 %v4356, %v4544
        %4546 = vmatprep.mubr.f32.mxu0 %v4376
        %4547 = vmatmul.mubr.f32.gmra.mrb[0].mxu0 %v4160
        %v4548 = vpop.f32.mrb[0].mxu0
        %v4549 = vadd.f32 %v4361, %v4548
        %v4550 = vpop.f32.mrb[0].mxu0
        %v4551 = vadd.f32 %v4361, %v4550
        %4552 = vmatprep.mubr.f32.mxu0 %v4379
        %4553 = vmatmul.mubr.f32.gmra.mrb[0].mxu0 %v4162
        %v4554 = vpop.f32.mrb[0].mxu0
        %v4555 = vadd.f32 %v4366, %v4554
        %v4556 = vpop.f32.mrb[0].mxu0
        %v4557 = vadd.f32 %v4366, %v4556
        %4558 = vdwg.mxu0
        %4559 = vmatprep.subr.mxu0 %v4169
        %4560 = vmatpush1.msra.mxu0 %v4168
        %4561 = vmatprep.subr.mxu0 %v4179
        %4562 = vmatpush1.msra.mxu0 %v4178
        %4563 = vmatprep.subr.mxu0 %v4189
        %4564 = vmatpush1.msra.mxu0 %v4188
        %4565 = vmatprep.subr.mxu0 %v4199
        %4566 = vmatpush1.msra.mxu0 %v4198
        %4567 = vmatprep.subr.mxu0 %v4209
        %4568 = vmatpush1.msra.mxu0 %v4208
        %4569 = vmatprep.subr.mxu0 %v4219
        %4570 = vmatpush1.msra.mxu0 %v4218
        %4571 = vmatprep.subr.mxu0 %v4229
        %4572 = vmatpush1.msra.mxu0 %v4228
        %4573 = vmatprep.subr.mxu0 %v4239
        %4574 = vmatpush1.msra.mxu0 %v4238
        %4575 = vmatprep.subr.mxu0 %v4249
        %4576 = vmatpush1.msra.mxu0 %v4248
        %4577 = vmatprep.subr.mxu0 %v4259
        %4578 = vmatpush1.msra.mxu0 %v4258
        %4579 = vmatprep.subr.mxu0 %v4269
        %4580 = vmatpush1.msra.mxu0 %v4268
        %4581 = vmatprep.subr.mxu0 %v4279
        %4582 = vmatpush1.msra.mxu0 %v4278
        %4583 = vmatprep.subr.mxu0 %v4289
        %4584 = vmatpush1.msra.mxu0 %v4288
        %4585 = vmatprep.subr.mxu0 %v4299
        %4586 = vmatpush1.msra.mxu0 %v4298
        %4587 = vmatprep.subr.mxu0 %v4309
        %4588 = vmatpush1.msra.mxu0 %v4308
        %4589 = vmatprep.subr.mxu0 %v4319
        %4590 = vmatpush1.msra.mxu0 %v4318
        %4591 = vmatprep.subr.mxu0 %v4329
        %4592 = vmatpush1.msra.mxu0 %v4328
        %4593 = vmatprep.subr.mxu0 %v4339
        %4594 = vmatpush1.msra.mxu0 %v4338
        %4595 = vmatprep.subr.mxu0 0.0
        %4596 = vmatpush1.msra.mxu0 0.0
        %4597 = vmatprep.subr.mxu0 0.0
        %4598 = vmatpush1.msra.mxu0 0.0
        %4599 = vmatprep.subr.mxu0 0.0
        %4600 = vmatpush1.msra.mxu0 0.0
        %4601 = vmatprep.subr.mxu0 0.0
        %4602 = vmatpush1.msra.mxu0 0.0
        %4603 = vmatprep.subr.mxu0 0.0
        %4604 = vmatpush1.msra.mxu0 0.0
        %4605 = vmatprep.subr.mxu0 0.0
        %4606 = vmatpush1.msra.mxu0 0.0
        %4607 = vmatprep.subr.mxu0 0.0
        %4608 = vmatpush1.msra.mxu0 0.0
        %4609 = vmatprep.subr.mxu0 0.0
        %4610 = vmatpush1.msra.mxu0 0.0
        %4611 = vmatprep.subr.mxu0 0.0
        %4612 = vmatpush1.msra.mxu0 0.0
        %4613 = vmatprep.subr.mxu0 0.0
        %4614 = vmatpush1.msra.mxu0 0.0
        %4615 = vmatprep.subr.mxu0 0.0
        %4616 = vmatpush1.msra.mxu0 0.0
        %4617 = vmatprep.subr.mxu0 0.0
        %4618 = vmatpush1.msra.mxu0 0.0
        %4619 = vmatprep.subr.mxu0 0.0
        %4620 = vmatpush1.msra.mxu0 0.0
        %4621 = vmatprep.subr.mxu0 0.0
        %4622 = vmatpush1.msra.mxu0 0.0
        %4623 = vmatprep.mubr.f32.mxu0 %v4370
        %4624 = vmatmul.mubr.f32.gmra.mrb[0].mxu0 %v4156
        %v4625 = vpop.f32.mrb[0].mxu0
        %v4626 = vadd.f32 %v4351, %v4625
        %v4627 = vpop.f32.mrb[0].mxu0
        %v4628 = vadd.f32 %v4351, %v4627
        %4629 = vmatprep.mubr.f32.mxu0 %v4373
        %4630 = vmatmul.mubr.f32.gmra.mrb[0].mxu0 %v4158
        %v4631 = vpop.f32.mrb[0].mxu0
        %v4632 = vadd.f32 %v4356, %v4631
        %v4633 = vpop.f32.mrb[0].mxu0
        %v4634 = vadd.f32 %v4356, %v4633
        %4635 = vmatprep.mubr.f32.mxu0 %v4376
        %4636 = vmatmul.mubr.f32.gmra.mrb[0].mxu0 %v4160
        %v4637 = vpop.f32.mrb[0].mxu0
        %v4638 = vadd.f32 %v4361, %v4637
        %v4639 = vpop.f32.mrb[0].mxu0
        %v4640 = vadd.f32 %v4361, %v4639
        %4641 = vmatprep.mubr.f32.mxu0 %v4379
        %4642 = vmatmul.mubr.f32.gmra.mrb[0].mxu0 %v4162
        %v4643 = vpop.f32.mrb[0].mxu0
        %v4644 = vadd.f32 %v4366, %v4643
        %v4645 = vpop.f32.mrb[0].mxu0
        %v4646 = vadd.f32 %v4366, %v4645
        %4647 = vdwg.mxu0
        %4648 = vmatprep.subr.mxu0 %v4171
        %4649 = vmatpush1.msra.mxu0 %v4170
        %4650 = vmatprep.subr.mxu0 %v4181
        %4651 = vmatpush1.msra.mxu0 %v4180
        %4652 = vmatprep.subr.mxu0 %v4191
        %4653 = vmatpush1.msra.mxu0 %v4190
        %4654 = vmatprep.subr.mxu0 %v4201
        %4655 = vmatpush1.msra.mxu0 %v4200
        %4656 = vmatprep.subr.mxu0 %v4211
        %4657 = vmatpush1.msra.mxu0 %v4210
        %4658 = vmatprep.subr.mxu0 %v4221
        %4659 = vmatpush1.msra.mxu0 %v4220
        %4660 = vmatprep.subr.mxu0 %v4231
        %4661 = vmatpush1.msra.mxu0 %v4230
        %4662 = vmatprep.subr.mxu0 %v4241
        %4663 = vmatpush1.msra.mxu0 %v4240
        %4664 = vmatprep.subr.mxu0 %v4251
        %4665 = vmatpush1.msra.mxu0 %v4250
        %4666 = vmatprep.subr.mxu0 %v4261
        %4667 = vmatpush1.msra.mxu0 %v4260
        %4668 = vmatprep.subr.mxu0 %v4271
        %4669 = vmatpush1.msra.mxu0 %v4270
        %4670 = vmatprep.subr.mxu0 %v4281
        %4671 = vmatpush1.msra.mxu0 %v4280
        %4672 = vmatprep.subr.mxu0 %v4291
        %4673 = vmatpush1.msra.mxu0 %v4290
        %4674 = vmatprep.subr.mxu0 %v4301
        %4675 = vmatpush1.msra.mxu0 %v4300
        %4676 = vmatprep.subr.mxu0 %v4311
        %4677 = vmatpush1.msra.mxu0 %v4310
        %4678 = vmatprep.subr.mxu0 %v4321
        %4679 = vmatpush1.msra.mxu0 %v4320
        %4680 = vmatprep.subr.mxu0 %v4331
        %4681 = vmatpush1.msra.mxu0 %v4330
        %4682 = vmatprep.subr.mxu0 %v4341
        %4683 = vmatpush1.msra.mxu0 %v4340
        %4684 = vmatprep.subr.mxu0 0.0
        %4685 = vmatpush1.msra.mxu0 0.0
        %4686 = vmatprep.subr.mxu0 0.0
        %4687 = vmatpush1.msra.mxu0 0.0
        %4688 = vmatprep.subr.mxu0 0.0
        %4689 = vmatpush1.msra.mxu0 0.0
        %4690 = vmatprep.subr.mxu0 0.0
        %4691 = vmatpush1.msra.mxu0 0.0
        %4692 = vmatprep.subr.mxu0 0.0
        %4693 = vmatpush1.msra.mxu0 0.0
        %4694 = vmatprep.subr.mxu0 0.0
        %4695 = vmatpush1.msra.mxu0 0.0
        %4696 = vmatprep.subr.mxu0 0.0
        %4697 = vmatpush1.msra.mxu0 0.0
        %4698 = vmatprep.subr.mxu0 0.0
        %4699 = vmatpush1.msra.mxu0 0.0
        %4700 = vmatprep.subr.mxu0 0.0
        %4701 = vmatpush1.msra.mxu0 0.0
        %4702 = vmatprep.subr.mxu0 0.0
        %4703 = vmatpush1.msra.mxu0 0.0
        %4704 = vmatprep.subr.mxu0 0.0
        %4705 = vmatpush1.msra.mxu0 0.0
        %4706 = vmatprep.subr.mxu0 0.0
        %4707 = vmatpush1.msra.mxu0 0.0
        %4708 = vmatprep.subr.mxu0 0.0
        %4709 = vmatpush1.msra.mxu0 0.0
        %4710 = vmatprep.subr.mxu0 0.0
        %4711 = vmatpush1.msra.mxu0 0.0
        %4712 = vmatprep.mubr.f32.mxu0 %v4370
        %4713 = vmatmul.mubr.f32.gmra.mrb[0].mxu0 %v4156
        %v4714 = vpop.f32.mrb[0].mxu0
        %v4715 = vadd.f32 %v4351, %v4714
        %v4716 = vpop.f32.mrb[0].mxu0
        %v4717 = vadd.f32 %v4351, %v4716
        %4718 = vmatprep.mubr.f32.mxu0 %v4373
        %4719 = vmatmul.mubr.f32.gmra.mrb[0].mxu0 %v4158
        %v4720 = vpop.f32.mrb[0].mxu0
        %v4721 = vadd.f32 %v4356, %v4720
        %v4722 = vpop.f32.mrb[0].mxu0
        %v4723 = vadd.f32 %v4356, %v4722
        %4724 = vmatprep.mubr.f32.mxu0 %v4376
        %4725 = vmatmul.mubr.f32.gmra.mrb[0].mxu0 %v4160
        %v4726 = vpop.f32.mrb[0].mxu0
        %v4727 = vadd.f32 %v4361, %v4726
        %v4728 = vpop.f32.mrb[0].mxu0
        %v4729 = vadd.f32 %v4361, %v4728
        %4730 = vmatprep.mubr.f32.mxu0 %v4379
        %4731 = vmatmul.mubr.f32.gmra.mrb[0].mxu0 %v4162
        %v4732 = vpop.f32.mrb[0].mxu0
        %v4733 = vadd.f32 %v4366, %v4732
        %v4734 = vpop.f32.mrb[0].mxu0
        %v4735 = vadd.f32 %v4366, %v4734
        %4736 = vdwg.mxu0
        %4737 = vmatprep.subr.mxu0 %v4173
        %4738 = vmatpush1.msra.mxu0 %v4172
        %4739 = vmatprep.subr.mxu0 %v4183
        %4740 = vmatpush1.msra.mxu0 %v4182
        %4741 = vmatprep.subr.mxu0 %v4193
        %4742 = vmatpush1.msra.mxu0 %v4192
        %4743 = vmatprep.subr.mxu0 %v4203
        %4744 = vmatpush1.msra.mxu0 %v4202
        %4745 = vmatprep.subr.mxu0 %v4213
        %4746 = vmatpush1.msra.mxu0 %v4212
        %4747 = vmatprep.subr.mxu0 %v4223
        %4748 = vmatpush1.msra.mxu0 %v4222
        %4749 = vmatprep.subr.mxu0 %v4233
        %4750 = vmatpush1.msra.mxu0 %v4232
        %4751 = vmatprep.subr.mxu0 %v4243
        %4752 = vmatpush1.msra.mxu0 %v4242
        %4753 = vmatprep.subr.mxu0 %v4253
        %4754 = vmatpush1.msra.mxu0 %v4252
        %4755 = vmatprep.subr.mxu0 %v4263
        %4756 = vmatpush1.msra.mxu0 %v4262
        %4757 = vmatprep.subr.mxu0 %v4273
        %4758 = vmatpush1.msra.mxu0 %v4272
        %4759 = vmatprep.subr.mxu0 %v4283
        %4760 = vmatpush1.msra.mxu0 %v4282
        %4761 = vmatprep.subr.mxu0 %v4293
        %4762 = vmatpush1.msra.mxu0 %v4292
        %4763 = vmatprep.subr.mxu0 %v4303
        %4764 = vmatpush1.msra.mxu0 %v4302
        %4765 = vmatprep.subr.mxu0 %v4313
        %4766 = vmatpush1.msra.mxu0 %v4312
        %4767 = vmatprep.subr.mxu0 %v4323
        %4768 = vmatpush1.msra.mxu0 %v4322
        %4769 = vmatprep.subr.mxu0 %v4333
        %4770 = vmatpush1.msra.mxu0 %v4332
        %4771 = vmatprep.subr.mxu0 %v4343
        %4772 = vmatpush1.msra.mxu0 %v4342
        %4773 = vmatprep.subr.mxu0 0.0
        %4774 = vmatpush1.msra.mxu0 0.0
        %4775 = vmatprep.subr.mxu0 0.0
        %4776 = vmatpush1.msra.mxu0 0.0
        %4777 = vmatprep.subr.mxu0 0.0
        %4778 = vmatpush1.msra.mxu0 0.0
        %4779 = vmatprep.subr.mxu0 0.0
        %4780 = vmatpush1.msra.mxu0 0.0
        %4781 = vmatprep.subr.mxu0 0.0
        %4782 = vmatpush1.msra.mxu0 0.0
        %4783 = vmatprep.subr.mxu0 0.0
        %4784 = vmatpush1.msra.mxu0 0.0
        %4785 = vmatprep.subr.mxu0 0.0
        %4786 = vmatpush1.msra.mxu0 0.0
        %4787 = vmatprep.subr.mxu0 0.0
        %4788 = vmatpush1.msra.mxu0 0.0
        %4789 = vmatprep.subr.mxu0 0.0
        %4790 = vmatpush1.msra.mxu0 0.0
        %4791 = vmatprep.subr.mxu0 0.0
        %4792 = vmatpush1.msra.mxu0 0.0
        %4793 = vmatprep.subr.mxu0 0.0
        %4794 = vmatpush1.msra.mxu0 0.0
        %4795 = vmatprep.subr.mxu0 0.0
        %4796 = vmatpush1.msra.mxu0 0.0
        %4797 = vmatprep.subr.mxu0 0.0
        %4798 = vmatpush1.msra.mxu0 0.0
        %4799 = vmatprep.subr.mxu0 0.0
        %4800 = vmatpush1.msra.mxu0 0.0
        %4801 = vmatprep.mubr.f32.mxu0 %v4370
        %4802 = vmatmul.mubr.f32.gmra.mrb[0].mxu0 %v4156
        %v4803 = vpop.f32.mrb[0].mxu0
        %v4804 = vadd.f32 %v4351, %v4803
        %v4805 = vpop.f32.mrb[0].mxu0
        %v4806 = vadd.f32 %v4351, %v4805
        %4807 = vmatprep.mubr.f32.mxu0 %v4373
        %4808 = vmatmul.mubr.f32.gmra.mrb[0].mxu0 %v4158
        %v4809 = vpop.f32.mrb[0].mxu0
        %v4810 = vadd.f32 %v4356, %v4809
        %v4811 = vpop.f32.mrb[0].mxu0
        %v4812 = vadd.f32 %v4356, %v4811
        %4813 = vmatprep.mubr.f32.mxu0 %v4376
        %4814 = vmatmul.mubr.f32.gmra.mrb[0].mxu0 %v4160
        %v4815 = vpop.f32.mrb[0].mxu0
        %v4816 = vadd.f32 %v4361, %v4815
        %v4817 = vpop.f32.mrb[0].mxu0
        %v4818 = vadd.f32 %v4361, %v4817
        %4819 = vmatprep.mubr.f32.mxu0 %v4379
        %4820 = vmatmul.mubr.f32.gmra.mrb[0].mxu0 %v4162
        %v4821 = vpop.f32.mrb[0].mxu0
        %v4822 = vadd.f32 %v4366, %v4821
        %v4823 = vpop.f32.mrb[0].mxu0
        %v4824 = vadd.f32 %v4366, %v4823
        %4825 = vdwg.mxu0
        %v4826 = vmul.f32 %v4448, 0.5
        %v4827 = vmul.f32 %v4450, 0.5
        %v4828 = vmul.f32 %v4537, 0.5
        %v4829 = vmul.f32 %v4539, 0.5
        %v4830 = vmul.f32 %v4626, 0.5
        %v4831 = vmul.f32 %v4628, 0.5
        %v4832 = vmul.f32 %v4715, 0.5
        %v4833 = vmul.f32 %v4717, 0.5
        %v4834 = vmul.f32 %v4804, 0.5
        %v4835 = vmul.f32 %v4806, 0.5
        %v4836 = vmul.f32 %v4454, 0.5
        %v4837 = vmul.f32 %v4456, 0.5
        %v4838 = vmul.f32 %v4543, 0.5
        %v4839 = vmul.f32 %v4545, 0.5
        %v4840 = vmul.f32 %v4632, 0.5
        %v4841 = vmul.f32 %v4634, 0.5
        %v4842 = vmul.f32 %v4721, 0.5
        %v4843 = vmul.f32 %v4723, 0.5
        %v4844 = vmul.f32 %v4810, 0.5
        %v4845 = vmul.f32 %v4812, 0.5
        %v4846 = vmul.f32 %v4460, 0.5
        %v4847 = vmul.f32 %v4462, 0.5
        %v4848 = vmul.f32 %v4549, 0.5
        %v4849 = vmul.f32 %v4551, 0.5
        %v4850 = vmul.f32 %v4638, 0.5
        %v4851 = vmul.f32 %v4640, 0.5
        %v4852 = vmul.f32 %v4727, 0.5
        %v4853 = vmul.f32 %v4729, 0.5
        %v4854 = vmul.f32 %v4816, 0.5
        %v4855 = vmul.f32 %v4818, 0.5
        %v4856 = vmul.f32 %v4466, 0.5
        %v4857 = vmul.f32 %v4468, 0.5
        %v4858 = vmul.f32 %v4555, 0.5
        %v4859 = vmul.f32 %v4557, 0.5
        %v4860 = vmul.f32 %v4644, 0.5
        %v4861 = vmul.f32 %v4646, 0.5
        %v4862 = vmul.f32 %v4733, 0.5
        %v4863 = vmul.f32 %v4735, 0.5
        %v4864 = vmul.f32 %v4822, 0.5
        %v4865 = vmul.f32 %v4824, 0.5
        %v4866 = vmul.f32 %v4448, 0.044715
        %v4867 = vmul.f32 %v4450, 0.044715
        %v4868 = vmul.f32 %v4537, 0.044715
        %v4869 = vmul.f32 %v4539, 0.044715
        %v4870 = vmul.f32 %v4626, 0.044715
        %v4871 = vmul.f32 %v4628, 0.044715
        %v4872 = vmul.f32 %v4715, 0.044715
        %v4873 = vmul.f32 %v4717, 0.044715
        %v4874 = vmul.f32 %v4804, 0.044715
        %v4875 = vmul.f32 %v4806, 0.044715
        %v4876 = vmul.f32 %v4454, 0.044715
        %v4877 = vmul.f32 %v4456, 0.044715
        %v4878 = vmul.f32 %v4543, 0.044715
        %v4879 = vmul.f32 %v4545, 0.044715
        %v4880 = vmul.f32 %v4632, 0.044715
        %v4881 = vmul.f32 %v4634, 0.044715
        %v4882 = vmul.f32 %v4721, 0.044715
        %v4883 = vmul.f32 %v4723, 0.044715
        %v4884 = vmul.f32 %v4810, 0.044715
        %v4885 = vmul.f32 %v4812, 0.044715
        %v4886 = vmul.f32 %v4460, 0.044715
        %v4887 = vmul.f32 %v4462, 0.044715
        %v4888 = vmul.f32 %v4549, 0.044715
        %v4889 = vmul.f32 %v4551, 0.044715
        %v4890 = vmul.f32 %v4638, 0.044715
        %v4891 = vmul.f32 %v4640, 0.044715
        %v4892 = vmul.f32 %v4727, 0.044715
        %v4893 = vmul.f32 %v4729, 0.044715
        %v4894 = vmul.f32 %v4816, 0.044715
        %v4895 = vmul.f32 %v4818, 0.044715
        %v4896 = vmul.f32 %v4466, 0.044715
        %v4897 = vmul.f32 %v4468, 0.044715
        %v4898 = vmul.f32 %v4555, 0.044715
        %v4899 = vmul.f32 %v4557, 0.044715
        %v4900 = vmul.f32 %v4644, 0.044715
        %v4901 = vmul.f32 %v4646, 0.044715
        %v4902 = vmul.f32 %v4733, 0.044715
        %v4903 = vmul.f32 %v4735, 0.044715
        %v4904 = vmul.f32 %v4822, 0.044715
        %v4905 = vmul.f32 %v4824, 0.044715
        %v4906 = vmul.f32 %v4866, %v4448
        %v4907 = vmul.f32 %v4867, %v4450
        %v4908 = vmul.f32 %v4868, %v4537
        %v4909 = vmul.f32 %v4869, %v4539
        %v4910 = vmul.f32 %v4870, %v4626
        %v4911 = vmul.f32 %v4871, %v4628
        %v4912 = vmul.f32 %v4872, %v4715
        %v4913 = vmul.f32 %v4873, %v4717
        %v4914 = vmul.f32 %v4874, %v4804
        %v4915 = vmul.f32 %v4875, %v4806
        %v4916 = vmul.f32 %v4876, %v4454
        %v4917 = vmul.f32 %v4877, %v4456
        %v4918 = vmul.f32 %v4878, %v4543
        %v4919 = vmul.f32 %v4879, %v4545
        %v4920 = vmul.f32 %v4880, %v4632
        %v4921 = vmul.f32 %v4881, %v4634
        %v4922 = vmul.f32 %v4882, %v4721
        %v4923 = vmul.f32 %v4883, %v4723
        %v4924 = vmul.f32 %v4884, %v4810
        %v4925 = vmul.f32 %v4885, %v4812
        %v4926 = vmul.f32 %v4886, %v4460
        %v4927 = vmul.f32 %v4887, %v4462
        %v4928 = vmul.f32 %v4888, %v4549
        %v4929 = vmul.f32 %v4889, %v4551
        %v4930 = vmul.f32 %v4890, %v4638
        %v4931 = vmul.f32 %v4891, %v4640
        %v4932 = vmul.f32 %v4892, %v4727
        %v4933 = vmul.f32 %v4893, %v4729
        %v4934 = vmul.f32 %v4894, %v4816
        %v4935 = vmul.f32 %v4895, %v4818
        %v4936 = vmul.f32 %v4896, %v4466
        %v4937 = vmul.f32 %v4897, %v4468
        %v4938 = vmul.f32 %v4898, %v4555
        %v4939 = vmul.f32 %v4899, %v4557
        %v4940 = vmul.f32 %v4900, %v4644
        %v4941 = vmul.f32 %v4901, %v4646
        %v4942 = vmul.f32 %v4902, %v4733
        %v4943 = vmul.f32 %v4903, %v4735
        %v4944 = vmul.f32 %v4904, %v4822
        %v4945 = vmul.f32 %v4905, %v4824
        %v4946 = vmul.f32 %v4906, %v4448
        %v4947 = vmul.f32 %v4907, %v4450
        %v4948 = vmul.f32 %v4908, %v4537
        %v4949 = vmul.f32 %v4909, %v4539
        %v4950 = vmul.f32 %v4910, %v4626
        %v4951 = vmul.f32 %v4911, %v4628
        %v4952 = vmul.f32 %v4912, %v4715
        %v4953 = vmul.f32 %v4913, %v4717
        %v4954 = vmul.f32 %v4914, %v4804
        %v4955 = vmul.f32 %v4915, %v4806
        %v4956 = vmul.f32 %v4916, %v4454
        %v4957 = vmul.f32 %v4917, %v4456
        %v4958 = vmul.f32 %v4918, %v4543
        %v4959 = vmul.f32 %v4919, %v4545
        %v4960 = vmul.f32 %v4920, %v4632
        %v4961 = vmul.f32 %v4921, %v4634
        %v4962 = vmul.f32 %v4922, %v4721
        %v4963 = vmul.f32 %v4923, %v4723
        %v4964 = vmul.f32 %v4924, %v4810
        %v4965 = vmul.f32 %v4925, %v4812
        %v4966 = vmul.f32 %v4926, %v4460
        %v4967 = vmul.f32 %v4927, %v4462
        %v4968 = vmul.f32 %v4928, %v4549
        %v4969 = vmul.f32 %v4929, %v4551
        %v4970 = vmul.f32 %v4930, %v4638
        %v4971 = vmul.f32 %v4931, %v4640
        %v4972 = vmul.f32 %v4932, %v4727
        %v4973 = vmul.f32 %v4933, %v4729
        %v4974 = vmul.f32 %v4934, %v4816
        %v4975 = vmul.f32 %v4935, %v4818
        %v4976 = vmul.f32 %v4936, %v4466
        %v4977 = vmul.f32 %v4937, %v4468
        %v4978 = vmul.f32 %v4938, %v4555
        %v4979 = vmul.f32 %v4939, %v4557
        %v4980 = vmul.f32 %v4940, %v4644
        %v4981 = vmul.f32 %v4941, %v4646
        %v4982 = vmul.f32 %v4942, %v4733
        %v4983 = vmul.f32 %v4943, %v4735
        %v4984 = vmul.f32 %v4944, %v4822
        %v4985 = vmul.f32 %v4945, %v4824
        %v4986 = vadd.f32 %v4448, %v4946
        %v4987 = vadd.f32 %v4450, %v4947
        %v4988 = vadd.f32 %v4537, %v4948
        %v4989 = vadd.f32 %v4539, %v4949
        %v4990 = vadd.f32 %v4626, %v4950
        %v4991 = vadd.f32 %v4628, %v4951
        %v4992 = vadd.f32 %v4715, %v4952
        %v4993 = vadd.f32 %v4717, %v4953
        %v4994 = vadd.f32 %v4804, %v4954
        %v4995 = vadd.f32 %v4806, %v4955
        %v4996 = vadd.f32 %v4454, %v4956
        %v4997 = vadd.f32 %v4456, %v4957
        %v4998 = vadd.f32 %v4543, %v4958
        %v4999 = vadd.f32 %v4545, %v4959
        %v5000 = vadd.f32 %v4632, %v4960
        %v5001 = vadd.f32 %v4634, %v4961
        %v5002 = vadd.f32 %v4721, %v4962
        %v5003 = vadd.f32 %v4723, %v4963
        %v5004 = vadd.f32 %v4810, %v4964
        %v5005 = vadd.f32 %v4812, %v4965
        %v5006 = vadd.f32 %v4460, %v4966
        %v5007 = vadd.f32 %v4462, %v4967
        %v5008 = vadd.f32 %v4549, %v4968
        %v5009 = vadd.f32 %v4551, %v4969
        %v5010 = vadd.f32 %v4638, %v4970
        %v5011 = vadd.f32 %v4640, %v4971
        %v5012 = vadd.f32 %v4727, %v4972
        %v5013 = vadd.f32 %v4729, %v4973
        %v5014 = vadd.f32 %v4816, %v4974
        %v5015 = vadd.f32 %v4818, %v4975
        %v5016 = vadd.f32 %v4466, %v4976
        %v5017 = vadd.f32 %v4468, %v4977
        %v5018 = vadd.f32 %v4555, %v4978
        %v5019 = vadd.f32 %v4557, %v4979
        %v5020 = vadd.f32 %v4644, %v4980
        %v5021 = vadd.f32 %v4646, %v4981
        %v5022 = vadd.f32 %v4733, %v4982
        %v5023 = vadd.f32 %v4735, %v4983
        %v5024 = vadd.f32 %v4822, %v4984
        %v5025 = vadd.f32 %v4824, %v4985
        %v5026 = vmul.f32 %v4986, 0.7978846
        %v5027 = vmul.f32 %v4987, 0.7978846
        %v5028 = vmul.f32 %v4988, 0.7978846
        %v5029 = vmul.f32 %v4989, 0.7978846
        %v5030 = vmul.f32 %v4990, 0.7978846
        %v5031 = vmul.f32 %v4991, 0.7978846
        %v5032 = vmul.f32 %v4992, 0.7978846
        %v5033 = vmul.f32 %v4993, 0.7978846
        %v5034 = vmul.f32 %v4994, 0.7978846
        %v5035 = vmul.f32 %v4995, 0.7978846
        %v5036 = vmul.f32 %v4996, 0.7978846
        %v5037 = vmul.f32 %v4997, 0.7978846
        %v5038 = vmul.f32 %v4998, 0.7978846
        %v5039 = vmul.f32 %v4999, 0.7978846
        %v5040 = vmul.f32 %v5000, 0.7978846
        %v5041 = vmul.f32 %v5001, 0.7978846
        %v5042 = vmul.f32 %v5002, 0.7978846
        %v5043 = vmul.f32 %v5003, 0.7978846
        %v5044 = vmul.f32 %v5004, 0.7978846
        %v5045 = vmul.f32 %v5005, 0.7978846
        %v5046 = vmul.f32 %v5006, 0.7978846
        %v5047 = vmul.f32 %v5007, 0.7978846
        %v5048 = vmul.f32 %v5008, 0.7978846
        %v5049 = vmul.f32 %v5009, 0.7978846
        %v5050 = vmul.f32 %v5010, 0.7978846
        %v5051 = vmul.f32 %v5011, 0.7978846
        %v5052 = vmul.f32 %v5012, 0.7978846
        %v5053 = vmul.f32 %v5013, 0.7978846
        %v5054 = vmul.f32 %v5014, 0.7978846
        %v5055 = vmul.f32 %v5015, 0.7978846
        %v5056 = vmul.f32 %v5016, 0.7978846
        %v5057 = vmul.f32 %v5017, 0.7978846
        %v5058 = vmul.f32 %v5018, 0.7978846
        %v5059 = vmul.f32 %v5019, 0.7978846
        %v5060 = vmul.f32 %v5020, 0.7978846
        %v5061 = vmul.f32 %v5021, 0.7978846
        %v5062 = vmul.f32 %v5022, 0.7978846
        %v5063 = vmul.f32 %v5023, 0.7978846
        %v5064 = vmul.f32 %v5024, 0.7978846
        %v5065 = vmul.f32 %v5025, 0.7978846
        %v5066 = vtanh.pop %v5026
        %v5067 = vtanh.pop %v5027
        %v5068 = vtanh.pop %v5028
        %v5069 = vtanh.pop %v5029
        %v5070 = vtanh.pop %v5030
        %v5071 = vtanh.pop %v5031
        %v5072 = vtanh.pop %v5032
        %v5073 = vtanh.pop %v5033
        %v5074 = vtanh.pop %v5034
        %v5075 = vtanh.pop %v5035
        %v5076 = vtanh.pop %v5036
        %v5077 = vtanh.pop %v5037
        %v5078 = vtanh.pop %v5038
        %v5079 = vtanh.pop %v5039
        %v5080 = vtanh.pop %v5040
        %v5081 = vtanh.pop %v5041
        %v5082 = vtanh.pop %v5042
        %v5083 = vtanh.pop %v5043
        %v5084 = vtanh.pop %v5044
        %v5085 = vtanh.pop %v5045
        %v5086 = vtanh.pop %v5046
        %v5087 = vtanh.pop %v5047
        %v5088 = vtanh.pop %v5048
        %v5089 = vtanh.pop %v5049
        %v5090 = vtanh.pop %v5050
        %v5091 = vtanh.pop %v5051
        %v5092 = vtanh.pop %v5052
        %v5093 = vtanh.pop %v5053
        %v5094 = vtanh.pop %v5054
        %v5095 = vtanh.pop %v5055
        %v5096 = vtanh.pop %v5056
        %v5097 = vtanh.pop %v5057
        %v5098 = vtanh.pop %v5058
        %v5099 = vtanh.pop %v5059
        %v5100 = vtanh.pop %v5060
        %v5101 = vtanh.pop %v5061
        %v5102 = vtanh.pop %v5062
        %v5103 = vtanh.pop %v5063
        %v5104 = vtanh.pop %v5064
        %v5105 = vtanh.pop %v5065
        %v5106 = vadd.f32 %v5066, 1.0
        %v5107 = vadd.f32 %v5067, 1.0
        %v5108 = vadd.f32 %v5068, 1.0
        %v5109 = vadd.f32 %v5069, 1.0
        %v5110 = vadd.f32 %v5070, 1.0
        %v5111 = vadd.f32 %v5071, 1.0
        %v5112 = vadd.f32 %v5072, 1.0
        %v5113 = vadd.f32 %v5073, 1.0
        %v5114 = vadd.f32 %v5074, 1.0
        %v5115 = vadd.f32 %v5075, 1.0
        %v5116 = vadd.f32 %v5076, 1.0
        %v5117 = vadd.f32 %v5077, 1.0
        %v5118 = vadd.f32 %v5078, 1.0
        %v5119 = vadd.f32 %v5079, 1.0
        %v5120 = vadd.f32 %v5080, 1.0
        %v5121 = vadd.f32 %v5081, 1.0
        %v5122 = vadd.f32 %v5082, 1.0
        %v5123 = vadd.f32 %v5083, 1.0
        %v5124 = vadd.f32 %v5084, 1.0
        %v5125 = vadd.f32 %v5085, 1.0
        %v5126 = vadd.f32 %v5086, 1.0
        %v5127 = vadd.f32 %v5087, 1.0
        %v5128 = vadd.f32 %v5088, 1.0
        %v5129 = vadd.f32 %v5089, 1.0
        %v5130 = vadd.f32 %v5090, 1.0
        %v5131 = vadd.f32 %v5091, 1.0
        %v5132 = vadd.f32 %v5092, 1.0
        %v5133 = vadd.f32 %v5093, 1.0
        %v5134 = vadd.f32 %v5094, 1.0
        %v5135 = vadd.f32 %v5095, 1.0
        %v5136 = vadd.f32 %v5096, 1.0
        %v5137 = vadd.f32 %v5097, 1.0
        %v5138 = vadd.f32 %v5098, 1.0
        %v5139 = vadd.f32 %v5099, 1.0
        %v5140 = vadd.f32 %v5100, 1.0
        %v5141 = vadd.f32 %v5101, 1.0
        %v5142 = vadd.f32 %v5102, 1.0
        %v5143 = vadd.f32 %v5103, 1.0
        %v5144 = vadd.f32 %v5104, 1.0
        %v5145 = vadd.f32 %v5105, 1.0
        %v5146 = vmul.f32 %v4826, %v5106
        %v5147 = vmul.f32 %v4827, %v5107
        %v5148 = vmul.f32 %v4828, %v5108
        %v5149 = vmul.f32 %v4829, %v5109
        %v5150 = vmul.f32 %v4830, %v5110
        %v5151 = vmul.f32 %v4831, %v5111
        %v5152 = vmul.f32 %v4832, %v5112
        %v5153 = vmul.f32 %v4833, %v5113
        %v5154 = vmul.f32 %v4834, %v5114
        %v5155 = vmul.f32 %v4835, %v5115
        %v5156 = vmul.f32 %v4836, %v5116
        %v5157 = vmul.f32 %v4837, %v5117
        %v5158 = vmul.f32 %v4838, %v5118
        %v5159 = vmul.f32 %v4839, %v5119
        %v5160 = vmul.f32 %v4840, %v5120
        %v5161 = vmul.f32 %v4841, %v5121
        %v5162 = vmul.f32 %v4842, %v5122
        %v5163 = vmul.f32 %v4843, %v5123
        %v5164 = vmul.f32 %v4844, %v5124
        %v5165 = vmul.f32 %v4845, %v5125
        %v5166 = vmul.f32 %v4846, %v5126
        %v5167 = vmul.f32 %v4847, %v5127
        %v5168 = vmul.f32 %v4848, %v5128
        %v5169 = vmul.f32 %v4849, %v5129
        %v5170 = vmul.f32 %v4850, %v5130
        %v5171 = vmul.f32 %v4851, %v5131
        %v5172 = vmul.f32 %v4852, %v5132
        %v5173 = vmul.f32 %v4853, %v5133
        %v5174 = vmul.f32 %v4854, %v5134
        %v5175 = vmul.f32 %v4855, %v5135
        %v5176 = vmul.f32 %v4856, %v5136
        %v5177 = vmul.f32 %v4857, %v5137
        %v5178 = vmul.f32 %v4858, %v5138
        %v5179 = vmul.f32 %v4859, %v5139
        %v5180 = vmul.f32 %v4860, %v5140
        %v5181 = vmul.f32 %v4861, %v5141
        %v5182 = vmul.f32 %v4862, %v5142
        %v5183 = vmul.f32 %v4863, %v5143
        %v5184 = vmul.f32 %v4864, %v5144
        %v5185 = vmul.f32 %v4865, %v5145
        %v5186 = vld [vmem:[#allocation23] sm:$0x7]
        %v5187 = vld [vmem:[%s15] sm:$0x7]
        %5189 = vset.pattern.permute.xlu0 0
        %5190 = vperm.xlu0 %5189, %v5187
        %v5191 = vpop.permute.xlu0 %5190
        %v5194 = vsel %vm707, %v5186, 0
        %5196 = vmatprep.subr.mxu0 %v5147
        %5197 = vmatpush1.msra.mxu0 %v5146
        %5198 = vmatprep.subr.mxu0 %v5157
        %5199 = vmatpush1.msra.mxu0 %v5156
        %5200 = vmatprep.subr.mxu0 %v5167
        %5201 = vmatpush1.msra.mxu0 %v5166
        %5202 = vmatprep.subr.mxu0 %v5177
        %5203 = vmatpush1.msra.mxu0 %v5176
        %5204 = vmatprep.subr.mxu0 0.0
        %5205 = vmatpush1.msra.mxu0 0.0
        %5206 = vmatprep.subr.mxu0 0.0
        %5207 = vmatpush1.msra.mxu0 0.0
        %5208 = vmatprep.subr.mxu0 0.0
        %5209 = vmatpush1.msra.mxu0 0.0
        %5210 = vmatprep.subr.mxu0 0.0
        %5211 = vmatpush1.msra.mxu0 0.0
        %5212 = vmatprep.subr.mxu0 0.0
        %5213 = vmatpush1.msra.mxu0 0.0
        %5214 = vmatprep.subr.mxu0 0.0
        %5215 = vmatpush1.msra.mxu0 0.0
        %5216 = vmatprep.subr.mxu0 0.0
        %5217 = vmatpush1.msra.mxu0 0.0
        %5218 = vmatprep.subr.mxu0 0.0
        %5219 = vmatpush1.msra.mxu0 0.0
        %5220 = vmatprep.subr.mxu0 0.0
        %5221 = vmatpush1.msra.mxu0 0.0
        %5222 = vmatprep.subr.mxu0 0.0
        %5223 = vmatpush1.msra.mxu0 0.0
        %5224 = vmatprep.subr.mxu0 0.0
        %5225 = vmatpush1.msra.mxu0 0.0
        %5226 = vmatprep.subr.mxu0 0.0
        %5227 = vmatpush1.msra.mxu0 0.0
        %5228 = vmatprep.subr.mxu0 0.0
        %5229 = vmatpush1.msra.mxu0 0.0
        %5230 = vmatprep.subr.mxu0 0.0
        %5231 = vmatpush1.msra.mxu0 0.0
        %5232 = vmatprep.subr.mxu0 0.0
        %5233 = vmatpush1.msra.mxu0 0.0
        %5234 = vmatprep.subr.mxu0 0.0
        %5235 = vmatpush1.msra.mxu0 0.0
        %5236 = vmatprep.subr.mxu0 0.0
        %5237 = vmatpush1.msra.mxu0 0.0
        %5238 = vmatprep.subr.mxu0 0.0
        %5239 = vmatpush1.msra.mxu0 0.0
        %5240 = vmatprep.subr.mxu0 0.0
        %5241 = vmatpush1.msra.mxu0 0.0
        %5242 = vmatprep.subr.mxu0 0.0
        %5243 = vmatpush1.msra.mxu0 0.0
        %5244 = vmatprep.subr.mxu0 0.0
        %5245 = vmatpush1.msra.mxu0 0.0
        %5246 = vmatprep.subr.mxu0 0.0
        %5247 = vmatpush1.msra.mxu0 0.0
        %5248 = vmatprep.subr.mxu0 0.0
        %5249 = vmatpush1.msra.mxu0 0.0
        %5250 = vmatprep.subr.mxu0 0.0
        %5251 = vmatpush1.msra.mxu0 0.0
        %5252 = vmatprep.subr.mxu0 0.0
        %5253 = vmatpush1.msra.mxu0 0.0
        %5254 = vmatprep.subr.mxu0 0.0
        %5255 = vmatpush1.msra.mxu0 0.0
        %5256 = vmatprep.subr.mxu0 0.0
        %5257 = vmatpush1.msra.mxu0 0.0
        %5258 = vmatprep.subr.mxu0 0.0
        %5259 = vmatpush1.msra.mxu0 0.0
        %5260 = vmatprep.mubr.f32.mxu0 0.0
        %5261 = vmatmul.mubr.f32.gmra.mrb[0].mxu0 %v5194
        %v5262 = vpop.f32.mrb[0].mxu0
        %v5263 = vadd.f32 %v5191, %v5262
        %v5264 = vpop.f32.mrb[0].mxu0
        %v5265 = vadd.f32 %v5191, %v5264
        %5266 = vdwg.mxu0
        %5267 = vmatprep.subr.mxu0 %v5149
        %5268 = vmatpush1.msra.mxu0 %v5148
        %5269 = vmatprep.subr.mxu0 %v5159
        %5270 = vmatpush1.msra.mxu0 %v5158
        %5271 = vmatprep.subr.mxu0 %v5169
        %5272 = vmatpush1.msra.mxu0 %v5168
        %5273 = vmatprep.subr.mxu0 %v5179
        %5274 = vmatpush1.msra.mxu0 %v5178
        %5275 = vmatprep.subr.mxu0 0.0
        %5276 = vmatpush1.msra.mxu0 0.0
        %5277 = vmatprep.subr.mxu0 0.0
        %5278 = vmatpush1.msra.mxu0 0.0
        %5279 = vmatprep.subr.mxu0 0.0
        %5280 = vmatpush1.msra.mxu0 0.0
        %5281 = vmatprep.subr.mxu0 0.0
        %5282 = vmatpush1.msra.mxu0 0.0
        %5283 = vmatprep.subr.mxu0 0.0
        %5284 = vmatpush1.msra.mxu0 0.0
        %5285 = vmatprep.subr.mxu0 0.0
        %5286 = vmatpush1.msra.mxu0 0.0
        %5287 = vmatprep.subr.mxu0 0.0
        %5288 = vmatpush1.msra.mxu0 0.0
        %5289 = vmatprep.subr.mxu0 0.0
        %5290 = vmatpush1.msra.mxu0 0.0
        %5291 = vmatprep.subr.mxu0 0.0
        %5292 = vmatpush1.msra.mxu0 0.0
        %5293 = vmatprep.subr.mxu0 0.0
        %5294 = vmatpush1.msra.mxu0 0.0
        %5295 = vmatprep.subr.mxu0 0.0
        %5296 = vmatpush1.msra.mxu0 0.0
        %5297 = vmatprep.subr.mxu0 0.0
        %5298 = vmatpush1.msra.mxu0 0.0
        %5299 = vmatprep.subr.mxu0 0.0
        %5300 = vmatpush1.msra.mxu0 0.0
        %5301 = vmatprep.subr.mxu0 0.0
        %5302 = vmatpush1.msra.mxu0 0.0
        %5303 = vmatprep.subr.mxu0 0.0
        %5304 = vmatpush1.msra.mxu0 0.0
        %5305 = vmatprep.subr.mxu0 0.0
        %5306 = vmatpush1.msra.mxu0 0.0
        %5307 = vmatprep.subr.mxu0 0.0
        %5308 = vmatpush1.msra.mxu0 0.0
        %5309 = vmatprep.subr.mxu0 0.0
        %5310 = vmatpush1.msra.mxu0 0.0
        %5311 = vmatprep.subr.mxu0 0.0
        %5312 = vmatpush1.msra.mxu0 0.0
        %5313 = vmatprep.subr.mxu0 0.0
        %5314 = vmatpush1.msra.mxu0 0.0
        %5315 = vmatprep.subr.mxu0 0.0
        %5316 = vmatpush1.msra.mxu0 0.0
        %5317 = vmatprep.subr.mxu0 0.0
        %5318 = vmatpush1.msra.mxu0 0.0
        %5319 = vmatprep.subr.mxu0 0.0
        %5320 = vmatpush1.msra.mxu0 0.0
        %5321 = vmatprep.subr.mxu0 0.0
        %5322 = vmatpush1.msra.mxu0 0.0
        %5323 = vmatprep.subr.mxu0 0.0
        %5324 = vmatpush1.msra.mxu0 0.0
        %5325 = vmatprep.subr.mxu0 0.0
        %5326 = vmatpush1.msra.mxu0 0.0
        %5327 = vmatprep.subr.mxu0 0.0
        %5328 = vmatpush1.msra.mxu0 0.0
        %5329 = vmatprep.subr.mxu0 0.0
        %5330 = vmatpush1.msra.mxu0 0.0
        %5331 = vmatprep.mubr.f32.mxu0 0.0
        %5332 = vmatmul.mubr.f32.gmra.mrb[0].mxu0 %v5194
        %v5333 = vpop.f32.mrb[0].mxu0
        %v5334 = vadd.f32 %v5191, %v5333
        %v5335 = vpop.f32.mrb[0].mxu0
        %v5336 = vadd.f32 %v5191, %v5335
        %5337 = vdwg.mxu0
        %5338 = vmatprep.subr.mxu0 %v5151
        %5339 = vmatpush1.msra.mxu0 %v5150
        %5340 = vmatprep.subr.mxu0 %v5161
        %5341 = vmatpush1.msra.mxu0 %v5160
        %5342 = vmatprep.subr.mxu0 %v5171
        %5343 = vmatpush1.msra.mxu0 %v5170
        %5344 = vmatprep.subr.mxu0 %v5181
        %5345 = vmatpush1.msra.mxu0 %v5180
        %5346 = vmatprep.subr.mxu0 0.0
        %5347 = vmatpush1.msra.mxu0 0.0
        %5348 = vmatprep.subr.mxu0 0.0
        %5349 = vmatpush1.msra.mxu0 0.0
        %5350 = vmatprep.subr.mxu0 0.0
        %5351 = vmatpush1.msra.mxu0 0.0
        %5352 = vmatprep.subr.mxu0 0.0
        %5353 = vmatpush1.msra.mxu0 0.0
        %5354 = vmatprep.subr.mxu0 0.0
        %5355 = vmatpush1.msra.mxu0 0.0
        %5356 = vmatprep.subr.mxu0 0.0
        %5357 = vmatpush1.msra.mxu0 0.0
        %5358 = vmatprep.subr.mxu0 0.0
        %5359 = vmatpush1.msra.mxu0 0.0
        %5360 = vmatprep.subr.mxu0 0.0
        %5361 = vmatpush1.msra.mxu0 0.0
        %5362 = vmatprep.subr.mxu0 0.0
        %5363 = vmatpush1.msra.mxu0 0.0
        %5364 = vmatprep.subr.mxu0 0.0
        %5365 = vmatpush1.msra.mxu0 0.0
        %5366 = vmatprep.subr.mxu0 0.0
        %5367 = vmatpush1.msra.mxu0 0.0
        %5368 = vmatprep.subr.mxu0 0.0
        %5369 = vmatpush1.msra.mxu0 0.0
        %5370 = vmatprep.subr.mxu0 0.0
        %5371 = vmatpush1.msra.mxu0 0.0
        %5372 = vmatprep.subr.mxu0 0.0
        %5373 = vmatpush1.msra.mxu0 0.0
        %5374 = vmatprep.subr.mxu0 0.0
        %5375 = vmatpush1.msra.mxu0 0.0
        %5376 = vmatprep.subr.mxu0 0.0
        %5377 = vmatpush1.msra.mxu0 0.0
        %5378 = vmatprep.subr.mxu0 0.0
        %5379 = vmatpush1.msra.mxu0 0.0
        %5380 = vmatprep.subr.mxu0 0.0
        %5381 = vmatpush1.msra.mxu0 0.0
        %5382 = vmatprep.subr.mxu0 0.0
        %5383 = vmatpush1.msra.mxu0 0.0
        %5384 = vmatprep.subr.mxu0 0.0
        %5385 = vmatpush1.msra.mxu0 0.0
        %5386 = vmatprep.subr.mxu0 0.0
        %5387 = vmatpush1.msra.mxu0 0.0
        %5388 = vmatprep.subr.mxu0 0.0
        %5389 = vmatpush1.msra.mxu0 0.0
        %5390 = vmatprep.subr.mxu0 0.0
        %5391 = vmatpush1.msra.mxu0 0.0
        %5392 = vmatprep.subr.mxu0 0.0
        %5393 = vmatpush1.msra.mxu0 0.0
        %5394 = vmatprep.subr.mxu0 0.0
        %5395 = vmatpush1.msra.mxu0 0.0
        %5396 = vmatprep.subr.mxu0 0.0
        %5397 = vmatpush1.msra.mxu0 0.0
        %5398 = vmatprep.subr.mxu0 0.0
        %5399 = vmatpush1.msra.mxu0 0.0
        %5400 = vmatprep.subr.mxu0 0.0
        %5401 = vmatpush1.msra.mxu0 0.0
        %5402 = vmatprep.mubr.f32.mxu0 0.0
        %5403 = vmatmul.mubr.f32.gmra.mrb[0].mxu0 %v5194
        %v5404 = vpop.f32.mrb[0].mxu0
        %v5405 = vadd.f32 %v5191, %v5404
        %v5406 = vpop.f32.mrb[0].mxu0
        %v5407 = vadd.f32 %v5191, %v5406
        %5408 = vdwg.mxu0
        %5409 = vmatprep.subr.mxu0 %v5153
        %5410 = vmatpush1.msra.mxu0 %v5152
        %5411 = vmatprep.subr.mxu0 %v5163
        %5412 = vmatpush1.msra.mxu0 %v5162
        %5413 = vmatprep.subr.mxu0 %v5173
        %5414 = vmatpush1.msra.mxu0 %v5172
        %5415 = vmatprep.subr.mxu0 %v5183
        %5416 = vmatpush1.msra.mxu0 %v5182
        %5417 = vmatprep.subr.mxu0 0.0
        %5418 = vmatpush1.msra.mxu0 0.0
        %5419 = vmatprep.subr.mxu0 0.0
        %5420 = vmatpush1.msra.mxu0 0.0
        %5421 = vmatprep.subr.mxu0 0.0
        %5422 = vmatpush1.msra.mxu0 0.0
        %5423 = vmatprep.subr.mxu0 0.0
        %5424 = vmatpush1.msra.mxu0 0.0
        %5425 = vmatprep.subr.mxu0 0.0
        %5426 = vmatpush1.msra.mxu0 0.0
        %5427 = vmatprep.subr.mxu0 0.0
        %5428 = vmatpush1.msra.mxu0 0.0
        %5429 = vmatprep.subr.mxu0 0.0
        %5430 = vmatpush1.msra.mxu0 0.0
        %5431 = vmatprep.subr.mxu0 0.0
        %5432 = vmatpush1.msra.mxu0 0.0
        %5433 = vmatprep.subr.mxu0 0.0
        %5434 = vmatpush1.msra.mxu0 0.0
        %5435 = vmatprep.subr.mxu0 0.0
        %5436 = vmatpush1.msra.mxu0 0.0
        %5437 = vmatprep.subr.mxu0 0.0
        %5438 = vmatpush1.msra.mxu0 0.0
        %5439 = vmatprep.subr.mxu0 0.0
        %5440 = vmatpush1.msra.mxu0 0.0
        %5441 = vmatprep.subr.mxu0 0.0
        %5442 = vmatpush1.msra.mxu0 0.0
        %5443 = vmatprep.subr.mxu0 0.0
        %5444 = vmatpush1.msra.mxu0 0.0
        %5445 = vmatprep.subr.mxu0 0.0
        %5446 = vmatpush1.msra.mxu0 0.0
        %5447 = vmatprep.subr.mxu0 0.0
        %5448 = vmatpush1.msra.mxu0 0.0
        %5449 = vmatprep.subr.mxu0 0.0
        %5450 = vmatpush1.msra.mxu0 0.0
        %5451 = vmatprep.subr.mxu0 0.0
        %5452 = vmatpush1.msra.mxu0 0.0
        %5453 = vmatprep.subr.mxu0 0.0
        %5454 = vmatpush1.msra.mxu0 0.0
        %5455 = vmatprep.subr.mxu0 0.0
        %5456 = vmatpush1.msra.mxu0 0.0
        %5457 = vmatprep.subr.mxu0 0.0
        %5458 = vmatpush1.msra.mxu0 0.0
        %5459 = vmatprep.subr.mxu0 0.0
        %5460 = vmatpush1.msra.mxu0 0.0
        %5461 = vmatprep.subr.mxu0 0.0
        %5462 = vmatpush1.msra.mxu0 0.0
        %5463 = vmatprep.subr.mxu0 0.0
        %5464 = vmatpush1.msra.mxu0 0.0
        %5465 = vmatprep.subr.mxu0 0.0
        %5466 = vmatpush1.msra.mxu0 0.0
        %5467 = vmatprep.subr.mxu0 0.0
        %5468 = vmatpush1.msra.mxu0 0.0
        %5469 = vmatprep.subr.mxu0 0.0
        %5470 = vmatpush1.msra.mxu0 0.0
        %5471 = vmatprep.subr.mxu0 0.0
        %5472 = vmatpush1.msra.mxu0 0.0
        %5473 = vmatprep.mubr.f32.mxu0 0.0
        %5474 = vmatmul.mubr.f32.gmra.mrb[0].mxu0 %v5194
        %v5475 = vpop.f32.mrb[0].mxu0
        %v5476 = vadd.f32 %v5191, %v5475
        %v5477 = vpop.f32.mrb[0].mxu0
        %v5478 = vadd.f32 %v5191, %v5477
        %5479 = vdwg.mxu0
        %5480 = vmatprep.subr.mxu0 %v5155
        %5481 = vmatpush1.msra.mxu0 %v5154
        %5482 = vmatprep.subr.mxu0 %v5165
        %5483 = vmatpush1.msra.mxu0 %v5164
        %5484 = vmatprep.subr.mxu0 %v5175
        %5485 = vmatpush1.msra.mxu0 %v5174
        %5486 = vmatprep.subr.mxu0 %v5185
        %5487 = vmatpush1.msra.mxu0 %v5184
        %5488 = vmatprep.subr.mxu0 0.0
        %5489 = vmatpush1.msra.mxu0 0.0
        %5490 = vmatprep.subr.mxu0 0.0
        %5491 = vmatpush1.msra.mxu0 0.0
        %5492 = vmatprep.subr.mxu0 0.0
        %5493 = vmatpush1.msra.mxu0 0.0
        %5494 = vmatprep.subr.mxu0 0.0
        %5495 = vmatpush1.msra.mxu0 0.0
        %5496 = vmatprep.subr.mxu0 0.0
        %5497 = vmatpush1.msra.mxu0 0.0
        %5498 = vmatprep.subr.mxu0 0.0
        %5499 = vmatpush1.msra.mxu0 0.0
        %5500 = vmatprep.subr.mxu0 0.0
        %5501 = vmatpush1.msra.mxu0 0.0
        %5502 = vmatprep.subr.mxu0 0.0
        %5503 = vmatpush1.msra.mxu0 0.0
        %5504 = vmatprep.subr.mxu0 0.0
        %5505 = vmatpush1.msra.mxu0 0.0
        %5506 = vmatprep.subr.mxu0 0.0
        %5507 = vmatpush1.msra.mxu0 0.0
        %5508 = vmatprep.subr.mxu0 0.0
        %5509 = vmatpush1.msra.mxu0 0.0
        %5510 = vmatprep.subr.mxu0 0.0
        %5511 = vmatpush1.msra.mxu0 0.0
        %5512 = vmatprep.subr.mxu0 0.0
        %5513 = vmatpush1.msra.mxu0 0.0
        %5514 = vmatprep.subr.mxu0 0.0
        %5515 = vmatpush1.msra.mxu0 0.0
        %5516 = vmatprep.subr.mxu0 0.0
        %5517 = vmatpush1.msra.mxu0 0.0
        %5518 = vmatprep.subr.mxu0 0.0
        %5519 = vmatpush1.msra.mxu0 0.0
        %5520 = vmatprep.subr.mxu0 0.0
        %5521 = vmatpush1.msra.mxu0 0.0
        %5522 = vmatprep.subr.mxu0 0.0
        %5523 = vmatpush1.msra.mxu0 0.0
        %5524 = vmatprep.subr.mxu0 0.0
        %5525 = vmatpush1.msra.mxu0 0.0
        %5526 = vmatprep.subr.mxu0 0.0
        %5527 = vmatpush1.msra.mxu0 0.0
        %5528 = vmatprep.subr.mxu0 0.0
        %5529 = vmatpush1.msra.mxu0 0.0
        %5530 = vmatprep.subr.mxu0 0.0
        %5531 = vmatpush1.msra.mxu0 0.0
        %5532 = vmatprep.subr.mxu0 0.0
        %5533 = vmatpush1.msra.mxu0 0.0
        %5534 = vmatprep.subr.mxu0 0.0
        %5535 = vmatpush1.msra.mxu0 0.0
        %5536 = vmatprep.subr.mxu0 0.0
        %5537 = vmatpush1.msra.mxu0 0.0
        %5538 = vmatprep.subr.mxu0 0.0
        %5539 = vmatpush1.msra.mxu0 0.0
        %5540 = vmatprep.subr.mxu0 0.0
        %5541 = vmatpush1.msra.mxu0 0.0
        %5542 = vmatprep.subr.mxu0 0.0
        %5543 = vmatpush1.msra.mxu0 0.0
        %5544 = vmatprep.mubr.f32.mxu0 0.0
        %5545 = vmatmul.mubr.f32.gmra.mrb[0].mxu0 %v5194
        %v5546 = vpop.f32.mrb[0].mxu0
        %v5547 = vadd.f32 %v5191, %v5546
        %v5548 = vpop.f32.mrb[0].mxu0
        %v5549 = vadd.f32 %v5191, %v5548
        %5550 = vdwg.mxu0
        %v5561 = vcombine.low %v5263, %v5265
        %v5562 = vcombine.low %v5334, %v5336
        %v5563 = vcombine.low %v5405, %v5407
        %v5564 = vcombine.low %v5476, %v5478
        %v5565 = vcombine.low %v5547, %v5549
        %5571 = vst [vmem:[%s685] sm:$0x77] %v5561
        %5572 = vst [vmem:[%s685 + $0x8] sm:$0x77] %v5562
        %5573 = vst [vmem:[%s685 + $0x10] sm:$0x77] %v5563
        %5574 = vst [vmem:[%s685 + $0x18] sm:$0x77] %v5564
        %vm5575 = vcmask 1042432
        %vm5576 = vcmask 30724
        %vm5577 = vmor %vm5576, %vm5575
        %5578 = vst.msk [vmem:[%s685 + $0x20] sm:$0x77] %vm5577, %v5565
        %p5579 = scmp.lt.s32.totalorder %s36, 1
        %s5580 = scalar_select %p5579, %s36, 1
        %s5581 = smul.addr %s5580, 10
        %s5582 = smul.addr %s5581, 4
        %s5583 = scalar_lea.vmem %s16, %s5582
        // Predicated region
        $region133: #{generator_forward.1} parent=83 // pred_check
          %p5584 = pneg %p395
        $region134: #{generator_forward.1} parent=83 // pred_check_branch
          %5586 = sbr.rel (%p5584) target = $region136
        $region135: #{generator_forward.1} parent=83 // pred_region
          _
        $region136: #{generator_forward.1} parent=83 // pred_fallthru
          _
      $region84: #{generator_forward.1} parent=5 // pred_fallthru
        _
      %p5587 = scmp.le.s32.totalorder 2, %s31
      // Predicated region
      $region137: #{generator_forward.1} parent=5 // pred_check
        %p5588 = pneg %p5587
      $region138: #{generator_forward.1} parent=5 // pred_check_branch
        %5590 = sbr.rel (%p5588) target = $region140
      $region139: #{generator_forward.1} parent=5 // pred_region
        %s5591 = ssub.s32 %s31, 2
        // Predicated region
        $region141: #{generator_forward.1} parent=139 // pred_check
          %p5592 = pneg %p401
        $region142: #{generator_forward.1} parent=139 // pred_check_branch
          %5594 = sbr.rel (%p5592) target = $region144
        $region143: #{generator_forward.1} parent=139 // pred_region
          %p5595 = scmp.lt.s32.totalorder %s37, 1
          %s5596 = scalar_select %p5595, %s37, 1
          %s5597 = smul.addr %s5596, 10
          %s5598 = smul.addr %s5597, 4
          %s5599 = scalar_lea.vmem %s16, %s5598
        $region144: #{generator_forward.1} parent=139 // pred_fallthru
          _
      $region140: #{generator_forward.1} parent=5 // pred_fallthru
        _
    $region6: #{generator_forward.1} parent=1 // loop_footer
      %s35 = sadd.s32 1, %s31
    $region7: #{generator_forward.1} parent=1 // loop_footer_branch
      %30 = sbr.rel target = $region3
    $region8: #{generator_forward.1} parent=1 // loop_exit
      _
    %5600 = vsyncpa [#allocation7], 1
    %s5601 = scalar_lea.sflag [#allocation7], 1
    %5602 = vsyncpa %s5601, 1
    %5603 = vsyncpa [#allocation9], 1
    %5604 = vsyncpa [#allocation12], 1
    %5605 = vsyncpa [#allocation15], 1
    %5606 = vsyncpa [#allocation18], 1
    %5607 = vsyncpa [#allocation21], 1
    %5608 = vsyncpa [#allocation24], 1

</llo_original>
